<compile_context>
chip_gen: v7x
topology: tpu7x:2x2x1
jax: 0.10.0
libtpu: 0.0.40
codegen_flags: <defaults>
</compile_context>

<pallas_src>
import functools

import jax
import jax.numpy as jnp
from jax.experimental import pallas as pl
from jax.experimental.pallas import tpu as pltpu

F32 = jnp.float32
BF16 = jnp.bfloat16
BN_EPS = 1e-5


def _round_up(x, m):
    return (x + m - 1) // m * m


# ----------------------------------------------------------------------------
# Pallas kernels
# ----------------------------------------------------------------------------
def _matmul_kernel(a_ref, b_ref, o_ref):
    o_ref[...] = jnp.dot(a_ref[...], b_ref[...],
                         preferred_element_type=jnp.float32)


def pl_matmul(a, b):
    """(M,K) @ (K,N) -> (M,N) f32.  bf16 MXU inputs, f32 accumulation,
    lane-padded K/N, M tiled and marked "parallel" (megacore)."""
    M, K = a.shape
    K2, N = b.shape
    assert K == K2
    Kp = _round_up(K, 128)
    Np = _round_up(N, 128)
    tm = min(512, _round_up(M, 8))
    Mp = _round_up(M, tm)
    a_p = jnp.pad(a, ((0, Mp - M), (0, Kp - K))).astype(BF16)
    b_p = jnp.pad(b, ((0, Kp - K), (0, Np - N))).astype(BF16)
    out = pl.pallas_call(
        _matmul_kernel,
        out_shape=jax.ShapeDtypeStruct((Mp, Np), F32),
        grid=(Mp // tm,),
        in_specs=[pl.BlockSpec((tm, Kp), lambda m: (m, 0)),
                  pl.BlockSpec((Kp, Np), lambda m: (0, 0))],
        out_specs=pl.BlockSpec((tm, Np), lambda m: (m, 0)),
        compiler_params=pltpu.CompilerParams(
            dimension_semantics=("parallel",)),
    )(a_p, b_p)
    return out[:M, :N]


def _dw_kernel(x_ref, w_ref, o_ref, *, KH, KW, dil, Ho, Wo, relu):
    # x_ref: (1, Hp, Wp, C) padded image; w_ref: (KH*KW, 1, C).
    x = x_ref[0]
    if relu:
        x = jnp.maximum(x, 0.0)          # fused ReLU on the input (pad is 0)
    C = x_ref.shape[-1]
    acc = jnp.zeros((Ho, Wo, C), F32)
    for kh in range(KH):
        for kw in range(KW):
            xs = x[kh * dil:kh * dil + Ho, kw * dil:kw * dil + Wo, :]
            acc = acc + xs * w_ref[kh * KW + kw]
    o_ref[0] = acc


def depthwise_conv(x, w_kkc, stride, dilation, pad, relu_input=False):
    """Depthwise conv (groups == channels).  x: (N,H,W,C) f32, w: (KH,KW,C).
    Stride applied by slicing the stride-1 output."""
    pt, pb, pleft, pright = pad
    xp = jnp.pad(x, ((0, 0), (pt, pb), (pleft, pright), (0, 0)))
    N, Hp, Wp, C = xp.shape
    KH, KW, _ = w_kkc.shape
    Ho1 = Hp - dilation * (KH - 1)
    Wo1 = Wp - dilation * (KW - 1)
    kern = functools.partial(_dw_kernel, KH=KH, KW=KW, dil=dilation,
                             Ho=Ho1, Wo=Wo1, relu=relu_input)
    y = pl.pallas_call(
        kern,
        out_shape=jax.ShapeDtypeStruct((N, Ho1, Wo1, C), F32),
        grid=(N,),
        in_specs=[pl.BlockSpec((1, Hp, Wp, C), lambda n: (n, 0, 0, 0)),
                  pl.BlockSpec((KH * KW, 1, C), lambda n: (0, 0, 0))],
        out_specs=pl.BlockSpec((1, Ho1, Wo1, C), lambda n: (n, 0, 0, 0)),
        compiler_params=pltpu.CompilerParams(
            dimension_semantics=("parallel",)),
    )(xp, w_kkc.reshape(KH * KW, 1, C))
    if stride != 1:
        y = y[:, ::stride, ::stride, :]
    return y


def _bn_kernel(x_ref, g_ref, b_ref, o_ref):
    x = x_ref[...]
    mean = jnp.mean(x, axis=0, keepdims=True)
    var = jnp.mean((x - mean) ** 2, axis=0, keepdims=True)
    o_ref[...] = (x - mean) * jax.lax.rsqrt(var + BN_EPS) * g_ref[...] + b_ref[...]


def _bn_res_kernel(x_ref, g_ref, b_ref, r_ref, o_ref):
    x = x_ref[...]
    mean = jnp.mean(x, axis=0, keepdims=True)
    var = jnp.mean((x - mean) ** 2, axis=0, keepdims=True)
    y = (x - mean) * jax.lax.rsqrt(var + BN_EPS) * g_ref[...] + b_ref[...]
    o_ref[...] = y + r_ref[...]


def pl_batchnorm(x_nhwc, gamma=None, beta=None, residual=None):
    """Training-mode BatchNorm2d (batch stats over N*H*W per channel), with an
    optional fused residual add (used for the block's final `x + x_skip`)."""
    N, H, W, C = x_nhwc.shape
    x2 = x_nhwc.reshape(N * H * W, C)
    g = (jnp.ones((C,), F32) if gamma is None else gamma).reshape(1, C)
    b = (jnp.zeros((C,), F32) if beta is None else beta).reshape(1, C)
    if residual is None:
        y = pl.pallas_call(
            _bn_kernel, out_shape=jax.ShapeDtypeStruct(x2.shape, F32))(x2, g, b)
    else:
        r2 = residual.reshape(N * H * W, C).astype(F32)
        y = pl.pallas_call(
            _bn_res_kernel,
            out_shape=jax.ShapeDtypeStruct(x2.shape, F32))(x2, g, b, r2)
    return y.reshape(N, H, W, C)


def _relu_kernel(x_ref, o_ref):
    o_ref[...] = jnp.maximum(x_ref[...], 0.0)


def pl_relu(x_nhwc):
    N, H, W, C = x_nhwc.shape
    x2 = x_nhwc.reshape(N * H * W, C)
    y = pl.pallas_call(
        _relu_kernel, out_shape=jax.ShapeDtypeStruct(x2.shape, F32))(x2)
    return y.reshape(N, H, W, C)


# ----------------------------------------------------------------------------
# Module pieces (Block_NAS and its candidate operations)
# ----------------------------------------------------------------------------
def pointwise(x, w_io):
    N, H, W, Cin = x.shape
    out = pl_matmul(x.reshape(N * H * W, Cin), w_io)
    return out.reshape(N, H, W, w_io.shape[1])


def apply_separable_conv2d(p, x, k, stride, dilation, relu_input):
    # fixed_padding -> depthwise -> BN(inplanes) -> pointwise (1x1)
    keff = k + (k - 1) * (dilation - 1)
    pad_total = keff - 1
    pb = pad_total // 2
    pe = pad_total - pb
    y = depthwise_conv(x, p['dw'], stride=stride, dilation=dilation,
                       pad=(pb, pe, pb, pe), relu_input=relu_input)
    y = pl_batchnorm(y, p['bng'], p['bnb'])
    y = pointwise(y, p['pw'])
    return y


def apply_sepconv(p, x, k, stride, padding):
    # SepConv: ReLU -> depthwise -> 1x1 -> BN(affine=False); ReLU fused into dw.
    y = depthwise_conv(x, p['dw'], stride=stride, dilation=1,
                       pad=(padding,) * 4, relu_input=True)
    y = pointwise(y, p['pw'])
    y = pl_batchnorm(y)                      # affine=False
    return y


def apply_op(code, p, x, stride, dilation):
    # The block's ReLU-before-op is fused into the op's depthwise input.
    if code == '00':
        return apply_separable_conv2d(p, x, 3, stride, dilation, relu_input=True)
    if code == '01':
        return apply_sepconv(p, x, 3, stride, 1)
    if code == '02':
        return apply_sepconv(p, x, 5, stride, 2)
    return pl_relu(x)                        # '03' Identity (block ReLU still applies)


def block_nas_forward(p, x_nchw, genotype, inplanes, planes, stride, dilation):
    """Block_NAS.forward with a fixed genotype (one-hot ChosenOperation)."""
    x = jnp.transpose(x_nchw, (0, 2, 3, 1)).astype(F32)   # NCHW -> NHWC

    # skip branch (uses the un-ReLU'd input)
    if planes != inplanes or stride != 1:
        s = x[:, ::stride, ::stride, :]
        s = pointwise(s, p['skip_w'])
        s = pl_batchnorm(s, *p['skip_bn'])
    else:
        s = x

    # relu -> SeparableConv2d(stride=1, dilation) -> BN   (relu fused into dw)
    h = apply_separable_conv2d(p['sep0'], x, 3, 1, dilation, relu_input=True)
    h = pl_batchnorm(h, *p['bn0'])
    # 2x (relu -> op(stride=1, dilation) -> BN)
    h = apply_op(genotype[0], p['op0'], h, 1, dilation)
    h = pl_batchnorm(h, *p['bn1'])
    h = apply_op(genotype[1], p['op1'], h, 1, dilation)
    h = pl_batchnorm(h, *p['bn2'])
    # relu -> op(stride, dilation=1) -> BN ; residual add fused into final BN
    h = apply_op(genotype[2], p['op2'], h, stride, 1)
    h = pl_batchnorm(h, *p['bn3'], residual=s)

    return jnp.transpose(h, (0, 3, 1, 2))                  # NHWC -> NCHW


# ----------------------------------------------------------------------------
# Deterministic parameter init
# ----------------------------------------------------------------------------
class _KeyGen:
    def __init__(self, seed):
        self._key = jax.random.PRNGKey(seed)

    def __call__(self):
        self._key, sub = jax.random.split(self._key)
        return sub


def _winit(kg, shape, fan_in):
    return (jax.random.normal(kg(), shape, dtype=F32)
            / jnp.sqrt(jnp.asarray(float(fan_in), F32))).astype(F32)


def _bn_params(c):
    return (jnp.ones((c,), F32), jnp.zeros((c,), F32))


def _init_sep2d(kg, cin, cout, k=3):
    return {'dw': _winit(kg, (k, k, cin), k * k),
            'bng': jnp.ones((cin,), F32), 'bnb': jnp.zeros((cin,), F32),
            'pw': _winit(kg, (cin, cout), cin)}


def _init_sepconv(kg, c, k):
    return {'dw': _winit(kg, (k, k, c), k * k), 'pw': _winit(kg, (c, c), c)}


def _init_op(kg, code, c):
    if code == '00':
        return _init_sep2d(kg, c, c, 3)
    if code == '01':
        return _init_sepconv(kg, c, 3)
    if code == '02':
        return _init_sepconv(kg, c, 5)
    return {}                                # '03' Identity


def init_block(seed, inplanes, planes, genotype, stride):
    kg = _KeyGen(seed)
    p = {'sep0': _init_sep2d(kg, inplanes, planes, 3),
         'bn0': _bn_params(planes),
         'op0': _init_op(kg, genotype[0], planes), 'bn1': _bn_params(planes),
         'op1': _init_op(kg, genotype[1], planes), 'bn2': _bn_params(planes),
         'op2': _init_op(kg, genotype[2], planes), 'bn3': _bn_params(planes)}
    if inplanes != planes or stride != 1:
        p['skip_w'] = _winit(kg, (inplanes, planes), inplanes)
        p['skip_bn'] = _bn_params(planes)
    return p


# ----------------------------------------------------------------------------
if __name__ == "__main__":
    # Block_NAS(inplanes=64, planes=128, reps=3, stride=2, dilation=2),
    # genotype exercising SepConv3x3, Identity, SepConv5x5 (+ SeparableConv2d
    # via the block's leading separable conv).
    INPLANES, PLANES, STRIDE, DILATION = 64, 128, 2, 2
    GENOTYPE = ['01', '03', '02']
    N, H, W = 2, 16, 16

    key = jax.random.PRNGKey(0)
    x = jax.random.uniform(key, (N, INPLANES, H, W), dtype=jnp.float32) * 2.0 - 1.0

    params = init_block(0, INPLANES, PLANES, GENOTYPE, STRIDE)

    fwd = jax.jit(lambda inp: block_nas_forward(
        params, inp, GENOTYPE, INPLANES, PLANES, STRIDE, DILATION))

    out = jax.block_until_ready(fwd(x))

    assert out.shape == (N, PLANES, H // STRIDE, W // STRIDE), out.shape
    assert bool(jnp.all(jnp.isfinite(out)))
    print("KERNEL_OK")
</pallas_src>

<mosaic_0001>
module attributes {stable_mosaic.version = 11 : i64} {
  func.func @_bn_kernel(%arg0: memref<512x64xf32, #tpu.memory_space<vmem>>, %arg1: memref<1x64xf32, #tpu.memory_space<vmem>>, %arg2: memref<1x64xf32, #tpu.memory_space<vmem>>, %arg3: memref<512x64xf32, #tpu.memory_space<vmem>>) attributes {dimension_semantics = [], scalar_prefetch = 0 : i64, scratch_operands = 0 : i64, tpu.core_type = #tpu.core_type<tc>} {
    %c0 = arith.constant 0 : index
    %c0_0 = arith.constant 0 : index
    %0 = vector.load %arg0[%c0, %c0_0] : memref<512x64xf32, #tpu.memory_space<vmem>>, vector<512x64xf32>
    %cst = arith.constant dense<0.000000e+00> : vector<64xf32>
    %1 = vector.multi_reduction <add>, %0, %cst [0] : vector<512x64xf32> to vector<64xf32>
    %2 = vector.shape_cast %1 : vector<64xf32> to vector<1x64xf32>
    %cst_1 = arith.constant 5.120000e+02 : f32
    %3 = vector.broadcast %cst_1 : f32 to vector<1x64xf32>
    %4 = arith.divf %2, %3 : vector<1x64xf32>
    %5 = vector.broadcast %4 : vector<1x64xf32> to vector<512x64xf32>
    %6 = arith.subf %0, %5 : vector<512x64xf32>
    %7 = arith.mulf %6, %6 : vector<512x64xf32>
    %cst_2 = arith.constant dense<0.000000e+00> : vector<64xf32>
    %8 = vector.multi_reduction <add>, %7, %cst_2 [0] : vector<512x64xf32> to vector<64xf32>
    %9 = vector.shape_cast %8 : vector<64xf32> to vector<1x64xf32>
    %cst_3 = arith.constant 5.120000e+02 : f32
    %10 = vector.broadcast %cst_3 : f32 to vector<1x64xf32>
    %11 = arith.divf %9, %10 : vector<1x64xf32>
    %12 = vector.broadcast %4 : vector<1x64xf32> to vector<512x64xf32>
    %13 = arith.subf %0, %12 : vector<512x64xf32>
    %cst_4 = arith.constant 9.99999974E-6 : f32
    %14 = vector.broadcast %cst_4 : f32 to vector<1x64xf32>
    %15 = arith.addf %11, %14 : vector<1x64xf32>
    %16 = math.rsqrt %15 : vector<1x64xf32>
    %17 = vector.broadcast %16 : vector<1x64xf32> to vector<512x64xf32>
    %18 = arith.mulf %13, %17 : vector<512x64xf32>
    %c0_5 = arith.constant 0 : index
    %c0_6 = arith.constant 0 : index
    %19 = vector.load %arg1[%c0_5, %c0_6] : memref<1x64xf32, #tpu.memory_space<vmem>>, vector<1x64xf32>
    %20 = vector.broadcast %19 : vector<1x64xf32> to vector<512x64xf32>
    %21 = arith.mulf %18, %20 : vector<512x64xf32>
    %c0_7 = arith.constant 0 : index
    %c0_8 = arith.constant 0 : index
    %22 = vector.load %arg2[%c0_7, %c0_8] : memref<1x64xf32, #tpu.memory_space<vmem>>, vector<1x64xf32>
    %23 = vector.broadcast %22 : vector<1x64xf32> to vector<512x64xf32>
    %24 = arith.addf %21, %23 : vector<512x64xf32>
    %c0_9 = arith.constant 0 : index
    %c0_10 = arith.constant 0 : index
    %25 = vector.load %arg3[%c0_9, %c0_10] : memref<512x64xf32, #tpu.memory_space<vmem>>, vector<512x64xf32>
    tpu.vector_store %arg3[%c0_9, %c0_10], %24 {strides = array<i32>} : memref<512x64xf32, #tpu.memory_space<vmem>>, vector<512x64xf32>,
    return
  }
}

module attributes {stable_mosaic.version = 11 : i64} {
  func.func @_dw_kernel(%arg0: i32, %arg1: memref<1x20x20x64xf32, #tpu.memory_space<vmem>>, %arg2: memref<9x1x64xf32, #tpu.memory_space<vmem>>, %arg3: memref<1x16x16x64xf32, #tpu.memory_space<vmem>>) attributes {dimension_semantics = [#tpu.dimension_semantics<parallel>], iteration_bounds = array<i64: 2>, scalar_prefetch = 0 : i64, scratch_operands = 0 : i64, tpu.core_type = #tpu.core_type<tc>, window_params = [{transform_indices = @transform_0, window_bounds = array<i64: 1, 20, 20, 64>}, {pipeline_mode = #tpu.pipeline_mode<synchronous>, transform_indices = @transform_1, window_bounds = array<i64: 9, 1, 64>}, {transform_indices = @transform_2, window_bounds = array<i64: 1, 16, 16, 64>}]} {
    %c0 = arith.constant 0 : index
    %c0_0 = arith.constant 0 : index
    %c0_1 = arith.constant 0 : index
    %c0_2 = arith.constant 0 : index
    %0 = vector.load %arg1[%c0, %c0_0, %c0_1, %c0_2] : memref<1x20x20x64xf32, #tpu.memory_space<vmem>>, vector<1x20x20x64xf32>
    %1 = vector.shape_cast %0 : vector<1x20x20x64xf32> to vector<20x20x64xf32>
    %cst = arith.constant 0.000000e+00 : f32
    %2 = vector.broadcast %cst : f32 to vector<20x20x64xf32>
    %3 = arith.maximumf %1, %2 : vector<20x20x64xf32>
    %cst_3 = arith.constant 0.000000e+00 : f32
    %4 = vector.broadcast %cst_3 : f32 to vector<16x16x64xf32>
    %5 = vector.extract_strided_slice %3 {offsets = [0, 0, 0], sizes = [16, 16, 64], strides = [1, 1, 1]} : vector<20x20x64xf32> to vector<16x16x64xf32>
    %c0_4 = arith.constant 0 : index
    %c0_5 = arith.constant 0 : index
    %c0_6 = arith.constant 0 : index
    %6 = vector.load %arg2[%c0_4, %c0_5, %c0_6] : memref<9x1x64xf32, #tpu.memory_space<vmem>>, vector<1x1x64xf32>
    %7 = vector.shape_cast %6 : vector<1x1x64xf32> to vector<1x64xf32>
    %8 = vector.shape_cast %7 : vector<1x64xf32> to vector<1x1x64xf32>
    %9 = vector.broadcast %8 : vector<1x1x64xf32> to vector<16x16x64xf32>
    %10 = arith.mulf %5, %9 : vector<16x16x64xf32>
    %11 = arith.addf %4, %10 : vector<16x16x64xf32>
    %12 = vector.extract_strided_slice %3 {offsets = [0, 2, 0], sizes = [16, 16, 64], strides = [1, 1, 1]} : vector<20x20x64xf32> to vector<16x16x64xf32>
    %c1 = arith.constant 1 : index
    %c0_7 = arith.constant 0 : index
    %c0_8 = arith.constant 0 : index
    %13 = vector.load %arg2[%c1, %c0_7, %c0_8] : memref<9x1x64xf32, #tpu.memory_space<vmem>>, vector<1x1x64xf32>
    %14 = vector.shape_cast %13 : vector<1x1x64xf32> to vector<1x64xf32>
    %15 = vector.shape_cast %14 : vector<1x64xf32> to vector<1x1x64xf32>
    %16 = vector.broadcast %15 : vector<1x1x64xf32> to vector<16x16x64xf32>
    %17 = arith.mulf %12, %16 : vector<16x16x64xf32>
    %18 = arith.addf %11, %17 : vector<16x16x64xf32>
    %19 = vector.extract_strided_slice %3 {offsets = [0, 4, 0], sizes = [16, 16, 64], strides = [1, 1, 1]} : vector<20x20x64xf32> to vector<16x16x64xf32>
    %c2 = arith.constant 2 : index
    %c0_9 = arith.constant 0 : index
    %c0_10 = arith.constant 0 : index
    %20 = vector.load %arg2[%c2, %c0_9, %c0_10] : memref<9x1x64xf32, #tpu.memory_space<vmem>>, vector<1x1x64xf32>
    %21 = vector.shape_cast %20 : vector<1x1x64xf32> to vector<1x64xf32>
    %22 = vector.shape_cast %21 : vector<1x64xf32> to vector<1x1x64xf32>
    %23 = vector.broadcast %22 : vector<1x1x64xf32> to vector<16x16x64xf32>
    %24 = arith.mulf %19, %23 : vector<16x16x64xf32>
    %25 = arith.addf %18, %24 : vector<16x16x64xf32>
    %26 = vector.extract_strided_slice %3 {offsets = [2, 0, 0], sizes = [16, 16, 64], strides = [1, 1, 1]} : vector<20x20x64xf32> to vector<16x16x64xf32>
    %c3 = arith.constant 3 : index
    %c0_11 = arith.constant 0 : index
    %c0_12 = arith.constant 0 : index
    %27 = vector.load %arg2[%c3, %c0_11, %c0_12] : memref<9x1x64xf32, #tpu.memory_space<vmem>>, vector<1x1x64xf32>
    %28 = vector.shape_cast %27 : vector<1x1x64xf32> to vector<1x64xf32>
    %29 = vector.shape_cast %28 : vector<1x64xf32> to vector<1x1x64xf32>
    %30 = vector.broadcast %29 : vector<1x1x64xf32> to vector<16x16x64xf32>
    %31 = arith.mulf %26, %30 : vector<16x16x64xf32>
    %32 = arith.addf %25, %31 : vector<16x16x64xf32>
    %33 = vector.extract_strided_slice %3 {offsets = [2, 2, 0], sizes = [16, 16, 64], strides = [1, 1, 1]} : vector<20x20x64xf32> to vector<16x16x64xf32>
    %c4 = arith.constant 4 : index
    %c0_13 = arith.constant 0 : index
    %c0_14 = arith.constant 0 : index
    %34 = vector.load %arg2[%c4, %c0_13, %c0_14] : memref<9x1x64xf32, #tpu.memory_space<vmem>>, vector<1x1x64xf32>
    %35 = vector.shape_cast %34 : vector<1x1x64xf32> to vector<1x64xf32>
    %36 = vector.shape_cast %35 : vector<1x64xf32> to vector<1x1x64xf32>
    %37 = vector.broadcast %36 : vector<1x1x64xf32> to vector<16x16x64xf32>
    %38 = arith.mulf %33, %37 : vector<16x16x64xf32>
    %39 = arith.addf %32, %38 : vector<16x16x64xf32>
    %40 = vector.extract_strided_slice %3 {offsets = [2, 4, 0], sizes = [16, 16, 64], strides = [1, 1, 1]} : vector<20x20x64xf32> to vector<16x16x64xf32>
    %c5 = arith.constant 5 : index
    %c0_15 = arith.constant 0 : index
    %c0_16 = arith.constant 0 : index
    %41 = vector.load %arg2[%c5, %c0_15, %c0_16] : memref<9x1x64xf32, #tpu.memory_space<vmem>>, vector<1x1x64xf32>
    %42 = vector.shape_cast %41 : vector<1x1x64xf32> to vector<1x64xf32>
    %43 = vector.shape_cast %42 : vector<1x64xf32> to vector<1x1x64xf32>
    %44 = vector.broadcast %43 : vector<1x1x64xf32> to vector<16x16x64xf32>
    %45 = arith.mulf %40, %44 : vector<16x16x64xf32>
    %46 = arith.addf %39, %45 : vector<16x16x64xf32>
    %47 = vector.extract_strided_slice %3 {offsets = [4, 0, 0], sizes = [16, 16, 64], strides = [1, 1, 1]} : vector<20x20x64xf32> to vector<16x16x64xf32>
    %c6 = arith.constant 6 : index
    %c0_17 = arith.constant 0 : index
    %c0_18 = arith.constant 0 : index
    %48 = vector.load %arg2[%c6, %c0_17, %c0_18] : memref<9x1x64xf32, #tpu.memory_space<vmem>>, vector<1x1x64xf32>
    %49 = vector.shape_cast %48 : vector<1x1x64xf32> to vector<1x64xf32>
    %50 = vector.shape_cast %49 : vector<1x64xf32> to vector<1x1x64xf32>
    %51 = vector.broadcast %50 : vector<1x1x64xf32> to vector<16x16x64xf32>
    %52 = arith.mulf %47, %51 : vector<16x16x64xf32>
    %53 = arith.addf %46, %52 : vector<16x16x64xf32>
    %54 = vector.extract_strided_slice %3 {offsets = [4, 2, 0], sizes = [16, 16, 64], strides = [1, 1, 1]} : vector<20x20x64xf32> to vector<16x16x64xf32>
    %c7 = arith.constant 7 : index
    %c0_19 = arith.constant 0 : index
    %c0_20 = arith.constant 0 : index
    %55 = vector.load %arg2[%c7, %c0_19, %c0_20] : memref<9x1x64xf32, #tpu.memory_space<vmem>>, vector<1x1x64xf32>
    %56 = vector.shape_cast %55 : vector<1x1x64xf32> to vector<1x64xf32>
    %57 = vector.shape_cast %56 : vector<1x64xf32> to vector<1x1x64xf32>
    %58 = vector.broadcast %57 : vector<1x1x64xf32> to vector<16x16x64xf32>
    %59 = arith.mulf %54, %58 : vector<16x16x64xf32>
    %60 = arith.addf %53, %59 : vector<16x16x64xf32>
    %61 = vector.extract_strided_slice %3 {offsets = [4, 4, 0], sizes = [16, 16, 64], strides = [1, 1, 1]} : vector<20x20x64xf32> to vector<16x16x64xf32>
    %c8 = arith.constant 8 : index
    %c0_21 = arith.constant 0 : index
    %c0_22 = arith.constant 0 : index
    %62 = vector.load %arg2[%c8, %c0_21, %c0_22] : memref<9x1x64xf32, #tpu.memory_space<vmem>>, vector<1x1x64xf32>
    %63 = vector.shape_cast %62 : vector<1x1x64xf32> to vector<1x64xf32>
    %64 = vector.shape_cast %63 : vector<1x64xf32> to vector<1x1x64xf32>
    %65 = vector.broadcast %64 : vector<1x1x64xf32> to vector<16x16x64xf32>
    %66 = arith.mulf %61, %65 : vector<16x16x64xf32>
    %67 = arith.addf %60, %66 : vector<16x16x64xf32>
    %c0_23 = arith.constant 0 : index
    %c0_24 = arith.constant 0 : index
    %c0_25 = arith.constant 0 : index
    %c0_26 = arith.constant 0 : index
    %68 = vector.load %arg3[%c0_23, %c0_24, %c0_25, %c0_26] : memref<1x16x16x64xf32, #tpu.memory_space<vmem>>, vector<1x16x16x64xf32>
    %69 = vector.shape_cast %68 : vector<1x16x16x64xf32> to vector<16x16x64xf32>
    %70 = vector.shape_cast %67 : vector<16x16x64xf32> to vector<1x16x16x64xf32>
    tpu.vector_store %arg3[%c0_23, %c0_24, %c0_25, %c0_26], %70 {strides = array<i32>} : memref<1x16x16x64xf32, #tpu.memory_space<vmem>>, vector<1x16x16x64xf32>,
    return
  }
  func.func @transform_0(%arg0: i32) -> (i32, i32, i32, i32) {
    %c0_i32 = arith.constant 0 : i32
    %c0_i32_0 = arith.constant 0 : i32
    %c0_i32_1 = arith.constant 0 : i32
    %c0_i32_2 = arith.constant 0 : i32
    return %arg0, %c0_i32, %c0_i32_0, %c0_i32_1 : i32, i32, i32, i32
  }
  func.func @transform_1(%arg0: i32) -> (i32, i32, i32) {
    %c0_i32 = arith.constant 0 : i32
    %c0_i32_0 = arith.constant 0 : i32
    %c0_i32_1 = arith.constant 0 : i32
    %c0_i32_2 = arith.constant 0 : i32
    return %c0_i32, %c0_i32_0, %c0_i32_1 : i32, i32, i32
  }
  func.func @transform_2(%arg0: i32) -> (i32, i32, i32, i32) {
    %c0_i32 = arith.constant 0 : i32
    %c0_i32_0 = arith.constant 0 : i32
    %c0_i32_1 = arith.constant 0 : i32
    %c0_i32_2 = arith.constant 0 : i32
    return %arg0, %c0_i32, %c0_i32_0, %c0_i32_1 : i32, i32, i32, i32
  }
}

module attributes {stable_mosaic.version = 11 : i64} {
  func.func @_matmul_kernel(%arg0: i32, %arg1: memref<512x128xbf16, #tpu.memory_space<vmem>>, %arg2: memref<128x128xbf16, #tpu.memory_space<vmem>>, %arg3: memref<512x128xf32, #tpu.memory_space<vmem>>) attributes {dimension_semantics = [#tpu.dimension_semantics<parallel>], iteration_bounds = array<i64: 1>, scalar_prefetch = 0 : i64, scratch_operands = 0 : i64, tpu.core_type = #tpu.core_type<tc>, window_params = [{transform_indices = @transform_0, window_bounds = array<i64: 512, 128>}, {pipeline_mode = #tpu.pipeline_mode<synchronous>, transform_indices = @transform_1, window_bounds = array<i64: 128, 128>}, {transform_indices = @transform_2, window_bounds = array<i64: 512, 128>}]} {
    %c0 = arith.constant 0 : index
    %c0_0 = arith.constant 0 : index
    %0 = vector.load %arg1[%c0, %c0_0] : memref<512x128xbf16, #tpu.memory_space<vmem>>, vector<512x128xbf16>
    %c0_1 = arith.constant 0 : index
    %c0_2 = arith.constant 0 : index
    %1 = vector.load %arg2[%c0_1, %c0_2] : memref<128x128xbf16, #tpu.memory_space<vmem>>, vector<128x128xbf16>
    %cst = arith.constant dense<0.000000e+00> : vector<512x128xf32>
    %2 = tpu.matmul %0, %1, %cst {dimension_numbers = #tpu.dot_dimension_numbers<[1], [0], [0], [1], [0, 0, 1, 1], [], []>} : vector<512x128xbf16>, vector<128x128xbf16>, vector<512x128xf32> -> vector<512x128xf32>
    %c0_3 = arith.constant 0 : index
    %c0_4 = arith.constant 0 : index
    %3 = vector.load %arg3[%c0_3, %c0_4] : memref<512x128xf32, #tpu.memory_space<vmem>>, vector<512x128xf32>
    tpu.vector_store %arg3[%c0_3, %c0_4], %2 {strides = array<i32>} : memref<512x128xf32, #tpu.memory_space<vmem>>, vector<512x128xf32>,
    return
  }
  func.func @transform_0(%arg0: i32) -> (i32, i32) {
    %c0_i32 = arith.constant 0 : i32
    %c0_i32_0 = arith.constant 0 : i32
    return %arg0, %c0_i32 : i32, i32
  }
  func.func @transform_1(%arg0: i32) -> (i32, i32) {
    %c0_i32 = arith.constant 0 : i32
    %c0_i32_0 = arith.constant 0 : i32
    %c0_i32_1 = arith.constant 0 : i32
    return %c0_i32, %c0_i32_0 : i32, i32
  }
  func.func @transform_2(%arg0: i32) -> (i32, i32) {
    %c0_i32 = arith.constant 0 : i32
    %c0_i32_0 = arith.constant 0 : i32
    return %arg0, %c0_i32 : i32, i32
  }
}

module attributes {stable_mosaic.version = 11 : i64} {
  func.func @_bn_kernel(%arg0: memref<512x128xf32, #tpu.memory_space<vmem>>, %arg1: memref<1x128xf32, #tpu.memory_space<vmem>>, %arg2: memref<1x128xf32, #tpu.memory_space<vmem>>, %arg3: memref<512x128xf32, #tpu.memory_space<vmem>>) attributes {dimension_semantics = [], scalar_prefetch = 0 : i64, scratch_operands = 0 : i64, tpu.core_type = #tpu.core_type<tc>} {
    %c0 = arith.constant 0 : index
    %c0_0 = arith.constant 0 : index
    %0 = vector.load %arg0[%c0, %c0_0] : memref<512x128xf32, #tpu.memory_space<vmem>>, vector<512x128xf32>
    %cst = arith.constant dense<0.000000e+00> : vector<128xf32>
    %1 = vector.multi_reduction <add>, %0, %cst [0] : vector<512x128xf32> to vector<128xf32>
    %2 = vector.shape_cast %1 : vector<128xf32> to vector<1x128xf32>
    %cst_1 = arith.constant 5.120000e+02 : f32
    %3 = vector.broadcast %cst_1 : f32 to vector<1x128xf32>
    %4 = arith.divf %2, %3 : vector<1x128xf32>
    %5 = vector.broadcast %4 : vector<1x128xf32> to vector<512x128xf32>
    %6 = arith.subf %0, %5 : vector<512x128xf32>
    %7 = arith.mulf %6, %6 : vector<512x128xf32>
    %cst_2 = arith.constant dense<0.000000e+00> : vector<128xf32>
    %8 = vector.multi_reduction <add>, %7, %cst_2 [0] : vector<512x128xf32> to vector<128xf32>
    %9 = vector.shape_cast %8 : vector<128xf32> to vector<1x128xf32>
    %cst_3 = arith.constant 5.120000e+02 : f32
    %10 = vector.broadcast %cst_3 : f32 to vector<1x128xf32>
    %11 = arith.divf %9, %10 : vector<1x128xf32>
    %12 = vector.broadcast %4 : vector<1x128xf32> to vector<512x128xf32>
    %13 = arith.subf %0, %12 : vector<512x128xf32>
    %cst_4 = arith.constant 9.99999974E-6 : f32
    %14 = vector.broadcast %cst_4 : f32 to vector<1x128xf32>
    %15 = arith.addf %11, %14 : vector<1x128xf32>
    %16 = math.rsqrt %15 : vector<1x128xf32>
    %17 = vector.broadcast %16 : vector<1x128xf32> to vector<512x128xf32>
    %18 = arith.mulf %13, %17 : vector<512x128xf32>
    %c0_5 = arith.constant 0 : index
    %c0_6 = arith.constant 0 : index
    %19 = vector.load %arg1[%c0_5, %c0_6] : memref<1x128xf32, #tpu.memory_space<vmem>>, vector<1x128xf32>
    %20 = vector.broadcast %19 : vector<1x128xf32> to vector<512x128xf32>
    %21 = arith.mulf %18, %20 : vector<512x128xf32>
    %c0_7 = arith.constant 0 : index
    %c0_8 = arith.constant 0 : index
    %22 = vector.load %arg2[%c0_7, %c0_8] : memref<1x128xf32, #tpu.memory_space<vmem>>, vector<1x128xf32>
    %23 = vector.broadcast %22 : vector<1x128xf32> to vector<512x128xf32>
    %24 = arith.addf %21, %23 : vector<512x128xf32>
    %c0_9 = arith.constant 0 : index
    %c0_10 = arith.constant 0 : index
    %25 = vector.load %arg3[%c0_9, %c0_10] : memref<512x128xf32, #tpu.memory_space<vmem>>, vector<512x128xf32>
    tpu.vector_store %arg3[%c0_9, %c0_10], %24 {strides = array<i32>} : memref<512x128xf32, #tpu.memory_space<vmem>>, vector<512x128xf32>,
    return
  }
}

module attributes {stable_mosaic.version = 11 : i64} {
  func.func @_dw_kernel(%arg0: i32, %arg1: memref<1x18x18x128xf32, #tpu.memory_space<vmem>>, %arg2: memref<9x1x128xf32, #tpu.memory_space<vmem>>, %arg3: memref<1x16x16x128xf32, #tpu.memory_space<vmem>>) attributes {dimension_semantics = [#tpu.dimension_semantics<parallel>], iteration_bounds = array<i64: 2>, scalar_prefetch = 0 : i64, scratch_operands = 0 : i64, tpu.core_type = #tpu.core_type<tc>, window_params = [{transform_indices = @transform_0, window_bounds = array<i64: 1, 18, 18, 128>}, {pipeline_mode = #tpu.pipeline_mode<synchronous>, transform_indices = @transform_1, window_bounds = array<i64: 9, 1, 128>}, {transform_indices = @transform_2, window_bounds = array<i64: 1, 16, 16, 128>}]} {
    %c0 = arith.constant 0 : index
    %c0_0 = arith.constant 0 : index
    %c0_1 = arith.constant 0 : index
    %c0_2 = arith.constant 0 : index
    %0 = vector.load %arg1[%c0, %c0_0, %c0_1, %c0_2] : memref<1x18x18x128xf32, #tpu.memory_space<vmem>>, vector<1x18x18x128xf32>
    %1 = vector.shape_cast %0 : vector<1x18x18x128xf32> to vector<18x18x128xf32>
    %cst = arith.constant 0.000000e+00 : f32
    %2 = vector.broadcast %cst : f32 to vector<18x18x128xf32>
    %3 = arith.maximumf %1, %2 : vector<18x18x128xf32>
    %cst_3 = arith.constant 0.000000e+00 : f32
    %4 = vector.broadcast %cst_3 : f32 to vector<16x16x128xf32>
    %5 = vector.extract_strided_slice %3 {offsets = [0, 0, 0], sizes = [16, 16, 128], strides = [1, 1, 1]} : vector<18x18x128xf32> to vector<16x16x128xf32>
    %c0_4 = arith.constant 0 : index
    %c0_5 = arith.constant 0 : index
    %c0_6 = arith.constant 0 : index
    %6 = vector.load %arg2[%c0_4, %c0_5, %c0_6] : memref<9x1x128xf32, #tpu.memory_space<vmem>>, vector<1x1x128xf32>
    %7 = vector.shape_cast %6 : vector<1x1x128xf32> to vector<1x128xf32>
    %8 = vector.shape_cast %7 : vector<1x128xf32> to vector<1x1x128xf32>
    %9 = vector.broadcast %8 : vector<1x1x128xf32> to vector<16x16x128xf32>
    %10 = arith.mulf %5, %9 : vector<16x16x128xf32>
    %11 = arith.addf %4, %10 : vector<16x16x128xf32>
    %12 = vector.extract_strided_slice %3 {offsets = [0, 1, 0], sizes = [16, 16, 128], strides = [1, 1, 1]} : vector<18x18x128xf32> to vector<16x16x128xf32>
    %c1 = arith.constant 1 : index
    %c0_7 = arith.constant 0 : index
    %c0_8 = arith.constant 0 : index
    %13 = vector.load %arg2[%c1, %c0_7, %c0_8] : memref<9x1x128xf32, #tpu.memory_space<vmem>>, vector<1x1x128xf32>
    %14 = vector.shape_cast %13 : vector<1x1x128xf32> to vector<1x128xf32>
    %15 = vector.shape_cast %14 : vector<1x128xf32> to vector<1x1x128xf32>
    %16 = vector.broadcast %15 : vector<1x1x128xf32> to vector<16x16x128xf32>
    %17 = arith.mulf %12, %16 : vector<16x16x128xf32>
    %18 = arith.addf %11, %17 : vector<16x16x128xf32>
    %19 = vector.extract_strided_slice %3 {offsets = [0, 2, 0], sizes = [16, 16, 128], strides = [1, 1, 1]} : vector<18x18x128xf32> to vector<16x16x128xf32>
    %c2 = arith.constant 2 : index
    %c0_9 = arith.constant 0 : index
    %c0_10 = arith.constant 0 : index
    %20 = vector.load %arg2[%c2, %c0_9, %c0_10] : memref<9x1x128xf32, #tpu.memory_space<vmem>>, vector<1x1x128xf32>
    %21 = vector.shape_cast %20 : vector<1x1x128xf32> to vector<1x128xf32>
    %22 = vector.shape_cast %21 : vector<1x128xf32> to vector<1x1x128xf32>
    %23 = vector.broadcast %22 : vector<1x1x128xf32> to vector<16x16x128xf32>
    %24 = arith.mulf %19, %23 : vector<16x16x128xf32>
    %25 = arith.addf %18, %24 : vector<16x16x128xf32>
    %26 = vector.extract_strided_slice %3 {offsets = [1, 0, 0], sizes = [16, 16, 128], strides = [1, 1, 1]} : vector<18x18x128xf32> to vector<16x16x128xf32>
    %c3 = arith.constant 3 : index
    %c0_11 = arith.constant 0 : index
    %c0_12 = arith.constant 0 : index
    %27 = vector.load %arg2[%c3, %c0_11, %c0_12] : memref<9x1x128xf32, #tpu.memory_space<vmem>>, vector<1x1x128xf32>
    %28 = vector.shape_cast %27 : vector<1x1x128xf32> to vector<1x128xf32>
    %29 = vector.shape_cast %28 : vector<1x128xf32> to vector<1x1x128xf32>
    %30 = vector.broadcast %29 : vector<1x1x128xf32> to vector<16x16x128xf32>
    %31 = arith.mulf %26, %30 : vector<16x16x128xf32>
    %32 = arith.addf %25, %31 : vector<16x16x128xf32>
    %33 = vector.extract_strided_slice %3 {offsets = [1, 1, 0], sizes = [16, 16, 128], strides = [1, 1, 1]} : vector<18x18x128xf32> to vector<16x16x128xf32>
    %c4 = arith.constant 4 : index
    %c0_13 = arith.constant 0 : index
    %c0_14 = arith.constant 0 : index
    %34 = vector.load %arg2[%c4, %c0_13, %c0_14] : memref<9x1x128xf32, #tpu.memory_space<vmem>>, vector<1x1x128xf32>
    %35 = vector.shape_cast %34 : vector<1x1x128xf32> to vector<1x128xf32>
    %36 = vector.shape_cast %35 : vector<1x128xf32> to vector<1x1x128xf32>
    %37 = vector.broadcast %36 : vector<1x1x128xf32> to vector<16x16x128xf32>
    %38 = arith.mulf %33, %37 : vector<16x16x128xf32>
    %39 = arith.addf %32, %38 : vector<16x16x128xf32>
    %40 = vector.extract_strided_slice %3 {offsets = [1, 2, 0], sizes = [16, 16, 128], strides = [1, 1, 1]} : vector<18x18x128xf32> to vector<16x16x128xf32>
    %c5 = arith.constant 5 : index
    %c0_15 = arith.constant 0 : index
    %c0_16 = arith.constant 0 : index
    %41 = vector.load %arg2[%c5, %c0_15, %c0_16] : memref<9x1x128xf32, #tpu.memory_space<vmem>>, vector<1x1x128xf32>
    %42 = vector.shape_cast %41 : vector<1x1x128xf32> to vector<1x128xf32>
    %43 = vector.shape_cast %42 : vector<1x128xf32> to vector<1x1x128xf32>
    %44 = vector.broadcast %43 : vector<1x1x128xf32> to vector<16x16x128xf32>
    %45 = arith.mulf %40, %44 : vector<16x16x128xf32>
    %46 = arith.addf %39, %45 : vector<16x16x128xf32>
    %47 = vector.extract_strided_slice %3 {offsets = [2, 0, 0], sizes = [16, 16, 128], strides = [1, 1, 1]} : vector<18x18x128xf32> to vector<16x16x128xf32>
    %c6 = arith.constant 6 : index
    %c0_17 = arith.constant 0 : index
    %c0_18 = arith.constant 0 : index
    %48 = vector.load %arg2[%c6, %c0_17, %c0_18] : memref<9x1x128xf32, #tpu.memory_space<vmem>>, vector<1x1x128xf32>
    %49 = vector.shape_cast %48 : vector<1x1x128xf32> to vector<1x128xf32>
    %50 = vector.shape_cast %49 : vector<1x128xf32> to vector<1x1x128xf32>
    %51 = vector.broadcast %50 : vector<1x1x128xf32> to vector<16x16x128xf32>
    %52 = arith.mulf %47, %51 : vector<16x16x128xf32>
    %53 = arith.addf %46, %52 : vector<16x16x128xf32>
    %54 = vector.extract_strided_slice %3 {offsets = [2, 1, 0], sizes = [16, 16, 128], strides = [1, 1, 1]} : vector<18x18x128xf32> to vector<16x16x128xf32>
    %c7 = arith.constant 7 : index
    %c0_19 = arith.constant 0 : index
    %c0_20 = arith.constant 0 : index
    %55 = vector.load %arg2[%c7, %c0_19, %c0_20] : memref<9x1x128xf32, #tpu.memory_space<vmem>>, vector<1x1x128xf32>
    %56 = vector.shape_cast %55 : vector<1x1x128xf32> to vector<1x128xf32>
    %57 = vector.shape_cast %56 : vector<1x128xf32> to vector<1x1x128xf32>
    %58 = vector.broadcast %57 : vector<1x1x128xf32> to vector<16x16x128xf32>
    %59 = arith.mulf %54, %58 : vector<16x16x128xf32>
    %60 = arith.addf %53, %59 : vector<16x16x128xf32>
    %61 = vector.extract_strided_slice %3 {offsets = [2, 2, 0], sizes = [16, 16, 128], strides = [1, 1, 1]} : vector<18x18x128xf32> to vector<16x16x128xf32>
    %c8 = arith.constant 8 : index
    %c0_21 = arith.constant 0 : index
    %c0_22 = arith.constant 0 : index
    %62 = vector.load %arg2[%c8, %c0_21, %c0_22] : memref<9x1x128xf32, #tpu.memory_space<vmem>>, vector<1x1x128xf32>
    %63 = vector.shape_cast %62 : vector<1x1x128xf32> to vector<1x128xf32>
    %64 = vector.shape_cast %63 : vector<1x128xf32> to vector<1x1x128xf32>
    %65 = vector.broadcast %64 : vector<1x1x128xf32> to vector<16x16x128xf32>
    %66 = arith.mulf %61, %65 : vector<16x16x128xf32>
    %67 = arith.addf %60, %66 : vector<16x16x128xf32>
    %c0_23 = arith.constant 0 : index
    %c0_24 = arith.constant 0 : index
    %c0_25 = arith.constant 0 : index
    %c0_26 = arith.constant 0 : index
    %68 = vector.load %arg3[%c0_23, %c0_24, %c0_25, %c0_26] : memref<1x16x16x128xf32, #tpu.memory_space<vmem>>, vector<1x16x16x128xf32>
    %69 = vector.shape_cast %68 : vector<1x16x16x128xf32> to vector<16x16x128xf32>
    %70 = vector.shape_cast %67 : vector<16x16x128xf32> to vector<1x16x16x128xf32>
    tpu.vector_store %arg3[%c0_23, %c0_24, %c0_25, %c0_26], %70 {strides = array<i32>} : memref<1x16x16x128xf32, #tpu.memory_space<vmem>>, vector<1x16x16x128xf32>,
    return
  }
  func.func @transform_0(%arg0: i32) -> (i32, i32, i32, i32) {
    %c0_i32 = arith.constant 0 : i32
    %c0_i32_0 = arith.constant 0 : i32
    %c0_i32_1 = arith.constant 0 : i32
    %c0_i32_2 = arith.constant 0 : i32
    return %arg0, %c0_i32, %c0_i32_0, %c0_i32_1 : i32, i32, i32, i32
  }
  func.func @transform_1(%arg0: i32) -> (i32, i32, i32) {
    %c0_i32 = arith.constant 0 : i32
    %c0_i32_0 = arith.constant 0 : i32
    %c0_i32_1 = arith.constant 0 : i32
    %c0_i32_2 = arith.constant 0 : i32
    return %c0_i32, %c0_i32_0, %c0_i32_1 : i32, i32, i32
  }
  func.func @transform_2(%arg0: i32) -> (i32, i32, i32, i32) {
    %c0_i32 = arith.constant 0 : i32
    %c0_i32_0 = arith.constant 0 : i32
    %c0_i32_1 = arith.constant 0 : i32
    %c0_i32_2 = arith.constant 0 : i32
    return %arg0, %c0_i32, %c0_i32_0, %c0_i32_1 : i32, i32, i32, i32
  }
}

module attributes {stable_mosaic.version = 11 : i64} {
  func.func @_relu_kernel(%arg0: memref<512x128xf32, #tpu.memory_space<vmem>>, %arg1: memref<512x128xf32, #tpu.memory_space<vmem>>) attributes {dimension_semantics = [], scalar_prefetch = 0 : i64, scratch_operands = 0 : i64, tpu.core_type = #tpu.core_type<tc>} {
    %c0 = arith.constant 0 : index
    %c0_0 = arith.constant 0 : index
    %0 = vector.load %arg0[%c0, %c0_0] : memref<512x128xf32, #tpu.memory_space<vmem>>, vector<512x128xf32>
    %cst = arith.constant 0.000000e+00 : f32
    %1 = vector.broadcast %cst : f32 to vector<512x128xf32>
    %2 = arith.maximumf %0, %1 : vector<512x128xf32>
    %c0_1 = arith.constant 0 : index
    %c0_2 = arith.constant 0 : index
    %3 = vector.load %arg1[%c0_1, %c0_2] : memref<512x128xf32, #tpu.memory_space<vmem>>, vector<512x128xf32>
    tpu.vector_store %arg1[%c0_1, %c0_2], %2 {strides = array<i32>} : memref<512x128xf32, #tpu.memory_space<vmem>>, vector<512x128xf32>,
    return
  }
}

module attributes {stable_mosaic.version = 11 : i64} {
  func.func @_dw_kernel(%arg0: i32, %arg1: memref<1x20x20x128xf32, #tpu.memory_space<vmem>>, %arg2: memref<25x1x128xf32, #tpu.memory_space<vmem>>, %arg3: memref<1x16x16x128xf32, #tpu.memory_space<vmem>>) attributes {dimension_semantics = [#tpu.dimension_semantics<parallel>], iteration_bounds = array<i64: 2>, scalar_prefetch = 0 : i64, scratch_operands = 0 : i64, tpu.core_type = #tpu.core_type<tc>, window_params = [{transform_indices = @transform_0, window_bounds = array<i64: 1, 20, 20, 128>}, {pipeline_mode = #tpu.pipeline_mode<synchronous>, transform_indices = @transform_1, window_bounds = array<i64: 25, 1, 128>}, {transform_indices = @transform_2, window_bounds = array<i64: 1, 16, 16, 128>}]} {
    %c0 = arith.constant 0 : index
    %c0_0 = arith.constant 0 : index
    %c0_1 = arith.constant 0 : index
    %c0_2 = arith.constant 0 : index
    %0 = vector.load %arg1[%c0, %c0_0, %c0_1, %c0_2] : memref<1x20x20x128xf32, #tpu.memory_space<vmem>>, vector<1x20x20x128xf32>
    %1 = vector.shape_cast %0 : vector<1x20x20x128xf32> to vector<20x20x128xf32>
    %cst = arith.constant 0.000000e+00 : f32
    %2 = vector.broadcast %cst : f32 to vector<20x20x128xf32>
    %3 = arith.maximumf %1, %2 : vector<20x20x128xf32>
    %cst_3 = arith.constant 0.000000e+00 : f32
    %4 = vector.broadcast %cst_3 : f32 to vector<16x16x128xf32>
    %5 = vector.extract_strided_slice %3 {offsets = [0, 0, 0], sizes = [16, 16, 128], strides = [1, 1, 1]} : vector<20x20x128xf32> to vector<16x16x128xf32>
    %c0_4 = arith.constant 0 : index
    %c0_5 = arith.constant 0 : index
    %c0_6 = arith.constant 0 : index
    %6 = vector.load %arg2[%c0_4, %c0_5, %c0_6] : memref<25x1x128xf32, #tpu.memory_space<vmem>>, vector<1x1x128xf32>
    %7 = vector.shape_cast %6 : vector<1x1x128xf32> to vector<1x128xf32>
    %8 = vector.shape_cast %7 : vector<1x128xf32> to vector<1x1x128xf32>
    %9 = vector.broadcast %8 : vector<1x1x128xf32> to vector<16x16x128xf32>
    %10 = arith.mulf %5, %9 : vector<16x16x128xf32>
    %11 = arith.addf %4, %10 : vector<16x16x128xf32>
    %12 = vector.extract_strided_slice %3 {offsets = [0, 1, 0], sizes = [16, 16, 128], strides = [1, 1, 1]} : vector<20x20x128xf32> to vector<16x16x128xf32>
    %c1 = arith.constant 1 : index
    %c0_7 = arith.constant 0 : index
    %c0_8 = arith.constant 0 : index
    %13 = vector.load %arg2[%c1, %c0_7, %c0_8] : memref<25x1x128xf32, #tpu.memory_space<vmem>>, vector<1x1x128xf32>
    %14 = vector.shape_cast %13 : vector<1x1x128xf32> to vector<1x128xf32>
    %15 = vector.shape_cast %14 : vector<1x128xf32> to vector<1x1x128xf32>
    %16 = vector.broadcast %15 : vector<1x1x128xf32> to vector<16x16x128xf32>
    %17 = arith.mulf %12, %16 : vector<16x16x128xf32>
    %18 = arith.addf %11, %17 : vector<16x16x128xf32>
    %19 = vector.extract_strided_slice %3 {offsets = [0, 2, 0], sizes = [16, 16, 128], strides = [1, 1, 1]} : vector<20x20x128xf32> to vector<16x16x128xf32>
    %c2 = arith.constant 2 : index
    %c0_9 = arith.constant 0 : index
    %c0_10 = arith.constant 0 : index
    %20 = vector.load %arg2[%c2, %c0_9, %c0_10] : memref<25x1x128xf32, #tpu.memory_space<vmem>>, vector<1x1x128xf32>
    %21 = vector.shape_cast %20 : vector<1x1x128xf32> to vector<1x128xf32>
    %22 = vector.shape_cast %21 : vector<1x128xf32> to vector<1x1x128xf32>
    %23 = vector.broadcast %22 : vector<1x1x128xf32> to vector<16x16x128xf32>
    %24 = arith.mulf %19, %23 : vector<16x16x128xf32>
    %25 = arith.addf %18, %24 : vector<16x16x128xf32>
    %26 = vector.extract_strided_slice %3 {offsets = [0, 3, 0], sizes = [16, 16, 128], strides = [1, 1, 1]} : vector<20x20x128xf32> to vector<16x16x128xf32>
    %c3 = arith.constant 3 : index
    %c0_11 = arith.constant 0 : index
    %c0_12 = arith.constant 0 : index
    %27 = vector.load %arg2[%c3, %c0_11, %c0_12] : memref<25x1x128xf32, #tpu.memory_space<vmem>>, vector<1x1x128xf32>
    %28 = vector.shape_cast %27 : vector<1x1x128xf32> to vector<1x128xf32>
    %29 = vector.shape_cast %28 : vector<1x128xf32> to vector<1x1x128xf32>
    %30 = vector.broadcast %29 : vector<1x1x128xf32> to vector<16x16x128xf32>
    %31 = arith.mulf %26, %30 : vector<16x16x128xf32>
    %32 = arith.addf %25, %31 : vector<16x16x128xf32>
    %33 = vector.extract_strided_slice %3 {offsets = [0, 4, 0], sizes = [16, 16, 128], strides = [1, 1, 1]} : vector<20x20x128xf32> to vector<16x16x128xf32>
    %c4 = arith.constant 4 : index
    %c0_13 = arith.constant 0 : index
    %c0_14 = arith.constant 0 : index
    %34 = vector.load %arg2[%c4, %c0_13, %c0_14] : memref<25x1x128xf32, #tpu.memory_space<vmem>>, vector<1x1x128xf32>
    %35 = vector.shape_cast %34 : vector<1x1x128xf32> to vector<1x128xf32>
    %36 = vector.shape_cast %35 : vector<1x128xf32> to vector<1x1x128xf32>
    %37 = vector.broadcast %36 : vector<1x1x128xf32> to vector<16x16x128xf32>
    %38 = arith.mulf %33, %37 : vector<16x16x128xf32>
    %39 = arith.addf %32, %38 : vector<16x16x128xf32>
    %40 = vector.extract_strided_slice %3 {offsets = [1, 0, 0], sizes = [16, 16, 128], strides = [1, 1, 1]} : vector<20x20x128xf32> to vector<16x16x128xf32>
    %c5 = arith.constant 5 : index
    %c0_15 = arith.constant 0 : index
    %c0_16 = arith.constant 0 : index
    %41 = vector.load %arg2[%c5, %c0_15, %c0_16] : memref<25x1x128xf32, #tpu.memory_space<vmem>>, vector<1x1x128xf32>
    %42 = vector.shape_cast %41 : vector<1x1x128xf32> to vector<1x128xf32>
    %43 = vector.shape_cast %42 : vector<1x128xf32> to vector<1x1x128xf32>
    %44 = vector.broadcast %43 : vector<1x1x128xf32> to vector<16x16x128xf32>
    %45 = arith.mulf %40, %44 : vector<16x16x128xf32>
    %46 = arith.addf %39, %45 : vector<16x16x128xf32>
    %47 = vector.extract_strided_slice %3 {offsets = [1, 1, 0], sizes = [16, 16, 128], strides = [1, 1, 1]} : vector<20x20x128xf32> to vector<16x16x128xf32>
    %c6 = arith.constant 6 : index
    %c0_17 = arith.constant 0 : index
    %c0_18 = arith.constant 0 : index
    %48 = vector.load %arg2[%c6, %c0_17, %c0_18] : memref<25x1x128xf32, #tpu.memory_space<vmem>>, vector<1x1x128xf32>
    %49 = vector.shape_cast %48 : vector<1x1x128xf32> to vector<1x128xf32>
    %50 = vector.shape_cast %49 : vector<1x128xf32> to vector<1x1x128xf32>
    %51 = vector.broadcast %50 : vector<1x1x128xf32> to vector<16x16x128xf32>
    %52 = arith.mulf %47, %51 : vector<16x16x128xf32>
    %53 = arith.addf %46, %52 : vector<16x16x128xf32>
    %54 = vector.extract_strided_slice %3 {offsets = [1, 2, 0], sizes = [16, 16, 128], strides = [1, 1, 1]} : vector<20x20x128xf32> to vector<16x16x128xf32>
    %c7 = arith.constant 7 : index
    %c0_19 = arith.constant 0 : index
    %c0_20 = arith.constant 0 : index
    %55 = vector.load %arg2[%c7, %c0_19, %c0_20] : memref<25x1x128xf32, #tpu.memory_space<vmem>>, vector<1x1x128xf32>
    %56 = vector.shape_cast %55 : vector<1x1x128xf32> to vector<1x128xf32>
    %57 = vector.shape_cast %56 : vector<1x128xf32> to vector<1x1x128xf32>
    %58 = vector.broadcast %57 : vector<1x1x128xf32> to vector<16x16x128xf32>
    %59 = arith.mulf %54, %58 : vector<16x16x128xf32>
    %60 = arith.addf %53, %59 : vector<16x16x128xf32>
    %61 = vector.extract_strided_slice %3 {offsets = [1, 3, 0], sizes = [16, 16, 128], strides = [1, 1, 1]} : vector<20x20x128xf32> to vector<16x16x128xf32>
    %c8 = arith.constant 8 : index
    %c0_21 = arith.constant 0 : index
    %c0_22 = arith.constant 0 : index
    %62 = vector.load %arg2[%c8, %c0_21, %c0_22] : memref<25x1x128xf32, #tpu.memory_space<vmem>>, vector<1x1x128xf32>
    %63 = vector.shape_cast %62 : vector<1x1x128xf32> to vector<1x128xf32>
    %64 = vector.shape_cast %63 : vector<1x128xf32> to vector<1x1x128xf32>
    %65 = vector.broadcast %64 : vector<1x1x128xf32> to vector<16x16x128xf32>
    %66 = arith.mulf %61, %65 : vector<16x16x128xf32>
    %67 = arith.addf %60, %66 : vector<16x16x128xf32>
    %68 = vector.extract_strided_slice %3 {offsets = [1, 4, 0], sizes = [16, 16, 128], strides = [1, 1, 1]} : vector<20x20x128xf32> to vector<16x16x128xf32>
    %c9 = arith.constant 9 : index
    %c0_23 = arith.constant 0 : index
    %c0_24 = arith.constant 0 : index
    %69 = vector.load %arg2[%c9, %c0_23, %c0_24] : memref<25x1x128xf32, #tpu.memory_space<vmem>>, vector<1x1x128xf32>
    %70 = vector.shape_cast %69 : vector<1x1x128xf32> to vector<1x128xf32>
    %71 = vector.shape_cast %70 : vector<1x128xf32> to vector<1x1x128xf32>
    %72 = vector.broadcast %71 : vector<1x1x128xf32> to vector<16x16x128xf32>
    %73 = arith.mulf %68, %72 : vector<16x16x128xf32>
    %74 = arith.addf %67, %73 : vector<16x16x128xf32>
    %75 = vector.extract_strided_slice %3 {offsets = [2, 0, 0], sizes = [16, 16, 128], strides = [1, 1, 1]} : vector<20x20x128xf32> to vector<16x16x128xf32>
    %c10 = arith.constant 10 : index
    %c0_25 = arith.constant 0 : index
    %c0_26 = arith.constant 0 : index
    %76 = vector.load %arg2[%c10, %c0_25, %c0_26] : memref<25x1x128xf32, #tpu.memory_space<vmem>>, vector<1x1x128xf32>
    %77 = vector.shape_cast %76 : vector<1x1x128xf32> to vector<1x128xf32>
    %78 = vector.shape_cast %77 : vector<1x128xf32> to vector<1x1x128xf32>
    %79 = vector.broadcast %78 : vector<1x1x128xf32> to vector<16x16x128xf32>
    %80 = arith.mulf %75, %79 : vector<16x16x128xf32>
    %81 = arith.addf %74, %80 : vector<16x16x128xf32>
    %82 = vector.extract_strided_slice %3 {offsets = [2, 1, 0], sizes = [16, 16, 128], strides = [1, 1, 1]} : vector<20x20x128xf32> to vector<16x16x128xf32>
    %c11 = arith.constant 11 : index
    %c0_27 = arith.constant 0 : index
    %c0_28 = arith.constant 0 : index
    %83 = vector.load %arg2[%c11, %c0_27, %c0_28] : memref<25x1x128xf32, #tpu.memory_space<vmem>>, vector<1x1x128xf32>
    %84 = vector.shape_cast %83 : vector<1x1x128xf32> to vector<1x128xf32>
    %85 = vector.shape_cast %84 : vector<1x128xf32> to vector<1x1x128xf32>
    %86 = vector.broadcast %85 : vector<1x1x128xf32> to vector<16x16x128xf32>
    %87 = arith.mulf %82, %86 : vector<16x16x128xf32>
    %88 = arith.addf %81, %87 : vector<16x16x128xf32>
    %89 = vector.extract_strided_slice %3 {offsets = [2, 2, 0], sizes = [16, 16, 128], strides = [1, 1, 1]} : vector<20x20x128xf32> to vector<16x16x128xf32>
    %c12 = arith.constant 12 : index
    %c0_29 = arith.constant 0 : index
    %c0_30 = arith.constant 0 : index
    %90 = vector.load %arg2[%c12, %c0_29, %c0_30] : memref<25x1x128xf32, #tpu.memory_space<vmem>>, vector<1x1x128xf32>
    %91 = vector.shape_cast %90 : vector<1x1x128xf32> to vector<1x128xf32>
    %92 = vector.shape_cast %91 : vector<1x128xf32> to vector<1x1x128xf32>
    %93 = vector.broadcast %92 : vector<1x1x128xf32> to vector<16x16x128xf32>
    %94 = arith.mulf %89, %93 : vector<16x16x128xf32>
    %95 = arith.addf %88, %94 : vector<16x16x128xf32>
    %96 = vector.extract_strided_slice %3 {offsets = [2, 3, 0], sizes = [16, 16, 128], strides = [1, 1, 1]} : vector<20x20x128xf32> to vector<16x16x128xf32>
    %c13 = arith.constant 13 : index
    %c0_31 = arith.constant 0 : index
    %c0_32 = arith.constant 0 : index
    %97 = vector.load %arg2[%c13, %c0_31, %c0_32] : memref<25x1x128xf32, #tpu.memory_space<vmem>>, vector<1x1x128xf32>
    %98 = vector.shape_cast %97 : vector<1x1x128xf32> to vector<1x128xf32>
    %99 = vector.shape_cast %98 : vector<1x128xf32> to vector<1x1x128xf32>
    %100 = vector.broadcast %99 : vector<1x1x128xf32> to vector<16x16x128xf32>
    %101 = arith.mulf %96, %100 : vector<16x16x128xf32>
    %102 = arith.addf %95, %101 : vector<16x16x128xf32>
    %103 = vector.extract_strided_slice %3 {offsets = [2, 4, 0], sizes = [16, 16, 128], strides = [1, 1, 1]} : vector<20x20x128xf32> to vector<16x16x128xf32>
    %c14 = arith.constant 14 : index
    %c0_33 = arith.constant 0 : index
    %c0_34 = arith.constant 0 : index
    %104 = vector.load %arg2[%c14, %c0_33, %c0_34] : memref<25x1x128xf32, #tpu.memory_space<vmem>>, vector<1x1x128xf32>
    %105 = vector.shape_cast %104 : vector<1x1x128xf32> to vector<1x128xf32>
    %106 = vector.shape_cast %105 : vector<1x128xf32> to vector<1x1x128xf32>
    %107 = vector.broadcast %106 : vector<1x1x128xf32> to vector<16x16x128xf32>
    %108 = arith.mulf %103, %107 : vector<16x16x128xf32>
    %109 = arith.addf %102, %108 : vector<16x16x128xf32>
    %110 = vector.extract_strided_slice %3 {offsets = [3, 0, 0], sizes = [16, 16, 128], strides = [1, 1, 1]} : vector<20x20x128xf32> to vector<16x16x128xf32>
    %c15 = arith.constant 15 : index
    %c0_35 = arith.constant 0 : index
    %c0_36 = arith.constant 0 : index
    %111 = vector.load %arg2[%c15, %c0_35, %c0_36] : memref<25x1x128xf32, #tpu.memory_space<vmem>>, vector<1x1x128xf32>
    %112 = vector.shape_cast %111 : vector<1x1x128xf32> to vector<1x128xf32>
    %113 = vector.shape_cast %112 : vector<1x128xf32> to vector<1x1x128xf32>
    %114 = vector.broadcast %113 : vector<1x1x128xf32> to vector<16x16x128xf32>
    %115 = arith.mulf %110, %114 : vector<16x16x128xf32>
    %116 = arith.addf %109, %115 : vector<16x16x128xf32>
    %117 = vector.extract_strided_slice %3 {offsets = [3, 1, 0], sizes = [16, 16, 128], strides = [1, 1, 1]} : vector<20x20x128xf32> to vector<16x16x128xf32>
    %c16 = arith.constant 16 : index
    %c0_37 = arith.constant 0 : index
    %c0_38 = arith.constant 0 : index
    %118 = vector.load %arg2[%c16, %c0_37, %c0_38] : memref<25x1x128xf32, #tpu.memory_space<vmem>>, vector<1x1x128xf32>
    %119 = vector.shape_cast %118 : vector<1x1x128xf32> to vector<1x128xf32>
    %120 = vector.shape_cast %119 : vector<1x128xf32> to vector<1x1x128xf32>
    %121 = vector.broadcast %120 : vector<1x1x128xf32> to vector<16x16x128xf32>
    %122 = arith.mulf %117, %121 : vector<16x16x128xf32>
    %123 = arith.addf %116, %122 : vector<16x16x128xf32>
    %124 = vector.extract_strided_slice %3 {offsets = [3, 2, 0], sizes = [16, 16, 128], strides = [1, 1, 1]} : vector<20x20x128xf32> to vector<16x16x128xf32>
    %c17 = arith.constant 17 : index
    %c0_39 = arith.constant 0 : index
    %c0_40 = arith.constant 0 : index
    %125 = vector.load %arg2[%c17, %c0_39, %c0_40] : memref<25x1x128xf32, #tpu.memory_space<vmem>>, vector<1x1x128xf32>
    %126 = vector.shape_cast %125 : vector<1x1x128xf32> to vector<1x128xf32>
    %127 = vector.shape_cast %126 : vector<1x128xf32> to vector<1x1x128xf32>
    %128 = vector.broadcast %127 : vector<1x1x128xf32> to vector<16x16x128xf32>
    %129 = arith.mulf %124, %128 : vector<16x16x128xf32>
    %130 = arith.addf %123, %129 : vector<16x16x128xf32>
    %131 = vector.extract_strided_slice %3 {offsets = [3, 3, 0], sizes = [16, 16, 128], strides = [1, 1, 1]} : vector<20x20x128xf32> to vector<16x16x128xf32>
    %c18 = arith.constant 18 : index
    %c0_41 = arith.constant 0 : index
    %c0_42 = arith.constant 0 : index
    %132 = vector.load %arg2[%c18, %c0_41, %c0_42] : memref<25x1x128xf32, #tpu.memory_space<vmem>>, vector<1x1x128xf32>
    %133 = vector.shape_cast %132 : vector<1x1x128xf32> to vector<1x128xf32>
    %134 = vector.shape_cast %133 : vector<1x128xf32> to vector<1x1x128xf32>
    %135 = vector.broadcast %134 : vector<1x1x128xf32> to vector<16x16x128xf32>
    %136 = arith.mulf %131, %135 : vector<16x16x128xf32>
    %137 = arith.addf %130, %136 : vector<16x16x128xf32>
    %138 = vector.extract_strided_slice %3 {offsets = [3, 4, 0], sizes = [16, 16, 128], strides = [1, 1, 1]} : vector<20x20x128xf32> to vector<16x16x128xf32>
    %c19 = arith.constant 19 : index
    %c0_43 = arith.constant 0 : index
    %c0_44 = arith.constant 0 : index
    %139 = vector.load %arg2[%c19, %c0_43, %c0_44] : memref<25x1x128xf32, #tpu.memory_space<vmem>>, vector<1x1x128xf32>
    %140 = vector.shape_cast %139 : vector<1x1x128xf32> to vector<1x128xf32>
    %141 = vector.shape_cast %140 : vector<1x128xf32> to vector<1x1x128xf32>
    %142 = vector.broadcast %141 : vector<1x1x128xf32> to vector<16x16x128xf32>
    %143 = arith.mulf %138, %142 : vector<16x16x128xf32>
    %144 = arith.addf %137, %143 : vector<16x16x128xf32>
    %145 = vector.extract_strided_slice %3 {offsets = [4, 0, 0], sizes = [16, 16, 128], strides = [1, 1, 1]} : vector<20x20x128xf32> to vector<16x16x128xf32>
    %c20 = arith.constant 20 : index
    %c0_45 = arith.constant 0 : index
    %c0_46 = arith.constant 0 : index
    %146 = vector.load %arg2[%c20, %c0_45, %c0_46] : memref<25x1x128xf32, #tpu.memory_space<vmem>>, vector<1x1x128xf32>
    %147 = vector.shape_cast %146 : vector<1x1x128xf32> to vector<1x128xf32>
    %148 = vector.shape_cast %147 : vector<1x128xf32> to vector<1x1x128xf32>
    %149 = vector.broadcast %148 : vector<1x1x128xf32> to vector<16x16x128xf32>
    %150 = arith.mulf %145, %149 : vector<16x16x128xf32>
    %151 = arith.addf %144, %150 : vector<16x16x128xf32>
    %152 = vector.extract_strided_slice %3 {offsets = [4, 1, 0], sizes = [16, 16, 128], strides = [1, 1, 1]} : vector<20x20x128xf32> to vector<16x16x128xf32>
    %c21 = arith.constant 21 : index
    %c0_47 = arith.constant 0 : index
    %c0_48 = arith.constant 0 : index
    %153 = vector.load %arg2[%c21, %c0_47, %c0_48] : memref<25x1x128xf32, #tpu.memory_space<vmem>>, vector<1x1x128xf32>
    %154 = vector.shape_cast %153 : vector<1x1x128xf32> to vector<1x128xf32>
    %155 = vector.shape_cast %154 : vector<1x128xf32> to vector<1x1x128xf32>
    %156 = vector.broadcast %155 : vector<1x1x128xf32> to vector<16x16x128xf32>
    %157 = arith.mulf %152, %156 : vector<16x16x128xf32>
    %158 = arith.addf %151, %157 : vector<16x16x128xf32>
    %159 = vector.extract_strided_slice %3 {offsets = [4, 2, 0], sizes = [16, 16, 128], strides = [1, 1, 1]} : vector<20x20x128xf32> to vector<16x16x128xf32>
    %c22 = arith.constant 22 : index
    %c0_49 = arith.constant 0 : index
    %c0_50 = arith.constant 0 : index
    %160 = vector.load %arg2[%c22, %c0_49, %c0_50] : memref<25x1x128xf32, #tpu.memory_space<vmem>>, vector<1x1x128xf32>
    %161 = vector.shape_cast %160 : vector<1x1x128xf32> to vector<1x128xf32>
    %162 = vector.shape_cast %161 : vector<1x128xf32> to vector<1x1x128xf32>
    %163 = vector.broadcast %162 : vector<1x1x128xf32> to vector<16x16x128xf32>
    %164 = arith.mulf %159, %163 : vector<16x16x128xf32>
    %165 = arith.addf %158, %164 : vector<16x16x128xf32>
    %166 = vector.extract_strided_slice %3 {offsets = [4, 3, 0], sizes = [16, 16, 128], strides = [1, 1, 1]} : vector<20x20x128xf32> to vector<16x16x128xf32>
    %c23 = arith.constant 23 : index
    %c0_51 = arith.constant 0 : index
    %c0_52 = arith.constant 0 : index
    %167 = vector.load %arg2[%c23, %c0_51, %c0_52] : memref<25x1x128xf32, #tpu.memory_space<vmem>>, vector<1x1x128xf32>
    %168 = vector.shape_cast %167 : vector<1x1x128xf32> to vector<1x128xf32>
    %169 = vector.shape_cast %168 : vector<1x128xf32> to vector<1x1x128xf32>
    %170 = vector.broadcast %169 : vector<1x1x128xf32> to vector<16x16x128xf32>
    %171 = arith.mulf %166, %170 : vector<16x16x128xf32>
    %172 = arith.addf %165, %171 : vector<16x16x128xf32>
    %173 = vector.extract_strided_slice %3 {offsets = [4, 4, 0], sizes = [16, 16, 128], strides = [1, 1, 1]} : vector<20x20x128xf32> to vector<16x16x128xf32>
    %c24 = arith.constant 24 : index
    %c0_53 = arith.constant 0 : index
    %c0_54 = arith.constant 0 : index
    %174 = vector.load %arg2[%c24, %c0_53, %c0_54] : memref<25x1x128xf32, #tpu.memory_space<vmem>>, vector<1x1x128xf32>
    %175 = vector.shape_cast %174 : vector<1x1x128xf32> to vector<1x128xf32>
    %176 = vector.shape_cast %175 : vector<1x128xf32> to vector<1x1x128xf32>
    %177 = vector.broadcast %176 : vector<1x1x128xf32> to vector<16x16x128xf32>
    %178 = arith.mulf %173, %177 : vector<16x16x128xf32>
    %179 = arith.addf %172, %178 : vector<16x16x128xf32>
    %c0_55 = arith.constant 0 : index
    %c0_56 = arith.constant 0 : index
    %c0_57 = arith.constant 0 : index
    %c0_58 = arith.constant 0 : index
    %180 = vector.load %arg3[%c0_55, %c0_56, %c0_57, %c0_58] : memref<1x16x16x128xf32, #tpu.memory_space<vmem>>, vector<1x16x16x128xf32>
    %181 = vector.shape_cast %180 : vector<1x16x16x128xf32> to vector<16x16x128xf32>
    %182 = vector.shape_cast %179 : vector<16x16x128xf32> to vector<1x16x16x128xf32>
    tpu.vector_store %arg3[%c0_55, %c0_56, %c0_57, %c0_58], %182 {strides = array<i32>} : memref<1x16x16x128xf32, #tpu.memory_space<vmem>>, vector<1x16x16x128xf32>,
    return
  }
  func.func @transform_0(%arg0: i32) -> (i32, i32, i32, i32) {
    %c0_i32 = arith.constant 0 : i32
    %c0_i32_0 = arith.constant 0 : i32
    %c0_i32_1 = arith.constant 0 : i32
    %c0_i32_2 = arith.constant 0 : i32
    return %arg0, %c0_i32, %c0_i32_0, %c0_i32_1 : i32, i32, i32, i32
  }
  func.func @transform_1(%arg0: i32) -> (i32, i32, i32) {
    %c0_i32 = arith.constant 0 : i32
    %c0_i32_0 = arith.constant 0 : i32
    %c0_i32_1 = arith.constant 0 : i32
    %c0_i32_2 = arith.constant 0 : i32
    return %c0_i32, %c0_i32_0, %c0_i32_1 : i32, i32, i32
  }
  func.func @transform_2(%arg0: i32) -> (i32, i32, i32, i32) {
    %c0_i32 = arith.constant 0 : i32
    %c0_i32_0 = arith.constant 0 : i32
    %c0_i32_1 = arith.constant 0 : i32
    %c0_i32_2 = arith.constant 0 : i32
    return %arg0, %c0_i32, %c0_i32_0, %c0_i32_1 : i32, i32, i32, i32
  }
}

module attributes {stable_mosaic.version = 11 : i64} {
  func.func @_matmul_kernel(%arg0: i32, %arg1: memref<128x128xbf16, #tpu.memory_space<vmem>>, %arg2: memref<128x128xbf16, #tpu.memory_space<vmem>>, %arg3: memref<128x128xf32, #tpu.memory_space<vmem>>) attributes {dimension_semantics = [#tpu.dimension_semantics<parallel>], iteration_bounds = array<i64: 1>, scalar_prefetch = 0 : i64, scratch_operands = 0 : i64, tpu.core_type = #tpu.core_type<tc>, window_params = [{transform_indices = @transform_0, window_bounds = array<i64: 128, 128>}, {pipeline_mode = #tpu.pipeline_mode<synchronous>, transform_indices = @transform_1, window_bounds = array<i64: 128, 128>}, {transform_indices = @transform_2, window_bounds = array<i64: 128, 128>}]} {
    %c0 = arith.constant 0 : index
    %c0_0 = arith.constant 0 : index
    %0 = vector.load %arg1[%c0, %c0_0] : memref<128x128xbf16, #tpu.memory_space<vmem>>, vector<128x128xbf16>
    %c0_1 = arith.constant 0 : index
    %c0_2 = arith.constant 0 : index
    %1 = vector.load %arg2[%c0_1, %c0_2] : memref<128x128xbf16, #tpu.memory_space<vmem>>, vector<128x128xbf16>
    %cst = arith.constant dense<0.000000e+00> : vector<128x128xf32>
    %2 = tpu.matmul %0, %1, %cst {dimension_numbers = #tpu.dot_dimension_numbers<[1], [0], [0], [1], [0, 0, 1, 1], [], []>} : vector<128x128xbf16>, vector<128x128xbf16>, vector<128x128xf32> -> vector<128x128xf32>
    %c0_3 = arith.constant 0 : index
    %c0_4 = arith.constant 0 : index
    %3 = vector.load %arg3[%c0_3, %c0_4] : memref<128x128xf32, #tpu.memory_space<vmem>>, vector<128x128xf32>
    tpu.vector_store %arg3[%c0_3, %c0_4], %2 {strides = array<i32>} : memref<128x128xf32, #tpu.memory_space<vmem>>, vector<128x128xf32>,
    return
  }
  func.func @transform_0(%arg0: i32) -> (i32, i32) {
    %c0_i32 = arith.constant 0 : i32
    %c0_i32_0 = arith.constant 0 : i32
    return %arg0, %c0_i32 : i32, i32
  }
  func.func @transform_1(%arg0: i32) -> (i32, i32) {
    %c0_i32 = arith.constant 0 : i32
    %c0_i32_0 = arith.constant 0 : i32
    %c0_i32_1 = arith.constant 0 : i32
    return %c0_i32, %c0_i32_0 : i32, i32
  }
  func.func @transform_2(%arg0: i32) -> (i32, i32) {
    %c0_i32 = arith.constant 0 : i32
    %c0_i32_0 = arith.constant 0 : i32
    return %arg0, %c0_i32 : i32, i32
  }
}

module attributes {stable_mosaic.version = 11 : i64} {
  func.func @_bn_kernel(%arg0: memref<128x128xf32, #tpu.memory_space<vmem>>, %arg1: memref<1x128xf32, #tpu.memory_space<vmem>>, %arg2: memref<1x128xf32, #tpu.memory_space<vmem>>, %arg3: memref<128x128xf32, #tpu.memory_space<vmem>>) attributes {dimension_semantics = [], scalar_prefetch = 0 : i64, scratch_operands = 0 : i64, tpu.core_type = #tpu.core_type<tc>} {
    %c0 = arith.constant 0 : index
    %c0_0 = arith.constant 0 : index
    %0 = vector.load %arg0[%c0, %c0_0] : memref<128x128xf32, #tpu.memory_space<vmem>>, vector<128x128xf32>
    %cst = arith.constant dense<0.000000e+00> : vector<128xf32>
    %1 = vector.multi_reduction <add>, %0, %cst [0] : vector<128x128xf32> to vector<128xf32>
    %2 = vector.shape_cast %1 : vector<128xf32> to vector<1x128xf32>
    %cst_1 = arith.constant 1.280000e+02 : f32
    %3 = vector.broadcast %cst_1 : f32 to vector<1x128xf32>
    %4 = arith.divf %2, %3 : vector<1x128xf32>
    %5 = vector.broadcast %4 : vector<1x128xf32> to vector<128x128xf32>
    %6 = arith.subf %0, %5 : vector<128x128xf32>
    %7 = arith.mulf %6, %6 : vector<128x128xf32>
    %cst_2 = arith.constant dense<0.000000e+00> : vector<128xf32>
    %8 = vector.multi_reduction <add>, %7, %cst_2 [0] : vector<128x128xf32> to vector<128xf32>
    %9 = vector.shape_cast %8 : vector<128xf32> to vector<1x128xf32>
    %cst_3 = arith.constant 1.280000e+02 : f32
    %10 = vector.broadcast %cst_3 : f32 to vector<1x128xf32>
    %11 = arith.divf %9, %10 : vector<1x128xf32>
    %12 = vector.broadcast %4 : vector<1x128xf32> to vector<128x128xf32>
    %13 = arith.subf %0, %12 : vector<128x128xf32>
    %cst_4 = arith.constant 9.99999974E-6 : f32
    %14 = vector.broadcast %cst_4 : f32 to vector<1x128xf32>
    %15 = arith.addf %11, %14 : vector<1x128xf32>
    %16 = math.rsqrt %15 : vector<1x128xf32>
    %17 = vector.broadcast %16 : vector<1x128xf32> to vector<128x128xf32>
    %18 = arith.mulf %13, %17 : vector<128x128xf32>
    %c0_5 = arith.constant 0 : index
    %c0_6 = arith.constant 0 : index
    %19 = vector.load %arg1[%c0_5, %c0_6] : memref<1x128xf32, #tpu.memory_space<vmem>>, vector<1x128xf32>
    %20 = vector.broadcast %19 : vector<1x128xf32> to vector<128x128xf32>
    %21 = arith.mulf %18, %20 : vector<128x128xf32>
    %c0_7 = arith.constant 0 : index
    %c0_8 = arith.constant 0 : index
    %22 = vector.load %arg2[%c0_7, %c0_8] : memref<1x128xf32, #tpu.memory_space<vmem>>, vector<1x128xf32>
    %23 = vector.broadcast %22 : vector<1x128xf32> to vector<128x128xf32>
    %24 = arith.addf %21, %23 : vector<128x128xf32>
    %c0_9 = arith.constant 0 : index
    %c0_10 = arith.constant 0 : index
    %25 = vector.load %arg3[%c0_9, %c0_10] : memref<128x128xf32, #tpu.memory_space<vmem>>, vector<128x128xf32>
    tpu.vector_store %arg3[%c0_9, %c0_10], %24 {strides = array<i32>} : memref<128x128xf32, #tpu.memory_space<vmem>>, vector<128x128xf32>,
    return
  }
}

module attributes {stable_mosaic.version = 11 : i64} {
  func.func @_bn_res_kernel(%arg0: memref<128x128xf32, #tpu.memory_space<vmem>>, %arg1: memref<1x128xf32, #tpu.memory_space<vmem>>, %arg2: memref<1x128xf32, #tpu.memory_space<vmem>>, %arg3: memref<128x128xf32, #tpu.memory_space<vmem>>, %arg4: memref<128x128xf32, #tpu.memory_space<vmem>>) attributes {dimension_semantics = [], scalar_prefetch = 0 : i64, scratch_operands = 0 : i64, tpu.core_type = #tpu.core_type<tc>} {
    %c0 = arith.constant 0 : index
    %c0_0 = arith.constant 0 : index
    %0 = vector.load %arg0[%c0, %c0_0] : memref<128x128xf32, #tpu.memory_space<vmem>>, vector<128x128xf32>
    %cst = arith.constant dense<0.000000e+00> : vector<128xf32>
    %1 = vector.multi_reduction <add>, %0, %cst [0] : vector<128x128xf32> to vector<128xf32>
    %2 = vector.shape_cast %1 : vector<128xf32> to vector<1x128xf32>
    %cst_1 = arith.constant 1.280000e+02 : f32
    %3 = vector.broadcast %cst_1 : f32 to vector<1x128xf32>
    %4 = arith.divf %2, %3 : vector<1x128xf32>
    %5 = vector.broadcast %4 : vector<1x128xf32> to vector<128x128xf32>
    %6 = arith.subf %0, %5 : vector<128x128xf32>
    %7 = arith.mulf %6, %6 : vector<128x128xf32>
    %cst_2 = arith.constant dense<0.000000e+00> : vector<128xf32>
    %8 = vector.multi_reduction <add>, %7, %cst_2 [0] : vector<128x128xf32> to vector<128xf32>
    %9 = vector.shape_cast %8 : vector<128xf32> to vector<1x128xf32>
    %cst_3 = arith.constant 1.280000e+02 : f32
    %10 = vector.broadcast %cst_3 : f32 to vector<1x128xf32>
    %11 = arith.divf %9, %10 : vector<1x128xf32>
    %12 = vector.broadcast %4 : vector<1x128xf32> to vector<128x128xf32>
    %13 = arith.subf %0, %12 : vector<128x128xf32>
    %cst_4 = arith.constant 9.99999974E-6 : f32
    %14 = vector.broadcast %cst_4 : f32 to vector<1x128xf32>
    %15 = arith.addf %11, %14 : vector<1x128xf32>
    %16 = math.rsqrt %15 : vector<1x128xf32>
    %17 = vector.broadcast %16 : vector<1x128xf32> to vector<128x128xf32>
    %18 = arith.mulf %13, %17 : vector<128x128xf32>
    %c0_5 = arith.constant 0 : index
    %c0_6 = arith.constant 0 : index
    %19 = vector.load %arg1[%c0_5, %c0_6] : memref<1x128xf32, #tpu.memory_space<vmem>>, vector<1x128xf32>
    %20 = vector.broadcast %19 : vector<1x128xf32> to vector<128x128xf32>
    %21 = arith.mulf %18, %20 : vector<128x128xf32>
    %c0_7 = arith.constant 0 : index
    %c0_8 = arith.constant 0 : index
    %22 = vector.load %arg2[%c0_7, %c0_8] : memref<1x128xf32, #tpu.memory_space<vmem>>, vector<1x128xf32>
    %23 = vector.broadcast %22 : vector<1x128xf32> to vector<128x128xf32>
    %24 = arith.addf %21, %23 : vector<128x128xf32>
    %c0_9 = arith.constant 0 : index
    %c0_10 = arith.constant 0 : index
    %25 = vector.load %arg3[%c0_9, %c0_10] : memref<128x128xf32, #tpu.memory_space<vmem>>, vector<128x128xf32>
    %26 = arith.addf %24, %25 : vector<128x128xf32>
    %c0_11 = arith.constant 0 : index
    %c0_12 = arith.constant 0 : index
    %27 = vector.load %arg4[%c0_11, %c0_12] : memref<128x128xf32, #tpu.memory_space<vmem>>, vector<128x128xf32>
    tpu.vector_store %arg4[%c0_11, %c0_12], %26 {strides = array<i32>} : memref<128x128xf32, #tpu.memory_space<vmem>>, vector<128x128xf32>,
    return
  }
}

</mosaic_0001>

<llo_original>
// kernel: _lambda_.21
$region0: #{_lambda_.21}
  #allocation0 [shape = 'u32[]', space=smem, size = 0x4, offset = 0x4, fixed_abs, tag = 'smem constant byte address 0x4 - core index']
  #allocation1 [shape = 'u32[144,128]{1,0:T(1,128)}', space=vmem, size = 0x12000, scoped, tag = 'internal scratch']
  %s0 = inlined_call_operand.vmem [shape: f32[512,128], index: 0, kind: input, shape index: {}]
  %s1 = inlined_call_operand.vmem [shape: f32[1,128], index: 1, kind: input, shape index: {}]
  %s2 = inlined_call_operand.vmem [shape: f32[1,128], index: 2, kind: input, shape index: {}]
  %s3 = inlined_call_operand.vmem [shape: f32[512,128], index: 3, kind: output, shape index: {}]
  %s4 = sld [smem:[#allocation0]]
  $region22: #{_lambda_.21} parent=0
    _
  %s6 = ssub.s32 1, %s4
  %s7 = scalar_select 0, %s6, %s4
  // Predicated region
  $region2: #{_lambda_.21} parent=0 // pred_check
    _
  $region3: #{_lambda_.21} parent=0 // pred_check_branch
    %9 = sbr.rel (0) target = $region5
  $region4: #{_lambda_.21} parent=0 // pred_region
    _
  $region5: #{_lambda_.21} parent=0 // pred_fallthru
    _
  // Predicated region
  $region6: #{_lambda_.21} parent=0 // pred_check
    _
  $region7: #{_lambda_.21} parent=0 // pred_check_branch
    %11 = sbr.rel (0) target = $region9
  $region8: #{_lambda_.21} parent=0 // pred_region
    _
  $region9: #{_lambda_.21} parent=0 // pred_fallthru
    _
  // Predicated region
  $region10: #{_lambda_.21} parent=0 // pred_check
    _
  $region11: #{_lambda_.21} parent=0 // pred_check_branch
    %13 = sbr.rel (0) target = $region13
  $region12: #{_lambda_.21} parent=0 // pred_region
    _
  $region13: #{_lambda_.21} parent=0 // pred_fallthru
    _
  %v14 = vld [vmem:[%s0] sm:$0xff]
  %v15 = vld [vmem:[%s0 + $0x8] sm:$0xff]
  %v16 = vld [vmem:[%s0 + $0x10] sm:$0xff]
  %v17 = vld [vmem:[%s0 + $0x18] sm:$0xff]
  %v18 = vld [vmem:[%s0 + $0x20] sm:$0xff]
  %v19 = vld [vmem:[%s0 + $0x28] sm:$0xff]
  %v20 = vld [vmem:[%s0 + $0x30] sm:$0xff]
  %v21 = vld [vmem:[%s0 + $0x38] sm:$0xff]
  %v22 = vld [vmem:[%s0 + $0x40] sm:$0xff]
  %v23 = vld [vmem:[%s0 + $0x48] sm:$0xff]
  %v24 = vld [vmem:[%s0 + $0x50] sm:$0xff]
  %v25 = vld [vmem:[%s0 + $0x58] sm:$0xff]
  %v26 = vld [vmem:[%s0 + $0x60] sm:$0xff]
  %v27 = vld [vmem:[%s0 + $0x68] sm:$0xff]
  %v28 = vld [vmem:[%s0 + $0x70] sm:$0xff]
  %v29 = vld [vmem:[%s0 + $0x78] sm:$0xff]
  %v30 = vld [vmem:[%s0 + $0x80] sm:$0xff]
  %v31 = vld [vmem:[%s0 + $0x88] sm:$0xff]
  %v32 = vld [vmem:[%s0 + $0x90] sm:$0xff]
  %v33 = vld [vmem:[%s0 + $0x98] sm:$0xff]
  %v34 = vld [vmem:[%s0 + $0xa0] sm:$0xff]
  %v35 = vld [vmem:[%s0 + $0xa8] sm:$0xff]
  %v36 = vld [vmem:[%s0 + $0xb0] sm:$0xff]
  %v37 = vld [vmem:[%s0 + $0xb8] sm:$0xff]
  %v38 = vld [vmem:[%s0 + $0xc0] sm:$0xff]
  %v39 = vld [vmem:[%s0 + $0xc8] sm:$0xff]
  %v40 = vld [vmem:[%s0 + $0xd0] sm:$0xff]
  %v41 = vld [vmem:[%s0 + $0xd8] sm:$0xff]
  %v42 = vld [vmem:[%s0 + $0xe0] sm:$0xff]
  %v43 = vld [vmem:[%s0 + $0xe8] sm:$0xff]
  %v44 = vld [vmem:[%s0 + $0xf0] sm:$0xff]
  %v45 = vld [vmem:[%s0 + $0xf8] sm:$0xff]
  %v46 = vld [vmem:[%s0 + $0x100] sm:$0xff]
  %v47 = vld [vmem:[%s0 + $0x108] sm:$0xff]
  %v48 = vld [vmem:[%s0 + $0x110] sm:$0xff]
  %v49 = vld [vmem:[%s0 + $0x118] sm:$0xff]
  %v50 = vld [vmem:[%s0 + $0x120] sm:$0xff]
  %v51 = vld [vmem:[%s0 + $0x128] sm:$0xff]
  %v52 = vld [vmem:[%s0 + $0x130] sm:$0xff]
  %v53 = vld [vmem:[%s0 + $0x138] sm:$0xff]
  %v54 = vld [vmem:[%s0 + $0x140] sm:$0xff]
  %v55 = vld [vmem:[%s0 + $0x148] sm:$0xff]
  %v56 = vld [vmem:[%s0 + $0x150] sm:$0xff]
  %v57 = vld [vmem:[%s0 + $0x158] sm:$0xff]
  %v58 = vld [vmem:[%s0 + $0x160] sm:$0xff]
  %v59 = vld [vmem:[%s0 + $0x168] sm:$0xff]
  %v60 = vld [vmem:[%s0 + $0x170] sm:$0xff]
  %v61 = vld [vmem:[%s0 + $0x178] sm:$0xff]
  %v62 = vld [vmem:[%s0 + $0x180] sm:$0xff]
  %v63 = vld [vmem:[%s0 + $0x188] sm:$0xff]
  %v64 = vld [vmem:[%s0 + $0x190] sm:$0xff]
  %v65 = vld [vmem:[%s0 + $0x198] sm:$0xff]
  %v66 = vld [vmem:[%s0 + $0x1a0] sm:$0xff]
  %v67 = vld [vmem:[%s0 + $0x1a8] sm:$0xff]
  %v68 = vld [vmem:[%s0 + $0x1b0] sm:$0xff]
  %v69 = vld [vmem:[%s0 + $0x1b8] sm:$0xff]
  %v70 = vld [vmem:[%s0 + $0x1c0] sm:$0xff]
  %v71 = vld [vmem:[%s0 + $0x1c8] sm:$0xff]
  %v72 = vld [vmem:[%s0 + $0x1d0] sm:$0xff]
  %v73 = vld [vmem:[%s0 + $0x1d8] sm:$0xff]
  %v74 = vld [vmem:[%s0 + $0x1e0] sm:$0xff]
  %v75 = vld [vmem:[%s0 + $0x1e8] sm:$0xff]
  %v76 = vld [vmem:[%s0 + $0x1f0] sm:$0xff]
  %v77 = vld [vmem:[%s0 + $0x1f8] sm:$0xff]
  %v78 = vadd.f32 %v14, %v15
  %v79 = vadd.f32 %v78, %v16
  %v80 = vadd.f32 %v79, %v17
  %v81 = vadd.f32 %v80, %v18
  %v82 = vadd.f32 %v81, %v19
  %v83 = vadd.f32 %v82, %v20
  %v84 = vadd.f32 %v83, %v21
  %v85 = vadd.f32 %v84, %v22
  %v86 = vadd.f32 %v85, %v23
  %v87 = vadd.f32 %v86, %v24
  %v88 = vadd.f32 %v87, %v25
  %v89 = vadd.f32 %v88, %v26
  %v90 = vadd.f32 %v89, %v27
  %v91 = vadd.f32 %v90, %v28
  %v92 = vadd.f32 %v91, %v29
  %v93 = vadd.f32 %v92, %v30
  %v94 = vadd.f32 %v93, %v31
  %v95 = vadd.f32 %v94, %v32
  %v96 = vadd.f32 %v95, %v33
  %v97 = vadd.f32 %v96, %v34
  %v98 = vadd.f32 %v97, %v35
  %v99 = vadd.f32 %v98, %v36
  %v100 = vadd.f32 %v99, %v37
  %v101 = vadd.f32 %v100, %v38
  %v102 = vadd.f32 %v101, %v39
  %v103 = vadd.f32 %v102, %v40
  %v104 = vadd.f32 %v103, %v41
  %v105 = vadd.f32 %v104, %v42
  %v106 = vadd.f32 %v105, %v43
  %v107 = vadd.f32 %v106, %v44
  %v108 = vadd.f32 %v107, %v45
  %v109 = vadd.f32 %v108, %v46
  %v110 = vadd.f32 %v109, %v47
  %v111 = vadd.f32 %v110, %v48
  %v112 = vadd.f32 %v111, %v49
  %v113 = vadd.f32 %v112, %v50
  %v114 = vadd.f32 %v113, %v51
  %v115 = vadd.f32 %v114, %v52
  %v116 = vadd.f32 %v115, %v53
  %v117 = vadd.f32 %v116, %v54
  %v118 = vadd.f32 %v117, %v55
  %v119 = vadd.f32 %v118, %v56
  %v120 = vadd.f32 %v119, %v57
  %v121 = vadd.f32 %v120, %v58
  %v122 = vadd.f32 %v121, %v59
  %v123 = vadd.f32 %v122, %v60
  %v124 = vadd.f32 %v123, %v61
  %v125 = vadd.f32 %v124, %v62
  %v126 = vadd.f32 %v125, %v63
  %v127 = vadd.f32 %v126, %v64
  %v128 = vadd.f32 %v127, %v65
  %v129 = vadd.f32 %v128, %v66
  %v130 = vadd.f32 %v129, %v67
  %v131 = vadd.f32 %v130, %v68
  %v132 = vadd.f32 %v131, %v69
  %v133 = vadd.f32 %v132, %v70
  %v134 = vadd.f32 %v133, %v71
  %v135 = vadd.f32 %v134, %v72
  %v136 = vadd.f32 %v135, %v73
  %v137 = vadd.f32 %v136, %v74
  %v138 = vadd.f32 %v137, %v75
  %v139 = vadd.f32 %v138, %v76
  %v140 = vadd.f32 %v139, %v77
  %v141 = vrot.slane %v140, 4
  %v142 = vadd.f32 %v140, %v141
  %v143 = vrot.slane %v142, 2
  %v144 = vadd.f32 %v142, %v143
  %v145 = vrot.slane %v144, 1
  %v146 = vadd.f32 %v144, %v145
  %v147 = vrcp.pop 512.0
  %v148 = vmul.f32 %v146, %v147
  %v149 = vsub.f32 %v14, %v148
  %v150 = vsub.f32 %v15, %v148
  %v151 = vsub.f32 %v16, %v148
  %v152 = vsub.f32 %v17, %v148
  %v153 = vsub.f32 %v18, %v148
  %v154 = vsub.f32 %v19, %v148
  %v155 = vsub.f32 %v20, %v148
  %v156 = vsub.f32 %v21, %v148
  %v157 = vsub.f32 %v22, %v148
  %v158 = vsub.f32 %v23, %v148
  %v159 = vsub.f32 %v24, %v148
  %v160 = vsub.f32 %v25, %v148
  %v161 = vsub.f32 %v26, %v148
  %v162 = vsub.f32 %v27, %v148
  %v163 = vsub.f32 %v28, %v148
  %v164 = vsub.f32 %v29, %v148
  %v165 = vsub.f32 %v30, %v148
  %v166 = vsub.f32 %v31, %v148
  %v167 = vsub.f32 %v32, %v148
  %v168 = vsub.f32 %v33, %v148
  %v169 = vsub.f32 %v34, %v148
  %v170 = vsub.f32 %v35, %v148
  %v171 = vsub.f32 %v36, %v148
  %v172 = vsub.f32 %v37, %v148
  %v173 = vsub.f32 %v38, %v148
  %v174 = vsub.f32 %v39, %v148
  %v175 = vsub.f32 %v40, %v148
  %v176 = vsub.f32 %v41, %v148
  %v177 = vsub.f32 %v42, %v148
  %v178 = vsub.f32 %v43, %v148
  %v179 = vsub.f32 %v44, %v148
  %v180 = vsub.f32 %v45, %v148
  %v181 = vsub.f32 %v46, %v148
  %v182 = vsub.f32 %v47, %v148
  %v183 = vsub.f32 %v48, %v148
  %v184 = vsub.f32 %v49, %v148
  %v185 = vsub.f32 %v50, %v148
  %v186 = vsub.f32 %v51, %v148
  %v187 = vsub.f32 %v52, %v148
  %v188 = vsub.f32 %v53, %v148
  %v189 = vsub.f32 %v54, %v148
  %v190 = vsub.f32 %v55, %v148
  %v191 = vsub.f32 %v56, %v148
  %v192 = vsub.f32 %v57, %v148
  %v193 = vsub.f32 %v58, %v148
  %v194 = vsub.f32 %v59, %v148
  %v195 = vsub.f32 %v60, %v148
  %v196 = vsub.f32 %v61, %v148
  %v197 = vsub.f32 %v62, %v148
  %v198 = vsub.f32 %v63, %v148
  %v199 = vsub.f32 %v64, %v148
  %v200 = vsub.f32 %v65, %v148
  %v201 = vsub.f32 %v66, %v148
  %v202 = vsub.f32 %v67, %v148
  %v203 = vsub.f32 %v68, %v148
  %v204 = vsub.f32 %v69, %v148
  %v205 = vsub.f32 %v70, %v148
  %v206 = vsub.f32 %v71, %v148
  %v207 = vsub.f32 %v72, %v148
  %v208 = vsub.f32 %v73, %v148
  %v209 = vsub.f32 %v74, %v148
  %v210 = vsub.f32 %v75, %v148
  %v211 = vsub.f32 %v76, %v148
  %v212 = vsub.f32 %v77, %v148
  %v213 = vmul.f32 %v149, %v149
  %v214 = vmul.f32 %v150, %v150
  %v215 = vmul.f32 %v151, %v151
  %v216 = vmul.f32 %v152, %v152
  %v217 = vmul.f32 %v153, %v153
  %v218 = vmul.f32 %v154, %v154
  %v219 = vmul.f32 %v155, %v155
  %v220 = vmul.f32 %v156, %v156
  %v221 = vmul.f32 %v157, %v157
  %v222 = vmul.f32 %v158, %v158
  %v223 = vmul.f32 %v159, %v159
  %v224 = vmul.f32 %v160, %v160
  %v225 = vmul.f32 %v161, %v161
  %v226 = vmul.f32 %v162, %v162
  %v227 = vmul.f32 %v163, %v163
  %v228 = vmul.f32 %v164, %v164
  %v229 = vmul.f32 %v165, %v165
  %v230 = vmul.f32 %v166, %v166
  %v231 = vmul.f32 %v167, %v167
  %v232 = vmul.f32 %v168, %v168
  %v233 = vmul.f32 %v169, %v169
  %v234 = vmul.f32 %v170, %v170
  %v235 = vmul.f32 %v171, %v171
  %v236 = vmul.f32 %v172, %v172
  %v237 = vmul.f32 %v173, %v173
  %v238 = vmul.f32 %v174, %v174
  %v239 = vmul.f32 %v175, %v175
  %v240 = vmul.f32 %v176, %v176
  %v241 = vmul.f32 %v177, %v177
  %v242 = vmul.f32 %v178, %v178
  %v243 = vmul.f32 %v179, %v179
  %v244 = vmul.f32 %v180, %v180
  %v245 = vmul.f32 %v181, %v181
  %v246 = vmul.f32 %v182, %v182
  %v247 = vmul.f32 %v183, %v183
  %v248 = vmul.f32 %v184, %v184
  %v249 = vmul.f32 %v185, %v185
  %v250 = vmul.f32 %v186, %v186
  %v251 = vmul.f32 %v187, %v187
  %v252 = vmul.f32 %v188, %v188
  %v253 = vmul.f32 %v189, %v189
  %v254 = vmul.f32 %v190, %v190
  %v255 = vmul.f32 %v191, %v191
  %v256 = vmul.f32 %v192, %v192
  %v257 = vmul.f32 %v193, %v193
  %v258 = vmul.f32 %v194, %v194
  %v259 = vmul.f32 %v195, %v195
  %v260 = vmul.f32 %v196, %v196
  %v261 = vmul.f32 %v197, %v197
  %v262 = vmul.f32 %v198, %v198
  %v263 = vmul.f32 %v199, %v199
  %v264 = vmul.f32 %v200, %v200
  %v265 = vmul.f32 %v201, %v201
  %v266 = vmul.f32 %v202, %v202
  %v267 = vmul.f32 %v203, %v203
  %v268 = vmul.f32 %v204, %v204
  %v269 = vmul.f32 %v205, %v205
  %v270 = vmul.f32 %v206, %v206
  %v271 = vmul.f32 %v207, %v207
  %v272 = vmul.f32 %v208, %v208
  %v273 = vmul.f32 %v209, %v209
  %v274 = vmul.f32 %v210, %v210
  %v275 = vmul.f32 %v211, %v211
  %v276 = vmul.f32 %v212, %v212
  %v277 = vadd.f32 %v213, %v214
  %v278 = vadd.f32 %v277, %v215
  %v279 = vadd.f32 %v278, %v216
  %v280 = vadd.f32 %v279, %v217
  %v281 = vadd.f32 %v280, %v218
  %v282 = vadd.f32 %v281, %v219
  %v283 = vadd.f32 %v282, %v220
  %v284 = vadd.f32 %v283, %v221
  %v285 = vadd.f32 %v284, %v222
  %v286 = vadd.f32 %v285, %v223
  %v287 = vadd.f32 %v286, %v224
  %v288 = vadd.f32 %v287, %v225
  %v289 = vadd.f32 %v288, %v226
  %v290 = vadd.f32 %v289, %v227
  %v291 = vadd.f32 %v290, %v228
  %v292 = vadd.f32 %v291, %v229
  %v293 = vadd.f32 %v292, %v230
  %v294 = vadd.f32 %v293, %v231
  %v295 = vadd.f32 %v294, %v232
  %v296 = vadd.f32 %v295, %v233
  %v297 = vadd.f32 %v296, %v234
  %v298 = vadd.f32 %v297, %v235
  %v299 = vadd.f32 %v298, %v236
  %v300 = vadd.f32 %v299, %v237
  %v301 = vadd.f32 %v300, %v238
  %v302 = vadd.f32 %v301, %v239
  %v303 = vadd.f32 %v302, %v240
  %v304 = vadd.f32 %v303, %v241
  %v305 = vadd.f32 %v304, %v242
  %v306 = vadd.f32 %v305, %v243
  %v307 = vadd.f32 %v306, %v244
  %v308 = vadd.f32 %v307, %v245
  %v309 = vadd.f32 %v308, %v246
  %v310 = vadd.f32 %v309, %v247
  %v311 = vadd.f32 %v310, %v248
  %v312 = vadd.f32 %v311, %v249
  %v313 = vadd.f32 %v312, %v250
  %v314 = vadd.f32 %v313, %v251
  %v315 = vadd.f32 %v314, %v252
  %v316 = vadd.f32 %v315, %v253
  %v317 = vadd.f32 %v316, %v254
  %v318 = vadd.f32 %v317, %v255
  %v319 = vadd.f32 %v318, %v256
  %v320 = vadd.f32 %v319, %v257
  %v321 = vadd.f32 %v320, %v258
  %v322 = vadd.f32 %v321, %v259
  %v323 = vadd.f32 %v322, %v260
  %v324 = vadd.f32 %v323, %v261
  %v325 = vadd.f32 %v324, %v262
  %v326 = vadd.f32 %v325, %v263
  %v327 = vadd.f32 %v326, %v264
  %v328 = vadd.f32 %v327, %v265
  %v329 = vadd.f32 %v328, %v266
  %v330 = vadd.f32 %v329, %v267
  %v331 = vadd.f32 %v330, %v268
  %v332 = vadd.f32 %v331, %v269
  %v333 = vadd.f32 %v332, %v270
  %v334 = vadd.f32 %v333, %v271
  %v335 = vadd.f32 %v334, %v272
  %v336 = vadd.f32 %v335, %v273
  %v337 = vadd.f32 %v336, %v274
  %v338 = vadd.f32 %v337, %v275
  %v339 = vadd.f32 %v338, %v276
  %v340 = vrot.slane %v339, 4
  %v341 = vadd.f32 %v339, %v340
  %v342 = vrot.slane %v341, 2
  %v343 = vadd.f32 %v341, %v342
  %v344 = vrot.slane %v343, 1
  %v345 = vadd.f32 %v343, %v344
  %v346 = vmul.f32 %v345, %v147
  %v347 = vadd.f32 %v346, 1e-05
  %v348 = vrsqrt.pop %v347
  %v349 = vmul.f32 %v149, %v348
  %v350 = vmul.f32 %v150, %v348
  %v351 = vmul.f32 %v151, %v348
  %v352 = vmul.f32 %v152, %v348
  %v353 = vmul.f32 %v153, %v348
  %v354 = vmul.f32 %v154, %v348
  %v355 = vmul.f32 %v155, %v348
  %v356 = vmul.f32 %v156, %v348
  %v357 = vmul.f32 %v157, %v348
  %v358 = vmul.f32 %v158, %v348
  %v359 = vmul.f32 %v159, %v348
  %v360 = vmul.f32 %v160, %v348
  %v361 = vmul.f32 %v161, %v348
  %v362 = vmul.f32 %v162, %v348
  %v363 = vmul.f32 %v163, %v348
  %v364 = vmul.f32 %v164, %v348
  %v365 = vmul.f32 %v165, %v348
  %v366 = vmul.f32 %v166, %v348
  %v367 = vmul.f32 %v167, %v348
  %v368 = vmul.f32 %v168, %v348
  %v369 = vmul.f32 %v169, %v348
  %v370 = vmul.f32 %v170, %v348
  %v371 = vmul.f32 %v171, %v348
  %v372 = vmul.f32 %v172, %v348
  %v373 = vmul.f32 %v173, %v348
  %v374 = vmul.f32 %v174, %v348
  %v375 = vmul.f32 %v175, %v348
  %v376 = vmul.f32 %v176, %v348
  %v377 = vmul.f32 %v177, %v348
  %v378 = vmul.f32 %v178, %v348
  %v379 = vmul.f32 %v179, %v348
  %v380 = vmul.f32 %v180, %v348
  %v381 = vmul.f32 %v181, %v348
  %v382 = vmul.f32 %v182, %v348
  %v383 = vmul.f32 %v183, %v348
  %v384 = vmul.f32 %v184, %v348
  %v385 = vmul.f32 %v185, %v348
  %v386 = vmul.f32 %v186, %v348
  %v387 = vmul.f32 %v187, %v348
  %v388 = vmul.f32 %v188, %v348
  %v389 = vmul.f32 %v189, %v348
  %v390 = vmul.f32 %v190, %v348
  %v391 = vmul.f32 %v191, %v348
  %v392 = vmul.f32 %v192, %v348
  %v393 = vmul.f32 %v193, %v348
  %v394 = vmul.f32 %v194, %v348
  %v395 = vmul.f32 %v195, %v348
  %v396 = vmul.f32 %v196, %v348
  %v397 = vmul.f32 %v197, %v348
  %v398 = vmul.f32 %v198, %v348
  %v399 = vmul.f32 %v199, %v348
  %v400 = vmul.f32 %v200, %v348
  %v401 = vmul.f32 %v201, %v348
  %v402 = vmul.f32 %v202, %v348
  %v403 = vmul.f32 %v203, %v348
  %v404 = vmul.f32 %v204, %v348
  %v405 = vmul.f32 %v205, %v348
  %v406 = vmul.f32 %v206, %v348
  %v407 = vmul.f32 %v207, %v348
  %v408 = vmul.f32 %v208, %v348
  %v409 = vmul.f32 %v209, %v348
  %v410 = vmul.f32 %v210, %v348
  %v411 = vmul.f32 %v211, %v348
  %v412 = vmul.f32 %v212, %v348
  %v413 = vld [vmem:[%s1] sm:$0x1]
  %v415 = vlaneseq
  %v416 = vshrl.u32 %v415, 7
  %v417 = vsub.s32 0, %v416
  %v418 = vrot.slane %v413, %v417
  %v420 = vmul.f32 %v349, %v418
  %v421 = vmul.f32 %v350, %v418
  %v422 = vmul.f32 %v351, %v418
  %v423 = vmul.f32 %v352, %v418
  %v424 = vmul.f32 %v353, %v418
  %v425 = vmul.f32 %v354, %v418
  %v426 = vmul.f32 %v355, %v418
  %v427 = vmul.f32 %v356, %v418
  %v428 = vmul.f32 %v357, %v418
  %v429 = vmul.f32 %v358, %v418
  %v430 = vmul.f32 %v359, %v418
  %v431 = vmul.f32 %v360, %v418
  %v432 = vmul.f32 %v361, %v418
  %v433 = vmul.f32 %v362, %v418
  %v434 = vmul.f32 %v363, %v418
  %v435 = vmul.f32 %v364, %v418
  %v436 = vmul.f32 %v365, %v418
  %v437 = vmul.f32 %v366, %v418
  %v438 = vmul.f32 %v367, %v418
  %v439 = vmul.f32 %v368, %v418
  %v440 = vmul.f32 %v369, %v418
  %v441 = vmul.f32 %v370, %v418
  %v442 = vmul.f32 %v371, %v418
  %v443 = vmul.f32 %v372, %v418
  %v444 = vmul.f32 %v373, %v418
  %v445 = vmul.f32 %v374, %v418
  %v446 = vmul.f32 %v375, %v418
  %v447 = vmul.f32 %v376, %v418
  %v448 = vmul.f32 %v377, %v418
  %v449 = vmul.f32 %v378, %v418
  %v450 = vmul.f32 %v379, %v418
  %v451 = vmul.f32 %v380, %v418
  %v452 = vmul.f32 %v381, %v418
  %v453 = vmul.f32 %v382, %v418
  %v454 = vmul.f32 %v383, %v418
  %v455 = vmul.f32 %v384, %v418
  %v456 = vmul.f32 %v385, %v418
  %v457 = vmul.f32 %v386, %v418
  %v458 = vmul.f32 %v387, %v418
  %v459 = vmul.f32 %v388, %v418
  %v460 = vmul.f32 %v389, %v418
  %v461 = vmul.f32 %v390, %v418
  %v462 = vmul.f32 %v391, %v418
  %v463 = vmul.f32 %v392, %v418
  %v464 = vmul.f32 %v393, %v418
  %v465 = vmul.f32 %v394, %v418
  %v466 = vmul.f32 %v395, %v418
  %v467 = vmul.f32 %v396, %v418
  %v468 = vmul.f32 %v397, %v418
  %v469 = vmul.f32 %v398, %v418
  %v470 = vmul.f32 %v399, %v418
  %v471 = vmul.f32 %v400, %v418
  %v472 = vmul.f32 %v401, %v418
  %v473 = vmul.f32 %v402, %v418
  %v474 = vmul.f32 %v403, %v418
  %v475 = vmul.f32 %v404, %v418
  %v476 = vmul.f32 %v405, %v418
  %v477 = vmul.f32 %v406, %v418
  %v478 = vmul.f32 %v407, %v418
  %v479 = vmul.f32 %v408, %v418
  %v480 = vmul.f32 %v409, %v418
  %v481 = vmul.f32 %v410, %v418
  %v482 = vmul.f32 %v411, %v418
  %v483 = vmul.f32 %v412, %v418
  %v484 = vld [vmem:[%s2] sm:$0x1]
  %v486 = vlaneseq
  %v487 = vshrl.u32 %v486, 7
  %v488 = vsub.s32 0, %v487
  %v489 = vrot.slane %v484, %v488
  %v491 = vadd.f32 %v420, %v489
  %v492 = vadd.f32 %v421, %v489
  %v493 = vadd.f32 %v422, %v489
  %v494 = vadd.f32 %v423, %v489
  %v495 = vadd.f32 %v424, %v489
  %v496 = vadd.f32 %v425, %v489
  %v497 = vadd.f32 %v426, %v489
  %v498 = vadd.f32 %v427, %v489
  %v499 = vadd.f32 %v428, %v489
  %v500 = vadd.f32 %v429, %v489
  %v501 = vadd.f32 %v430, %v489
  %v502 = vadd.f32 %v431, %v489
  %v503 = vadd.f32 %v432, %v489
  %v504 = vadd.f32 %v433, %v489
  %v505 = vadd.f32 %v434, %v489
  %v506 = vadd.f32 %v435, %v489
  %v507 = vadd.f32 %v436, %v489
  %v508 = vadd.f32 %v437, %v489
  %v509 = vadd.f32 %v438, %v489
  %v510 = vadd.f32 %v439, %v489
  %v511 = vadd.f32 %v440, %v489
  %v512 = vadd.f32 %v441, %v489
  %v513 = vadd.f32 %v442, %v489
  %v514 = vadd.f32 %v443, %v489
  %v515 = vadd.f32 %v444, %v489
  %v516 = vadd.f32 %v445, %v489
  %v517 = vadd.f32 %v446, %v489
  %v518 = vadd.f32 %v447, %v489
  %v519 = vadd.f32 %v448, %v489
  %v520 = vadd.f32 %v449, %v489
  %v521 = vadd.f32 %v450, %v489
  %v522 = vadd.f32 %v451, %v489
  %v523 = vadd.f32 %v452, %v489
  %v524 = vadd.f32 %v453, %v489
  %v525 = vadd.f32 %v454, %v489
  %v526 = vadd.f32 %v455, %v489
  %v527 = vadd.f32 %v456, %v489
  %v528 = vadd.f32 %v457, %v489
  %v529 = vadd.f32 %v458, %v489
  %v530 = vadd.f32 %v459, %v489
  %v531 = vadd.f32 %v460, %v489
  %v532 = vadd.f32 %v461, %v489
  %v533 = vadd.f32 %v462, %v489
  %v534 = vadd.f32 %v463, %v489
  %v535 = vadd.f32 %v464, %v489
  %v536 = vadd.f32 %v465, %v489
  %v537 = vadd.f32 %v466, %v489
  %v538 = vadd.f32 %v467, %v489
  %v539 = vadd.f32 %v468, %v489
  %v540 = vadd.f32 %v469, %v489
  %v541 = vadd.f32 %v470, %v489
  %v542 = vadd.f32 %v471, %v489
  %v543 = vadd.f32 %v472, %v489
  %v544 = vadd.f32 %v473, %v489
  %v545 = vadd.f32 %v474, %v489
  %v546 = vadd.f32 %v475, %v489
  %v547 = vadd.f32 %v476, %v489
  %v548 = vadd.f32 %v477, %v489
  %v549 = vadd.f32 %v478, %v489
  %v550 = vadd.f32 %v479, %v489
  %v551 = vadd.f32 %v480, %v489
  %v552 = vadd.f32 %v481, %v489
  %v553 = vadd.f32 %v482, %v489
  %v554 = vadd.f32 %v483, %v489
  %555 = vst [vmem:[%s3] sm:$0xff] %v491
  %556 = vst [vmem:[%s3 + $0x8] sm:$0xff] %v492
  %557 = vst [vmem:[%s3 + $0x10] sm:$0xff] %v493
  %558 = vst [vmem:[%s3 + $0x18] sm:$0xff] %v494
  %559 = vst [vmem:[%s3 + $0x20] sm:$0xff] %v495
  %560 = vst [vmem:[%s3 + $0x28] sm:$0xff] %v496
  %561 = vst [vmem:[%s3 + $0x30] sm:$0xff] %v497
  %562 = vst [vmem:[%s3 + $0x38] sm:$0xff] %v498
  %563 = vst [vmem:[%s3 + $0x40] sm:$0xff] %v499
  %564 = vst [vmem:[%s3 + $0x48] sm:$0xff] %v500
  %565 = vst [vmem:[%s3 + $0x50] sm:$0xff] %v501
  %566 = vst [vmem:[%s3 + $0x58] sm:$0xff] %v502
  %567 = vst [vmem:[%s3 + $0x60] sm:$0xff] %v503
  %568 = vst [vmem:[%s3 + $0x68] sm:$0xff] %v504
  %569 = vst [vmem:[%s3 + $0x70] sm:$0xff] %v505
  %570 = vst [vmem:[%s3 + $0x78] sm:$0xff] %v506
  %571 = vst [vmem:[%s3 + $0x80] sm:$0xff] %v507
  %572 = vst [vmem:[%s3 + $0x88] sm:$0xff] %v508
  %573 = vst [vmem:[%s3 + $0x90] sm:$0xff] %v509
  %574 = vst [vmem:[%s3 + $0x98] sm:$0xff] %v510
  %575 = vst [vmem:[%s3 + $0xa0] sm:$0xff] %v511
  %576 = vst [vmem:[%s3 + $0xa8] sm:$0xff] %v512
  %577 = vst [vmem:[%s3 + $0xb0] sm:$0xff] %v513
  %578 = vst [vmem:[%s3 + $0xb8] sm:$0xff] %v514
  %579 = vst [vmem:[%s3 + $0xc0] sm:$0xff] %v515
  %580 = vst [vmem:[%s3 + $0xc8] sm:$0xff] %v516
  %581 = vst [vmem:[%s3 + $0xd0] sm:$0xff] %v517
  %582 = vst [vmem:[%s3 + $0xd8] sm:$0xff] %v518
  %583 = vst [vmem:[%s3 + $0xe0] sm:$0xff] %v519
  %584 = vst [vmem:[%s3 + $0xe8] sm:$0xff] %v520
  %585 = vst [vmem:[%s3 + $0xf0] sm:$0xff] %v521
  %586 = vst [vmem:[%s3 + $0xf8] sm:$0xff] %v522
  %587 = vst [vmem:[%s3 + $0x100] sm:$0xff] %v523
  %588 = vst [vmem:[%s3 + $0x108] sm:$0xff] %v524
  %589 = vst [vmem:[%s3 + $0x110] sm:$0xff] %v525
  %590 = vst [vmem:[%s3 + $0x118] sm:$0xff] %v526
  %591 = vst [vmem:[%s3 + $0x120] sm:$0xff] %v527
  %592 = vst [vmem:[%s3 + $0x128] sm:$0xff] %v528
  %593 = vst [vmem:[%s3 + $0x130] sm:$0xff] %v529
  %594 = vst [vmem:[%s3 + $0x138] sm:$0xff] %v530
  %595 = vst [vmem:[%s3 + $0x140] sm:$0xff] %v531
  %596 = vst [vmem:[%s3 + $0x148] sm:$0xff] %v532
  %597 = vst [vmem:[%s3 + $0x150] sm:$0xff] %v533
  %598 = vst [vmem:[%s3 + $0x158] sm:$0xff] %v534
  %599 = vst [vmem:[%s3 + $0x160] sm:$0xff] %v535
  %600 = vst [vmem:[%s3 + $0x168] sm:$0xff] %v536
  %601 = vst [vmem:[%s3 + $0x170] sm:$0xff] %v537
  %602 = vst [vmem:[%s3 + $0x178] sm:$0xff] %v538
  %603 = vst [vmem:[%s3 + $0x180] sm:$0xff] %v539
  %604 = vst [vmem:[%s3 + $0x188] sm:$0xff] %v540
  %605 = vst [vmem:[%s3 + $0x190] sm:$0xff] %v541
  %606 = vst [vmem:[%s3 + $0x198] sm:$0xff] %v542
  %607 = vst [vmem:[%s3 + $0x1a0] sm:$0xff] %v543
  %608 = vst [vmem:[%s3 + $0x1a8] sm:$0xff] %v544
  %609 = vst [vmem:[%s3 + $0x1b0] sm:$0xff] %v545
  %610 = vst [vmem:[%s3 + $0x1b8] sm:$0xff] %v546
  %611 = vst [vmem:[%s3 + $0x1c0] sm:$0xff] %v547
  %612 = vst [vmem:[%s3 + $0x1c8] sm:$0xff] %v548
  %613 = vst [vmem:[%s3 + $0x1d0] sm:$0xff] %v549
  %614 = vst [vmem:[%s3 + $0x1d8] sm:$0xff] %v550
  %615 = vst [vmem:[%s3 + $0x1e0] sm:$0xff] %v551
  %616 = vst [vmem:[%s3 + $0x1e8] sm:$0xff] %v552
  %617 = vst [vmem:[%s3 + $0x1f0] sm:$0xff] %v553
  %618 = vst [vmem:[%s3 + $0x1f8] sm:$0xff] %v554
  // Predicated region
  $region14: #{_lambda_.21} parent=0 // pred_check
    _
  $region15: #{_lambda_.21} parent=0 // pred_check_branch
    %620 = sbr.rel (0) target = $region17
  $region16: #{_lambda_.21} parent=0 // pred_region
    _
  $region17: #{_lambda_.21} parent=0 // pred_fallthru
    _
  // Predicated region
  $region18: #{_lambda_.21} parent=0 // pred_check
    _
  $region19: #{_lambda_.21} parent=0 // pred_check_branch
    %622 = sbr.rel (0) target = $region21
  $region20: #{_lambda_.21} parent=0 // pred_region
    _
  $region21: #{_lambda_.21} parent=0 // pred_fallthru
    _

// kernel: _lambda_.19
$region0: #{_lambda_.19}
  #allocation0 [shape = 'u32[]', space=smem, size = 0x4, offset = 0x4, fixed_abs, tag = 'smem constant byte address 0x4 - core index']
  #allocation1 [shape = 'u32[144,128]{1,0:T(1,128)}', space=vmem, size = 0x12000, scoped, tag = 'internal scratch']
  %s0 = inlined_call_operand.vmem [shape: f32[512,64], index: 0, kind: input, shape index: {}]
  %s1 = inlined_call_operand.vmem [shape: f32[1,64], index: 1, kind: input, shape index: {}]
  %s2 = inlined_call_operand.vmem [shape: f32[1,64], index: 2, kind: input, shape index: {}]
  %s3 = inlined_call_operand.vmem [shape: f32[512,64], index: 3, kind: output, shape index: {}]
  %s4 = sld [smem:[#allocation0]]
  $region22: #{_lambda_.19} parent=0
    _
  %s6 = ssub.s32 1, %s4
  %s7 = scalar_select 0, %s6, %s4
  // Predicated region
  $region2: #{_lambda_.19} parent=0 // pred_check
    _
  $region3: #{_lambda_.19} parent=0 // pred_check_branch
    %9 = sbr.rel (0) target = $region5
  $region4: #{_lambda_.19} parent=0 // pred_region
    _
  $region5: #{_lambda_.19} parent=0 // pred_fallthru
    _
  // Predicated region
  $region6: #{_lambda_.19} parent=0 // pred_check
    _
  $region7: #{_lambda_.19} parent=0 // pred_check_branch
    %11 = sbr.rel (0) target = $region9
  $region8: #{_lambda_.19} parent=0 // pred_region
    _
  $region9: #{_lambda_.19} parent=0 // pred_fallthru
    _
  // Predicated region
  $region10: #{_lambda_.19} parent=0 // pred_check
    _
  $region11: #{_lambda_.19} parent=0 // pred_check_branch
    %13 = sbr.rel (0) target = $region13
  $region12: #{_lambda_.19} parent=0 // pred_region
    _
  $region13: #{_lambda_.19} parent=0 // pred_fallthru
    _
  %v14 = vld [vmem:[%s0] sm:$0xff]
  %v15 = vld [vmem:[%s0 + $0x8] sm:$0xff]
  %v16 = vld [vmem:[%s0 + $0x10] sm:$0xff]
  %v17 = vld [vmem:[%s0 + $0x18] sm:$0xff]
  %v18 = vld [vmem:[%s0 + $0x20] sm:$0xff]
  %v19 = vld [vmem:[%s0 + $0x28] sm:$0xff]
  %v20 = vld [vmem:[%s0 + $0x30] sm:$0xff]
  %v21 = vld [vmem:[%s0 + $0x38] sm:$0xff]
  %v22 = vld [vmem:[%s0 + $0x40] sm:$0xff]
  %v23 = vld [vmem:[%s0 + $0x48] sm:$0xff]
  %v24 = vld [vmem:[%s0 + $0x50] sm:$0xff]
  %v25 = vld [vmem:[%s0 + $0x58] sm:$0xff]
  %v26 = vld [vmem:[%s0 + $0x60] sm:$0xff]
  %v27 = vld [vmem:[%s0 + $0x68] sm:$0xff]
  %v28 = vld [vmem:[%s0 + $0x70] sm:$0xff]
  %v29 = vld [vmem:[%s0 + $0x78] sm:$0xff]
  %v30 = vld [vmem:[%s0 + $0x80] sm:$0xff]
  %v31 = vld [vmem:[%s0 + $0x88] sm:$0xff]
  %v32 = vld [vmem:[%s0 + $0x90] sm:$0xff]
  %v33 = vld [vmem:[%s0 + $0x98] sm:$0xff]
  %v34 = vld [vmem:[%s0 + $0xa0] sm:$0xff]
  %v35 = vld [vmem:[%s0 + $0xa8] sm:$0xff]
  %v36 = vld [vmem:[%s0 + $0xb0] sm:$0xff]
  %v37 = vld [vmem:[%s0 + $0xb8] sm:$0xff]
  %v38 = vld [vmem:[%s0 + $0xc0] sm:$0xff]
  %v39 = vld [vmem:[%s0 + $0xc8] sm:$0xff]
  %v40 = vld [vmem:[%s0 + $0xd0] sm:$0xff]
  %v41 = vld [vmem:[%s0 + $0xd8] sm:$0xff]
  %v42 = vld [vmem:[%s0 + $0xe0] sm:$0xff]
  %v43 = vld [vmem:[%s0 + $0xe8] sm:$0xff]
  %v44 = vld [vmem:[%s0 + $0xf0] sm:$0xff]
  %v45 = vld [vmem:[%s0 + $0xf8] sm:$0xff]
  %v46 = vld [vmem:[%s0 + $0x100] sm:$0xff]
  %v47 = vld [vmem:[%s0 + $0x108] sm:$0xff]
  %v48 = vld [vmem:[%s0 + $0x110] sm:$0xff]
  %v49 = vld [vmem:[%s0 + $0x118] sm:$0xff]
  %v50 = vld [vmem:[%s0 + $0x120] sm:$0xff]
  %v51 = vld [vmem:[%s0 + $0x128] sm:$0xff]
  %v52 = vld [vmem:[%s0 + $0x130] sm:$0xff]
  %v53 = vld [vmem:[%s0 + $0x138] sm:$0xff]
  %v54 = vld [vmem:[%s0 + $0x140] sm:$0xff]
  %v55 = vld [vmem:[%s0 + $0x148] sm:$0xff]
  %v56 = vld [vmem:[%s0 + $0x150] sm:$0xff]
  %v57 = vld [vmem:[%s0 + $0x158] sm:$0xff]
  %v58 = vld [vmem:[%s0 + $0x160] sm:$0xff]
  %v59 = vld [vmem:[%s0 + $0x168] sm:$0xff]
  %v60 = vld [vmem:[%s0 + $0x170] sm:$0xff]
  %v61 = vld [vmem:[%s0 + $0x178] sm:$0xff]
  %v62 = vld [vmem:[%s0 + $0x180] sm:$0xff]
  %v63 = vld [vmem:[%s0 + $0x188] sm:$0xff]
  %v64 = vld [vmem:[%s0 + $0x190] sm:$0xff]
  %v65 = vld [vmem:[%s0 + $0x198] sm:$0xff]
  %v66 = vld [vmem:[%s0 + $0x1a0] sm:$0xff]
  %v67 = vld [vmem:[%s0 + $0x1a8] sm:$0xff]
  %v68 = vld [vmem:[%s0 + $0x1b0] sm:$0xff]
  %v69 = vld [vmem:[%s0 + $0x1b8] sm:$0xff]
  %v70 = vld [vmem:[%s0 + $0x1c0] sm:$0xff]
  %v71 = vld [vmem:[%s0 + $0x1c8] sm:$0xff]
  %v72 = vld [vmem:[%s0 + $0x1d0] sm:$0xff]
  %v73 = vld [vmem:[%s0 + $0x1d8] sm:$0xff]
  %v74 = vld [vmem:[%s0 + $0x1e0] sm:$0xff]
  %v75 = vld [vmem:[%s0 + $0x1e8] sm:$0xff]
  %v76 = vld [vmem:[%s0 + $0x1f0] sm:$0xff]
  %v77 = vld [vmem:[%s0 + $0x1f8] sm:$0xff]
  %vm78 = vcmask 523264
  %v79 = vsel %vm78, %v14, 0.0
  %v80 = vsel %vm78, %v15, 0.0
  %v81 = vadd.f32 %v79, %v80
  %v82 = vsel %vm78, %v16, 0.0
  %v83 = vadd.f32 %v81, %v82
  %v84 = vsel %vm78, %v17, 0.0
  %v85 = vadd.f32 %v83, %v84
  %v86 = vsel %vm78, %v18, 0.0
  %v87 = vadd.f32 %v85, %v86
  %v88 = vsel %vm78, %v19, 0.0
  %v89 = vadd.f32 %v87, %v88
  %v90 = vsel %vm78, %v20, 0.0
  %v91 = vadd.f32 %v89, %v90
  %v92 = vsel %vm78, %v21, 0.0
  %v93 = vadd.f32 %v91, %v92
  %v94 = vsel %vm78, %v22, 0.0
  %v95 = vadd.f32 %v93, %v94
  %v96 = vsel %vm78, %v23, 0.0
  %v97 = vadd.f32 %v95, %v96
  %v98 = vsel %vm78, %v24, 0.0
  %v99 = vadd.f32 %v97, %v98
  %v100 = vsel %vm78, %v25, 0.0
  %v101 = vadd.f32 %v99, %v100
  %v102 = vsel %vm78, %v26, 0.0
  %v103 = vadd.f32 %v101, %v102
  %v104 = vsel %vm78, %v27, 0.0
  %v105 = vadd.f32 %v103, %v104
  %v106 = vsel %vm78, %v28, 0.0
  %v107 = vadd.f32 %v105, %v106
  %v108 = vsel %vm78, %v29, 0.0
  %v109 = vadd.f32 %v107, %v108
  %v110 = vsel %vm78, %v30, 0.0
  %v111 = vadd.f32 %v109, %v110
  %v112 = vsel %vm78, %v31, 0.0
  %v113 = vadd.f32 %v111, %v112
  %v114 = vsel %vm78, %v32, 0.0
  %v115 = vadd.f32 %v113, %v114
  %v116 = vsel %vm78, %v33, 0.0
  %v117 = vadd.f32 %v115, %v116
  %v118 = vsel %vm78, %v34, 0.0
  %v119 = vadd.f32 %v117, %v118
  %v120 = vsel %vm78, %v35, 0.0
  %v121 = vadd.f32 %v119, %v120
  %v122 = vsel %vm78, %v36, 0.0
  %v123 = vadd.f32 %v121, %v122
  %v124 = vsel %vm78, %v37, 0.0
  %v125 = vadd.f32 %v123, %v124
  %v126 = vsel %vm78, %v38, 0.0
  %v127 = vadd.f32 %v125, %v126
  %v128 = vsel %vm78, %v39, 0.0
  %v129 = vadd.f32 %v127, %v128
  %v130 = vsel %vm78, %v40, 0.0
  %v131 = vadd.f32 %v129, %v130
  %v132 = vsel %vm78, %v41, 0.0
  %v133 = vadd.f32 %v131, %v132
  %v134 = vsel %vm78, %v42, 0.0
  %v135 = vadd.f32 %v133, %v134
  %v136 = vsel %vm78, %v43, 0.0
  %v137 = vadd.f32 %v135, %v136
  %v138 = vsel %vm78, %v44, 0.0
  %v139 = vadd.f32 %v137, %v138
  %v140 = vsel %vm78, %v45, 0.0
  %v141 = vadd.f32 %v139, %v140
  %v142 = vsel %vm78, %v46, 0.0
  %v143 = vadd.f32 %v141, %v142
  %v144 = vsel %vm78, %v47, 0.0
  %v145 = vadd.f32 %v143, %v144
  %v146 = vsel %vm78, %v48, 0.0
  %v147 = vadd.f32 %v145, %v146
  %v148 = vsel %vm78, %v49, 0.0
  %v149 = vadd.f32 %v147, %v148
  %v150 = vsel %vm78, %v50, 0.0
  %v151 = vadd.f32 %v149, %v150
  %v152 = vsel %vm78, %v51, 0.0
  %v153 = vadd.f32 %v151, %v152
  %v154 = vsel %vm78, %v52, 0.0
  %v155 = vadd.f32 %v153, %v154
  %v156 = vsel %vm78, %v53, 0.0
  %v157 = vadd.f32 %v155, %v156
  %v158 = vsel %vm78, %v54, 0.0
  %v159 = vadd.f32 %v157, %v158
  %v160 = vsel %vm78, %v55, 0.0
  %v161 = vadd.f32 %v159, %v160
  %v162 = vsel %vm78, %v56, 0.0
  %v163 = vadd.f32 %v161, %v162
  %v164 = vsel %vm78, %v57, 0.0
  %v165 = vadd.f32 %v163, %v164
  %v166 = vsel %vm78, %v58, 0.0
  %v167 = vadd.f32 %v165, %v166
  %v168 = vsel %vm78, %v59, 0.0
  %v169 = vadd.f32 %v167, %v168
  %v170 = vsel %vm78, %v60, 0.0
  %v171 = vadd.f32 %v169, %v170
  %v172 = vsel %vm78, %v61, 0.0
  %v173 = vadd.f32 %v171, %v172
  %v174 = vsel %vm78, %v62, 0.0
  %v175 = vadd.f32 %v173, %v174
  %v176 = vsel %vm78, %v63, 0.0
  %v177 = vadd.f32 %v175, %v176
  %v178 = vsel %vm78, %v64, 0.0
  %v179 = vadd.f32 %v177, %v178
  %v180 = vsel %vm78, %v65, 0.0
  %v181 = vadd.f32 %v179, %v180
  %v182 = vsel %vm78, %v66, 0.0
  %v183 = vadd.f32 %v181, %v182
  %v184 = vsel %vm78, %v67, 0.0
  %v185 = vadd.f32 %v183, %v184
  %v186 = vsel %vm78, %v68, 0.0
  %v187 = vadd.f32 %v185, %v186
  %v188 = vsel %vm78, %v69, 0.0
  %v189 = vadd.f32 %v187, %v188
  %v190 = vsel %vm78, %v70, 0.0
  %v191 = vadd.f32 %v189, %v190
  %v192 = vsel %vm78, %v71, 0.0
  %v193 = vadd.f32 %v191, %v192
  %v194 = vsel %vm78, %v72, 0.0
  %v195 = vadd.f32 %v193, %v194
  %v196 = vsel %vm78, %v73, 0.0
  %v197 = vadd.f32 %v195, %v196
  %v198 = vsel %vm78, %v74, 0.0
  %v199 = vadd.f32 %v197, %v198
  %v200 = vsel %vm78, %v75, 0.0
  %v201 = vadd.f32 %v199, %v200
  %v202 = vsel %vm78, %v76, 0.0
  %v203 = vadd.f32 %v201, %v202
  %v204 = vsel %vm78, %v77, 0.0
  %v205 = vadd.f32 %v203, %v204
  %v206 = vrot.slane %v205, 4
  %v207 = vadd.f32 %v205, %v206
  %v208 = vrot.slane %v207, 2
  %v209 = vadd.f32 %v207, %v208
  %v210 = vrot.slane %v209, 1
  %v211 = vadd.f32 %v209, %v210
  %v212 = vrcp.pop 512.0
  %v213 = vmul.f32 %v211, %v212
  %v214 = vsub.f32 %v14, %v213
  %v215 = vsub.f32 %v15, %v213
  %v216 = vsub.f32 %v16, %v213
  %v217 = vsub.f32 %v17, %v213
  %v218 = vsub.f32 %v18, %v213
  %v219 = vsub.f32 %v19, %v213
  %v220 = vsub.f32 %v20, %v213
  %v221 = vsub.f32 %v21, %v213
  %v222 = vsub.f32 %v22, %v213
  %v223 = vsub.f32 %v23, %v213
  %v224 = vsub.f32 %v24, %v213
  %v225 = vsub.f32 %v25, %v213
  %v226 = vsub.f32 %v26, %v213
  %v227 = vsub.f32 %v27, %v213
  %v228 = vsub.f32 %v28, %v213
  %v229 = vsub.f32 %v29, %v213
  %v230 = vsub.f32 %v30, %v213
  %v231 = vsub.f32 %v31, %v213
  %v232 = vsub.f32 %v32, %v213
  %v233 = vsub.f32 %v33, %v213
  %v234 = vsub.f32 %v34, %v213
  %v235 = vsub.f32 %v35, %v213
  %v236 = vsub.f32 %v36, %v213
  %v237 = vsub.f32 %v37, %v213
  %v238 = vsub.f32 %v38, %v213
  %v239 = vsub.f32 %v39, %v213
  %v240 = vsub.f32 %v40, %v213
  %v241 = vsub.f32 %v41, %v213
  %v242 = vsub.f32 %v42, %v213
  %v243 = vsub.f32 %v43, %v213
  %v244 = vsub.f32 %v44, %v213
  %v245 = vsub.f32 %v45, %v213
  %v246 = vsub.f32 %v46, %v213
  %v247 = vsub.f32 %v47, %v213
  %v248 = vsub.f32 %v48, %v213
  %v249 = vsub.f32 %v49, %v213
  %v250 = vsub.f32 %v50, %v213
  %v251 = vsub.f32 %v51, %v213
  %v252 = vsub.f32 %v52, %v213
  %v253 = vsub.f32 %v53, %v213
  %v254 = vsub.f32 %v54, %v213
  %v255 = vsub.f32 %v55, %v213
  %v256 = vsub.f32 %v56, %v213
  %v257 = vsub.f32 %v57, %v213
  %v258 = vsub.f32 %v58, %v213
  %v259 = vsub.f32 %v59, %v213
  %v260 = vsub.f32 %v60, %v213
  %v261 = vsub.f32 %v61, %v213
  %v262 = vsub.f32 %v62, %v213
  %v263 = vsub.f32 %v63, %v213
  %v264 = vsub.f32 %v64, %v213
  %v265 = vsub.f32 %v65, %v213
  %v266 = vsub.f32 %v66, %v213
  %v267 = vsub.f32 %v67, %v213
  %v268 = vsub.f32 %v68, %v213
  %v269 = vsub.f32 %v69, %v213
  %v270 = vsub.f32 %v70, %v213
  %v271 = vsub.f32 %v71, %v213
  %v272 = vsub.f32 %v72, %v213
  %v273 = vsub.f32 %v73, %v213
  %v274 = vsub.f32 %v74, %v213
  %v275 = vsub.f32 %v75, %v213
  %v276 = vsub.f32 %v76, %v213
  %v277 = vsub.f32 %v77, %v213
  %v278 = vmul.f32 %v214, %v214
  %v279 = vmul.f32 %v215, %v215
  %v280 = vmul.f32 %v216, %v216
  %v281 = vmul.f32 %v217, %v217
  %v282 = vmul.f32 %v218, %v218
  %v283 = vmul.f32 %v219, %v219
  %v284 = vmul.f32 %v220, %v220
  %v285 = vmul.f32 %v221, %v221
  %v286 = vmul.f32 %v222, %v222
  %v287 = vmul.f32 %v223, %v223
  %v288 = vmul.f32 %v224, %v224
  %v289 = vmul.f32 %v225, %v225
  %v290 = vmul.f32 %v226, %v226
  %v291 = vmul.f32 %v227, %v227
  %v292 = vmul.f32 %v228, %v228
  %v293 = vmul.f32 %v229, %v229
  %v294 = vmul.f32 %v230, %v230
  %v295 = vmul.f32 %v231, %v231
  %v296 = vmul.f32 %v232, %v232
  %v297 = vmul.f32 %v233, %v233
  %v298 = vmul.f32 %v234, %v234
  %v299 = vmul.f32 %v235, %v235
  %v300 = vmul.f32 %v236, %v236
  %v301 = vmul.f32 %v237, %v237
  %v302 = vmul.f32 %v238, %v238
  %v303 = vmul.f32 %v239, %v239
  %v304 = vmul.f32 %v240, %v240
  %v305 = vmul.f32 %v241, %v241
  %v306 = vmul.f32 %v242, %v242
  %v307 = vmul.f32 %v243, %v243
  %v308 = vmul.f32 %v244, %v244
  %v309 = vmul.f32 %v245, %v245
  %v310 = vmul.f32 %v246, %v246
  %v311 = vmul.f32 %v247, %v247
  %v312 = vmul.f32 %v248, %v248
  %v313 = vmul.f32 %v249, %v249
  %v314 = vmul.f32 %v250, %v250
  %v315 = vmul.f32 %v251, %v251
  %v316 = vmul.f32 %v252, %v252
  %v317 = vmul.f32 %v253, %v253
  %v318 = vmul.f32 %v254, %v254
  %v319 = vmul.f32 %v255, %v255
  %v320 = vmul.f32 %v256, %v256
  %v321 = vmul.f32 %v257, %v257
  %v322 = vmul.f32 %v258, %v258
  %v323 = vmul.f32 %v259, %v259
  %v324 = vmul.f32 %v260, %v260
  %v325 = vmul.f32 %v261, %v261
  %v326 = vmul.f32 %v262, %v262
  %v327 = vmul.f32 %v263, %v263
  %v328 = vmul.f32 %v264, %v264
  %v329 = vmul.f32 %v265, %v265
  %v330 = vmul.f32 %v266, %v266
  %v331 = vmul.f32 %v267, %v267
  %v332 = vmul.f32 %v268, %v268
  %v333 = vmul.f32 %v269, %v269
  %v334 = vmul.f32 %v270, %v270
  %v335 = vmul.f32 %v271, %v271
  %v336 = vmul.f32 %v272, %v272
  %v337 = vmul.f32 %v273, %v273
  %v338 = vmul.f32 %v274, %v274
  %v339 = vmul.f32 %v275, %v275
  %v340 = vmul.f32 %v276, %v276
  %v341 = vmul.f32 %v277, %v277
  %v342 = vsel %vm78, %v278, 0.0
  %v343 = vsel %vm78, %v279, 0.0
  %v344 = vadd.f32 %v342, %v343
  %v345 = vsel %vm78, %v280, 0.0
  %v346 = vadd.f32 %v344, %v345
  %v347 = vsel %vm78, %v281, 0.0
  %v348 = vadd.f32 %v346, %v347
  %v349 = vsel %vm78, %v282, 0.0
  %v350 = vadd.f32 %v348, %v349
  %v351 = vsel %vm78, %v283, 0.0
  %v352 = vadd.f32 %v350, %v351
  %v353 = vsel %vm78, %v284, 0.0
  %v354 = vadd.f32 %v352, %v353
  %v355 = vsel %vm78, %v285, 0.0
  %v356 = vadd.f32 %v354, %v355
  %v357 = vsel %vm78, %v286, 0.0
  %v358 = vadd.f32 %v356, %v357
  %v359 = vsel %vm78, %v287, 0.0
  %v360 = vadd.f32 %v358, %v359
  %v361 = vsel %vm78, %v288, 0.0
  %v362 = vadd.f32 %v360, %v361
  %v363 = vsel %vm78, %v289, 0.0
  %v364 = vadd.f32 %v362, %v363
  %v365 = vsel %vm78, %v290, 0.0
  %v366 = vadd.f32 %v364, %v365
  %v367 = vsel %vm78, %v291, 0.0
  %v368 = vadd.f32 %v366, %v367
  %v369 = vsel %vm78, %v292, 0.0
  %v370 = vadd.f32 %v368, %v369
  %v371 = vsel %vm78, %v293, 0.0
  %v372 = vadd.f32 %v370, %v371
  %v373 = vsel %vm78, %v294, 0.0
  %v374 = vadd.f32 %v372, %v373
  %v375 = vsel %vm78, %v295, 0.0
  %v376 = vadd.f32 %v374, %v375
  %v377 = vsel %vm78, %v296, 0.0
  %v378 = vadd.f32 %v376, %v377
  %v379 = vsel %vm78, %v297, 0.0
  %v380 = vadd.f32 %v378, %v379
  %v381 = vsel %vm78, %v298, 0.0
  %v382 = vadd.f32 %v380, %v381
  %v383 = vsel %vm78, %v299, 0.0
  %v384 = vadd.f32 %v382, %v383
  %v385 = vsel %vm78, %v300, 0.0
  %v386 = vadd.f32 %v384, %v385
  %v387 = vsel %vm78, %v301, 0.0
  %v388 = vadd.f32 %v386, %v387
  %v389 = vsel %vm78, %v302, 0.0
  %v390 = vadd.f32 %v388, %v389
  %v391 = vsel %vm78, %v303, 0.0
  %v392 = vadd.f32 %v390, %v391
  %v393 = vsel %vm78, %v304, 0.0
  %v394 = vadd.f32 %v392, %v393
  %v395 = vsel %vm78, %v305, 0.0
  %v396 = vadd.f32 %v394, %v395
  %v397 = vsel %vm78, %v306, 0.0
  %v398 = vadd.f32 %v396, %v397
  %v399 = vsel %vm78, %v307, 0.0
  %v400 = vadd.f32 %v398, %v399
  %v401 = vsel %vm78, %v308, 0.0
  %v402 = vadd.f32 %v400, %v401
  %v403 = vsel %vm78, %v309, 0.0
  %v404 = vadd.f32 %v402, %v403
  %v405 = vsel %vm78, %v310, 0.0
  %v406 = vadd.f32 %v404, %v405
  %v407 = vsel %vm78, %v311, 0.0
  %v408 = vadd.f32 %v406, %v407
  %v409 = vsel %vm78, %v312, 0.0
  %v410 = vadd.f32 %v408, %v409
  %v411 = vsel %vm78, %v313, 0.0
  %v412 = vadd.f32 %v410, %v411
  %v413 = vsel %vm78, %v314, 0.0
  %v414 = vadd.f32 %v412, %v413
  %v415 = vsel %vm78, %v315, 0.0
  %v416 = vadd.f32 %v414, %v415
  %v417 = vsel %vm78, %v316, 0.0
  %v418 = vadd.f32 %v416, %v417
  %v419 = vsel %vm78, %v317, 0.0
  %v420 = vadd.f32 %v418, %v419
  %v421 = vsel %vm78, %v318, 0.0
  %v422 = vadd.f32 %v420, %v421
  %v423 = vsel %vm78, %v319, 0.0
  %v424 = vadd.f32 %v422, %v423
  %v425 = vsel %vm78, %v320, 0.0
  %v426 = vadd.f32 %v424, %v425
  %v427 = vsel %vm78, %v321, 0.0
  %v428 = vadd.f32 %v426, %v427
  %v429 = vsel %vm78, %v322, 0.0
  %v430 = vadd.f32 %v428, %v429
  %v431 = vsel %vm78, %v323, 0.0
  %v432 = vadd.f32 %v430, %v431
  %v433 = vsel %vm78, %v324, 0.0
  %v434 = vadd.f32 %v432, %v433
  %v435 = vsel %vm78, %v325, 0.0
  %v436 = vadd.f32 %v434, %v435
  %v437 = vsel %vm78, %v326, 0.0
  %v438 = vadd.f32 %v436, %v437
  %v439 = vsel %vm78, %v327, 0.0
  %v440 = vadd.f32 %v438, %v439
  %v441 = vsel %vm78, %v328, 0.0
  %v442 = vadd.f32 %v440, %v441
  %v443 = vsel %vm78, %v329, 0.0
  %v444 = vadd.f32 %v442, %v443
  %v445 = vsel %vm78, %v330, 0.0
  %v446 = vadd.f32 %v444, %v445
  %v447 = vsel %vm78, %v331, 0.0
  %v448 = vadd.f32 %v446, %v447
  %v449 = vsel %vm78, %v332, 0.0
  %v450 = vadd.f32 %v448, %v449
  %v451 = vsel %vm78, %v333, 0.0
  %v452 = vadd.f32 %v450, %v451
  %v453 = vsel %vm78, %v334, 0.0
  %v454 = vadd.f32 %v452, %v453
  %v455 = vsel %vm78, %v335, 0.0
  %v456 = vadd.f32 %v454, %v455
  %v457 = vsel %vm78, %v336, 0.0
  %v458 = vadd.f32 %v456, %v457
  %v459 = vsel %vm78, %v337, 0.0
  %v460 = vadd.f32 %v458, %v459
  %v461 = vsel %vm78, %v338, 0.0
  %v462 = vadd.f32 %v460, %v461
  %v463 = vsel %vm78, %v339, 0.0
  %v464 = vadd.f32 %v462, %v463
  %v465 = vsel %vm78, %v340, 0.0
  %v466 = vadd.f32 %v464, %v465
  %v467 = vsel %vm78, %v341, 0.0
  %v468 = vadd.f32 %v466, %v467
  %v469 = vrot.slane %v468, 4
  %v470 = vadd.f32 %v468, %v469
  %v471 = vrot.slane %v470, 2
  %v472 = vadd.f32 %v470, %v471
  %v473 = vrot.slane %v472, 1
  %v474 = vadd.f32 %v472, %v473
  %v475 = vmul.f32 %v474, %v212
  %v476 = vadd.f32 %v475, 1e-05
  %v477 = vrsqrt.pop %v476
  %v478 = vmul.f32 %v214, %v477
  %v479 = vmul.f32 %v215, %v477
  %v480 = vmul.f32 %v216, %v477
  %v481 = vmul.f32 %v217, %v477
  %v482 = vmul.f32 %v218, %v477
  %v483 = vmul.f32 %v219, %v477
  %v484 = vmul.f32 %v220, %v477
  %v485 = vmul.f32 %v221, %v477
  %v486 = vmul.f32 %v222, %v477
  %v487 = vmul.f32 %v223, %v477
  %v488 = vmul.f32 %v224, %v477
  %v489 = vmul.f32 %v225, %v477
  %v490 = vmul.f32 %v226, %v477
  %v491 = vmul.f32 %v227, %v477
  %v492 = vmul.f32 %v228, %v477
  %v493 = vmul.f32 %v229, %v477
  %v494 = vmul.f32 %v230, %v477
  %v495 = vmul.f32 %v231, %v477
  %v496 = vmul.f32 %v232, %v477
  %v497 = vmul.f32 %v233, %v477
  %v498 = vmul.f32 %v234, %v477
  %v499 = vmul.f32 %v235, %v477
  %v500 = vmul.f32 %v236, %v477
  %v501 = vmul.f32 %v237, %v477
  %v502 = vmul.f32 %v238, %v477
  %v503 = vmul.f32 %v239, %v477
  %v504 = vmul.f32 %v240, %v477
  %v505 = vmul.f32 %v241, %v477
  %v506 = vmul.f32 %v242, %v477
  %v507 = vmul.f32 %v243, %v477
  %v508 = vmul.f32 %v244, %v477
  %v509 = vmul.f32 %v245, %v477
  %v510 = vmul.f32 %v246, %v477
  %v511 = vmul.f32 %v247, %v477
  %v512 = vmul.f32 %v248, %v477
  %v513 = vmul.f32 %v249, %v477
  %v514 = vmul.f32 %v250, %v477
  %v515 = vmul.f32 %v251, %v477
  %v516 = vmul.f32 %v252, %v477
  %v517 = vmul.f32 %v253, %v477
  %v518 = vmul.f32 %v254, %v477
  %v519 = vmul.f32 %v255, %v477
  %v520 = vmul.f32 %v256, %v477
  %v521 = vmul.f32 %v257, %v477
  %v522 = vmul.f32 %v258, %v477
  %v523 = vmul.f32 %v259, %v477
  %v524 = vmul.f32 %v260, %v477
  %v525 = vmul.f32 %v261, %v477
  %v526 = vmul.f32 %v262, %v477
  %v527 = vmul.f32 %v263, %v477
  %v528 = vmul.f32 %v264, %v477
  %v529 = vmul.f32 %v265, %v477
  %v530 = vmul.f32 %v266, %v477
  %v531 = vmul.f32 %v267, %v477
  %v532 = vmul.f32 %v268, %v477
  %v533 = vmul.f32 %v269, %v477
  %v534 = vmul.f32 %v270, %v477
  %v535 = vmul.f32 %v271, %v477
  %v536 = vmul.f32 %v272, %v477
  %v537 = vmul.f32 %v273, %v477
  %v538 = vmul.f32 %v274, %v477
  %v539 = vmul.f32 %v275, %v477
  %v540 = vmul.f32 %v276, %v477
  %v541 = vmul.f32 %v277, %v477
  %v542 = vld [vmem:[%s1] sm:$0x1]
  %v544 = vlaneseq
  %v545 = vshrl.u32 %v544, 7
  %v546 = vsub.s32 0, %v545
  %v547 = vrot.slane %v542, %v546
  %v549 = vmul.f32 %v478, %v547
  %v550 = vmul.f32 %v479, %v547
  %v551 = vmul.f32 %v480, %v547
  %v552 = vmul.f32 %v481, %v547
  %v553 = vmul.f32 %v482, %v547
  %v554 = vmul.f32 %v483, %v547
  %v555 = vmul.f32 %v484, %v547
  %v556 = vmul.f32 %v485, %v547
  %v557 = vmul.f32 %v486, %v547
  %v558 = vmul.f32 %v487, %v547
  %v559 = vmul.f32 %v488, %v547
  %v560 = vmul.f32 %v489, %v547
  %v561 = vmul.f32 %v490, %v547
  %v562 = vmul.f32 %v491, %v547
  %v563 = vmul.f32 %v492, %v547
  %v564 = vmul.f32 %v493, %v547
  %v565 = vmul.f32 %v494, %v547
  %v566 = vmul.f32 %v495, %v547
  %v567 = vmul.f32 %v496, %v547
  %v568 = vmul.f32 %v497, %v547
  %v569 = vmul.f32 %v498, %v547
  %v570 = vmul.f32 %v499, %v547
  %v571 = vmul.f32 %v500, %v547
  %v572 = vmul.f32 %v501, %v547
  %v573 = vmul.f32 %v502, %v547
  %v574 = vmul.f32 %v503, %v547
  %v575 = vmul.f32 %v504, %v547
  %v576 = vmul.f32 %v505, %v547
  %v577 = vmul.f32 %v506, %v547
  %v578 = vmul.f32 %v507, %v547
  %v579 = vmul.f32 %v508, %v547
  %v580 = vmul.f32 %v509, %v547
  %v581 = vmul.f32 %v510, %v547
  %v582 = vmul.f32 %v511, %v547
  %v583 = vmul.f32 %v512, %v547
  %v584 = vmul.f32 %v513, %v547
  %v585 = vmul.f32 %v514, %v547
  %v586 = vmul.f32 %v515, %v547
  %v587 = vmul.f32 %v516, %v547
  %v588 = vmul.f32 %v517, %v547
  %v589 = vmul.f32 %v518, %v547
  %v590 = vmul.f32 %v519, %v547
  %v591 = vmul.f32 %v520, %v547
  %v592 = vmul.f32 %v521, %v547
  %v593 = vmul.f32 %v522, %v547
  %v594 = vmul.f32 %v523, %v547
  %v595 = vmul.f32 %v524, %v547
  %v596 = vmul.f32 %v525, %v547
  %v597 = vmul.f32 %v526, %v547
  %v598 = vmul.f32 %v527, %v547
  %v599 = vmul.f32 %v528, %v547
  %v600 = vmul.f32 %v529, %v547
  %v601 = vmul.f32 %v530, %v547
  %v602 = vmul.f32 %v531, %v547
  %v603 = vmul.f32 %v532, %v547
  %v604 = vmul.f32 %v533, %v547
  %v605 = vmul.f32 %v534, %v547
  %v606 = vmul.f32 %v535, %v547
  %v607 = vmul.f32 %v536, %v547
  %v608 = vmul.f32 %v537, %v547
  %v609 = vmul.f32 %v538, %v547
  %v610 = vmul.f32 %v539, %v547
  %v611 = vmul.f32 %v540, %v547
  %v612 = vmul.f32 %v541, %v547
  %v613 = vld [vmem:[%s2] sm:$0x1]
  %v615 = vlaneseq
  %v616 = vshrl.u32 %v615, 7
  %v617 = vsub.s32 0, %v616
  %v618 = vrot.slane %v613, %v617
  %v620 = vadd.f32 %v549, %v618
  %v621 = vadd.f32 %v550, %v618
  %v622 = vadd.f32 %v551, %v618
  %v623 = vadd.f32 %v552, %v618
  %v624 = vadd.f32 %v553, %v618
  %v625 = vadd.f32 %v554, %v618
  %v626 = vadd.f32 %v555, %v618
  %v627 = vadd.f32 %v556, %v618
  %v628 = vadd.f32 %v557, %v618
  %v629 = vadd.f32 %v558, %v618
  %v630 = vadd.f32 %v559, %v618
  %v631 = vadd.f32 %v560, %v618
  %v632 = vadd.f32 %v561, %v618
  %v633 = vadd.f32 %v562, %v618
  %v634 = vadd.f32 %v563, %v618
  %v635 = vadd.f32 %v564, %v618
  %v636 = vadd.f32 %v565, %v618
  %v637 = vadd.f32 %v566, %v618
  %v638 = vadd.f32 %v567, %v618
  %v639 = vadd.f32 %v568, %v618
  %v640 = vadd.f32 %v569, %v618
  %v641 = vadd.f32 %v570, %v618
  %v642 = vadd.f32 %v571, %v618
  %v643 = vadd.f32 %v572, %v618
  %v644 = vadd.f32 %v573, %v618
  %v645 = vadd.f32 %v574, %v618
  %v646 = vadd.f32 %v575, %v618
  %v647 = vadd.f32 %v576, %v618
  %v648 = vadd.f32 %v577, %v618
  %v649 = vadd.f32 %v578, %v618
  %v650 = vadd.f32 %v579, %v618
  %v651 = vadd.f32 %v580, %v618
  %v652 = vadd.f32 %v581, %v618
  %v653 = vadd.f32 %v582, %v618
  %v654 = vadd.f32 %v583, %v618
  %v655 = vadd.f32 %v584, %v618
  %v656 = vadd.f32 %v585, %v618
  %v657 = vadd.f32 %v586, %v618
  %v658 = vadd.f32 %v587, %v618
  %v659 = vadd.f32 %v588, %v618
  %v660 = vadd.f32 %v589, %v618
  %v661 = vadd.f32 %v590, %v618
  %v662 = vadd.f32 %v591, %v618
  %v663 = vadd.f32 %v592, %v618
  %v664 = vadd.f32 %v593, %v618
  %v665 = vadd.f32 %v594, %v618
  %v666 = vadd.f32 %v595, %v618
  %v667 = vadd.f32 %v596, %v618
  %v668 = vadd.f32 %v597, %v618
  %v669 = vadd.f32 %v598, %v618
  %v670 = vadd.f32 %v599, %v618
  %v671 = vadd.f32 %v600, %v618
  %v672 = vadd.f32 %v601, %v618
  %v673 = vadd.f32 %v602, %v618
  %v674 = vadd.f32 %v603, %v618
  %v675 = vadd.f32 %v604, %v618
  %v676 = vadd.f32 %v605, %v618
  %v677 = vadd.f32 %v606, %v618
  %v678 = vadd.f32 %v607, %v618
  %v679 = vadd.f32 %v608, %v618
  %v680 = vadd.f32 %v609, %v618
  %v681 = vadd.f32 %v610, %v618
  %v682 = vadd.f32 %v611, %v618
  %v683 = vadd.f32 %v612, %v618
  %684 = vst.msk [vmem:[%s3] sm:$0xff] %vm78, %v620
  %685 = vst.msk [vmem:[%s3 + $0x8] sm:$0xff] %vm78, %v621
  %686 = vst.msk [vmem:[%s3 + $0x10] sm:$0xff] %vm78, %v622
  %687 = vst.msk [vmem:[%s3 + $0x18] sm:$0xff] %vm78, %v623
  %688 = vst.msk [vmem:[%s3 + $0x20] sm:$0xff] %vm78, %v624
  %689 = vst.msk [vmem:[%s3 + $0x28] sm:$0xff] %vm78, %v625
  %690 = vst.msk [vmem:[%s3 + $0x30] sm:$0xff] %vm78, %v626
  %691 = vst.msk [vmem:[%s3 + $0x38] sm:$0xff] %vm78, %v627
  %692 = vst.msk [vmem:[%s3 + $0x40] sm:$0xff] %vm78, %v628
  %693 = vst.msk [vmem:[%s3 + $0x48] sm:$0xff] %vm78, %v629
  %694 = vst.msk [vmem:[%s3 + $0x50] sm:$0xff] %vm78, %v630
  %695 = vst.msk [vmem:[%s3 + $0x58] sm:$0xff] %vm78, %v631
  %696 = vst.msk [vmem:[%s3 + $0x60] sm:$0xff] %vm78, %v632
  %697 = vst.msk [vmem:[%s3 + $0x68] sm:$0xff] %vm78, %v633
  %698 = vst.msk [vmem:[%s3 + $0x70] sm:$0xff] %vm78, %v634
  %699 = vst.msk [vmem:[%s3 + $0x78] sm:$0xff] %vm78, %v635
  %700 = vst.msk [vmem:[%s3 + $0x80] sm:$0xff] %vm78, %v636
  %701 = vst.msk [vmem:[%s3 + $0x88] sm:$0xff] %vm78, %v637
  %702 = vst.msk [vmem:[%s3 + $0x90] sm:$0xff] %vm78, %v638
  %703 = vst.msk [vmem:[%s3 + $0x98] sm:$0xff] %vm78, %v639
  %704 = vst.msk [vmem:[%s3 + $0xa0] sm:$0xff] %vm78, %v640
  %705 = vst.msk [vmem:[%s3 + $0xa8] sm:$0xff] %vm78, %v641
  %706 = vst.msk [vmem:[%s3 + $0xb0] sm:$0xff] %vm78, %v642
  %707 = vst.msk [vmem:[%s3 + $0xb8] sm:$0xff] %vm78, %v643
  %708 = vst.msk [vmem:[%s3 + $0xc0] sm:$0xff] %vm78, %v644
  %709 = vst.msk [vmem:[%s3 + $0xc8] sm:$0xff] %vm78, %v645
  %710 = vst.msk [vmem:[%s3 + $0xd0] sm:$0xff] %vm78, %v646
  %711 = vst.msk [vmem:[%s3 + $0xd8] sm:$0xff] %vm78, %v647
  %712 = vst.msk [vmem:[%s3 + $0xe0] sm:$0xff] %vm78, %v648
  %713 = vst.msk [vmem:[%s3 + $0xe8] sm:$0xff] %vm78, %v649
  %714 = vst.msk [vmem:[%s3 + $0xf0] sm:$0xff] %vm78, %v650
  %715 = vst.msk [vmem:[%s3 + $0xf8] sm:$0xff] %vm78, %v651
  %716 = vst.msk [vmem:[%s3 + $0x100] sm:$0xff] %vm78, %v652
  %717 = vst.msk [vmem:[%s3 + $0x108] sm:$0xff] %vm78, %v653
  %718 = vst.msk [vmem:[%s3 + $0x110] sm:$0xff] %vm78, %v654
  %719 = vst.msk [vmem:[%s3 + $0x118] sm:$0xff] %vm78, %v655
  %720 = vst.msk [vmem:[%s3 + $0x120] sm:$0xff] %vm78, %v656
  %721 = vst.msk [vmem:[%s3 + $0x128] sm:$0xff] %vm78, %v657
  %722 = vst.msk [vmem:[%s3 + $0x130] sm:$0xff] %vm78, %v658
  %723 = vst.msk [vmem:[%s3 + $0x138] sm:$0xff] %vm78, %v659
  %724 = vst.msk [vmem:[%s3 + $0x140] sm:$0xff] %vm78, %v660
  %725 = vst.msk [vmem:[%s3 + $0x148] sm:$0xff] %vm78, %v661
  %726 = vst.msk [vmem:[%s3 + $0x150] sm:$0xff] %vm78, %v662
  %727 = vst.msk [vmem:[%s3 + $0x158] sm:$0xff] %vm78, %v663
  %728 = vst.msk [vmem:[%s3 + $0x160] sm:$0xff] %vm78, %v664
  %729 = vst.msk [vmem:[%s3 + $0x168] sm:$0xff] %vm78, %v665
  %730 = vst.msk [vmem:[%s3 + $0x170] sm:$0xff] %vm78, %v666
  %731 = vst.msk [vmem:[%s3 + $0x178] sm:$0xff] %vm78, %v667
  %732 = vst.msk [vmem:[%s3 + $0x180] sm:$0xff] %vm78, %v668
  %733 = vst.msk [vmem:[%s3 + $0x188] sm:$0xff] %vm78, %v669
  %734 = vst.msk [vmem:[%s3 + $0x190] sm:$0xff] %vm78, %v670
  %735 = vst.msk [vmem:[%s3 + $0x198] sm:$0xff] %vm78, %v671
  %736 = vst.msk [vmem:[%s3 + $0x1a0] sm:$0xff] %vm78, %v672
  %737 = vst.msk [vmem:[%s3 + $0x1a8] sm:$0xff] %vm78, %v673
  %738 = vst.msk [vmem:[%s3 + $0x1b0] sm:$0xff] %vm78, %v674
  %739 = vst.msk [vmem:[%s3 + $0x1b8] sm:$0xff] %vm78, %v675
  %740 = vst.msk [vmem:[%s3 + $0x1c0] sm:$0xff] %vm78, %v676
  %741 = vst.msk [vmem:[%s3 + $0x1c8] sm:$0xff] %vm78, %v677
  %742 = vst.msk [vmem:[%s3 + $0x1d0] sm:$0xff] %vm78, %v678
  %743 = vst.msk [vmem:[%s3 + $0x1d8] sm:$0xff] %vm78, %v679
  %744 = vst.msk [vmem:[%s3 + $0x1e0] sm:$0xff] %vm78, %v680
  %745 = vst.msk [vmem:[%s3 + $0x1e8] sm:$0xff] %vm78, %v681
  %746 = vst.msk [vmem:[%s3 + $0x1f0] sm:$0xff] %vm78, %v682
  %747 = vst.msk [vmem:[%s3 + $0x1f8] sm:$0xff] %vm78, %v683
  // Predicated region
  $region14: #{_lambda_.19} parent=0 // pred_check
    _
  $region15: #{_lambda_.19} parent=0 // pred_check_branch
    %749 = sbr.rel (0) target = $region17
  $region16: #{_lambda_.19} parent=0 // pred_region
    _
  $region17: #{_lambda_.19} parent=0 // pred_fallthru
    _
  // Predicated region
  $region18: #{_lambda_.19} parent=0 // pred_check
    _
  $region19: #{_lambda_.19} parent=0 // pred_check_branch
    %751 = sbr.rel (0) target = $region21
  $region20: #{_lambda_.19} parent=0 // pred_region
    _
  $region21: #{_lambda_.19} parent=0 // pred_fallthru
    _

// kernel: _lambda_.20
$region0: #{_lambda_.20}
  #allocation0 [shape = 'u32[]', space=smem, size = 0x4, offset = 0x4, fixed_abs, tag = 'smem constant byte address 0x4 - core index']
  #allocation1 [shape = 'u32[144,128]{1,0:T(1,128)}', space=vmem, size = 0x12000, scoped, tag = 'internal scratch']
  %s0 = inlined_call_operand.vmem [shape: bf16[512,128], index: 0, kind: input, shape index: {}]
  %s1 = inlined_call_operand.vmem [shape: bf16[128,128], index: 1, kind: input, shape index: {}]
  %s2 = inlined_call_operand.vmem [shape: f32[512,128], index: 2, kind: output, shape index: {}]
  %s3 = sld [smem:[#allocation0]]
  $region18: #{_lambda_.20} parent=0
    _
  %s5 = ssub.s32 1, %s3
  %s6 = scalar_select 0, %s5, %s3
  // Predicated region
  $region2: #{_lambda_.20} parent=0 // pred_check
    _
  $region3: #{_lambda_.20} parent=0 // pred_check_branch
    %8 = sbr.rel (0) target = $region5
  $region4: #{_lambda_.20} parent=0 // pred_region
    _
  $region5: #{_lambda_.20} parent=0 // pred_fallthru
    _
  // Predicated region
  $region6: #{_lambda_.20} parent=0 // pred_check
    _
  $region7: #{_lambda_.20} parent=0 // pred_check_branch
    %10 = sbr.rel (0) target = $region9
  $region8: #{_lambda_.20} parent=0 // pred_region
    _
  $region9: #{_lambda_.20} parent=0 // pred_fallthru
    _
  %v12 = vld [vmem:[%s0] sm:$0xf]
  %v13 = vld [vmem:[%s0 + $0x4] sm:$0xf]
  %v14 = vld [vmem:[%s0 + $0x8] sm:$0xf]
  %v15 = vld [vmem:[%s0 + $0xc] sm:$0xf]
  %v16 = vld [vmem:[%s0 + $0x10] sm:$0xf]
  %v17 = vld [vmem:[%s0 + $0x14] sm:$0xf]
  %v18 = vld [vmem:[%s0 + $0x18] sm:$0xf]
  %v19 = vld [vmem:[%s0 + $0x1c] sm:$0xf]
  %v20 = vld [vmem:[%s0 + $0x20] sm:$0xf]
  %v21 = vld [vmem:[%s0 + $0x24] sm:$0xf]
  %v22 = vld [vmem:[%s0 + $0x28] sm:$0xf]
  %v23 = vld [vmem:[%s0 + $0x2c] sm:$0xf]
  %v24 = vld [vmem:[%s0 + $0x30] sm:$0xf]
  %v25 = vld [vmem:[%s0 + $0x34] sm:$0xf]
  %v26 = vld [vmem:[%s0 + $0x38] sm:$0xf]
  %v27 = vld [vmem:[%s0 + $0x3c] sm:$0xf]
  %v28 = vld [vmem:[%s0 + $0x40] sm:$0xf]
  %v29 = vld [vmem:[%s0 + $0x44] sm:$0xf]
  %v30 = vld [vmem:[%s0 + $0x48] sm:$0xf]
  %v31 = vld [vmem:[%s0 + $0x4c] sm:$0xf]
  %v32 = vld [vmem:[%s0 + $0x50] sm:$0xf]
  %v33 = vld [vmem:[%s0 + $0x54] sm:$0xf]
  %v34 = vld [vmem:[%s0 + $0x58] sm:$0xf]
  %v35 = vld [vmem:[%s0 + $0x5c] sm:$0xf]
  %v36 = vld [vmem:[%s0 + $0x60] sm:$0xf]
  %v37 = vld [vmem:[%s0 + $0x64] sm:$0xf]
  %v38 = vld [vmem:[%s0 + $0x68] sm:$0xf]
  %v39 = vld [vmem:[%s0 + $0x6c] sm:$0xf]
  %v40 = vld [vmem:[%s0 + $0x70] sm:$0xf]
  %v41 = vld [vmem:[%s0 + $0x74] sm:$0xf]
  %v42 = vld [vmem:[%s0 + $0x78] sm:$0xf]
  %v43 = vld [vmem:[%s0 + $0x7c] sm:$0xf]
  %v44 = vld [vmem:[%s0 + $0x80] sm:$0xf]
  %v45 = vld [vmem:[%s0 + $0x84] sm:$0xf]
  %v46 = vld [vmem:[%s0 + $0x88] sm:$0xf]
  %v47 = vld [vmem:[%s0 + $0x8c] sm:$0xf]
  %v48 = vld [vmem:[%s0 + $0x90] sm:$0xf]
  %v49 = vld [vmem:[%s0 + $0x94] sm:$0xf]
  %v50 = vld [vmem:[%s0 + $0x98] sm:$0xf]
  %v51 = vld [vmem:[%s0 + $0x9c] sm:$0xf]
  %v52 = vld [vmem:[%s0 + $0xa0] sm:$0xf]
  %v53 = vld [vmem:[%s0 + $0xa4] sm:$0xf]
  %v54 = vld [vmem:[%s0 + $0xa8] sm:$0xf]
  %v55 = vld [vmem:[%s0 + $0xac] sm:$0xf]
  %v56 = vld [vmem:[%s0 + $0xb0] sm:$0xf]
  %v57 = vld [vmem:[%s0 + $0xb4] sm:$0xf]
  %v58 = vld [vmem:[%s0 + $0xb8] sm:$0xf]
  %v59 = vld [vmem:[%s0 + $0xbc] sm:$0xf]
  %v60 = vld [vmem:[%s0 + $0xc0] sm:$0xf]
  %v61 = vld [vmem:[%s0 + $0xc4] sm:$0xf]
  %v62 = vld [vmem:[%s0 + $0xc8] sm:$0xf]
  %v63 = vld [vmem:[%s0 + $0xcc] sm:$0xf]
  %v64 = vld [vmem:[%s0 + $0xd0] sm:$0xf]
  %v65 = vld [vmem:[%s0 + $0xd4] sm:$0xf]
  %v66 = vld [vmem:[%s0 + $0xd8] sm:$0xf]
  %v67 = vld [vmem:[%s0 + $0xdc] sm:$0xf]
  %v68 = vld [vmem:[%s0 + $0xe0] sm:$0xf]
  %v69 = vld [vmem:[%s0 + $0xe4] sm:$0xf]
  %v70 = vld [vmem:[%s0 + $0xe8] sm:$0xf]
  %v71 = vld [vmem:[%s0 + $0xec] sm:$0xf]
  %v72 = vld [vmem:[%s0 + $0xf0] sm:$0xf]
  %v73 = vld [vmem:[%s0 + $0xf4] sm:$0xf]
  %v74 = vld [vmem:[%s0 + $0xf8] sm:$0xf]
  %v75 = vld [vmem:[%s0 + $0xfc] sm:$0xf]
  %v76 = vld [vmem:[%s1] sm:$0xf]
  %v77 = vld [vmem:[%s1 + $0x4] sm:$0xf]
  %v78 = vld [vmem:[%s1 + $0x8] sm:$0xf]
  %v79 = vld [vmem:[%s1 + $0xc] sm:$0xf]
  %v80 = vld [vmem:[%s1 + $0x10] sm:$0xf]
  %v81 = vld [vmem:[%s1 + $0x14] sm:$0xf]
  %v82 = vld [vmem:[%s1 + $0x18] sm:$0xf]
  %v83 = vld [vmem:[%s1 + $0x1c] sm:$0xf]
  %v84 = vld [vmem:[%s1 + $0x20] sm:$0xf]
  %v85 = vld [vmem:[%s1 + $0x24] sm:$0xf]
  %v86 = vld [vmem:[%s1 + $0x28] sm:$0xf]
  %v87 = vld [vmem:[%s1 + $0x2c] sm:$0xf]
  %v88 = vld [vmem:[%s1 + $0x30] sm:$0xf]
  %v89 = vld [vmem:[%s1 + $0x34] sm:$0xf]
  %v90 = vld [vmem:[%s1 + $0x38] sm:$0xf]
  %v91 = vld [vmem:[%s1 + $0x3c] sm:$0xf]
  %v156 = vunpack.c.l.b16 %v12
  %v157 = vunpack.c.l.b16 %v13
  %v158 = vunpack.c.l.b16 %v14
  %v159 = vunpack.c.l.b16 %v15
  %v160 = vunpack.c.l.b16 %v16
  %v161 = vunpack.c.l.b16 %v17
  %v162 = vunpack.c.l.b16 %v18
  %v163 = vunpack.c.l.b16 %v19
  %v164 = vunpack.c.l.b16 %v20
  %v165 = vunpack.c.l.b16 %v21
  %v166 = vunpack.c.l.b16 %v22
  %v167 = vunpack.c.l.b16 %v23
  %v168 = vunpack.c.l.b16 %v24
  %v169 = vunpack.c.l.b16 %v25
  %v170 = vunpack.c.l.b16 %v26
  %v171 = vunpack.c.l.b16 %v27
  %v172 = vunpack.c.l.b16 %v28
  %v173 = vunpack.c.l.b16 %v29
  %v174 = vunpack.c.l.b16 %v30
  %v175 = vunpack.c.l.b16 %v31
  %v176 = vunpack.c.l.b16 %v32
  %v177 = vunpack.c.l.b16 %v33
  %v178 = vunpack.c.l.b16 %v34
  %v179 = vunpack.c.l.b16 %v35
  %v180 = vunpack.c.l.b16 %v36
  %v181 = vunpack.c.l.b16 %v37
  %v182 = vunpack.c.l.b16 %v38
  %v183 = vunpack.c.l.b16 %v39
  %v184 = vunpack.c.l.b16 %v40
  %v185 = vunpack.c.l.b16 %v41
  %v186 = vunpack.c.l.b16 %v42
  %v187 = vunpack.c.l.b16 %v43
  %v188 = vunpack.c.l.b16 %v44
  %v189 = vunpack.c.l.b16 %v45
  %v190 = vunpack.c.l.b16 %v46
  %v191 = vunpack.c.l.b16 %v47
  %v192 = vunpack.c.l.b16 %v48
  %v193 = vunpack.c.l.b16 %v49
  %v194 = vunpack.c.l.b16 %v50
  %v195 = vunpack.c.l.b16 %v51
  %v196 = vunpack.c.l.b16 %v52
  %v197 = vunpack.c.l.b16 %v53
  %v198 = vunpack.c.l.b16 %v54
  %v199 = vunpack.c.l.b16 %v55
  %v200 = vunpack.c.l.b16 %v56
  %v201 = vunpack.c.l.b16 %v57
  %v202 = vunpack.c.l.b16 %v58
  %v203 = vunpack.c.l.b16 %v59
  %v204 = vunpack.c.l.b16 %v60
  %v205 = vunpack.c.l.b16 %v61
  %v206 = vunpack.c.l.b16 %v62
  %v207 = vunpack.c.l.b16 %v63
  %v208 = vunpack.c.l.b16 %v64
  %v209 = vunpack.c.l.b16 %v65
  %v210 = vunpack.c.l.b16 %v66
  %v211 = vunpack.c.l.b16 %v67
  %v212 = vunpack.c.l.b16 %v68
  %v213 = vunpack.c.l.b16 %v69
  %v214 = vunpack.c.l.b16 %v70
  %v215 = vunpack.c.l.b16 %v71
  %v216 = vunpack.c.l.b16 %v72
  %v217 = vunpack.c.l.b16 %v73
  %v218 = vunpack.c.l.b16 %v74
  %v219 = vunpack.c.l.b16 %v75
  %v220 = vpack.c.b16 %v157, %v156
  %v221 = vpack.c.b16 %v159, %v158
  %v222 = vpack.c.b16 %v161, %v160
  %v223 = vpack.c.b16 %v163, %v162
  %v224 = vpack.c.b16 %v165, %v164
  %v225 = vpack.c.b16 %v167, %v166
  %v226 = vpack.c.b16 %v169, %v168
  %v227 = vpack.c.b16 %v171, %v170
  %v228 = vpack.c.b16 %v173, %v172
  %v229 = vpack.c.b16 %v175, %v174
  %v230 = vpack.c.b16 %v177, %v176
  %v231 = vpack.c.b16 %v179, %v178
  %v232 = vpack.c.b16 %v181, %v180
  %v233 = vpack.c.b16 %v183, %v182
  %v234 = vpack.c.b16 %v185, %v184
  %v235 = vpack.c.b16 %v187, %v186
  %v236 = vpack.c.b16 %v189, %v188
  %v237 = vpack.c.b16 %v191, %v190
  %v238 = vpack.c.b16 %v193, %v192
  %v239 = vpack.c.b16 %v195, %v194
  %v240 = vpack.c.b16 %v197, %v196
  %v241 = vpack.c.b16 %v199, %v198
  %v242 = vpack.c.b16 %v201, %v200
  %v243 = vpack.c.b16 %v203, %v202
  %v244 = vpack.c.b16 %v205, %v204
  %v245 = vpack.c.b16 %v207, %v206
  %v246 = vpack.c.b16 %v209, %v208
  %v247 = vpack.c.b16 %v211, %v210
  %v248 = vpack.c.b16 %v213, %v212
  %v249 = vpack.c.b16 %v215, %v214
  %v250 = vpack.c.b16 %v217, %v216
  %v251 = vpack.c.b16 %v219, %v218
  %v300 = vunpack.c.l.b16 %v76
  %v301 = vunpack.c.l.b16 %v77
  %v302 = vunpack.c.l.b16 %v78
  %v303 = vunpack.c.l.b16 %v79
  %v304 = vunpack.c.l.b16 %v80
  %v305 = vunpack.c.l.b16 %v81
  %v306 = vunpack.c.l.b16 %v82
  %v307 = vunpack.c.l.b16 %v83
  %v308 = vunpack.c.l.b16 %v84
  %v309 = vunpack.c.l.b16 %v85
  %v310 = vunpack.c.l.b16 %v86
  %v311 = vunpack.c.l.b16 %v87
  %v312 = vunpack.c.l.b16 %v88
  %v313 = vunpack.c.l.b16 %v89
  %v314 = vunpack.c.l.b16 %v90
  %v315 = vunpack.c.l.b16 %v91
  %v316 = vpack.c.b16 %v301, %v300
  %v317 = vpack.c.b16 %v303, %v302
  %v318 = vpack.c.b16 %v305, %v304
  %v319 = vpack.c.b16 %v307, %v306
  %v320 = vpack.c.b16 %v309, %v308
  %v321 = vpack.c.b16 %v311, %v310
  %v322 = vpack.c.b16 %v313, %v312
  %v323 = vpack.c.b16 %v315, %v314
  %332 = vmatprep.subr.bf16.mxu0 0
  %333 = vmatpush1.bf16.msra.mxu0 %v316
  %334 = vmatprep.subr.bf16.mxu0 0
  %335 = vmatpush1.bf16.msra.mxu0 %v317
  %336 = vmatprep.subr.bf16.mxu0 0
  %337 = vmatpush1.bf16.msra.mxu0 %v318
  %338 = vmatprep.subr.bf16.mxu0 0
  %339 = vmatpush1.bf16.msra.mxu0 %v319
  %340 = vmatprep.subr.bf16.mxu0 0
  %341 = vmatpush1.bf16.msra.mxu0 %v320
  %342 = vmatprep.subr.bf16.mxu0 0
  %343 = vmatpush1.bf16.msra.mxu0 %v321
  %344 = vmatprep.subr.bf16.mxu0 0
  %345 = vmatpush1.bf16.msra.mxu0 %v322
  %346 = vmatprep.subr.bf16.mxu0 0
  %347 = vmatpush1.bf16.msra.mxu0 %v323
  %348 = vmatprep.subr.bf16.mxu0 0
  %349 = vmatpush1.bf16.msra.mxu0 0
  %350 = vmatprep.subr.bf16.mxu0 0
  %351 = vmatpush1.bf16.msra.mxu0 0
  %352 = vmatprep.subr.bf16.mxu0 0
  %353 = vmatpush1.bf16.msra.mxu0 0
  %354 = vmatprep.subr.bf16.mxu0 0
  %355 = vmatpush1.bf16.msra.mxu0 0
  %356 = vmatprep.subr.bf16.mxu0 0
  %357 = vmatpush1.bf16.msra.mxu0 0
  %358 = vmatprep.subr.bf16.mxu0 0
  %359 = vmatpush1.bf16.msra.mxu0 0
  %360 = vmatprep.subr.bf16.mxu0 0
  %361 = vmatpush1.bf16.msra.mxu0 0
  %362 = vmatprep.subr.bf16.mxu0 0
  %363 = vmatpush1.bf16.msra.mxu0 0
  %364 = vmatprep.mubr.bf16.mxu0 0
  %365 = vmatmul.mubr.bf16.gmra.mrb[0].mxu0 %v220
  %v366 = vpop.f32.mrb[0].mxu0
  %v367 = vadd.f32 0.0, %v366
  %v368 = vpop.f32.mrb[0].mxu0
  %v369 = vpop.f32.mrb[0].mxu0
  %v370 = vadd.f32 0.0, %v369
  %v371 = vpop.f32.mrb[0].mxu0
  %372 = vmatprep.mubr.bf16.mxu0 0
  %373 = vmatmul.mubr.bf16.gmra.mrb[0].mxu0 %v221
  %v374 = vpop.f32.mrb[0].mxu0
  %v375 = vadd.f32 0.0, %v374
  %v376 = vpop.f32.mrb[0].mxu0
  %v377 = vpop.f32.mrb[0].mxu0
  %v378 = vadd.f32 0.0, %v377
  %v379 = vpop.f32.mrb[0].mxu0
  %380 = vmatprep.mubr.bf16.mxu0 0
  %381 = vmatmul.mubr.bf16.gmra.mrb[0].mxu0 %v222
  %v382 = vpop.f32.mrb[0].mxu0
  %v383 = vadd.f32 0.0, %v382
  %v384 = vpop.f32.mrb[0].mxu0
  %v385 = vpop.f32.mrb[0].mxu0
  %v386 = vadd.f32 0.0, %v385
  %v387 = vpop.f32.mrb[0].mxu0
  %388 = vmatprep.mubr.bf16.mxu0 0
  %389 = vmatmul.mubr.bf16.gmra.mrb[0].mxu0 %v223
  %v390 = vpop.f32.mrb[0].mxu0
  %v391 = vadd.f32 0.0, %v390
  %v392 = vpop.f32.mrb[0].mxu0
  %v393 = vpop.f32.mrb[0].mxu0
  %v394 = vadd.f32 0.0, %v393
  %v395 = vpop.f32.mrb[0].mxu0
  %396 = vmatprep.mubr.bf16.mxu0 0
  %397 = vmatmul.mubr.bf16.gmra.mrb[0].mxu0 %v224
  %v398 = vpop.f32.mrb[0].mxu0
  %v399 = vadd.f32 0.0, %v398
  %v400 = vpop.f32.mrb[0].mxu0
  %v401 = vpop.f32.mrb[0].mxu0
  %v402 = vadd.f32 0.0, %v401
  %v403 = vpop.f32.mrb[0].mxu0
  %404 = vmatprep.mubr.bf16.mxu0 0
  %405 = vmatmul.mubr.bf16.gmra.mrb[0].mxu0 %v225
  %v406 = vpop.f32.mrb[0].mxu0
  %v407 = vadd.f32 0.0, %v406
  %v408 = vpop.f32.mrb[0].mxu0
  %v409 = vpop.f32.mrb[0].mxu0
  %v410 = vadd.f32 0.0, %v409
  %v411 = vpop.f32.mrb[0].mxu0
  %412 = vmatprep.mubr.bf16.mxu0 0
  %413 = vmatmul.mubr.bf16.gmra.mrb[0].mxu0 %v226
  %v414 = vpop.f32.mrb[0].mxu0
  %v415 = vadd.f32 0.0, %v414
  %v416 = vpop.f32.mrb[0].mxu0
  %v417 = vpop.f32.mrb[0].mxu0
  %v418 = vadd.f32 0.0, %v417
  %v419 = vpop.f32.mrb[0].mxu0
  %420 = vmatprep.mubr.bf16.mxu0 0
  %421 = vmatmul.mubr.bf16.gmra.mrb[0].mxu0 %v227
  %v422 = vpop.f32.mrb[0].mxu0
  %v423 = vadd.f32 0.0, %v422
  %v424 = vpop.f32.mrb[0].mxu0
  %v425 = vpop.f32.mrb[0].mxu0
  %v426 = vadd.f32 0.0, %v425
  %v427 = vpop.f32.mrb[0].mxu0
  %428 = vmatprep.mubr.bf16.mxu0 0
  %429 = vmatmul.mubr.bf16.gmra.mrb[0].mxu0 %v228
  %v430 = vpop.f32.mrb[0].mxu0
  %v431 = vadd.f32 0.0, %v430
  %v432 = vpop.f32.mrb[0].mxu0
  %v433 = vpop.f32.mrb[0].mxu0
  %v434 = vadd.f32 0.0, %v433
  %v435 = vpop.f32.mrb[0].mxu0
  %436 = vmatprep.mubr.bf16.mxu0 0
  %437 = vmatmul.mubr.bf16.gmra.mrb[0].mxu0 %v229
  %v438 = vpop.f32.mrb[0].mxu0
  %v439 = vadd.f32 0.0, %v438
  %v440 = vpop.f32.mrb[0].mxu0
  %v441 = vpop.f32.mrb[0].mxu0
  %v442 = vadd.f32 0.0, %v441
  %v443 = vpop.f32.mrb[0].mxu0
  %444 = vmatprep.mubr.bf16.mxu0 0
  %445 = vmatmul.mubr.bf16.gmra.mrb[0].mxu0 %v230
  %v446 = vpop.f32.mrb[0].mxu0
  %v447 = vadd.f32 0.0, %v446
  %v448 = vpop.f32.mrb[0].mxu0
  %v449 = vpop.f32.mrb[0].mxu0
  %v450 = vadd.f32 0.0, %v449
  %v451 = vpop.f32.mrb[0].mxu0
  %452 = vmatprep.mubr.bf16.mxu0 0
  %453 = vmatmul.mubr.bf16.gmra.mrb[0].mxu0 %v231
  %v454 = vpop.f32.mrb[0].mxu0
  %v455 = vadd.f32 0.0, %v454
  %v456 = vpop.f32.mrb[0].mxu0
  %v457 = vpop.f32.mrb[0].mxu0
  %v458 = vadd.f32 0.0, %v457
  %v459 = vpop.f32.mrb[0].mxu0
  %460 = vmatprep.mubr.bf16.mxu0 0
  %461 = vmatmul.mubr.bf16.gmra.mrb[0].mxu0 %v232
  %v462 = vpop.f32.mrb[0].mxu0
  %v463 = vadd.f32 0.0, %v462
  %v464 = vpop.f32.mrb[0].mxu0
  %v465 = vpop.f32.mrb[0].mxu0
  %v466 = vadd.f32 0.0, %v465
  %v467 = vpop.f32.mrb[0].mxu0
  %468 = vmatprep.mubr.bf16.mxu0 0
  %469 = vmatmul.mubr.bf16.gmra.mrb[0].mxu0 %v233
  %v470 = vpop.f32.mrb[0].mxu0
  %v471 = vadd.f32 0.0, %v470
  %v472 = vpop.f32.mrb[0].mxu0
  %v473 = vpop.f32.mrb[0].mxu0
  %v474 = vadd.f32 0.0, %v473
  %v475 = vpop.f32.mrb[0].mxu0
  %476 = vmatprep.mubr.bf16.mxu0 0
  %477 = vmatmul.mubr.bf16.gmra.mrb[0].mxu0 %v234
  %v478 = vpop.f32.mrb[0].mxu0
  %v479 = vadd.f32 0.0, %v478
  %v480 = vpop.f32.mrb[0].mxu0
  %v481 = vpop.f32.mrb[0].mxu0
  %v482 = vadd.f32 0.0, %v481
  %v483 = vpop.f32.mrb[0].mxu0
  %484 = vmatprep.mubr.bf16.mxu0 0
  %485 = vmatmul.mubr.bf16.gmra.mrb[0].mxu0 %v235
  %v486 = vpop.f32.mrb[0].mxu0
  %v487 = vadd.f32 0.0, %v486
  %v488 = vpop.f32.mrb[0].mxu0
  %v489 = vpop.f32.mrb[0].mxu0
  %v490 = vadd.f32 0.0, %v489
  %v491 = vpop.f32.mrb[0].mxu0
  %492 = vmatprep.mubr.bf16.mxu0 0
  %493 = vmatmul.mubr.bf16.gmra.mrb[0].mxu0 %v236
  %v494 = vpop.f32.mrb[0].mxu0
  %v495 = vadd.f32 0.0, %v494
  %v496 = vpop.f32.mrb[0].mxu0
  %v497 = vpop.f32.mrb[0].mxu0
  %v498 = vadd.f32 0.0, %v497
  %v499 = vpop.f32.mrb[0].mxu0
  %500 = vmatprep.mubr.bf16.mxu0 0
  %501 = vmatmul.mubr.bf16.gmra.mrb[0].mxu0 %v237
  %v502 = vpop.f32.mrb[0].mxu0
  %v503 = vadd.f32 0.0, %v502
  %v504 = vpop.f32.mrb[0].mxu0
  %v505 = vpop.f32.mrb[0].mxu0
  %v506 = vadd.f32 0.0, %v505
  %v507 = vpop.f32.mrb[0].mxu0
  %508 = vmatprep.mubr.bf16.mxu0 0
  %509 = vmatmul.mubr.bf16.gmra.mrb[0].mxu0 %v238
  %v510 = vpop.f32.mrb[0].mxu0
  %v511 = vadd.f32 0.0, %v510
  %v512 = vpop.f32.mrb[0].mxu0
  %v513 = vpop.f32.mrb[0].mxu0
  %v514 = vadd.f32 0.0, %v513
  %v515 = vpop.f32.mrb[0].mxu0
  %516 = vmatprep.mubr.bf16.mxu0 0
  %517 = vmatmul.mubr.bf16.gmra.mrb[0].mxu0 %v239
  %v518 = vpop.f32.mrb[0].mxu0
  %v519 = vadd.f32 0.0, %v518
  %v520 = vpop.f32.mrb[0].mxu0
  %v521 = vpop.f32.mrb[0].mxu0
  %v522 = vadd.f32 0.0, %v521
  %v523 = vpop.f32.mrb[0].mxu0
  %524 = vmatprep.mubr.bf16.mxu0 0
  %525 = vmatmul.mubr.bf16.gmra.mrb[0].mxu0 %v240
  %v526 = vpop.f32.mrb[0].mxu0
  %v527 = vadd.f32 0.0, %v526
  %v528 = vpop.f32.mrb[0].mxu0
  %v529 = vpop.f32.mrb[0].mxu0
  %v530 = vadd.f32 0.0, %v529
  %v531 = vpop.f32.mrb[0].mxu0
  %532 = vmatprep.mubr.bf16.mxu0 0
  %533 = vmatmul.mubr.bf16.gmra.mrb[0].mxu0 %v241
  %v534 = vpop.f32.mrb[0].mxu0
  %v535 = vadd.f32 0.0, %v534
  %v536 = vpop.f32.mrb[0].mxu0
  %v537 = vpop.f32.mrb[0].mxu0
  %v538 = vadd.f32 0.0, %v537
  %v539 = vpop.f32.mrb[0].mxu0
  %540 = vmatprep.mubr.bf16.mxu0 0
  %541 = vmatmul.mubr.bf16.gmra.mrb[0].mxu0 %v242
  %v542 = vpop.f32.mrb[0].mxu0
  %v543 = vadd.f32 0.0, %v542
  %v544 = vpop.f32.mrb[0].mxu0
  %v545 = vpop.f32.mrb[0].mxu0
  %v546 = vadd.f32 0.0, %v545
  %v547 = vpop.f32.mrb[0].mxu0
  %548 = vmatprep.mubr.bf16.mxu0 0
  %549 = vmatmul.mubr.bf16.gmra.mrb[0].mxu0 %v243
  %v550 = vpop.f32.mrb[0].mxu0
  %v551 = vadd.f32 0.0, %v550
  %v552 = vpop.f32.mrb[0].mxu0
  %v553 = vpop.f32.mrb[0].mxu0
  %v554 = vadd.f32 0.0, %v553
  %v555 = vpop.f32.mrb[0].mxu0
  %556 = vmatprep.mubr.bf16.mxu0 0
  %557 = vmatmul.mubr.bf16.gmra.mrb[0].mxu0 %v244
  %v558 = vpop.f32.mrb[0].mxu0
  %v559 = vadd.f32 0.0, %v558
  %v560 = vpop.f32.mrb[0].mxu0
  %v561 = vpop.f32.mrb[0].mxu0
  %v562 = vadd.f32 0.0, %v561
  %v563 = vpop.f32.mrb[0].mxu0
  %564 = vmatprep.mubr.bf16.mxu0 0
  %565 = vmatmul.mubr.bf16.gmra.mrb[0].mxu0 %v245
  %v566 = vpop.f32.mrb[0].mxu0
  %v567 = vadd.f32 0.0, %v566
  %v568 = vpop.f32.mrb[0].mxu0
  %v569 = vpop.f32.mrb[0].mxu0
  %v570 = vadd.f32 0.0, %v569
  %v571 = vpop.f32.mrb[0].mxu0
  %572 = vmatprep.mubr.bf16.mxu0 0
  %573 = vmatmul.mubr.bf16.gmra.mrb[0].mxu0 %v246
  %v574 = vpop.f32.mrb[0].mxu0
  %v575 = vadd.f32 0.0, %v574
  %v576 = vpop.f32.mrb[0].mxu0
  %v577 = vpop.f32.mrb[0].mxu0
  %v578 = vadd.f32 0.0, %v577
  %v579 = vpop.f32.mrb[0].mxu0
  %580 = vmatprep.mubr.bf16.mxu0 0
  %581 = vmatmul.mubr.bf16.gmra.mrb[0].mxu0 %v247
  %v582 = vpop.f32.mrb[0].mxu0
  %v583 = vadd.f32 0.0, %v582
  %v584 = vpop.f32.mrb[0].mxu0
  %v585 = vpop.f32.mrb[0].mxu0
  %v586 = vadd.f32 0.0, %v585
  %v587 = vpop.f32.mrb[0].mxu0
  %588 = vmatprep.mubr.bf16.mxu0 0
  %589 = vmatmul.mubr.bf16.gmra.mrb[0].mxu0 %v248
  %v590 = vpop.f32.mrb[0].mxu0
  %v591 = vadd.f32 0.0, %v590
  %v592 = vpop.f32.mrb[0].mxu0
  %v593 = vpop.f32.mrb[0].mxu0
  %v594 = vadd.f32 0.0, %v593
  %v595 = vpop.f32.mrb[0].mxu0
  %596 = vmatprep.mubr.bf16.mxu0 0
  %597 = vmatmul.mubr.bf16.gmra.mrb[0].mxu0 %v249
  %v598 = vpop.f32.mrb[0].mxu0
  %v599 = vadd.f32 0.0, %v598
  %v600 = vpop.f32.mrb[0].mxu0
  %v601 = vpop.f32.mrb[0].mxu0
  %v602 = vadd.f32 0.0, %v601
  %v603 = vpop.f32.mrb[0].mxu0
  %604 = vmatprep.mubr.bf16.mxu0 0
  %605 = vmatmul.mubr.bf16.gmra.mrb[0].mxu0 %v250
  %v606 = vpop.f32.mrb[0].mxu0
  %v607 = vadd.f32 0.0, %v606
  %v608 = vpop.f32.mrb[0].mxu0
  %v609 = vpop.f32.mrb[0].mxu0
  %v610 = vadd.f32 0.0, %v609
  %v611 = vpop.f32.mrb[0].mxu0
  %612 = vmatprep.mubr.bf16.mxu0 0
  %613 = vmatmul.mubr.bf16.gmra.mrb[0].mxu0 %v251
  %v614 = vpop.f32.mrb[0].mxu0
  %v615 = vadd.f32 0.0, %v614
  %v616 = vpop.f32.mrb[0].mxu0
  %v617 = vpop.f32.mrb[0].mxu0
  %v618 = vadd.f32 0.0, %v617
  %v619 = vpop.f32.mrb[0].mxu0
  %620 = vdwg.mxu0
  %621 = vst [vmem:[%s2] sm:$0xff] %v367
  %622 = vst [vmem:[%s2 + $0x8] sm:$0xff] %v370
  %623 = vst [vmem:[%s2 + $0x10] sm:$0xff] %v375
  %624 = vst [vmem:[%s2 + $0x18] sm:$0xff] %v378
  %625 = vst [vmem:[%s2 + $0x20] sm:$0xff] %v383
  %626 = vst [vmem:[%s2 + $0x28] sm:$0xff] %v386
  %627 = vst [vmem:[%s2 + $0x30] sm:$0xff] %v391
  %628 = vst [vmem:[%s2 + $0x38] sm:$0xff] %v394
  %629 = vst [vmem:[%s2 + $0x40] sm:$0xff] %v399
  %630 = vst [vmem:[%s2 + $0x48] sm:$0xff] %v402
  %631 = vst [vmem:[%s2 + $0x50] sm:$0xff] %v407
  %632 = vst [vmem:[%s2 + $0x58] sm:$0xff] %v410
  %633 = vst [vmem:[%s2 + $0x60] sm:$0xff] %v415
  %634 = vst [vmem:[%s2 + $0x68] sm:$0xff] %v418
  %635 = vst [vmem:[%s2 + $0x70] sm:$0xff] %v423
  %636 = vst [vmem:[%s2 + $0x78] sm:$0xff] %v426
  %637 = vst [vmem:[%s2 + $0x80] sm:$0xff] %v431
  %638 = vst [vmem:[%s2 + $0x88] sm:$0xff] %v434
  %639 = vst [vmem:[%s2 + $0x90] sm:$0xff] %v439
  %640 = vst [vmem:[%s2 + $0x98] sm:$0xff] %v442
  %641 = vst [vmem:[%s2 + $0xa0] sm:$0xff] %v447
  %642 = vst [vmem:[%s2 + $0xa8] sm:$0xff] %v450
  %643 = vst [vmem:[%s2 + $0xb0] sm:$0xff] %v455
  %644 = vst [vmem:[%s2 + $0xb8] sm:$0xff] %v458
  %645 = vst [vmem:[%s2 + $0xc0] sm:$0xff] %v463
  %646 = vst [vmem:[%s2 + $0xc8] sm:$0xff] %v466
  %647 = vst [vmem:[%s2 + $0xd0] sm:$0xff] %v471
  %648 = vst [vmem:[%s2 + $0xd8] sm:$0xff] %v474
  %649 = vst [vmem:[%s2 + $0xe0] sm:$0xff] %v479
  %650 = vst [vmem:[%s2 + $0xe8] sm:$0xff] %v482
  %651 = vst [vmem:[%s2 + $0xf0] sm:$0xff] %v487
  %652 = vst [vmem:[%s2 + $0xf8] sm:$0xff] %v490
  %653 = vst [vmem:[%s2 + $0x100] sm:$0xff] %v495
  %654 = vst [vmem:[%s2 + $0x108] sm:$0xff] %v498
  %655 = vst [vmem:[%s2 + $0x110] sm:$0xff] %v503
  %656 = vst [vmem:[%s2 + $0x118] sm:$0xff] %v506
  %657 = vst [vmem:[%s2 + $0x120] sm:$0xff] %v511
  %658 = vst [vmem:[%s2 + $0x128] sm:$0xff] %v514
  %659 = vst [vmem:[%s2 + $0x130] sm:$0xff] %v519
  %660 = vst [vmem:[%s2 + $0x138] sm:$0xff] %v522
  %661 = vst [vmem:[%s2 + $0x140] sm:$0xff] %v527
  %662 = vst [vmem:[%s2 + $0x148] sm:$0xff] %v530
  %663 = vst [vmem:[%s2 + $0x150] sm:$0xff] %v535
  %664 = vst [vmem:[%s2 + $0x158] sm:$0xff] %v538
  %665 = vst [vmem:[%s2 + $0x160] sm:$0xff] %v543
  %666 = vst [vmem:[%s2 + $0x168] sm:$0xff] %v546
  %667 = vst [vmem:[%s2 + $0x170] sm:$0xff] %v551
  %668 = vst [vmem:[%s2 + $0x178] sm:$0xff] %v554
  %669 = vst [vmem:[%s2 + $0x180] sm:$0xff] %v559
  %670 = vst [vmem:[%s2 + $0x188] sm:$0xff] %v562
  %671 = vst [vmem:[%s2 + $0x190] sm:$0xff] %v567
  %672 = vst [vmem:[%s2 + $0x198] sm:$0xff] %v570
  %673 = vst [vmem:[%s2 + $0x1a0] sm:$0xff] %v575
  %674 = vst [vmem:[%s2 + $0x1a8] sm:$0xff] %v578
  %675 = vst [vmem:[%s2 + $0x1b0] sm:$0xff] %v583
  %676 = vst [vmem:[%s2 + $0x1b8] sm:$0xff] %v586
  %677 = vst [vmem:[%s2 + $0x1c0] sm:$0xff] %v591
  %678 = vst [vmem:[%s2 + $0x1c8] sm:$0xff] %v594
  %679 = vst [vmem:[%s2 + $0x1d0] sm:$0xff] %v599
  %680 = vst [vmem:[%s2 + $0x1d8] sm:$0xff] %v602
  %681 = vst [vmem:[%s2 + $0x1e0] sm:$0xff] %v607
  %682 = vst [vmem:[%s2 + $0x1e8] sm:$0xff] %v610
  %683 = vst [vmem:[%s2 + $0x1f0] sm:$0xff] %v615
  %684 = vst [vmem:[%s2 + $0x1f8] sm:$0xff] %v618
  // Predicated region
  $region10: #{_lambda_.20} parent=0 // pred_check
    _
  $region11: #{_lambda_.20} parent=0 // pred_check_branch
    %686 = sbr.rel (0) target = $region13
  $region12: #{_lambda_.20} parent=0 // pred_region
    _
  $region13: #{_lambda_.20} parent=0 // pred_fallthru
    _
  // Predicated region
  $region14: #{_lambda_.20} parent=0 // pred_check
    _
  $region15: #{_lambda_.20} parent=0 // pred_check_branch
    %688 = sbr.rel (0) target = $region17
  $region16: #{_lambda_.20} parent=0 // pred_region
    _
  $region17: #{_lambda_.20} parent=0 // pred_fallthru
    _

// kernel: _lambda_.18
$region0: #{_lambda_.18}
  #allocation0 [shape = 'u32[]', space=smem, size = 0x4, offset = 0x4, fixed_abs, tag = 'smem constant byte address 0x4 - core index']
  #allocation1 [shape = 'u32[144,128]{1,0:T(1,128)}', space=vmem, size = 0x12000, scoped, tag = 'internal scratch']
  %s0 = inlined_call_operand.vmem [shape: f32[2,20,20,64], index: 0, kind: input, shape index: {}]
  %s1 = inlined_call_operand.vmem [shape: f32[9,1,64], index: 1, kind: input, shape index: {}]
  %s2 = inlined_call_operand.vmem [shape: f32[2,16,16,64], index: 2, kind: output, shape index: {}]
  %s3 = sld [smem:[#allocation0]]
  $region41: #{_lambda_.18} parent=0
    _
  %s5 = ssub.s32 1, %s3
  %s6 = scalar_select 0, %s5, %s3
  loop: start=0, step=1, limit=4
  $region2: #{_lambda_.18} parent=0 // loop_pre_header
    _
  $region3: #{_lambda_.18} parent=0 // loop_header
    %s8 = sphi 0, %s12
    %p9 = scmp.ge.s32.totalorder %s8, 4
    %s18 = sphi 0, %s20
    %s21 = sphi 0, %s18
    %s22 = sphi 0, %s21
    %s38 = sphi 0, %s22
    %s42 = sphi 0, %s42
    %s44 = sphi 0, %s42
    %s45 = sphi 0, %s44
    %s59 = sphi 0, %s45
    %s65 = sphi 0, %s67
    %s68 = sphi 0, %s65
    %s69 = sphi 0, %s68
    %s85 = sphi 0, %s69
  $region4: #{_lambda_.18} parent=0 // loop_header_branch
    %11 = sbr.rel (%p9) target = $region8
  $region5: #{_lambda_.18} parent=0 // loop_body
    %s13 = ssub.s32 %s8, 1
    %s14 = ssub.s32 %s8, 2
    %s15 = sadd.s32 %s8, 1
    %s16 = ssub.s32 %s8, %s15
    %p17 = scmp.eq.s32.totalorder %s16, 0
    %s19 = sadd.s32 %s18, 1
    %s20 = scalar_select %p17, %s18, %s19
    %p23 = pneg %p17
    %p24 = scmp.eq.s32.totalorder %s8, 1
    %p25 = por %p23, %p24
    %p26 = scmp.ne.s32.totalorder %s18, %s21
    %p27 = scmp.eq.s32.totalorder %s8, 0
    %p28 = por %p26, %p27
    %p29 = scmp.ne.s32.totalorder %s18, %s21
    %p30 = scmp.eq.s32.totalorder %s13, 1
    %p31 = por %p29, %p30
    %p32 = scmp.ne.s32.totalorder %s21, %s22
    %p33 = scmp.eq.s32.totalorder %s13, 0
    %p34 = por %p32, %p33
    %p35 = scmp.ne.s32.totalorder %s21, %s22
    %p36 = scmp.eq.s32.totalorder %s14, 1
    %p37 = por %p35, %p36
    %p39 = scmp.ne.s32.totalorder %s22, %s38
    %p40 = scmp.eq.s32.totalorder %s14, 0
    %p41 = por %p39, %p40
    %s43 = sadd.s32 %s42, 1
    %p46 = scmp.eq.s32.totalorder %s8, 1
    %p47 = scmp.ne.s32.totalorder %s42, %s44
    %p48 = scmp.eq.s32.totalorder %s8, 0
    %p49 = por %p47, %p48
    %p50 = scmp.ne.s32.totalorder %s42, %s44
    %p51 = scmp.eq.s32.totalorder %s13, 1
    %p52 = por %p50, %p51
    %p53 = scmp.ne.s32.totalorder %s44, %s45
    %p54 = scmp.eq.s32.totalorder %s13, 0
    %p55 = por %p53, %p54
    %p56 = scmp.ne.s32.totalorder %s44, %s45
    %p57 = scmp.eq.s32.totalorder %s14, 1
    %p58 = por %p56, %p57
    %p60 = scmp.ne.s32.totalorder %s45, %s59
    %p61 = scmp.eq.s32.totalorder %s14, 0
    %p62 = por %p60, %p61
    %s63 = ssub.s32 %s8, %s15
    %p64 = scmp.eq.s32.totalorder %s63, 0
    %s66 = sadd.s32 %s65, 1
    %s67 = scalar_select %p64, %s65, %s66
    %p70 = pneg %p64
    %p71 = scmp.eq.s32.totalorder %s8, 1
    %p72 = por %p70, %p71
    %p73 = scmp.ne.s32.totalorder %s65, %s68
    %p74 = scmp.eq.s32.totalorder %s8, 0
    %p75 = por %p73, %p74
    %p76 = scmp.ne.s32.totalorder %s65, %s68
    %p77 = scmp.eq.s32.totalorder %s13, 1
    %p78 = por %p76, %p77
    %p79 = scmp.ne.s32.totalorder %s68, %s69
    %p80 = scmp.eq.s32.totalorder %s13, 0
    %p81 = por %p79, %p80
    %p82 = scmp.ne.s32.totalorder %s68, %s69
    %p83 = scmp.eq.s32.totalorder %s14, 1
    %p84 = por %p82, %p83
    %p86 = scmp.ne.s32.totalorder %s69, %s85
    %p87 = scmp.eq.s32.totalorder %s14, 0
    %p88 = por %p86, %p87
    %p89 = scmp.le.s32.totalorder 1, %s8
    %p90 = scmp.lt.s32.totalorder %s8, 3
    %p91 = pnand %p89, %p90
    %p92 = pneg %p91
    // Predicated region
    $region9: #{_lambda_.18} parent=5 // pred_check
      _
    $region10: #{_lambda_.18} parent=5 // pred_check_branch
      %94 = sbr.rel (%p91) target = $region12
    $region11: #{_lambda_.18} parent=5 // pred_region
      %s95 = ssub.s32 %s8, 1
      // Predicated region
      $region13: #{_lambda_.18} parent=11 // pred_check
        %p96 = pneg %p55
      $region14: #{_lambda_.18} parent=11 // pred_check_branch
        %98 = sbr.rel (%p96) target = $region16
      $region15: #{_lambda_.18} parent=11 // pred_region
        _
      $region16: #{_lambda_.18} parent=11 // pred_fallthru
        _
    $region12: #{_lambda_.18} parent=5 // pred_fallthru
      _
    %p99 = scmp.lt.s32.totalorder %s8, 2
    // Predicated region
    $region17: #{_lambda_.18} parent=5 // pred_check
      %p100 = pneg %p99
    $region18: #{_lambda_.18} parent=5 // pred_check_branch
      %102 = sbr.rel (%p100) target = $region20
    $region19: #{_lambda_.18} parent=5 // pred_region
      // Predicated region
      $region21: #{_lambda_.18} parent=19 // pred_check
        %p103 = pneg %p28
      $region22: #{_lambda_.18} parent=19 // pred_check_branch
        %105 = sbr.rel (%p103) target = $region24
      $region23: #{_lambda_.18} parent=19 // pred_region
        %p106 = scmp.lt.s32.totalorder %s8, 1
        %s107 = scalar_select %p106, %s8, 1
        %s108 = smul.addr %s107, 60
        %s109 = smul.addr %s108, 8
        %s110 = scalar_lea.vmem %s0, %s109
      $region24: #{_lambda_.18} parent=19 // pred_fallthru
        _
    $region20: #{_lambda_.18} parent=5 // pred_fallthru
      _
    %p111 = scmp.le.s32.totalorder 1, %s8
    %p112 = scmp.lt.s32.totalorder %s8, 3
    %p113 = pnand %p111, %p112
    %p114 = pneg %p113
    // Predicated region
    $region25: #{_lambda_.18} parent=5 // pred_check
      _
    $region26: #{_lambda_.18} parent=5 // pred_check_branch
      %116 = sbr.rel (%p113) target = $region28
    $region27: #{_lambda_.18} parent=5 // pred_region
      %s117 = ssub.s32 %s8, 1
      %p118 = scmp.lt.s32.totalorder %s13, 1
      %s119 = scalar_select %p118, %s13, 1
      %s120 = smul.addr %s119, 60
      %s121 = smul.addr %s120, 8
      %s122 = scalar_lea.vmem %s0, %s121
      %p123 = pneg %p34
      %p124 = pneg %p31
      %p125 = pneg %p55
      %p126 = pneg %p52
      %p127 = pneg %p81
      %p128 = pneg %p78
      %p129 = scmp.lt.s32.totalorder %s13, 1
      %s130 = scalar_select %p129, %s13, 1
      %s131 = smul.addr %s130, 32
      %s132 = smul.addr %s131, 8
      %s133 = scalar_lea.vmem %s2, %s132
      %p134 = scmp.lt.s32.totalorder %s13, 1
      %s135 = scalar_select %p134, %s13, 1
      %s136 = smul.addr %s135, 60
      %s137 = smul.addr %s136, 8
      %s138 = scalar_lea.vmem %s0, %s137
      %p139 = scmp.lt.s32.totalorder %s13, 1
      %s140 = scalar_select %p139, %s13, 1
      %s141 = smul.addr %s140, 32
      %s142 = smul.addr %s141, 8
      %s143 = scalar_lea.vmem %s2, %s142
      %v144 = vld [vmem:[%s138] sm:$0xff]
      %v145 = vld [vmem:[%s138 + $0x8] sm:$0xff]
      %v146 = vld [vmem:[%s138 + $0x10] sm:$0xf]
      %v147 = vld [vmem:[%s138 + $0x18] sm:$0xff]
      %v148 = vld [vmem:[%s138 + $0x20] sm:$0xff]
      %v149 = vld [vmem:[%s138 + $0x28] sm:$0xf]
      %v150 = vld [vmem:[%s138 + $0x30] sm:$0xff]
      %v151 = vld [vmem:[%s138 + $0x38] sm:$0xff]
      %v152 = vld [vmem:[%s138 + $0x40] sm:$0xf]
      %v153 = vld [vmem:[%s138 + $0x48] sm:$0xff]
      %v154 = vld [vmem:[%s138 + $0x50] sm:$0xff]
      %v155 = vld [vmem:[%s138 + $0x58] sm:$0xf]
      %v156 = vld [vmem:[%s138 + $0x60] sm:$0xff]
      %v157 = vld [vmem:[%s138 + $0x68] sm:$0xff]
      %v158 = vld [vmem:[%s138 + $0x70] sm:$0xf]
      %v159 = vld [vmem:[%s138 + $0x78] sm:$0xff]
      %v160 = vld [vmem:[%s138 + $0x80] sm:$0xff]
      %v161 = vld [vmem:[%s138 + $0x88] sm:$0xf]
      %v162 = vld [vmem:[%s138 + $0x90] sm:$0xff]
      %v163 = vld [vmem:[%s138 + $0x98] sm:$0xff]
      %v164 = vld [vmem:[%s138 + $0xa0] sm:$0xf]
      %v165 = vld [vmem:[%s138 + $0xa8] sm:$0xff]
      %v166 = vld [vmem:[%s138 + $0xb0] sm:$0xff]
      %v167 = vld [vmem:[%s138 + $0xb8] sm:$0xf]
      %v168 = vld [vmem:[%s138 + $0xc0] sm:$0xff]
      %v169 = vld [vmem:[%s138 + $0xc8] sm:$0xff]
      %v170 = vld [vmem:[%s138 + $0xd0] sm:$0xf]
      %v171 = vld [vmem:[%s138 + $0xd8] sm:$0xff]
      %v172 = vld [vmem:[%s138 + $0xe0] sm:$0xff]
      %v173 = vld [vmem:[%s138 + $0xe8] sm:$0xf]
      %v174 = vld [vmem:[%s138 + $0xf0] sm:$0xff]
      %v175 = vld [vmem:[%s138 + $0xf8] sm:$0xff]
      %v176 = vld [vmem:[%s138 + $0x100] sm:$0xf]
      %v177 = vld [vmem:[%s138 + $0x108] sm:$0xff]
      %v178 = vld [vmem:[%s138 + $0x110] sm:$0xff]
      %v179 = vld [vmem:[%s138 + $0x118] sm:$0xf]
      %v180 = vld [vmem:[%s138 + $0x120] sm:$0xff]
      %v181 = vld [vmem:[%s138 + $0x128] sm:$0xff]
      %v182 = vld [vmem:[%s138 + $0x130] sm:$0xf]
      %v183 = vld [vmem:[%s138 + $0x138] sm:$0xff]
      %v184 = vld [vmem:[%s138 + $0x140] sm:$0xff]
      %v185 = vld [vmem:[%s138 + $0x148] sm:$0xf]
      %v186 = vld [vmem:[%s138 + $0x150] sm:$0xff]
      %v187 = vld [vmem:[%s138 + $0x158] sm:$0xff]
      %v188 = vld [vmem:[%s138 + $0x160] sm:$0xf]
      %v189 = vld [vmem:[%s138 + $0x168] sm:$0xff]
      %v190 = vld [vmem:[%s138 + $0x170] sm:$0xff]
      %v191 = vld [vmem:[%s138 + $0x178] sm:$0xf]
      %v192 = vld [vmem:[%s138 + $0x180] sm:$0xff]
      %v193 = vld [vmem:[%s138 + $0x188] sm:$0xff]
      %v194 = vld [vmem:[%s138 + $0x190] sm:$0xf]
      %v195 = vld [vmem:[%s138 + $0x198] sm:$0xff]
      %v196 = vld [vmem:[%s138 + $0x1a0] sm:$0xff]
      %v197 = vld [vmem:[%s138 + $0x1a8] sm:$0xf]
      %v198 = vld [vmem:[%s138 + $0x1b0] sm:$0xff]
      %v199 = vld [vmem:[%s138 + $0x1b8] sm:$0xff]
      %v200 = vld [vmem:[%s138 + $0x1c0] sm:$0xf]
      %v201 = vld [vmem:[%s138 + $0x1c8] sm:$0xff]
      %v202 = vld [vmem:[%s138 + $0x1d0] sm:$0xff]
      %v203 = vld [vmem:[%s138 + $0x1d8] sm:$0xf]
      %v204 = vmax.f32 %v144, 0.0
      %v205 = vmax.f32 %v145, 0.0
      %v206 = vmax.f32 %v146, 0.0
      %v207 = vmax.f32 %v147, 0.0
      %v208 = vmax.f32 %v148, 0.0
      %v209 = vmax.f32 %v149, 0.0
      %v210 = vmax.f32 %v150, 0.0
      %v211 = vmax.f32 %v151, 0.0
      %v212 = vmax.f32 %v152, 0.0
      %v213 = vmax.f32 %v153, 0.0
      %v214 = vmax.f32 %v154, 0.0
      %v215 = vmax.f32 %v155, 0.0
      %v216 = vmax.f32 %v156, 0.0
      %v217 = vmax.f32 %v157, 0.0
      %v218 = vmax.f32 %v158, 0.0
      %v219 = vmax.f32 %v159, 0.0
      %v220 = vmax.f32 %v160, 0.0
      %v221 = vmax.f32 %v161, 0.0
      %v222 = vmax.f32 %v162, 0.0
      %v223 = vmax.f32 %v163, 0.0
      %v224 = vmax.f32 %v164, 0.0
      %v225 = vmax.f32 %v165, 0.0
      %v226 = vmax.f32 %v166, 0.0
      %v227 = vmax.f32 %v167, 0.0
      %v228 = vmax.f32 %v168, 0.0
      %v229 = vmax.f32 %v169, 0.0
      %v230 = vmax.f32 %v170, 0.0
      %v231 = vmax.f32 %v171, 0.0
      %v232 = vmax.f32 %v172, 0.0
      %v233 = vmax.f32 %v173, 0.0
      %v234 = vmax.f32 %v174, 0.0
      %v235 = vmax.f32 %v175, 0.0
      %v236 = vmax.f32 %v176, 0.0
      %v237 = vmax.f32 %v177, 0.0
      %v238 = vmax.f32 %v178, 0.0
      %v239 = vmax.f32 %v179, 0.0
      %v240 = vmax.f32 %v180, 0.0
      %v241 = vmax.f32 %v181, 0.0
      %v242 = vmax.f32 %v182, 0.0
      %v243 = vmax.f32 %v183, 0.0
      %v244 = vmax.f32 %v184, 0.0
      %v245 = vmax.f32 %v185, 0.0
      %v246 = vmax.f32 %v186, 0.0
      %v247 = vmax.f32 %v187, 0.0
      %v248 = vmax.f32 %v188, 0.0
      %v249 = vmax.f32 %v189, 0.0
      %v250 = vmax.f32 %v190, 0.0
      %v251 = vmax.f32 %v191, 0.0
      %v252 = vmax.f32 %v192, 0.0
      %v253 = vmax.f32 %v193, 0.0
      %v254 = vmax.f32 %v194, 0.0
      %v255 = vmax.f32 %v195, 0.0
      %v256 = vmax.f32 %v196, 0.0
      %v257 = vmax.f32 %v197, 0.0
      %v258 = vmax.f32 %v198, 0.0
      %v259 = vmax.f32 %v199, 0.0
      %v260 = vmax.f32 %v200, 0.0
      %v261 = vmax.f32 %v201, 0.0
      %v262 = vmax.f32 %v202, 0.0
      %v263 = vmax.f32 %v203, 0.0
      %v264 = vld [vmem:[%s1] sm:$0x1]
      %v266 = vlaneseq
      %v267 = vshrl.u32 %v266, 7
      %v268 = vsub.s32 0, %v267
      %v269 = vrot.slane %v264, %v268
      %v271 = vmul.f32 %v204, %v269
      %v272 = vmul.f32 %v205, %v269
      %v273 = vmul.f32 %v207, %v269
      %v274 = vmul.f32 %v208, %v269
      %v275 = vmul.f32 %v210, %v269
      %v276 = vmul.f32 %v211, %v269
      %v277 = vmul.f32 %v213, %v269
      %v278 = vmul.f32 %v214, %v269
      %v279 = vmul.f32 %v216, %v269
      %v280 = vmul.f32 %v217, %v269
      %v281 = vmul.f32 %v219, %v269
      %v282 = vmul.f32 %v220, %v269
      %v283 = vmul.f32 %v222, %v269
      %v284 = vmul.f32 %v223, %v269
      %v285 = vmul.f32 %v225, %v269
      %v286 = vmul.f32 %v226, %v269
      %v287 = vmul.f32 %v228, %v269
      %v288 = vmul.f32 %v229, %v269
      %v289 = vmul.f32 %v231, %v269
      %v290 = vmul.f32 %v232, %v269
      %v291 = vmul.f32 %v234, %v269
      %v292 = vmul.f32 %v235, %v269
      %v293 = vmul.f32 %v237, %v269
      %v294 = vmul.f32 %v238, %v269
      %v295 = vmul.f32 %v240, %v269
      %v296 = vmul.f32 %v241, %v269
      %v297 = vmul.f32 %v243, %v269
      %v298 = vmul.f32 %v244, %v269
      %v299 = vmul.f32 %v246, %v269
      %v300 = vmul.f32 %v247, %v269
      %v301 = vmul.f32 %v249, %v269
      %v302 = vmul.f32 %v250, %v269
      %v303 = vadd.f32 %v271, 0.0
      %v304 = vadd.f32 %v272, 0.0
      %v305 = vadd.f32 %v273, 0.0
      %v306 = vadd.f32 %v274, 0.0
      %v307 = vadd.f32 %v275, 0.0
      %v308 = vadd.f32 %v276, 0.0
      %v309 = vadd.f32 %v277, 0.0
      %v310 = vadd.f32 %v278, 0.0
      %v311 = vadd.f32 %v279, 0.0
      %v312 = vadd.f32 %v280, 0.0
      %v313 = vadd.f32 %v281, 0.0
      %v314 = vadd.f32 %v282, 0.0
      %v315 = vadd.f32 %v283, 0.0
      %v316 = vadd.f32 %v284, 0.0
      %v317 = vadd.f32 %v285, 0.0
      %v318 = vadd.f32 %v286, 0.0
      %v319 = vadd.f32 %v287, 0.0
      %v320 = vadd.f32 %v288, 0.0
      %v321 = vadd.f32 %v289, 0.0
      %v322 = vadd.f32 %v290, 0.0
      %v323 = vadd.f32 %v291, 0.0
      %v324 = vadd.f32 %v292, 0.0
      %v325 = vadd.f32 %v293, 0.0
      %v326 = vadd.f32 %v294, 0.0
      %v327 = vadd.f32 %v295, 0.0
      %v328 = vadd.f32 %v296, 0.0
      %v329 = vadd.f32 %v297, 0.0
      %v330 = vadd.f32 %v298, 0.0
      %v331 = vadd.f32 %v299, 0.0
      %v332 = vadd.f32 %v300, 0.0
      %v333 = vadd.f32 %v301, 0.0
      %v334 = vadd.f32 %v302, 0.0
      %s335 = scalar_lea.vmem %s1, 1
      %v336 = vld [vmem:[%s335] sm:$0x1]
      %v338 = vlaneseq
      %v339 = vshrl.u32 %v338, 7
      %v340 = vsub.s32 0, %v339
      %v341 = vrot.slane %v336, %v340
      %v343 = vmul.f32 %v204, %v341
      %v344 = vmul.f32 %v205, %v341
      %v345 = vmul.f32 %v206, %v341
      %v346 = vmul.f32 %v207, %v341
      %v347 = vmul.f32 %v208, %v341
      %v348 = vmul.f32 %v209, %v341
      %v349 = vmul.f32 %v210, %v341
      %v350 = vmul.f32 %v211, %v341
      %v351 = vmul.f32 %v212, %v341
      %v352 = vmul.f32 %v213, %v341
      %v353 = vmul.f32 %v214, %v341
      %v354 = vmul.f32 %v215, %v341
      %v355 = vmul.f32 %v216, %v341
      %v356 = vmul.f32 %v217, %v341
      %v357 = vmul.f32 %v218, %v341
      %v358 = vmul.f32 %v219, %v341
      %v359 = vmul.f32 %v220, %v341
      %v360 = vmul.f32 %v221, %v341
      %v361 = vmul.f32 %v222, %v341
      %v362 = vmul.f32 %v223, %v341
      %v363 = vmul.f32 %v224, %v341
      %v364 = vmul.f32 %v225, %v341
      %v365 = vmul.f32 %v226, %v341
      %v366 = vmul.f32 %v227, %v341
      %v367 = vmul.f32 %v228, %v341
      %v368 = vmul.f32 %v229, %v341
      %v369 = vmul.f32 %v230, %v341
      %v370 = vmul.f32 %v231, %v341
      %v371 = vmul.f32 %v232, %v341
      %v372 = vmul.f32 %v233, %v341
      %v373 = vmul.f32 %v234, %v341
      %v374 = vmul.f32 %v235, %v341
      %v375 = vmul.f32 %v236, %v341
      %v376 = vmul.f32 %v237, %v341
      %v377 = vmul.f32 %v238, %v341
      %v378 = vmul.f32 %v239, %v341
      %v379 = vmul.f32 %v240, %v341
      %v380 = vmul.f32 %v241, %v341
      %v381 = vmul.f32 %v242, %v341
      %v382 = vmul.f32 %v243, %v341
      %v383 = vmul.f32 %v244, %v341
      %v384 = vmul.f32 %v245, %v341
      %v385 = vmul.f32 %v246, %v341
      %v386 = vmul.f32 %v247, %v341
      %v387 = vmul.f32 %v248, %v341
      %v388 = vmul.f32 %v249, %v341
      %v389 = vmul.f32 %v250, %v341
      %v390 = vmul.f32 %v251, %v341
      %vm439 = vcmask 1045504
      %v440 = vrot.slane %v343, 2
      %v441 = vrot.slane %v344, 2
      %v442 = vsel %vm439, %v440, %v441
      %v443 = vrot.slane %v345, 2
      %v444 = vsel %vm439, %v441, %v443
      %v445 = vrot.slane %v346, 2
      %v446 = vrot.slane %v347, 2
      %v447 = vsel %vm439, %v445, %v446
      %v448 = vrot.slane %v348, 2
      %v449 = vsel %vm439, %v446, %v448
      %v450 = vrot.slane %v349, 2
      %v451 = vrot.slane %v350, 2
      %v452 = vsel %vm439, %v450, %v451
      %v453 = vrot.slane %v351, 2
      %v454 = vsel %vm439, %v451, %v453
      %v455 = vrot.slane %v352, 2
      %v456 = vrot.slane %v353, 2
      %v457 = vsel %vm439, %v455, %v456
      %v458 = vrot.slane %v354, 2
      %v459 = vsel %vm439, %v456, %v458
      %v460 = vrot.slane %v355, 2
      %v461 = vrot.slane %v356, 2
      %v462 = vsel %vm439, %v460, %v461
      %v463 = vrot.slane %v357, 2
      %v464 = vsel %vm439, %v461, %v463
      %v465 = vrot.slane %v358, 2
      %v466 = vrot.slane %v359, 2
      %v467 = vsel %vm439, %v465, %v466
      %v468 = vrot.slane %v360, 2
      %v469 = vsel %vm439, %v466, %v468
      %v470 = vrot.slane %v361, 2
      %v471 = vrot.slane %v362, 2
      %v472 = vsel %vm439, %v470, %v471
      %v473 = vrot.slane %v363, 2
      %v474 = vsel %vm439, %v471, %v473
      %v475 = vrot.slane %v364, 2
      %v476 = vrot.slane %v365, 2
      %v477 = vsel %vm439, %v475, %v476
      %v478 = vrot.slane %v366, 2
      %v479 = vsel %vm439, %v476, %v478
      %v480 = vrot.slane %v367, 2
      %v481 = vrot.slane %v368, 2
      %v482 = vsel %vm439, %v480, %v481
      %v483 = vrot.slane %v369, 2
      %v484 = vsel %vm439, %v481, %v483
      %v485 = vrot.slane %v370, 2
      %v486 = vrot.slane %v371, 2
      %v487 = vsel %vm439, %v485, %v486
      %v488 = vrot.slane %v372, 2
      %v489 = vsel %vm439, %v486, %v488
      %v490 = vrot.slane %v373, 2
      %v491 = vrot.slane %v374, 2
      %v492 = vsel %vm439, %v490, %v491
      %v493 = vrot.slane %v375, 2
      %v494 = vsel %vm439, %v491, %v493
      %v495 = vrot.slane %v376, 2
      %v496 = vrot.slane %v377, 2
      %v497 = vsel %vm439, %v495, %v496
      %v498 = vrot.slane %v378, 2
      %v499 = vsel %vm439, %v496, %v498
      %v500 = vrot.slane %v379, 2
      %v501 = vrot.slane %v380, 2
      %v502 = vsel %vm439, %v500, %v501
      %v503 = vrot.slane %v381, 2
      %v504 = vsel %vm439, %v501, %v503
      %v505 = vrot.slane %v382, 2
      %v506 = vrot.slane %v383, 2
      %v507 = vsel %vm439, %v505, %v506
      %v508 = vrot.slane %v384, 2
      %v509 = vsel %vm439, %v506, %v508
      %v510 = vrot.slane %v385, 2
      %v511 = vrot.slane %v386, 2
      %v512 = vsel %vm439, %v510, %v511
      %v513 = vrot.slane %v387, 2
      %v514 = vsel %vm439, %v511, %v513
      %v515 = vrot.slane %v388, 2
      %v516 = vrot.slane %v389, 2
      %v517 = vsel %vm439, %v515, %v516
      %v518 = vrot.slane %v390, 2
      %v519 = vsel %vm439, %v516, %v518
      %v552 = vadd.f32 %v303, %v442
      %v553 = vadd.f32 %v304, %v444
      %v554 = vadd.f32 %v305, %v447
      %v555 = vadd.f32 %v306, %v449
      %v556 = vadd.f32 %v307, %v452
      %v557 = vadd.f32 %v308, %v454
      %v558 = vadd.f32 %v309, %v457
      %v559 = vadd.f32 %v310, %v459
      %v560 = vadd.f32 %v311, %v462
      %v561 = vadd.f32 %v312, %v464
      %v562 = vadd.f32 %v313, %v467
      %v563 = vadd.f32 %v314, %v469
      %v564 = vadd.f32 %v315, %v472
      %v565 = vadd.f32 %v316, %v474
      %v566 = vadd.f32 %v317, %v477
      %v567 = vadd.f32 %v318, %v479
      %v568 = vadd.f32 %v319, %v482
      %v569 = vadd.f32 %v320, %v484
      %v570 = vadd.f32 %v321, %v487
      %v571 = vadd.f32 %v322, %v489
      %v572 = vadd.f32 %v323, %v492
      %v573 = vadd.f32 %v324, %v494
      %v574 = vadd.f32 %v325, %v497
      %v575 = vadd.f32 %v326, %v499
      %v576 = vadd.f32 %v327, %v502
      %v577 = vadd.f32 %v328, %v504
      %v578 = vadd.f32 %v329, %v507
      %v579 = vadd.f32 %v330, %v509
      %v580 = vadd.f32 %v331, %v512
      %v581 = vadd.f32 %v332, %v514
      %v582 = vadd.f32 %v333, %v517
      %v583 = vadd.f32 %v334, %v519
      %s584 = scalar_lea.vmem %s1, 2
      %v585 = vld [vmem:[%s584] sm:$0x1]
      %v587 = vlaneseq
      %v588 = vshrl.u32 %v587, 7
      %v589 = vsub.s32 0, %v588
      %v590 = vrot.slane %v585, %v589
      %v592 = vmul.f32 %v204, %v590
      %v593 = vmul.f32 %v205, %v590
      %v594 = vmul.f32 %v206, %v590
      %v595 = vmul.f32 %v207, %v590
      %v596 = vmul.f32 %v208, %v590
      %v597 = vmul.f32 %v209, %v590
      %v598 = vmul.f32 %v210, %v590
      %v599 = vmul.f32 %v211, %v590
      %v600 = vmul.f32 %v212, %v590
      %v601 = vmul.f32 %v213, %v590
      %v602 = vmul.f32 %v214, %v590
      %v603 = vmul.f32 %v215, %v590
      %v604 = vmul.f32 %v216, %v590
      %v605 = vmul.f32 %v217, %v590
      %v606 = vmul.f32 %v218, %v590
      %v607 = vmul.f32 %v219, %v590
      %v608 = vmul.f32 %v220, %v590
      %v609 = vmul.f32 %v221, %v590
      %v610 = vmul.f32 %v222, %v590
      %v611 = vmul.f32 %v223, %v590
      %v612 = vmul.f32 %v224, %v590
      %v613 = vmul.f32 %v225, %v590
      %v614 = vmul.f32 %v226, %v590
      %v615 = vmul.f32 %v227, %v590
      %v616 = vmul.f32 %v228, %v590
      %v617 = vmul.f32 %v229, %v590
      %v618 = vmul.f32 %v230, %v590
      %v619 = vmul.f32 %v231, %v590
      %v620 = vmul.f32 %v232, %v590
      %v621 = vmul.f32 %v233, %v590
      %v622 = vmul.f32 %v234, %v590
      %v623 = vmul.f32 %v235, %v590
      %v624 = vmul.f32 %v236, %v590
      %v625 = vmul.f32 %v237, %v590
      %v626 = vmul.f32 %v238, %v590
      %v627 = vmul.f32 %v239, %v590
      %v628 = vmul.f32 %v240, %v590
      %v629 = vmul.f32 %v241, %v590
      %v630 = vmul.f32 %v242, %v590
      %v631 = vmul.f32 %v243, %v590
      %v632 = vmul.f32 %v244, %v590
      %v633 = vmul.f32 %v245, %v590
      %v634 = vmul.f32 %v246, %v590
      %v635 = vmul.f32 %v247, %v590
      %v636 = vmul.f32 %v248, %v590
      %v637 = vmul.f32 %v249, %v590
      %v638 = vmul.f32 %v250, %v590
      %v639 = vmul.f32 %v251, %v590
      %vm688 = vcmask 1043456
      %v689 = vrot.slane %v592, 4
      %v690 = vrot.slane %v593, 4
      %v691 = vsel %vm688, %v689, %v690
      %v692 = vrot.slane %v594, 4
      %v693 = vsel %vm688, %v690, %v692
      %v694 = vrot.slane %v595, 4
      %v695 = vrot.slane %v596, 4
      %v696 = vsel %vm688, %v694, %v695
      %v697 = vrot.slane %v597, 4
      %v698 = vsel %vm688, %v695, %v697
      %v699 = vrot.slane %v598, 4
      %v700 = vrot.slane %v599, 4
      %v701 = vsel %vm688, %v699, %v700
      %v702 = vrot.slane %v600, 4
      %v703 = vsel %vm688, %v700, %v702
      %v704 = vrot.slane %v601, 4
      %v705 = vrot.slane %v602, 4
      %v706 = vsel %vm688, %v704, %v705
      %v707 = vrot.slane %v603, 4
      %v708 = vsel %vm688, %v705, %v707
      %v709 = vrot.slane %v604, 4
      %v710 = vrot.slane %v605, 4
      %v711 = vsel %vm688, %v709, %v710
      %v712 = vrot.slane %v606, 4
      %v713 = vsel %vm688, %v710, %v712
      %v714 = vrot.slane %v607, 4
      %v715 = vrot.slane %v608, 4
      %v716 = vsel %vm688, %v714, %v715
      %v717 = vrot.slane %v609, 4
      %v718 = vsel %vm688, %v715, %v717
      %v719 = vrot.slane %v610, 4
      %v720 = vrot.slane %v611, 4
      %v721 = vsel %vm688, %v719, %v720
      %v722 = vrot.slane %v612, 4
      %v723 = vsel %vm688, %v720, %v722
      %v724 = vrot.slane %v613, 4
      %v725 = vrot.slane %v614, 4
      %v726 = vsel %vm688, %v724, %v725
      %v727 = vrot.slane %v615, 4
      %v728 = vsel %vm688, %v725, %v727
      %v729 = vrot.slane %v616, 4
      %v730 = vrot.slane %v617, 4
      %v731 = vsel %vm688, %v729, %v730
      %v732 = vrot.slane %v618, 4
      %v733 = vsel %vm688, %v730, %v732
      %v734 = vrot.slane %v619, 4
      %v735 = vrot.slane %v620, 4
      %v736 = vsel %vm688, %v734, %v735
      %v737 = vrot.slane %v621, 4
      %v738 = vsel %vm688, %v735, %v737
      %v739 = vrot.slane %v622, 4
      %v740 = vrot.slane %v623, 4
      %v741 = vsel %vm688, %v739, %v740
      %v742 = vrot.slane %v624, 4
      %v743 = vsel %vm688, %v740, %v742
      %v744 = vrot.slane %v625, 4
      %v745 = vrot.slane %v626, 4
      %v746 = vsel %vm688, %v744, %v745
      %v747 = vrot.slane %v627, 4
      %v748 = vsel %vm688, %v745, %v747
      %v749 = vrot.slane %v628, 4
      %v750 = vrot.slane %v629, 4
      %v751 = vsel %vm688, %v749, %v750
      %v752 = vrot.slane %v630, 4
      %v753 = vsel %vm688, %v750, %v752
      %v754 = vrot.slane %v631, 4
      %v755 = vrot.slane %v632, 4
      %v756 = vsel %vm688, %v754, %v755
      %v757 = vrot.slane %v633, 4
      %v758 = vsel %vm688, %v755, %v757
      %v759 = vrot.slane %v634, 4
      %v760 = vrot.slane %v635, 4
      %v761 = vsel %vm688, %v759, %v760
      %v762 = vrot.slane %v636, 4
      %v763 = vsel %vm688, %v760, %v762
      %v764 = vrot.slane %v637, 4
      %v765 = vrot.slane %v638, 4
      %v766 = vsel %vm688, %v764, %v765
      %v767 = vrot.slane %v639, 4
      %v768 = vsel %vm688, %v765, %v767
      %v801 = vadd.f32 %v552, %v691
      %v802 = vadd.f32 %v553, %v693
      %v803 = vadd.f32 %v554, %v696
      %v804 = vadd.f32 %v555, %v698
      %v805 = vadd.f32 %v556, %v701
      %v806 = vadd.f32 %v557, %v703
      %v807 = vadd.f32 %v558, %v706
      %v808 = vadd.f32 %v559, %v708
      %v809 = vadd.f32 %v560, %v711
      %v810 = vadd.f32 %v561, %v713
      %v811 = vadd.f32 %v562, %v716
      %v812 = vadd.f32 %v563, %v718
      %v813 = vadd.f32 %v564, %v721
      %v814 = vadd.f32 %v565, %v723
      %v815 = vadd.f32 %v566, %v726
      %v816 = vadd.f32 %v567, %v728
      %v817 = vadd.f32 %v568, %v731
      %v818 = vadd.f32 %v569, %v733
      %v819 = vadd.f32 %v570, %v736
      %v820 = vadd.f32 %v571, %v738
      %v821 = vadd.f32 %v572, %v741
      %v822 = vadd.f32 %v573, %v743
      %v823 = vadd.f32 %v574, %v746
      %v824 = vadd.f32 %v575, %v748
      %v825 = vadd.f32 %v576, %v751
      %v826 = vadd.f32 %v577, %v753
      %v827 = vadd.f32 %v578, %v756
      %v828 = vadd.f32 %v579, %v758
      %v829 = vadd.f32 %v580, %v761
      %v830 = vadd.f32 %v581, %v763
      %v831 = vadd.f32 %v582, %v766
      %v832 = vadd.f32 %v583, %v768
      %s833 = scalar_lea.vmem %s1, 3
      %v834 = vld [vmem:[%s833] sm:$0x1]
      %v836 = vlaneseq
      %v837 = vshrl.u32 %v836, 7
      %v838 = vsub.s32 0, %v837
      %v839 = vrot.slane %v834, %v838
      %v841 = vmul.f32 %v210, %v839
      %v842 = vmul.f32 %v211, %v839
      %v843 = vmul.f32 %v213, %v839
      %v844 = vmul.f32 %v214, %v839
      %v845 = vmul.f32 %v216, %v839
      %v846 = vmul.f32 %v217, %v839
      %v847 = vmul.f32 %v219, %v839
      %v848 = vmul.f32 %v220, %v839
      %v849 = vmul.f32 %v222, %v839
      %v850 = vmul.f32 %v223, %v839
      %v851 = vmul.f32 %v225, %v839
      %v852 = vmul.f32 %v226, %v839
      %v853 = vmul.f32 %v228, %v839
      %v854 = vmul.f32 %v229, %v839
      %v855 = vmul.f32 %v231, %v839
      %v856 = vmul.f32 %v232, %v839
      %v857 = vmul.f32 %v234, %v839
      %v858 = vmul.f32 %v235, %v839
      %v859 = vmul.f32 %v237, %v839
      %v860 = vmul.f32 %v238, %v839
      %v861 = vmul.f32 %v240, %v839
      %v862 = vmul.f32 %v241, %v839
      %v863 = vmul.f32 %v243, %v839
      %v864 = vmul.f32 %v244, %v839
      %v865 = vmul.f32 %v246, %v839
      %v866 = vmul.f32 %v247, %v839
      %v867 = vmul.f32 %v249, %v839
      %v868 = vmul.f32 %v250, %v839
      %v869 = vmul.f32 %v252, %v839
      %v870 = vmul.f32 %v253, %v839
      %v871 = vmul.f32 %v255, %v839
      %v872 = vmul.f32 %v256, %v839
      %v873 = vadd.f32 %v801, %v841
      %v874 = vadd.f32 %v802, %v842
      %v875 = vadd.f32 %v803, %v843
      %v876 = vadd.f32 %v804, %v844
      %v877 = vadd.f32 %v805, %v845
      %v878 = vadd.f32 %v806, %v846
      %v879 = vadd.f32 %v807, %v847
      %v880 = vadd.f32 %v808, %v848
      %v881 = vadd.f32 %v809, %v849
      %v882 = vadd.f32 %v810, %v850
      %v883 = vadd.f32 %v811, %v851
      %v884 = vadd.f32 %v812, %v852
      %v885 = vadd.f32 %v813, %v853
      %v886 = vadd.f32 %v814, %v854
      %v887 = vadd.f32 %v815, %v855
      %v888 = vadd.f32 %v816, %v856
      %v889 = vadd.f32 %v817, %v857
      %v890 = vadd.f32 %v818, %v858
      %v891 = vadd.f32 %v819, %v859
      %v892 = vadd.f32 %v820, %v860
      %v893 = vadd.f32 %v821, %v861
      %v894 = vadd.f32 %v822, %v862
      %v895 = vadd.f32 %v823, %v863
      %v896 = vadd.f32 %v824, %v864
      %v897 = vadd.f32 %v825, %v865
      %v898 = vadd.f32 %v826, %v866
      %v899 = vadd.f32 %v827, %v867
      %v900 = vadd.f32 %v828, %v868
      %v901 = vadd.f32 %v829, %v869
      %v902 = vadd.f32 %v830, %v870
      %v903 = vadd.f32 %v831, %v871
      %v904 = vadd.f32 %v832, %v872
      %s905 = scalar_lea.vmem %s1, 4
      %v906 = vld [vmem:[%s905] sm:$0x1]
      %v908 = vlaneseq
      %v909 = vshrl.u32 %v908, 7
      %v910 = vsub.s32 0, %v909
      %v911 = vrot.slane %v906, %v910
      %v913 = vmul.f32 %v210, %v911
      %v914 = vmul.f32 %v211, %v911
      %v915 = vmul.f32 %v212, %v911
      %v916 = vmul.f32 %v213, %v911
      %v917 = vmul.f32 %v214, %v911
      %v918 = vmul.f32 %v215, %v911
      %v919 = vmul.f32 %v216, %v911
      %v920 = vmul.f32 %v217, %v911
      %v921 = vmul.f32 %v218, %v911
      %v922 = vmul.f32 %v219, %v911
      %v923 = vmul.f32 %v220, %v911
      %v924 = vmul.f32 %v221, %v911
      %v925 = vmul.f32 %v222, %v911
      %v926 = vmul.f32 %v223, %v911
      %v927 = vmul.f32 %v224, %v911
      %v928 = vmul.f32 %v225, %v911
      %v929 = vmul.f32 %v226, %v911
      %v930 = vmul.f32 %v227, %v911
      %v931 = vmul.f32 %v228, %v911
      %v932 = vmul.f32 %v229, %v911
      %v933 = vmul.f32 %v230, %v911
      %v934 = vmul.f32 %v231, %v911
      %v935 = vmul.f32 %v232, %v911
      %v936 = vmul.f32 %v233, %v911
      %v937 = vmul.f32 %v234, %v911
      %v938 = vmul.f32 %v235, %v911
      %v939 = vmul.f32 %v236, %v911
      %v940 = vmul.f32 %v237, %v911
      %v941 = vmul.f32 %v238, %v911
      %v942 = vmul.f32 %v239, %v911
      %v943 = vmul.f32 %v240, %v911
      %v944 = vmul.f32 %v241, %v911
      %v945 = vmul.f32 %v242, %v911
      %v946 = vmul.f32 %v243, %v911
      %v947 = vmul.f32 %v244, %v911
      %v948 = vmul.f32 %v245, %v911
      %v949 = vmul.f32 %v246, %v911
      %v950 = vmul.f32 %v247, %v911
      %v951 = vmul.f32 %v248, %v911
      %v952 = vmul.f32 %v249, %v911
      %v953 = vmul.f32 %v250, %v911
      %v954 = vmul.f32 %v251, %v911
      %v955 = vmul.f32 %v252, %v911
      %v956 = vmul.f32 %v253, %v911
      %v957 = vmul.f32 %v254, %v911
      %v958 = vmul.f32 %v255, %v911
      %v959 = vmul.f32 %v256, %v911
      %v960 = vmul.f32 %v257, %v911
      %v1009 = vrot.slane %v913, 2
      %v1010 = vrot.slane %v914, 2
      %v1011 = vsel %vm439, %v1009, %v1010
      %v1012 = vrot.slane %v915, 2
      %v1013 = vsel %vm439, %v1010, %v1012
      %v1014 = vrot.slane %v916, 2
      %v1015 = vrot.slane %v917, 2
      %v1016 = vsel %vm439, %v1014, %v1015
      %v1017 = vrot.slane %v918, 2
      %v1018 = vsel %vm439, %v1015, %v1017
      %v1019 = vrot.slane %v919, 2
      %v1020 = vrot.slane %v920, 2
      %v1021 = vsel %vm439, %v1019, %v1020
      %v1022 = vrot.slane %v921, 2
      %v1023 = vsel %vm439, %v1020, %v1022
      %v1024 = vrot.slane %v922, 2
      %v1025 = vrot.slane %v923, 2
      %v1026 = vsel %vm439, %v1024, %v1025
      %v1027 = vrot.slane %v924, 2
      %v1028 = vsel %vm439, %v1025, %v1027
      %v1029 = vrot.slane %v925, 2
      %v1030 = vrot.slane %v926, 2
      %v1031 = vsel %vm439, %v1029, %v1030
      %v1032 = vrot.slane %v927, 2
      %v1033 = vsel %vm439, %v1030, %v1032
      %v1034 = vrot.slane %v928, 2
      %v1035 = vrot.slane %v929, 2
      %v1036 = vsel %vm439, %v1034, %v1035
      %v1037 = vrot.slane %v930, 2
      %v1038 = vsel %vm439, %v1035, %v1037
      %v1039 = vrot.slane %v931, 2
      %v1040 = vrot.slane %v932, 2
      %v1041 = vsel %vm439, %v1039, %v1040
      %v1042 = vrot.slane %v933, 2
      %v1043 = vsel %vm439, %v1040, %v1042
      %v1044 = vrot.slane %v934, 2
      %v1045 = vrot.slane %v935, 2
      %v1046 = vsel %vm439, %v1044, %v1045
      %v1047 = vrot.slane %v936, 2
      %v1048 = vsel %vm439, %v1045, %v1047
      %v1049 = vrot.slane %v937, 2
      %v1050 = vrot.slane %v938, 2
      %v1051 = vsel %vm439, %v1049, %v1050
      %v1052 = vrot.slane %v939, 2
      %v1053 = vsel %vm439, %v1050, %v1052
      %v1054 = vrot.slane %v940, 2
      %v1055 = vrot.slane %v941, 2
      %v1056 = vsel %vm439, %v1054, %v1055
      %v1057 = vrot.slane %v942, 2
      %v1058 = vsel %vm439, %v1055, %v1057
      %v1059 = vrot.slane %v943, 2
      %v1060 = vrot.slane %v944, 2
      %v1061 = vsel %vm439, %v1059, %v1060
      %v1062 = vrot.slane %v945, 2
      %v1063 = vsel %vm439, %v1060, %v1062
      %v1064 = vrot.slane %v946, 2
      %v1065 = vrot.slane %v947, 2
      %v1066 = vsel %vm439, %v1064, %v1065
      %v1067 = vrot.slane %v948, 2
      %v1068 = vsel %vm439, %v1065, %v1067
      %v1069 = vrot.slane %v949, 2
      %v1070 = vrot.slane %v950, 2
      %v1071 = vsel %vm439, %v1069, %v1070
      %v1072 = vrot.slane %v951, 2
      %v1073 = vsel %vm439, %v1070, %v1072
      %v1074 = vrot.slane %v952, 2
      %v1075 = vrot.slane %v953, 2
      %v1076 = vsel %vm439, %v1074, %v1075
      %v1077 = vrot.slane %v954, 2
      %v1078 = vsel %vm439, %v1075, %v1077
      %v1079 = vrot.slane %v955, 2
      %v1080 = vrot.slane %v956, 2
      %v1081 = vsel %vm439, %v1079, %v1080
      %v1082 = vrot.slane %v957, 2
      %v1083 = vsel %vm439, %v1080, %v1082
      %v1084 = vrot.slane %v958, 2
      %v1085 = vrot.slane %v959, 2
      %v1086 = vsel %vm439, %v1084, %v1085
      %v1087 = vrot.slane %v960, 2
      %v1088 = vsel %vm439, %v1085, %v1087
      %v1121 = vadd.f32 %v873, %v1011
      %v1122 = vadd.f32 %v874, %v1013
      %v1123 = vadd.f32 %v875, %v1016
      %v1124 = vadd.f32 %v876, %v1018
      %v1125 = vadd.f32 %v877, %v1021
      %v1126 = vadd.f32 %v878, %v1023
      %v1127 = vadd.f32 %v879, %v1026
      %v1128 = vadd.f32 %v880, %v1028
      %v1129 = vadd.f32 %v881, %v1031
      %v1130 = vadd.f32 %v882, %v1033
      %v1131 = vadd.f32 %v883, %v1036
      %v1132 = vadd.f32 %v884, %v1038
      %v1133 = vadd.f32 %v885, %v1041
      %v1134 = vadd.f32 %v886, %v1043
      %v1135 = vadd.f32 %v887, %v1046
      %v1136 = vadd.f32 %v888, %v1048
      %v1137 = vadd.f32 %v889, %v1051
      %v1138 = vadd.f32 %v890, %v1053
      %v1139 = vadd.f32 %v891, %v1056
      %v1140 = vadd.f32 %v892, %v1058
      %v1141 = vadd.f32 %v893, %v1061
      %v1142 = vadd.f32 %v894, %v1063
      %v1143 = vadd.f32 %v895, %v1066
      %v1144 = vadd.f32 %v896, %v1068
      %v1145 = vadd.f32 %v897, %v1071
      %v1146 = vadd.f32 %v898, %v1073
      %v1147 = vadd.f32 %v899, %v1076
      %v1148 = vadd.f32 %v900, %v1078
      %v1149 = vadd.f32 %v901, %v1081
      %v1150 = vadd.f32 %v902, %v1083
      %v1151 = vadd.f32 %v903, %v1086
      %v1152 = vadd.f32 %v904, %v1088
      %s1153 = scalar_lea.vmem %s1, 5
      %v1154 = vld [vmem:[%s1153] sm:$0x1]
      %v1156 = vlaneseq
      %v1157 = vshrl.u32 %v1156, 7
      %v1158 = vsub.s32 0, %v1157
      %v1159 = vrot.slane %v1154, %v1158
      %v1161 = vmul.f32 %v210, %v1159
      %v1162 = vmul.f32 %v211, %v1159
      %v1163 = vmul.f32 %v212, %v1159
      %v1164 = vmul.f32 %v213, %v1159
      %v1165 = vmul.f32 %v214, %v1159
      %v1166 = vmul.f32 %v215, %v1159
      %v1167 = vmul.f32 %v216, %v1159
      %v1168 = vmul.f32 %v217, %v1159
      %v1169 = vmul.f32 %v218, %v1159
      %v1170 = vmul.f32 %v219, %v1159
      %v1171 = vmul.f32 %v220, %v1159
      %v1172 = vmul.f32 %v221, %v1159
      %v1173 = vmul.f32 %v222, %v1159
      %v1174 = vmul.f32 %v223, %v1159
      %v1175 = vmul.f32 %v224, %v1159
      %v1176 = vmul.f32 %v225, %v1159
      %v1177 = vmul.f32 %v226, %v1159
      %v1178 = vmul.f32 %v227, %v1159
      %v1179 = vmul.f32 %v228, %v1159
      %v1180 = vmul.f32 %v229, %v1159
      %v1181 = vmul.f32 %v230, %v1159
      %v1182 = vmul.f32 %v231, %v1159
      %v1183 = vmul.f32 %v232, %v1159
      %v1184 = vmul.f32 %v233, %v1159
      %v1185 = vmul.f32 %v234, %v1159
      %v1186 = vmul.f32 %v235, %v1159
      %v1187 = vmul.f32 %v236, %v1159
      %v1188 = vmul.f32 %v237, %v1159
      %v1189 = vmul.f32 %v238, %v1159
      %v1190 = vmul.f32 %v239, %v1159
      %v1191 = vmul.f32 %v240, %v1159
      %v1192 = vmul.f32 %v241, %v1159
      %v1193 = vmul.f32 %v242, %v1159
      %v1194 = vmul.f32 %v243, %v1159
      %v1195 = vmul.f32 %v244, %v1159
      %v1196 = vmul.f32 %v245, %v1159
      %v1197 = vmul.f32 %v246, %v1159
      %v1198 = vmul.f32 %v247, %v1159
      %v1199 = vmul.f32 %v248, %v1159
      %v1200 = vmul.f32 %v249, %v1159
      %v1201 = vmul.f32 %v250, %v1159
      %v1202 = vmul.f32 %v251, %v1159
      %v1203 = vmul.f32 %v252, %v1159
      %v1204 = vmul.f32 %v253, %v1159
      %v1205 = vmul.f32 %v254, %v1159
      %v1206 = vmul.f32 %v255, %v1159
      %v1207 = vmul.f32 %v256, %v1159
      %v1208 = vmul.f32 %v257, %v1159
      %v1257 = vrot.slane %v1161, 4
      %v1258 = vrot.slane %v1162, 4
      %v1259 = vsel %vm688, %v1257, %v1258
      %v1260 = vrot.slane %v1163, 4
      %v1261 = vsel %vm688, %v1258, %v1260
      %v1262 = vrot.slane %v1164, 4
      %v1263 = vrot.slane %v1165, 4
      %v1264 = vsel %vm688, %v1262, %v1263
      %v1265 = vrot.slane %v1166, 4
      %v1266 = vsel %vm688, %v1263, %v1265
      %v1267 = vrot.slane %v1167, 4
      %v1268 = vrot.slane %v1168, 4
      %v1269 = vsel %vm688, %v1267, %v1268
      %v1270 = vrot.slane %v1169, 4
      %v1271 = vsel %vm688, %v1268, %v1270
      %v1272 = vrot.slane %v1170, 4
      %v1273 = vrot.slane %v1171, 4
      %v1274 = vsel %vm688, %v1272, %v1273
      %v1275 = vrot.slane %v1172, 4
      %v1276 = vsel %vm688, %v1273, %v1275
      %v1277 = vrot.slane %v1173, 4
      %v1278 = vrot.slane %v1174, 4
      %v1279 = vsel %vm688, %v1277, %v1278
      %v1280 = vrot.slane %v1175, 4
      %v1281 = vsel %vm688, %v1278, %v1280
      %v1282 = vrot.slane %v1176, 4
      %v1283 = vrot.slane %v1177, 4
      %v1284 = vsel %vm688, %v1282, %v1283
      %v1285 = vrot.slane %v1178, 4
      %v1286 = vsel %vm688, %v1283, %v1285
      %v1287 = vrot.slane %v1179, 4
      %v1288 = vrot.slane %v1180, 4
      %v1289 = vsel %vm688, %v1287, %v1288
      %v1290 = vrot.slane %v1181, 4
      %v1291 = vsel %vm688, %v1288, %v1290
      %v1292 = vrot.slane %v1182, 4
      %v1293 = vrot.slane %v1183, 4
      %v1294 = vsel %vm688, %v1292, %v1293
      %v1295 = vrot.slane %v1184, 4
      %v1296 = vsel %vm688, %v1293, %v1295
      %v1297 = vrot.slane %v1185, 4
      %v1298 = vrot.slane %v1186, 4
      %v1299 = vsel %vm688, %v1297, %v1298
      %v1300 = vrot.slane %v1187, 4
      %v1301 = vsel %vm688, %v1298, %v1300
      %v1302 = vrot.slane %v1188, 4
      %v1303 = vrot.slane %v1189, 4
      %v1304 = vsel %vm688, %v1302, %v1303
      %v1305 = vrot.slane %v1190, 4
      %v1306 = vsel %vm688, %v1303, %v1305
      %v1307 = vrot.slane %v1191, 4
      %v1308 = vrot.slane %v1192, 4
      %v1309 = vsel %vm688, %v1307, %v1308
      %v1310 = vrot.slane %v1193, 4
      %v1311 = vsel %vm688, %v1308, %v1310
      %v1312 = vrot.slane %v1194, 4
      %v1313 = vrot.slane %v1195, 4
      %v1314 = vsel %vm688, %v1312, %v1313
      %v1315 = vrot.slane %v1196, 4
      %v1316 = vsel %vm688, %v1313, %v1315
      %v1317 = vrot.slane %v1197, 4
      %v1318 = vrot.slane %v1198, 4
      %v1319 = vsel %vm688, %v1317, %v1318
      %v1320 = vrot.slane %v1199, 4
      %v1321 = vsel %vm688, %v1318, %v1320
      %v1322 = vrot.slane %v1200, 4
      %v1323 = vrot.slane %v1201, 4
      %v1324 = vsel %vm688, %v1322, %v1323
      %v1325 = vrot.slane %v1202, 4
      %v1326 = vsel %vm688, %v1323, %v1325
      %v1327 = vrot.slane %v1203, 4
      %v1328 = vrot.slane %v1204, 4
      %v1329 = vsel %vm688, %v1327, %v1328
      %v1330 = vrot.slane %v1205, 4
      %v1331 = vsel %vm688, %v1328, %v1330
      %v1332 = vrot.slane %v1206, 4
      %v1333 = vrot.slane %v1207, 4
      %v1334 = vsel %vm688, %v1332, %v1333
      %v1335 = vrot.slane %v1208, 4
      %v1336 = vsel %vm688, %v1333, %v1335
      %v1369 = vadd.f32 %v1121, %v1259
      %v1370 = vadd.f32 %v1122, %v1261
      %v1371 = vadd.f32 %v1123, %v1264
      %v1372 = vadd.f32 %v1124, %v1266
      %v1373 = vadd.f32 %v1125, %v1269
      %v1374 = vadd.f32 %v1126, %v1271
      %v1375 = vadd.f32 %v1127, %v1274
      %v1376 = vadd.f32 %v1128, %v1276
      %v1377 = vadd.f32 %v1129, %v1279
      %v1378 = vadd.f32 %v1130, %v1281
      %v1379 = vadd.f32 %v1131, %v1284
      %v1380 = vadd.f32 %v1132, %v1286
      %v1381 = vadd.f32 %v1133, %v1289
      %v1382 = vadd.f32 %v1134, %v1291
      %v1383 = vadd.f32 %v1135, %v1294
      %v1384 = vadd.f32 %v1136, %v1296
      %v1385 = vadd.f32 %v1137, %v1299
      %v1386 = vadd.f32 %v1138, %v1301
      %v1387 = vadd.f32 %v1139, %v1304
      %v1388 = vadd.f32 %v1140, %v1306
      %v1389 = vadd.f32 %v1141, %v1309
      %v1390 = vadd.f32 %v1142, %v1311
      %v1391 = vadd.f32 %v1143, %v1314
      %v1392 = vadd.f32 %v1144, %v1316
      %v1393 = vadd.f32 %v1145, %v1319
      %v1394 = vadd.f32 %v1146, %v1321
      %v1395 = vadd.f32 %v1147, %v1324
      %v1396 = vadd.f32 %v1148, %v1326
      %v1397 = vadd.f32 %v1149, %v1329
      %v1398 = vadd.f32 %v1150, %v1331
      %v1399 = vadd.f32 %v1151, %v1334
      %v1400 = vadd.f32 %v1152, %v1336
      %s1401 = scalar_lea.vmem %s1, 6
      %v1402 = vld [vmem:[%s1401] sm:$0x1]
      %v1404 = vlaneseq
      %v1405 = vshrl.u32 %v1404, 7
      %v1406 = vsub.s32 0, %v1405
      %v1407 = vrot.slane %v1402, %v1406
      %v1409 = vmul.f32 %v216, %v1407
      %v1410 = vmul.f32 %v217, %v1407
      %v1411 = vmul.f32 %v219, %v1407
      %v1412 = vmul.f32 %v220, %v1407
      %v1413 = vmul.f32 %v222, %v1407
      %v1414 = vmul.f32 %v223, %v1407
      %v1415 = vmul.f32 %v225, %v1407
      %v1416 = vmul.f32 %v226, %v1407
      %v1417 = vmul.f32 %v228, %v1407
      %v1418 = vmul.f32 %v229, %v1407
      %v1419 = vmul.f32 %v231, %v1407
      %v1420 = vmul.f32 %v232, %v1407
      %v1421 = vmul.f32 %v234, %v1407
      %v1422 = vmul.f32 %v235, %v1407
      %v1423 = vmul.f32 %v237, %v1407
      %v1424 = vmul.f32 %v238, %v1407
      %v1425 = vmul.f32 %v240, %v1407
      %v1426 = vmul.f32 %v241, %v1407
      %v1427 = vmul.f32 %v243, %v1407
      %v1428 = vmul.f32 %v244, %v1407
      %v1429 = vmul.f32 %v246, %v1407
      %v1430 = vmul.f32 %v247, %v1407
      %v1431 = vmul.f32 %v249, %v1407
      %v1432 = vmul.f32 %v250, %v1407
      %v1433 = vmul.f32 %v252, %v1407
      %v1434 = vmul.f32 %v253, %v1407
      %v1435 = vmul.f32 %v255, %v1407
      %v1436 = vmul.f32 %v256, %v1407
      %v1437 = vmul.f32 %v258, %v1407
      %v1438 = vmul.f32 %v259, %v1407
      %v1439 = vmul.f32 %v261, %v1407
      %v1440 = vmul.f32 %v262, %v1407
      %v1441 = vadd.f32 %v1369, %v1409
      %v1442 = vadd.f32 %v1370, %v1410
      %v1443 = vadd.f32 %v1371, %v1411
      %v1444 = vadd.f32 %v1372, %v1412
      %v1445 = vadd.f32 %v1373, %v1413
      %v1446 = vadd.f32 %v1374, %v1414
      %v1447 = vadd.f32 %v1375, %v1415
      %v1448 = vadd.f32 %v1376, %v1416
      %v1449 = vadd.f32 %v1377, %v1417
      %v1450 = vadd.f32 %v1378, %v1418
      %v1451 = vadd.f32 %v1379, %v1419
      %v1452 = vadd.f32 %v1380, %v1420
      %v1453 = vadd.f32 %v1381, %v1421
      %v1454 = vadd.f32 %v1382, %v1422
      %v1455 = vadd.f32 %v1383, %v1423
      %v1456 = vadd.f32 %v1384, %v1424
      %v1457 = vadd.f32 %v1385, %v1425
      %v1458 = vadd.f32 %v1386, %v1426
      %v1459 = vadd.f32 %v1387, %v1427
      %v1460 = vadd.f32 %v1388, %v1428
      %v1461 = vadd.f32 %v1389, %v1429
      %v1462 = vadd.f32 %v1390, %v1430
      %v1463 = vadd.f32 %v1391, %v1431
      %v1464 = vadd.f32 %v1392, %v1432
      %v1465 = vadd.f32 %v1393, %v1433
      %v1466 = vadd.f32 %v1394, %v1434
      %v1467 = vadd.f32 %v1395, %v1435
      %v1468 = vadd.f32 %v1396, %v1436
      %v1469 = vadd.f32 %v1397, %v1437
      %v1470 = vadd.f32 %v1398, %v1438
      %v1471 = vadd.f32 %v1399, %v1439
      %v1472 = vadd.f32 %v1400, %v1440
      %s1473 = scalar_lea.vmem %s1, 7
      %v1474 = vld [vmem:[%s1473] sm:$0x1]
      %v1476 = vlaneseq
      %v1477 = vshrl.u32 %v1476, 7
      %v1478 = vsub.s32 0, %v1477
      %v1479 = vrot.slane %v1474, %v1478
      %v1481 = vmul.f32 %v216, %v1479
      %v1482 = vmul.f32 %v217, %v1479
      %v1483 = vmul.f32 %v218, %v1479
      %v1484 = vmul.f32 %v219, %v1479
      %v1485 = vmul.f32 %v220, %v1479
      %v1486 = vmul.f32 %v221, %v1479
      %v1487 = vmul.f32 %v222, %v1479
      %v1488 = vmul.f32 %v223, %v1479
      %v1489 = vmul.f32 %v224, %v1479
      %v1490 = vmul.f32 %v225, %v1479
      %v1491 = vmul.f32 %v226, %v1479
      %v1492 = vmul.f32 %v227, %v1479
      %v1493 = vmul.f32 %v228, %v1479
      %v1494 = vmul.f32 %v229, %v1479
      %v1495 = vmul.f32 %v230, %v1479
      %v1496 = vmul.f32 %v231, %v1479
      %v1497 = vmul.f32 %v232, %v1479
      %v1498 = vmul.f32 %v233, %v1479
      %v1499 = vmul.f32 %v234, %v1479
      %v1500 = vmul.f32 %v235, %v1479
      %v1501 = vmul.f32 %v236, %v1479
      %v1502 = vmul.f32 %v237, %v1479
      %v1503 = vmul.f32 %v238, %v1479
      %v1504 = vmul.f32 %v239, %v1479
      %v1505 = vmul.f32 %v240, %v1479
      %v1506 = vmul.f32 %v241, %v1479
      %v1507 = vmul.f32 %v242, %v1479
      %v1508 = vmul.f32 %v243, %v1479
      %v1509 = vmul.f32 %v244, %v1479
      %v1510 = vmul.f32 %v245, %v1479
      %v1511 = vmul.f32 %v246, %v1479
      %v1512 = vmul.f32 %v247, %v1479
      %v1513 = vmul.f32 %v248, %v1479
      %v1514 = vmul.f32 %v249, %v1479
      %v1515 = vmul.f32 %v250, %v1479
      %v1516 = vmul.f32 %v251, %v1479
      %v1517 = vmul.f32 %v252, %v1479
      %v1518 = vmul.f32 %v253, %v1479
      %v1519 = vmul.f32 %v254, %v1479
      %v1520 = vmul.f32 %v255, %v1479
      %v1521 = vmul.f32 %v256, %v1479
      %v1522 = vmul.f32 %v257, %v1479
      %v1523 = vmul.f32 %v258, %v1479
      %v1524 = vmul.f32 %v259, %v1479
      %v1525 = vmul.f32 %v260, %v1479
      %v1526 = vmul.f32 %v261, %v1479
      %v1527 = vmul.f32 %v262, %v1479
      %v1528 = vmul.f32 %v263, %v1479
      %v1577 = vrot.slane %v1481, 2
      %v1578 = vrot.slane %v1482, 2
      %v1579 = vsel %vm439, %v1577, %v1578
      %v1580 = vrot.slane %v1483, 2
      %v1581 = vsel %vm439, %v1578, %v1580
      %v1582 = vrot.slane %v1484, 2
      %v1583 = vrot.slane %v1485, 2
      %v1584 = vsel %vm439, %v1582, %v1583
      %v1585 = vrot.slane %v1486, 2
      %v1586 = vsel %vm439, %v1583, %v1585
      %v1587 = vrot.slane %v1487, 2
      %v1588 = vrot.slane %v1488, 2
      %v1589 = vsel %vm439, %v1587, %v1588
      %v1590 = vrot.slane %v1489, 2
      %v1591 = vsel %vm439, %v1588, %v1590
      %v1592 = vrot.slane %v1490, 2
      %v1593 = vrot.slane %v1491, 2
      %v1594 = vsel %vm439, %v1592, %v1593
      %v1595 = vrot.slane %v1492, 2
      %v1596 = vsel %vm439, %v1593, %v1595
      %v1597 = vrot.slane %v1493, 2
      %v1598 = vrot.slane %v1494, 2
      %v1599 = vsel %vm439, %v1597, %v1598
      %v1600 = vrot.slane %v1495, 2
      %v1601 = vsel %vm439, %v1598, %v1600
      %v1602 = vrot.slane %v1496, 2
      %v1603 = vrot.slane %v1497, 2
      %v1604 = vsel %vm439, %v1602, %v1603
      %v1605 = vrot.slane %v1498, 2
      %v1606 = vsel %vm439, %v1603, %v1605
      %v1607 = vrot.slane %v1499, 2
      %v1608 = vrot.slane %v1500, 2
      %v1609 = vsel %vm439, %v1607, %v1608
      %v1610 = vrot.slane %v1501, 2
      %v1611 = vsel %vm439, %v1608, %v1610
      %v1612 = vrot.slane %v1502, 2
      %v1613 = vrot.slane %v1503, 2
      %v1614 = vsel %vm439, %v1612, %v1613
      %v1615 = vrot.slane %v1504, 2
      %v1616 = vsel %vm439, %v1613, %v1615
      %v1617 = vrot.slane %v1505, 2
      %v1618 = vrot.slane %v1506, 2
      %v1619 = vsel %vm439, %v1617, %v1618
      %v1620 = vrot.slane %v1507, 2
      %v1621 = vsel %vm439, %v1618, %v1620
      %v1622 = vrot.slane %v1508, 2
      %v1623 = vrot.slane %v1509, 2
      %v1624 = vsel %vm439, %v1622, %v1623
      %v1625 = vrot.slane %v1510, 2
      %v1626 = vsel %vm439, %v1623, %v1625
      %v1627 = vrot.slane %v1511, 2
      %v1628 = vrot.slane %v1512, 2
      %v1629 = vsel %vm439, %v1627, %v1628
      %v1630 = vrot.slane %v1513, 2
      %v1631 = vsel %vm439, %v1628, %v1630
      %v1632 = vrot.slane %v1514, 2
      %v1633 = vrot.slane %v1515, 2
      %v1634 = vsel %vm439, %v1632, %v1633
      %v1635 = vrot.slane %v1516, 2
      %v1636 = vsel %vm439, %v1633, %v1635
      %v1637 = vrot.slane %v1517, 2
      %v1638 = vrot.slane %v1518, 2
      %v1639 = vsel %vm439, %v1637, %v1638
      %v1640 = vrot.slane %v1519, 2
      %v1641 = vsel %vm439, %v1638, %v1640
      %v1642 = vrot.slane %v1520, 2
      %v1643 = vrot.slane %v1521, 2
      %v1644 = vsel %vm439, %v1642, %v1643
      %v1645 = vrot.slane %v1522, 2
      %v1646 = vsel %vm439, %v1643, %v1645
      %v1647 = vrot.slane %v1523, 2
      %v1648 = vrot.slane %v1524, 2
      %v1649 = vsel %vm439, %v1647, %v1648
      %v1650 = vrot.slane %v1525, 2
      %v1651 = vsel %vm439, %v1648, %v1650
      %v1652 = vrot.slane %v1526, 2
      %v1653 = vrot.slane %v1527, 2
      %v1654 = vsel %vm439, %v1652, %v1653
      %v1655 = vrot.slane %v1528, 2
      %v1656 = vsel %vm439, %v1653, %v1655
      %v1689 = vadd.f32 %v1441, %v1579
      %v1690 = vadd.f32 %v1442, %v1581
      %v1691 = vadd.f32 %v1443, %v1584
      %v1692 = vadd.f32 %v1444, %v1586
      %v1693 = vadd.f32 %v1445, %v1589
      %v1694 = vadd.f32 %v1446, %v1591
      %v1695 = vadd.f32 %v1447, %v1594
      %v1696 = vadd.f32 %v1448, %v1596
      %v1697 = vadd.f32 %v1449, %v1599
      %v1698 = vadd.f32 %v1450, %v1601
      %v1699 = vadd.f32 %v1451, %v1604
      %v1700 = vadd.f32 %v1452, %v1606
      %v1701 = vadd.f32 %v1453, %v1609
      %v1702 = vadd.f32 %v1454, %v1611
      %v1703 = vadd.f32 %v1455, %v1614
      %v1704 = vadd.f32 %v1456, %v1616
      %v1705 = vadd.f32 %v1457, %v1619
      %v1706 = vadd.f32 %v1458, %v1621
      %v1707 = vadd.f32 %v1459, %v1624
      %v1708 = vadd.f32 %v1460, %v1626
      %v1709 = vadd.f32 %v1461, %v1629
      %v1710 = vadd.f32 %v1462, %v1631
      %v1711 = vadd.f32 %v1463, %v1634
      %v1712 = vadd.f32 %v1464, %v1636
      %v1713 = vadd.f32 %v1465, %v1639
      %v1714 = vadd.f32 %v1466, %v1641
      %v1715 = vadd.f32 %v1467, %v1644
      %v1716 = vadd.f32 %v1468, %v1646
      %v1717 = vadd.f32 %v1469, %v1649
      %v1718 = vadd.f32 %v1470, %v1651
      %v1719 = vadd.f32 %v1471, %v1654
      %v1720 = vadd.f32 %v1472, %v1656
      %s1721 = scalar_lea.vmem %s1, 8
      %v1722 = vld [vmem:[%s1721] sm:$0x1]
      %v1724 = vlaneseq
      %v1725 = vshrl.u32 %v1724, 7
      %v1726 = vsub.s32 0, %v1725
      %v1727 = vrot.slane %v1722, %v1726
      %v1729 = vmul.f32 %v216, %v1727
      %v1730 = vmul.f32 %v217, %v1727
      %v1731 = vmul.f32 %v218, %v1727
      %v1732 = vmul.f32 %v219, %v1727
      %v1733 = vmul.f32 %v220, %v1727
      %v1734 = vmul.f32 %v221, %v1727
      %v1735 = vmul.f32 %v222, %v1727
      %v1736 = vmul.f32 %v223, %v1727
      %v1737 = vmul.f32 %v224, %v1727
      %v1738 = vmul.f32 %v225, %v1727
      %v1739 = vmul.f32 %v226, %v1727
      %v1740 = vmul.f32 %v227, %v1727
      %v1741 = vmul.f32 %v228, %v1727
      %v1742 = vmul.f32 %v229, %v1727
      %v1743 = vmul.f32 %v230, %v1727
      %v1744 = vmul.f32 %v231, %v1727
      %v1745 = vmul.f32 %v232, %v1727
      %v1746 = vmul.f32 %v233, %v1727
      %v1747 = vmul.f32 %v234, %v1727
      %v1748 = vmul.f32 %v235, %v1727
      %v1749 = vmul.f32 %v236, %v1727
      %v1750 = vmul.f32 %v237, %v1727
      %v1751 = vmul.f32 %v238, %v1727
      %v1752 = vmul.f32 %v239, %v1727
      %v1753 = vmul.f32 %v240, %v1727
      %v1754 = vmul.f32 %v241, %v1727
      %v1755 = vmul.f32 %v242, %v1727
      %v1756 = vmul.f32 %v243, %v1727
      %v1757 = vmul.f32 %v244, %v1727
      %v1758 = vmul.f32 %v245, %v1727
      %v1759 = vmul.f32 %v246, %v1727
      %v1760 = vmul.f32 %v247, %v1727
      %v1761 = vmul.f32 %v248, %v1727
      %v1762 = vmul.f32 %v249, %v1727
      %v1763 = vmul.f32 %v250, %v1727
      %v1764 = vmul.f32 %v251, %v1727
      %v1765 = vmul.f32 %v252, %v1727
      %v1766 = vmul.f32 %v253, %v1727
      %v1767 = vmul.f32 %v254, %v1727
      %v1768 = vmul.f32 %v255, %v1727
      %v1769 = vmul.f32 %v256, %v1727
      %v1770 = vmul.f32 %v257, %v1727
      %v1771 = vmul.f32 %v258, %v1727
      %v1772 = vmul.f32 %v259, %v1727
      %v1773 = vmul.f32 %v260, %v1727
      %v1774 = vmul.f32 %v261, %v1727
      %v1775 = vmul.f32 %v262, %v1727
      %v1776 = vmul.f32 %v263, %v1727
      %v1825 = vrot.slane %v1729, 4
      %v1826 = vrot.slane %v1730, 4
      %v1827 = vsel %vm688, %v1825, %v1826
      %v1828 = vrot.slane %v1731, 4
      %v1829 = vsel %vm688, %v1826, %v1828
      %v1830 = vrot.slane %v1732, 4
      %v1831 = vrot.slane %v1733, 4
      %v1832 = vsel %vm688, %v1830, %v1831
      %v1833 = vrot.slane %v1734, 4
      %v1834 = vsel %vm688, %v1831, %v1833
      %v1835 = vrot.slane %v1735, 4
      %v1836 = vrot.slane %v1736, 4
      %v1837 = vsel %vm688, %v1835, %v1836
      %v1838 = vrot.slane %v1737, 4
      %v1839 = vsel %vm688, %v1836, %v1838
      %v1840 = vrot.slane %v1738, 4
      %v1841 = vrot.slane %v1739, 4
      %v1842 = vsel %vm688, %v1840, %v1841
      %v1843 = vrot.slane %v1740, 4
      %v1844 = vsel %vm688, %v1841, %v1843
      %v1845 = vrot.slane %v1741, 4
      %v1846 = vrot.slane %v1742, 4
      %v1847 = vsel %vm688, %v1845, %v1846
      %v1848 = vrot.slane %v1743, 4
      %v1849 = vsel %vm688, %v1846, %v1848
      %v1850 = vrot.slane %v1744, 4
      %v1851 = vrot.slane %v1745, 4
      %v1852 = vsel %vm688, %v1850, %v1851
      %v1853 = vrot.slane %v1746, 4
      %v1854 = vsel %vm688, %v1851, %v1853
      %v1855 = vrot.slane %v1747, 4
      %v1856 = vrot.slane %v1748, 4
      %v1857 = vsel %vm688, %v1855, %v1856
      %v1858 = vrot.slane %v1749, 4
      %v1859 = vsel %vm688, %v1856, %v1858
      %v1860 = vrot.slane %v1750, 4
      %v1861 = vrot.slane %v1751, 4
      %v1862 = vsel %vm688, %v1860, %v1861
      %v1863 = vrot.slane %v1752, 4
      %v1864 = vsel %vm688, %v1861, %v1863
      %v1865 = vrot.slane %v1753, 4
      %v1866 = vrot.slane %v1754, 4
      %v1867 = vsel %vm688, %v1865, %v1866
      %v1868 = vrot.slane %v1755, 4
      %v1869 = vsel %vm688, %v1866, %v1868
      %v1870 = vrot.slane %v1756, 4
      %v1871 = vrot.slane %v1757, 4
      %v1872 = vsel %vm688, %v1870, %v1871
      %v1873 = vrot.slane %v1758, 4
      %v1874 = vsel %vm688, %v1871, %v1873
      %v1875 = vrot.slane %v1759, 4
      %v1876 = vrot.slane %v1760, 4
      %v1877 = vsel %vm688, %v1875, %v1876
      %v1878 = vrot.slane %v1761, 4
      %v1879 = vsel %vm688, %v1876, %v1878
      %v1880 = vrot.slane %v1762, 4
      %v1881 = vrot.slane %v1763, 4
      %v1882 = vsel %vm688, %v1880, %v1881
      %v1883 = vrot.slane %v1764, 4
      %v1884 = vsel %vm688, %v1881, %v1883
      %v1885 = vrot.slane %v1765, 4
      %v1886 = vrot.slane %v1766, 4
      %v1887 = vsel %vm688, %v1885, %v1886
      %v1888 = vrot.slane %v1767, 4
      %v1889 = vsel %vm688, %v1886, %v1888
      %v1890 = vrot.slane %v1768, 4
      %v1891 = vrot.slane %v1769, 4
      %v1892 = vsel %vm688, %v1890, %v1891
      %v1893 = vrot.slane %v1770, 4
      %v1894 = vsel %vm688, %v1891, %v1893
      %v1895 = vrot.slane %v1771, 4
      %v1896 = vrot.slane %v1772, 4
      %v1897 = vsel %vm688, %v1895, %v1896
      %v1898 = vrot.slane %v1773, 4
      %v1899 = vsel %vm688, %v1896, %v1898
      %v1900 = vrot.slane %v1774, 4
      %v1901 = vrot.slane %v1775, 4
      %v1902 = vsel %vm688, %v1900, %v1901
      %v1903 = vrot.slane %v1776, 4
      %v1904 = vsel %vm688, %v1901, %v1903
      %v1937 = vadd.f32 %v1689, %v1827
      %v1938 = vadd.f32 %v1690, %v1829
      %v1939 = vadd.f32 %v1691, %v1832
      %v1940 = vadd.f32 %v1692, %v1834
      %v1941 = vadd.f32 %v1693, %v1837
      %v1942 = vadd.f32 %v1694, %v1839
      %v1943 = vadd.f32 %v1695, %v1842
      %v1944 = vadd.f32 %v1696, %v1844
      %v1945 = vadd.f32 %v1697, %v1847
      %v1946 = vadd.f32 %v1698, %v1849
      %v1947 = vadd.f32 %v1699, %v1852
      %v1948 = vadd.f32 %v1700, %v1854
      %v1949 = vadd.f32 %v1701, %v1857
      %v1950 = vadd.f32 %v1702, %v1859
      %v1951 = vadd.f32 %v1703, %v1862
      %v1952 = vadd.f32 %v1704, %v1864
      %v1953 = vadd.f32 %v1705, %v1867
      %v1954 = vadd.f32 %v1706, %v1869
      %v1955 = vadd.f32 %v1707, %v1872
      %v1956 = vadd.f32 %v1708, %v1874
      %v1957 = vadd.f32 %v1709, %v1877
      %v1958 = vadd.f32 %v1710, %v1879
      %v1959 = vadd.f32 %v1711, %v1882
      %v1960 = vadd.f32 %v1712, %v1884
      %v1961 = vadd.f32 %v1713, %v1887
      %v1962 = vadd.f32 %v1714, %v1889
      %v1963 = vadd.f32 %v1715, %v1892
      %v1964 = vadd.f32 %v1716, %v1894
      %v1965 = vadd.f32 %v1717, %v1897
      %v1966 = vadd.f32 %v1718, %v1899
      %v1967 = vadd.f32 %v1719, %v1902
      %v1968 = vadd.f32 %v1720, %v1904
      %vm1969 = vcmask 523264
      %1970 = vst.msk [vmem:[%s143] sm:$0xff] %vm1969, %v1937
      %1971 = vst.msk [vmem:[%s143 + $0x8] sm:$0xff] %vm1969, %v1938
      %1972 = vst.msk [vmem:[%s143 + $0x10] sm:$0xff] %vm1969, %v1939
      %1973 = vst.msk [vmem:[%s143 + $0x18] sm:$0xff] %vm1969, %v1940
      %1974 = vst.msk [vmem:[%s143 + $0x20] sm:$0xff] %vm1969, %v1941
      %1975 = vst.msk [vmem:[%s143 + $0x28] sm:$0xff] %vm1969, %v1942
      %1976 = vst.msk [vmem:[%s143 + $0x30] sm:$0xff] %vm1969, %v1943
      %1977 = vst.msk [vmem:[%s143 + $0x38] sm:$0xff] %vm1969, %v1944
      %1978 = vst.msk [vmem:[%s143 + $0x40] sm:$0xff] %vm1969, %v1945
      %1979 = vst.msk [vmem:[%s143 + $0x48] sm:$0xff] %vm1969, %v1946
      %1980 = vst.msk [vmem:[%s143 + $0x50] sm:$0xff] %vm1969, %v1947
      %1981 = vst.msk [vmem:[%s143 + $0x58] sm:$0xff] %vm1969, %v1948
      %1982 = vst.msk [vmem:[%s143 + $0x60] sm:$0xff] %vm1969, %v1949
      %1983 = vst.msk [vmem:[%s143 + $0x68] sm:$0xff] %vm1969, %v1950
      %1984 = vst.msk [vmem:[%s143 + $0x70] sm:$0xff] %vm1969, %v1951
      %1985 = vst.msk [vmem:[%s143 + $0x78] sm:$0xff] %vm1969, %v1952
      %1986 = vst.msk [vmem:[%s143 + $0x80] sm:$0xff] %vm1969, %v1953
      %1987 = vst.msk [vmem:[%s143 + $0x88] sm:$0xff] %vm1969, %v1954
      %1988 = vst.msk [vmem:[%s143 + $0x90] sm:$0xff] %vm1969, %v1955
      %1989 = vst.msk [vmem:[%s143 + $0x98] sm:$0xff] %vm1969, %v1956
      %1990 = vst.msk [vmem:[%s143 + $0xa0] sm:$0xff] %vm1969, %v1957
      %1991 = vst.msk [vmem:[%s143 + $0xa8] sm:$0xff] %vm1969, %v1958
      %1992 = vst.msk [vmem:[%s143 + $0xb0] sm:$0xff] %vm1969, %v1959
      %1993 = vst.msk [vmem:[%s143 + $0xb8] sm:$0xff] %vm1969, %v1960
      %1994 = vst.msk [vmem:[%s143 + $0xc0] sm:$0xff] %vm1969, %v1961
      %1995 = vst.msk [vmem:[%s143 + $0xc8] sm:$0xff] %vm1969, %v1962
      %1996 = vst.msk [vmem:[%s143 + $0xd0] sm:$0xff] %vm1969, %v1963
      %1997 = vst.msk [vmem:[%s143 + $0xd8] sm:$0xff] %vm1969, %v1964
      %1998 = vst.msk [vmem:[%s143 + $0xe0] sm:$0xff] %vm1969, %v1965
      %1999 = vst.msk [vmem:[%s143 + $0xe8] sm:$0xff] %vm1969, %v1966
      %2000 = vst.msk [vmem:[%s143 + $0xf0] sm:$0xff] %vm1969, %v1967
      %2001 = vst.msk [vmem:[%s143 + $0xf8] sm:$0xff] %vm1969, %v1968
      %p2002 = scmp.lt.s32.totalorder %s13, 1
      %s2003 = scalar_select %p2002, %s13, 1
      %s2004 = smul.addr %s2003, 32
      %s2005 = smul.addr %s2004, 8
      %s2006 = scalar_lea.vmem %s2, %s2005
      // Predicated region
      $region29: #{_lambda_.18} parent=27 // pred_check
        %p2007 = pneg %p78
      $region30: #{_lambda_.18} parent=27 // pred_check_branch
        %2009 = sbr.rel (%p2007) target = $region32
      $region31: #{_lambda_.18} parent=27 // pred_region
        _
      $region32: #{_lambda_.18} parent=27 // pred_fallthru
        _
    $region28: #{_lambda_.18} parent=5 // pred_fallthru
      _
    %p2010 = scmp.le.s32.totalorder 2, %s8
    // Predicated region
    $region33: #{_lambda_.18} parent=5 // pred_check
      %p2011 = pneg %p2010
    $region34: #{_lambda_.18} parent=5 // pred_check_branch
      %2013 = sbr.rel (%p2011) target = $region36
    $region35: #{_lambda_.18} parent=5 // pred_region
      %s2014 = ssub.s32 %s8, 2
      // Predicated region
      $region37: #{_lambda_.18} parent=35 // pred_check
        %p2015 = pneg %p84
      $region38: #{_lambda_.18} parent=35 // pred_check_branch
        %2017 = sbr.rel (%p2015) target = $region40
      $region39: #{_lambda_.18} parent=35 // pred_region
        %p2018 = scmp.lt.s32.totalorder %s14, 1
        %s2019 = scalar_select %p2018, %s14, 1
        %s2020 = smul.addr %s2019, 32
        %s2021 = smul.addr %s2020, 8
        %s2022 = scalar_lea.vmem %s2, %s2021
      $region40: #{_lambda_.18} parent=35 // pred_fallthru
        _
    $region36: #{_lambda_.18} parent=5 // pred_fallthru
      _
  $region6: #{_lambda_.18} parent=0 // loop_footer
    %s12 = sadd.s32 1, %s8
  $region7: #{_lambda_.18} parent=0 // loop_footer_branch
    %7 = sbr.rel target = $region3
  $region8: #{_lambda_.18} parent=0 // loop_exit
    _

// kernel: _lambda_.26
$region0: #{_lambda_.26}
  #allocation0 [shape = 'u32[]', space=smem, size = 0x4, offset = 0x4, fixed_abs, tag = 'smem constant byte address 0x4 - core index']
  #allocation1 [shape = 'u32[144,128]{1,0:T(1,128)}', space=vmem, size = 0x12000, scoped, tag = 'internal scratch']
  %s0 = inlined_call_operand.vmem [shape: f32[512,128], index: 0, kind: input, shape index: {}]
  %s1 = inlined_call_operand.vmem [shape: f32[512,128], index: 1, kind: output, shape index: {}]
  %s2 = sld [smem:[#allocation0]]
  $region14: #{_lambda_.26} parent=0
    _
  %s4 = ssub.s32 1, %s2
  %s5 = scalar_select 0, %s4, %s2
  // Predicated region
  $region2: #{_lambda_.26} parent=0 // pred_check
    _
  $region3: #{_lambda_.26} parent=0 // pred_check_branch
    %7 = sbr.rel (0) target = $region5
  $region4: #{_lambda_.26} parent=0 // pred_region
    _
  $region5: #{_lambda_.26} parent=0 // pred_fallthru
    _
  %v8 = vld [vmem:[%s0] sm:$0xff]
  %v9 = vld [vmem:[%s0 + $0x8] sm:$0xff]
  %v10 = vld [vmem:[%s0 + $0x10] sm:$0xff]
  %v11 = vld [vmem:[%s0 + $0x18] sm:$0xff]
  %v12 = vld [vmem:[%s0 + $0x20] sm:$0xff]
  %v13 = vld [vmem:[%s0 + $0x28] sm:$0xff]
  %v14 = vld [vmem:[%s0 + $0x30] sm:$0xff]
  %v15 = vld [vmem:[%s0 + $0x38] sm:$0xff]
  %v16 = vld [vmem:[%s0 + $0x40] sm:$0xff]
  %v17 = vld [vmem:[%s0 + $0x48] sm:$0xff]
  %v18 = vld [vmem:[%s0 + $0x50] sm:$0xff]
  %v19 = vld [vmem:[%s0 + $0x58] sm:$0xff]
  %v20 = vld [vmem:[%s0 + $0x60] sm:$0xff]
  %v21 = vld [vmem:[%s0 + $0x68] sm:$0xff]
  %v22 = vld [vmem:[%s0 + $0x70] sm:$0xff]
  %v23 = vld [vmem:[%s0 + $0x78] sm:$0xff]
  %v24 = vld [vmem:[%s0 + $0x80] sm:$0xff]
  %v25 = vld [vmem:[%s0 + $0x88] sm:$0xff]
  %v26 = vld [vmem:[%s0 + $0x90] sm:$0xff]
  %v27 = vld [vmem:[%s0 + $0x98] sm:$0xff]
  %v28 = vld [vmem:[%s0 + $0xa0] sm:$0xff]
  %v29 = vld [vmem:[%s0 + $0xa8] sm:$0xff]
  %v30 = vld [vmem:[%s0 + $0xb0] sm:$0xff]
  %v31 = vld [vmem:[%s0 + $0xb8] sm:$0xff]
  %v32 = vld [vmem:[%s0 + $0xc0] sm:$0xff]
  %v33 = vld [vmem:[%s0 + $0xc8] sm:$0xff]
  %v34 = vld [vmem:[%s0 + $0xd0] sm:$0xff]
  %v35 = vld [vmem:[%s0 + $0xd8] sm:$0xff]
  %v36 = vld [vmem:[%s0 + $0xe0] sm:$0xff]
  %v37 = vld [vmem:[%s0 + $0xe8] sm:$0xff]
  %v38 = vld [vmem:[%s0 + $0xf0] sm:$0xff]
  %v39 = vld [vmem:[%s0 + $0xf8] sm:$0xff]
  %v40 = vld [vmem:[%s0 + $0x100] sm:$0xff]
  %v41 = vld [vmem:[%s0 + $0x108] sm:$0xff]
  %v42 = vld [vmem:[%s0 + $0x110] sm:$0xff]
  %v43 = vld [vmem:[%s0 + $0x118] sm:$0xff]
  %v44 = vld [vmem:[%s0 + $0x120] sm:$0xff]
  %v45 = vld [vmem:[%s0 + $0x128] sm:$0xff]
  %v46 = vld [vmem:[%s0 + $0x130] sm:$0xff]
  %v47 = vld [vmem:[%s0 + $0x138] sm:$0xff]
  %v48 = vld [vmem:[%s0 + $0x140] sm:$0xff]
  %v49 = vld [vmem:[%s0 + $0x148] sm:$0xff]
  %v50 = vld [vmem:[%s0 + $0x150] sm:$0xff]
  %v51 = vld [vmem:[%s0 + $0x158] sm:$0xff]
  %v52 = vld [vmem:[%s0 + $0x160] sm:$0xff]
  %v53 = vld [vmem:[%s0 + $0x168] sm:$0xff]
  %v54 = vld [vmem:[%s0 + $0x170] sm:$0xff]
  %v55 = vld [vmem:[%s0 + $0x178] sm:$0xff]
  %v56 = vld [vmem:[%s0 + $0x180] sm:$0xff]
  %v57 = vld [vmem:[%s0 + $0x188] sm:$0xff]
  %v58 = vld [vmem:[%s0 + $0x190] sm:$0xff]
  %v59 = vld [vmem:[%s0 + $0x198] sm:$0xff]
  %v60 = vld [vmem:[%s0 + $0x1a0] sm:$0xff]
  %v61 = vld [vmem:[%s0 + $0x1a8] sm:$0xff]
  %v62 = vld [vmem:[%s0 + $0x1b0] sm:$0xff]
  %v63 = vld [vmem:[%s0 + $0x1b8] sm:$0xff]
  %v64 = vld [vmem:[%s0 + $0x1c0] sm:$0xff]
  %v65 = vld [vmem:[%s0 + $0x1c8] sm:$0xff]
  %v66 = vld [vmem:[%s0 + $0x1d0] sm:$0xff]
  %v67 = vld [vmem:[%s0 + $0x1d8] sm:$0xff]
  %v68 = vld [vmem:[%s0 + $0x1e0] sm:$0xff]
  %v69 = vld [vmem:[%s0 + $0x1e8] sm:$0xff]
  %v70 = vld [vmem:[%s0 + $0x1f0] sm:$0xff]
  %v71 = vld [vmem:[%s0 + $0x1f8] sm:$0xff]
  %v72 = vmax.f32 %v8, 0.0
  %v73 = vmax.f32 %v9, 0.0
  %v74 = vmax.f32 %v10, 0.0
  %v75 = vmax.f32 %v11, 0.0
  %v76 = vmax.f32 %v12, 0.0
  %v77 = vmax.f32 %v13, 0.0
  %v78 = vmax.f32 %v14, 0.0
  %v79 = vmax.f32 %v15, 0.0
  %v80 = vmax.f32 %v16, 0.0
  %v81 = vmax.f32 %v17, 0.0
  %v82 = vmax.f32 %v18, 0.0
  %v83 = vmax.f32 %v19, 0.0
  %v84 = vmax.f32 %v20, 0.0
  %v85 = vmax.f32 %v21, 0.0
  %v86 = vmax.f32 %v22, 0.0
  %v87 = vmax.f32 %v23, 0.0
  %v88 = vmax.f32 %v24, 0.0
  %v89 = vmax.f32 %v25, 0.0
  %v90 = vmax.f32 %v26, 0.0
  %v91 = vmax.f32 %v27, 0.0
  %v92 = vmax.f32 %v28, 0.0
  %v93 = vmax.f32 %v29, 0.0
  %v94 = vmax.f32 %v30, 0.0
  %v95 = vmax.f32 %v31, 0.0
  %v96 = vmax.f32 %v32, 0.0
  %v97 = vmax.f32 %v33, 0.0
  %v98 = vmax.f32 %v34, 0.0
  %v99 = vmax.f32 %v35, 0.0
  %v100 = vmax.f32 %v36, 0.0
  %v101 = vmax.f32 %v37, 0.0
  %v102 = vmax.f32 %v38, 0.0
  %v103 = vmax.f32 %v39, 0.0
  %v104 = vmax.f32 %v40, 0.0
  %v105 = vmax.f32 %v41, 0.0
  %v106 = vmax.f32 %v42, 0.0
  %v107 = vmax.f32 %v43, 0.0
  %v108 = vmax.f32 %v44, 0.0
  %v109 = vmax.f32 %v45, 0.0
  %v110 = vmax.f32 %v46, 0.0
  %v111 = vmax.f32 %v47, 0.0
  %v112 = vmax.f32 %v48, 0.0
  %v113 = vmax.f32 %v49, 0.0
  %v114 = vmax.f32 %v50, 0.0
  %v115 = vmax.f32 %v51, 0.0
  %v116 = vmax.f32 %v52, 0.0
  %v117 = vmax.f32 %v53, 0.0
  %v118 = vmax.f32 %v54, 0.0
  %v119 = vmax.f32 %v55, 0.0
  %v120 = vmax.f32 %v56, 0.0
  %v121 = vmax.f32 %v57, 0.0
  %v122 = vmax.f32 %v58, 0.0
  %v123 = vmax.f32 %v59, 0.0
  %v124 = vmax.f32 %v60, 0.0
  %v125 = vmax.f32 %v61, 0.0
  %v126 = vmax.f32 %v62, 0.0
  %v127 = vmax.f32 %v63, 0.0
  %v128 = vmax.f32 %v64, 0.0
  %v129 = vmax.f32 %v65, 0.0
  %v130 = vmax.f32 %v66, 0.0
  %v131 = vmax.f32 %v67, 0.0
  %v132 = vmax.f32 %v68, 0.0
  %v133 = vmax.f32 %v69, 0.0
  %v134 = vmax.f32 %v70, 0.0
  %v135 = vmax.f32 %v71, 0.0
  %136 = vst [vmem:[%s1] sm:$0xff] %v72
  %137 = vst [vmem:[%s1 + $0x8] sm:$0xff] %v73
  %138 = vst [vmem:[%s1 + $0x10] sm:$0xff] %v74
  %139 = vst [vmem:[%s1 + $0x18] sm:$0xff] %v75
  %140 = vst [vmem:[%s1 + $0x20] sm:$0xff] %v76
  %141 = vst [vmem:[%s1 + $0x28] sm:$0xff] %v77
  %142 = vst [vmem:[%s1 + $0x30] sm:$0xff] %v78
  %143 = vst [vmem:[%s1 + $0x38] sm:$0xff] %v79
  %144 = vst [vmem:[%s1 + $0x40] sm:$0xff] %v80
  %145 = vst [vmem:[%s1 + $0x48] sm:$0xff] %v81
  %146 = vst [vmem:[%s1 + $0x50] sm:$0xff] %v82
  %147 = vst [vmem:[%s1 + $0x58] sm:$0xff] %v83
  %148 = vst [vmem:[%s1 + $0x60] sm:$0xff] %v84
  %149 = vst [vmem:[%s1 + $0x68] sm:$0xff] %v85
  %150 = vst [vmem:[%s1 + $0x70] sm:$0xff] %v86
  %151 = vst [vmem:[%s1 + $0x78] sm:$0xff] %v87
  %152 = vst [vmem:[%s1 + $0x80] sm:$0xff] %v88
  %153 = vst [vmem:[%s1 + $0x88] sm:$0xff] %v89
  %154 = vst [vmem:[%s1 + $0x90] sm:$0xff] %v90
  %155 = vst [vmem:[%s1 + $0x98] sm:$0xff] %v91
  %156 = vst [vmem:[%s1 + $0xa0] sm:$0xff] %v92
  %157 = vst [vmem:[%s1 + $0xa8] sm:$0xff] %v93
  %158 = vst [vmem:[%s1 + $0xb0] sm:$0xff] %v94
  %159 = vst [vmem:[%s1 + $0xb8] sm:$0xff] %v95
  %160 = vst [vmem:[%s1 + $0xc0] sm:$0xff] %v96
  %161 = vst [vmem:[%s1 + $0xc8] sm:$0xff] %v97
  %162 = vst [vmem:[%s1 + $0xd0] sm:$0xff] %v98
  %163 = vst [vmem:[%s1 + $0xd8] sm:$0xff] %v99
  %164 = vst [vmem:[%s1 + $0xe0] sm:$0xff] %v100
  %165 = vst [vmem:[%s1 + $0xe8] sm:$0xff] %v101
  %166 = vst [vmem:[%s1 + $0xf0] sm:$0xff] %v102
  %167 = vst [vmem:[%s1 + $0xf8] sm:$0xff] %v103
  %168 = vst [vmem:[%s1 + $0x100] sm:$0xff] %v104
  %169 = vst [vmem:[%s1 + $0x108] sm:$0xff] %v105
  %170 = vst [vmem:[%s1 + $0x110] sm:$0xff] %v106
  %171 = vst [vmem:[%s1 + $0x118] sm:$0xff] %v107
  %172 = vst [vmem:[%s1 + $0x120] sm:$0xff] %v108
  %173 = vst [vmem:[%s1 + $0x128] sm:$0xff] %v109
  %174 = vst [vmem:[%s1 + $0x130] sm:$0xff] %v110
  %175 = vst [vmem:[%s1 + $0x138] sm:$0xff] %v111
  %176 = vst [vmem:[%s1 + $0x140] sm:$0xff] %v112
  %177 = vst [vmem:[%s1 + $0x148] sm:$0xff] %v113
  %178 = vst [vmem:[%s1 + $0x150] sm:$0xff] %v114
  %179 = vst [vmem:[%s1 + $0x158] sm:$0xff] %v115
  %180 = vst [vmem:[%s1 + $0x160] sm:$0xff] %v116
  %181 = vst [vmem:[%s1 + $0x168] sm:$0xff] %v117
  %182 = vst [vmem:[%s1 + $0x170] sm:$0xff] %v118
  %183 = vst [vmem:[%s1 + $0x178] sm:$0xff] %v119
  %184 = vst [vmem:[%s1 + $0x180] sm:$0xff] %v120
  %185 = vst [vmem:[%s1 + $0x188] sm:$0xff] %v121
  %186 = vst [vmem:[%s1 + $0x190] sm:$0xff] %v122
  %187 = vst [vmem:[%s1 + $0x198] sm:$0xff] %v123
  %188 = vst [vmem:[%s1 + $0x1a0] sm:$0xff] %v124
  %189 = vst [vmem:[%s1 + $0x1a8] sm:$0xff] %v125
  %190 = vst [vmem:[%s1 + $0x1b0] sm:$0xff] %v126
  %191 = vst [vmem:[%s1 + $0x1b8] sm:$0xff] %v127
  %192 = vst [vmem:[%s1 + $0x1c0] sm:$0xff] %v128
  %193 = vst [vmem:[%s1 + $0x1c8] sm:$0xff] %v129
  %194 = vst [vmem:[%s1 + $0x1d0] sm:$0xff] %v130
  %195 = vst [vmem:[%s1 + $0x1d8] sm:$0xff] %v131
  %196 = vst [vmem:[%s1 + $0x1e0] sm:$0xff] %v132
  %197 = vst [vmem:[%s1 + $0x1e8] sm:$0xff] %v133
  %198 = vst [vmem:[%s1 + $0x1f0] sm:$0xff] %v134
  %199 = vst [vmem:[%s1 + $0x1f8] sm:$0xff] %v135
  // Predicated region
  $region6: #{_lambda_.26} parent=0 // pred_check
    _
  $region7: #{_lambda_.26} parent=0 // pred_check_branch
    %201 = sbr.rel (0) target = $region9
  $region8: #{_lambda_.26} parent=0 // pred_region
    _
  $region9: #{_lambda_.26} parent=0 // pred_fallthru
    _
  // Predicated region
  $region10: #{_lambda_.26} parent=0 // pred_check
    _
  $region11: #{_lambda_.26} parent=0 // pred_check_branch
    %203 = sbr.rel (0) target = $region13
  $region12: #{_lambda_.26} parent=0 // pred_region
    _
  $region13: #{_lambda_.26} parent=0 // pred_fallthru
    _

// kernel: _lambda_.29
$region0: #{_lambda_.29}
  #allocation0 [shape = 'u32[]', space=smem, size = 0x4, offset = 0x4, fixed_abs, tag = 'smem constant byte address 0x4 - core index']
  #allocation1 [shape = 'u32[144,128]{1,0:T(1,128)}', space=vmem, size = 0x12000, scoped, tag = 'internal scratch']
  %s0 = inlined_call_operand.vmem [shape: bf16[128,128], index: 0, kind: input, shape index: {}]
  %s1 = inlined_call_operand.vmem [shape: bf16[128,128], index: 1, kind: input, shape index: {}]
  %s2 = inlined_call_operand.vmem [shape: f32[128,128], index: 2, kind: output, shape index: {}]
  %s3 = sld [smem:[#allocation0]]
  $region18: #{_lambda_.29} parent=0
    _
  %s5 = ssub.s32 1, %s3
  %s6 = scalar_select 0, %s5, %s3
  // Predicated region
  $region2: #{_lambda_.29} parent=0 // pred_check
    _
  $region3: #{_lambda_.29} parent=0 // pred_check_branch
    %8 = sbr.rel (0) target = $region5
  $region4: #{_lambda_.29} parent=0 // pred_region
    _
  $region5: #{_lambda_.29} parent=0 // pred_fallthru
    _
  // Predicated region
  $region6: #{_lambda_.29} parent=0 // pred_check
    _
  $region7: #{_lambda_.29} parent=0 // pred_check_branch
    %10 = sbr.rel (0) target = $region9
  $region8: #{_lambda_.29} parent=0 // pred_region
    _
  $region9: #{_lambda_.29} parent=0 // pred_fallthru
    _
  %v12 = vld [vmem:[%s0] sm:$0xf]
  %v13 = vld [vmem:[%s0 + $0x4] sm:$0xf]
  %v14 = vld [vmem:[%s0 + $0x8] sm:$0xf]
  %v15 = vld [vmem:[%s0 + $0xc] sm:$0xf]
  %v16 = vld [vmem:[%s0 + $0x10] sm:$0xf]
  %v17 = vld [vmem:[%s0 + $0x14] sm:$0xf]
  %v18 = vld [vmem:[%s0 + $0x18] sm:$0xf]
  %v19 = vld [vmem:[%s0 + $0x1c] sm:$0xf]
  %v20 = vld [vmem:[%s0 + $0x20] sm:$0xf]
  %v21 = vld [vmem:[%s0 + $0x24] sm:$0xf]
  %v22 = vld [vmem:[%s0 + $0x28] sm:$0xf]
  %v23 = vld [vmem:[%s0 + $0x2c] sm:$0xf]
  %v24 = vld [vmem:[%s0 + $0x30] sm:$0xf]
  %v25 = vld [vmem:[%s0 + $0x34] sm:$0xf]
  %v26 = vld [vmem:[%s0 + $0x38] sm:$0xf]
  %v27 = vld [vmem:[%s0 + $0x3c] sm:$0xf]
  %v28 = vld [vmem:[%s1] sm:$0xf]
  %v29 = vld [vmem:[%s1 + $0x4] sm:$0xf]
  %v30 = vld [vmem:[%s1 + $0x8] sm:$0xf]
  %v31 = vld [vmem:[%s1 + $0xc] sm:$0xf]
  %v32 = vld [vmem:[%s1 + $0x10] sm:$0xf]
  %v33 = vld [vmem:[%s1 + $0x14] sm:$0xf]
  %v34 = vld [vmem:[%s1 + $0x18] sm:$0xf]
  %v35 = vld [vmem:[%s1 + $0x1c] sm:$0xf]
  %v36 = vld [vmem:[%s1 + $0x20] sm:$0xf]
  %v37 = vld [vmem:[%s1 + $0x24] sm:$0xf]
  %v38 = vld [vmem:[%s1 + $0x28] sm:$0xf]
  %v39 = vld [vmem:[%s1 + $0x2c] sm:$0xf]
  %v40 = vld [vmem:[%s1 + $0x30] sm:$0xf]
  %v41 = vld [vmem:[%s1 + $0x34] sm:$0xf]
  %v42 = vld [vmem:[%s1 + $0x38] sm:$0xf]
  %v43 = vld [vmem:[%s1 + $0x3c] sm:$0xf]
  %v60 = vunpack.c.l.b16 %v12
  %v61 = vunpack.c.l.b16 %v13
  %v62 = vunpack.c.l.b16 %v14
  %v63 = vunpack.c.l.b16 %v15
  %v64 = vunpack.c.l.b16 %v16
  %v65 = vunpack.c.l.b16 %v17
  %v66 = vunpack.c.l.b16 %v18
  %v67 = vunpack.c.l.b16 %v19
  %v68 = vunpack.c.l.b16 %v20
  %v69 = vunpack.c.l.b16 %v21
  %v70 = vunpack.c.l.b16 %v22
  %v71 = vunpack.c.l.b16 %v23
  %v72 = vunpack.c.l.b16 %v24
  %v73 = vunpack.c.l.b16 %v25
  %v74 = vunpack.c.l.b16 %v26
  %v75 = vunpack.c.l.b16 %v27
  %v76 = vpack.c.b16 %v61, %v60
  %v77 = vpack.c.b16 %v63, %v62
  %v78 = vpack.c.b16 %v65, %v64
  %v79 = vpack.c.b16 %v67, %v66
  %v80 = vpack.c.b16 %v69, %v68
  %v81 = vpack.c.b16 %v71, %v70
  %v82 = vpack.c.b16 %v73, %v72
  %v83 = vpack.c.b16 %v75, %v74
  %v108 = vunpack.c.l.b16 %v28
  %v109 = vunpack.c.l.b16 %v29
  %v110 = vunpack.c.l.b16 %v30
  %v111 = vunpack.c.l.b16 %v31
  %v112 = vunpack.c.l.b16 %v32
  %v113 = vunpack.c.l.b16 %v33
  %v114 = vunpack.c.l.b16 %v34
  %v115 = vunpack.c.l.b16 %v35
  %v116 = vunpack.c.l.b16 %v36
  %v117 = vunpack.c.l.b16 %v37
  %v118 = vunpack.c.l.b16 %v38
  %v119 = vunpack.c.l.b16 %v39
  %v120 = vunpack.c.l.b16 %v40
  %v121 = vunpack.c.l.b16 %v41
  %v122 = vunpack.c.l.b16 %v42
  %v123 = vunpack.c.l.b16 %v43
  %v124 = vpack.c.b16 %v109, %v108
  %v125 = vpack.c.b16 %v111, %v110
  %v126 = vpack.c.b16 %v113, %v112
  %v127 = vpack.c.b16 %v115, %v114
  %v128 = vpack.c.b16 %v117, %v116
  %v129 = vpack.c.b16 %v119, %v118
  %v130 = vpack.c.b16 %v121, %v120
  %v131 = vpack.c.b16 %v123, %v122
  %140 = vmatprep.subr.bf16.mxu0 0
  %141 = vmatpush1.bf16.msra.mxu0 %v124
  %142 = vmatprep.subr.bf16.mxu0 0
  %143 = vmatpush1.bf16.msra.mxu0 %v125
  %144 = vmatprep.subr.bf16.mxu0 0
  %145 = vmatpush1.bf16.msra.mxu0 %v126
  %146 = vmatprep.subr.bf16.mxu0 0
  %147 = vmatpush1.bf16.msra.mxu0 %v127
  %148 = vmatprep.subr.bf16.mxu0 0
  %149 = vmatpush1.bf16.msra.mxu0 %v128
  %150 = vmatprep.subr.bf16.mxu0 0
  %151 = vmatpush1.bf16.msra.mxu0 %v129
  %152 = vmatprep.subr.bf16.mxu0 0
  %153 = vmatpush1.bf16.msra.mxu0 %v130
  %154 = vmatprep.subr.bf16.mxu0 0
  %155 = vmatpush1.bf16.msra.mxu0 %v131
  %156 = vmatprep.subr.bf16.mxu0 0
  %157 = vmatpush1.bf16.msra.mxu0 0
  %158 = vmatprep.subr.bf16.mxu0 0
  %159 = vmatpush1.bf16.msra.mxu0 0
  %160 = vmatprep.subr.bf16.mxu0 0
  %161 = vmatpush1.bf16.msra.mxu0 0
  %162 = vmatprep.subr.bf16.mxu0 0
  %163 = vmatpush1.bf16.msra.mxu0 0
  %164 = vmatprep.subr.bf16.mxu0 0
  %165 = vmatpush1.bf16.msra.mxu0 0
  %166 = vmatprep.subr.bf16.mxu0 0
  %167 = vmatpush1.bf16.msra.mxu0 0
  %168 = vmatprep.subr.bf16.mxu0 0
  %169 = vmatpush1.bf16.msra.mxu0 0
  %170 = vmatprep.subr.bf16.mxu0 0
  %171 = vmatpush1.bf16.msra.mxu0 0
  %172 = vmatprep.mubr.bf16.mxu0 0
  %173 = vmatmul.mubr.bf16.gmra.mrb[0].mxu0 %v76
  %v174 = vpop.f32.mrb[0].mxu0
  %v175 = vadd.f32 0.0, %v174
  %v176 = vpop.f32.mrb[0].mxu0
  %v177 = vpop.f32.mrb[0].mxu0
  %v178 = vadd.f32 0.0, %v177
  %v179 = vpop.f32.mrb[0].mxu0
  %180 = vmatprep.mubr.bf16.mxu0 0
  %181 = vmatmul.mubr.bf16.gmra.mrb[0].mxu0 %v77
  %v182 = vpop.f32.mrb[0].mxu0
  %v183 = vadd.f32 0.0, %v182
  %v184 = vpop.f32.mrb[0].mxu0
  %v185 = vpop.f32.mrb[0].mxu0
  %v186 = vadd.f32 0.0, %v185
  %v187 = vpop.f32.mrb[0].mxu0
  %188 = vmatprep.mubr.bf16.mxu0 0
  %189 = vmatmul.mubr.bf16.gmra.mrb[0].mxu0 %v78
  %v190 = vpop.f32.mrb[0].mxu0
  %v191 = vadd.f32 0.0, %v190
  %v192 = vpop.f32.mrb[0].mxu0
  %v193 = vpop.f32.mrb[0].mxu0
  %v194 = vadd.f32 0.0, %v193
  %v195 = vpop.f32.mrb[0].mxu0
  %196 = vmatprep.mubr.bf16.mxu0 0
  %197 = vmatmul.mubr.bf16.gmra.mrb[0].mxu0 %v79
  %v198 = vpop.f32.mrb[0].mxu0
  %v199 = vadd.f32 0.0, %v198
  %v200 = vpop.f32.mrb[0].mxu0
  %v201 = vpop.f32.mrb[0].mxu0
  %v202 = vadd.f32 0.0, %v201
  %v203 = vpop.f32.mrb[0].mxu0
  %204 = vmatprep.mubr.bf16.mxu0 0
  %205 = vmatmul.mubr.bf16.gmra.mrb[0].mxu0 %v80
  %v206 = vpop.f32.mrb[0].mxu0
  %v207 = vadd.f32 0.0, %v206
  %v208 = vpop.f32.mrb[0].mxu0
  %v209 = vpop.f32.mrb[0].mxu0
  %v210 = vadd.f32 0.0, %v209
  %v211 = vpop.f32.mrb[0].mxu0
  %212 = vmatprep.mubr.bf16.mxu0 0
  %213 = vmatmul.mubr.bf16.gmra.mrb[0].mxu0 %v81
  %v214 = vpop.f32.mrb[0].mxu0
  %v215 = vadd.f32 0.0, %v214
  %v216 = vpop.f32.mrb[0].mxu0
  %v217 = vpop.f32.mrb[0].mxu0
  %v218 = vadd.f32 0.0, %v217
  %v219 = vpop.f32.mrb[0].mxu0
  %220 = vmatprep.mubr.bf16.mxu0 0
  %221 = vmatmul.mubr.bf16.gmra.mrb[0].mxu0 %v82
  %v222 = vpop.f32.mrb[0].mxu0
  %v223 = vadd.f32 0.0, %v222
  %v224 = vpop.f32.mrb[0].mxu0
  %v225 = vpop.f32.mrb[0].mxu0
  %v226 = vadd.f32 0.0, %v225
  %v227 = vpop.f32.mrb[0].mxu0
  %228 = vmatprep.mubr.bf16.mxu0 0
  %229 = vmatmul.mubr.bf16.gmra.mrb[0].mxu0 %v83
  %v230 = vpop.f32.mrb[0].mxu0
  %v231 = vadd.f32 0.0, %v230
  %v232 = vpop.f32.mrb[0].mxu0
  %v233 = vpop.f32.mrb[0].mxu0
  %v234 = vadd.f32 0.0, %v233
  %v235 = vpop.f32.mrb[0].mxu0
  %236 = vdwg.mxu0
  %237 = vst [vmem:[%s2] sm:$0xff] %v175
  %238 = vst [vmem:[%s2 + $0x8] sm:$0xff] %v178
  %239 = vst [vmem:[%s2 + $0x10] sm:$0xff] %v183
  %240 = vst [vmem:[%s2 + $0x18] sm:$0xff] %v186
  %241 = vst [vmem:[%s2 + $0x20] sm:$0xff] %v191
  %242 = vst [vmem:[%s2 + $0x28] sm:$0xff] %v194
  %243 = vst [vmem:[%s2 + $0x30] sm:$0xff] %v199
  %244 = vst [vmem:[%s2 + $0x38] sm:$0xff] %v202
  %245 = vst [vmem:[%s2 + $0x40] sm:$0xff] %v207
  %246 = vst [vmem:[%s2 + $0x48] sm:$0xff] %v210
  %247 = vst [vmem:[%s2 + $0x50] sm:$0xff] %v215
  %248 = vst [vmem:[%s2 + $0x58] sm:$0xff] %v218
  %249 = vst [vmem:[%s2 + $0x60] sm:$0xff] %v223
  %250 = vst [vmem:[%s2 + $0x68] sm:$0xff] %v226
  %251 = vst [vmem:[%s2 + $0x70] sm:$0xff] %v231
  %252 = vst [vmem:[%s2 + $0x78] sm:$0xff] %v234
  // Predicated region
  $region10: #{_lambda_.29} parent=0 // pred_check
    _
  $region11: #{_lambda_.29} parent=0 // pred_check_branch
    %254 = sbr.rel (0) target = $region13
  $region12: #{_lambda_.29} parent=0 // pred_region
    _
  $region13: #{_lambda_.29} parent=0 // pred_fallthru
    _
  // Predicated region
  $region14: #{_lambda_.29} parent=0 // pred_check
    _
  $region15: #{_lambda_.29} parent=0 // pred_check_branch
    %256 = sbr.rel (0) target = $region17
  $region16: #{_lambda_.29} parent=0 // pred_region
    _
  $region17: #{_lambda_.29} parent=0 // pred_fallthru
    _

// kernel: _lambda_.22
$region0: #{_lambda_.22}
  #allocation0 [shape = 'u32[]', space=smem, size = 0x4, offset = 0x4, fixed_abs, tag = 'smem constant byte address 0x4 - core index']
  #allocation1 [shape = 'u32[144,128]{1,0:T(1,128)}', space=vmem, size = 0x12000, scoped, tag = 'internal scratch']
  %s0 = inlined_call_operand.vmem [shape: f32[2,18,18,128], index: 0, kind: input, shape index: {}]
  %s1 = inlined_call_operand.vmem [shape: f32[9,1,128], index: 1, kind: input, shape index: {}]
  %s2 = inlined_call_operand.vmem [shape: f32[2,16,16,128], index: 2, kind: output, shape index: {}]
  %s3 = sld [smem:[#allocation0]]
  $region41: #{_lambda_.22} parent=0
    _
  %s5 = ssub.s32 1, %s3
  %s6 = scalar_select 0, %s5, %s3
  loop: start=0, step=1, limit=4
  $region2: #{_lambda_.22} parent=0 // loop_pre_header
    _
  $region3: #{_lambda_.22} parent=0 // loop_header
    %s8 = sphi 0, %s12
    %p9 = scmp.ge.s32.totalorder %s8, 4
    %s18 = sphi 0, %s20
    %s21 = sphi 0, %s18
    %s22 = sphi 0, %s21
    %s38 = sphi 0, %s22
    %s42 = sphi 0, %s42
    %s44 = sphi 0, %s42
    %s45 = sphi 0, %s44
    %s59 = sphi 0, %s45
    %s65 = sphi 0, %s67
    %s68 = sphi 0, %s65
    %s69 = sphi 0, %s68
    %s85 = sphi 0, %s69
  $region4: #{_lambda_.22} parent=0 // loop_header_branch
    %11 = sbr.rel (%p9) target = $region8
  $region5: #{_lambda_.22} parent=0 // loop_body
    %s13 = ssub.s32 %s8, 1
    %s14 = ssub.s32 %s8, 2
    %s15 = sadd.s32 %s8, 1
    %s16 = ssub.s32 %s8, %s15
    %p17 = scmp.eq.s32.totalorder %s16, 0
    %s19 = sadd.s32 %s18, 1
    %s20 = scalar_select %p17, %s18, %s19
    %p23 = pneg %p17
    %p24 = scmp.eq.s32.totalorder %s8, 1
    %p25 = por %p23, %p24
    %p26 = scmp.ne.s32.totalorder %s18, %s21
    %p27 = scmp.eq.s32.totalorder %s8, 0
    %p28 = por %p26, %p27
    %p29 = scmp.ne.s32.totalorder %s18, %s21
    %p30 = scmp.eq.s32.totalorder %s13, 1
    %p31 = por %p29, %p30
    %p32 = scmp.ne.s32.totalorder %s21, %s22
    %p33 = scmp.eq.s32.totalorder %s13, 0
    %p34 = por %p32, %p33
    %p35 = scmp.ne.s32.totalorder %s21, %s22
    %p36 = scmp.eq.s32.totalorder %s14, 1
    %p37 = por %p35, %p36
    %p39 = scmp.ne.s32.totalorder %s22, %s38
    %p40 = scmp.eq.s32.totalorder %s14, 0
    %p41 = por %p39, %p40
    %s43 = sadd.s32 %s42, 1
    %p46 = scmp.eq.s32.totalorder %s8, 1
    %p47 = scmp.ne.s32.totalorder %s42, %s44
    %p48 = scmp.eq.s32.totalorder %s8, 0
    %p49 = por %p47, %p48
    %p50 = scmp.ne.s32.totalorder %s42, %s44
    %p51 = scmp.eq.s32.totalorder %s13, 1
    %p52 = por %p50, %p51
    %p53 = scmp.ne.s32.totalorder %s44, %s45
    %p54 = scmp.eq.s32.totalorder %s13, 0
    %p55 = por %p53, %p54
    %p56 = scmp.ne.s32.totalorder %s44, %s45
    %p57 = scmp.eq.s32.totalorder %s14, 1
    %p58 = por %p56, %p57
    %p60 = scmp.ne.s32.totalorder %s45, %s59
    %p61 = scmp.eq.s32.totalorder %s14, 0
    %p62 = por %p60, %p61
    %s63 = ssub.s32 %s8, %s15
    %p64 = scmp.eq.s32.totalorder %s63, 0
    %s66 = sadd.s32 %s65, 1
    %s67 = scalar_select %p64, %s65, %s66
    %p70 = pneg %p64
    %p71 = scmp.eq.s32.totalorder %s8, 1
    %p72 = por %p70, %p71
    %p73 = scmp.ne.s32.totalorder %s65, %s68
    %p74 = scmp.eq.s32.totalorder %s8, 0
    %p75 = por %p73, %p74
    %p76 = scmp.ne.s32.totalorder %s65, %s68
    %p77 = scmp.eq.s32.totalorder %s13, 1
    %p78 = por %p76, %p77
    %p79 = scmp.ne.s32.totalorder %s68, %s69
    %p80 = scmp.eq.s32.totalorder %s13, 0
    %p81 = por %p79, %p80
    %p82 = scmp.ne.s32.totalorder %s68, %s69
    %p83 = scmp.eq.s32.totalorder %s14, 1
    %p84 = por %p82, %p83
    %p86 = scmp.ne.s32.totalorder %s69, %s85
    %p87 = scmp.eq.s32.totalorder %s14, 0
    %p88 = por %p86, %p87
    %p89 = scmp.le.s32.totalorder 1, %s8
    %p90 = scmp.lt.s32.totalorder %s8, 3
    %p91 = pnand %p89, %p90
    %p92 = pneg %p91
    // Predicated region
    $region9: #{_lambda_.22} parent=5 // pred_check
      _
    $region10: #{_lambda_.22} parent=5 // pred_check_branch
      %94 = sbr.rel (%p91) target = $region12
    $region11: #{_lambda_.22} parent=5 // pred_region
      %s95 = ssub.s32 %s8, 1
      // Predicated region
      $region13: #{_lambda_.22} parent=11 // pred_check
        %p96 = pneg %p55
      $region14: #{_lambda_.22} parent=11 // pred_check_branch
        %98 = sbr.rel (%p96) target = $region16
      $region15: #{_lambda_.22} parent=11 // pred_region
        _
      $region16: #{_lambda_.22} parent=11 // pred_fallthru
        _
    $region12: #{_lambda_.22} parent=5 // pred_fallthru
      _
    %p99 = scmp.lt.s32.totalorder %s8, 2
    // Predicated region
    $region17: #{_lambda_.22} parent=5 // pred_check
      %p100 = pneg %p99
    $region18: #{_lambda_.22} parent=5 // pred_check_branch
      %102 = sbr.rel (%p100) target = $region20
    $region19: #{_lambda_.22} parent=5 // pred_region
      // Predicated region
      $region21: #{_lambda_.22} parent=19 // pred_check
        %p103 = pneg %p28
      $region22: #{_lambda_.22} parent=19 // pred_check_branch
        %105 = sbr.rel (%p103) target = $region24
      $region23: #{_lambda_.22} parent=19 // pred_region
        %p106 = scmp.lt.s32.totalorder %s8, 1
        %s107 = scalar_select %p106, %s8, 1
        %s108 = smul.addr %s107, 54
        %s109 = smul.addr %s108, 8
        %s110 = scalar_lea.vmem %s0, %s109
      $region24: #{_lambda_.22} parent=19 // pred_fallthru
        _
    $region20: #{_lambda_.22} parent=5 // pred_fallthru
      _
    %p111 = scmp.le.s32.totalorder 1, %s8
    %p112 = scmp.lt.s32.totalorder %s8, 3
    %p113 = pnand %p111, %p112
    %p114 = pneg %p113
    // Predicated region
    $region25: #{_lambda_.22} parent=5 // pred_check
      _
    $region26: #{_lambda_.22} parent=5 // pred_check_branch
      %116 = sbr.rel (%p113) target = $region28
    $region27: #{_lambda_.22} parent=5 // pred_region
      %s117 = ssub.s32 %s8, 1
      %p118 = scmp.lt.s32.totalorder %s13, 1
      %s119 = scalar_select %p118, %s13, 1
      %s120 = smul.addr %s119, 54
      %s121 = smul.addr %s120, 8
      %s122 = scalar_lea.vmem %s0, %s121
      %p123 = pneg %p34
      %p124 = pneg %p31
      %p125 = pneg %p55
      %p126 = pneg %p52
      %p127 = pneg %p81
      %p128 = pneg %p78
      %p129 = scmp.lt.s32.totalorder %s13, 1
      %s130 = scalar_select %p129, %s13, 1
      %s131 = smul.addr %s130, 32
      %s132 = smul.addr %s131, 8
      %s133 = scalar_lea.vmem %s2, %s132
      %p134 = scmp.lt.s32.totalorder %s13, 1
      %s135 = scalar_select %p134, %s13, 1
      %s136 = smul.addr %s135, 54
      %s137 = smul.addr %s136, 8
      %s138 = scalar_lea.vmem %s0, %s137
      %p139 = scmp.lt.s32.totalorder %s13, 1
      %s140 = scalar_select %p139, %s13, 1
      %s141 = smul.addr %s140, 32
      %s142 = smul.addr %s141, 8
      %s143 = scalar_lea.vmem %s2, %s142
      %v144 = vld [vmem:[%s138] sm:$0xff]
      %v145 = vld [vmem:[%s138 + $0x8] sm:$0xff]
      %v146 = vld [vmem:[%s138 + $0x10] sm:$0x3]
      %v147 = vld [vmem:[%s138 + $0x18] sm:$0xff]
      %v148 = vld [vmem:[%s138 + $0x20] sm:$0xff]
      %v149 = vld [vmem:[%s138 + $0x28] sm:$0x3]
      %v150 = vld [vmem:[%s138 + $0x30] sm:$0xff]
      %v151 = vld [vmem:[%s138 + $0x38] sm:$0xff]
      %v152 = vld [vmem:[%s138 + $0x40] sm:$0x3]
      %v153 = vld [vmem:[%s138 + $0x48] sm:$0xff]
      %v154 = vld [vmem:[%s138 + $0x50] sm:$0xff]
      %v155 = vld [vmem:[%s138 + $0x58] sm:$0x3]
      %v156 = vld [vmem:[%s138 + $0x60] sm:$0xff]
      %v157 = vld [vmem:[%s138 + $0x68] sm:$0xff]
      %v158 = vld [vmem:[%s138 + $0x70] sm:$0x3]
      %v159 = vld [vmem:[%s138 + $0x78] sm:$0xff]
      %v160 = vld [vmem:[%s138 + $0x80] sm:$0xff]
      %v161 = vld [vmem:[%s138 + $0x88] sm:$0x3]
      %v162 = vld [vmem:[%s138 + $0x90] sm:$0xff]
      %v163 = vld [vmem:[%s138 + $0x98] sm:$0xff]
      %v164 = vld [vmem:[%s138 + $0xa0] sm:$0x3]
      %v165 = vld [vmem:[%s138 + $0xa8] sm:$0xff]
      %v166 = vld [vmem:[%s138 + $0xb0] sm:$0xff]
      %v167 = vld [vmem:[%s138 + $0xb8] sm:$0x3]
      %v168 = vld [vmem:[%s138 + $0xc0] sm:$0xff]
      %v169 = vld [vmem:[%s138 + $0xc8] sm:$0xff]
      %v170 = vld [vmem:[%s138 + $0xd0] sm:$0x3]
      %v171 = vld [vmem:[%s138 + $0xd8] sm:$0xff]
      %v172 = vld [vmem:[%s138 + $0xe0] sm:$0xff]
      %v173 = vld [vmem:[%s138 + $0xe8] sm:$0x3]
      %v174 = vld [vmem:[%s138 + $0xf0] sm:$0xff]
      %v175 = vld [vmem:[%s138 + $0xf8] sm:$0xff]
      %v176 = vld [vmem:[%s138 + $0x100] sm:$0x3]
      %v177 = vld [vmem:[%s138 + $0x108] sm:$0xff]
      %v178 = vld [vmem:[%s138 + $0x110] sm:$0xff]
      %v179 = vld [vmem:[%s138 + $0x118] sm:$0x3]
      %v180 = vld [vmem:[%s138 + $0x120] sm:$0xff]
      %v181 = vld [vmem:[%s138 + $0x128] sm:$0xff]
      %v182 = vld [vmem:[%s138 + $0x130] sm:$0x3]
      %v183 = vld [vmem:[%s138 + $0x138] sm:$0xff]
      %v184 = vld [vmem:[%s138 + $0x140] sm:$0xff]
      %v185 = vld [vmem:[%s138 + $0x148] sm:$0x3]
      %v186 = vld [vmem:[%s138 + $0x150] sm:$0xff]
      %v187 = vld [vmem:[%s138 + $0x158] sm:$0xff]
      %v188 = vld [vmem:[%s138 + $0x160] sm:$0x3]
      %v189 = vld [vmem:[%s138 + $0x168] sm:$0xff]
      %v190 = vld [vmem:[%s138 + $0x170] sm:$0xff]
      %v191 = vld [vmem:[%s138 + $0x178] sm:$0x3]
      %v192 = vld [vmem:[%s138 + $0x180] sm:$0xff]
      %v193 = vld [vmem:[%s138 + $0x188] sm:$0xff]
      %v194 = vld [vmem:[%s138 + $0x190] sm:$0x3]
      %v195 = vld [vmem:[%s138 + $0x198] sm:$0xff]
      %v196 = vld [vmem:[%s138 + $0x1a0] sm:$0xff]
      %v197 = vld [vmem:[%s138 + $0x1a8] sm:$0x3]
      %v198 = vmax.f32 %v144, 0.0
      %v199 = vmax.f32 %v145, 0.0
      %v200 = vmax.f32 %v146, 0.0
      %v201 = vmax.f32 %v147, 0.0
      %v202 = vmax.f32 %v148, 0.0
      %v203 = vmax.f32 %v149, 0.0
      %v204 = vmax.f32 %v150, 0.0
      %v205 = vmax.f32 %v151, 0.0
      %v206 = vmax.f32 %v152, 0.0
      %v207 = vmax.f32 %v153, 0.0
      %v208 = vmax.f32 %v154, 0.0
      %v209 = vmax.f32 %v155, 0.0
      %v210 = vmax.f32 %v156, 0.0
      %v211 = vmax.f32 %v157, 0.0
      %v212 = vmax.f32 %v158, 0.0
      %v213 = vmax.f32 %v159, 0.0
      %v214 = vmax.f32 %v160, 0.0
      %v215 = vmax.f32 %v161, 0.0
      %v216 = vmax.f32 %v162, 0.0
      %v217 = vmax.f32 %v163, 0.0
      %v218 = vmax.f32 %v164, 0.0
      %v219 = vmax.f32 %v165, 0.0
      %v220 = vmax.f32 %v166, 0.0
      %v221 = vmax.f32 %v167, 0.0
      %v222 = vmax.f32 %v168, 0.0
      %v223 = vmax.f32 %v169, 0.0
      %v224 = vmax.f32 %v170, 0.0
      %v225 = vmax.f32 %v171, 0.0
      %v226 = vmax.f32 %v172, 0.0
      %v227 = vmax.f32 %v173, 0.0
      %v228 = vmax.f32 %v174, 0.0
      %v229 = vmax.f32 %v175, 0.0
      %v230 = vmax.f32 %v176, 0.0
      %v231 = vmax.f32 %v177, 0.0
      %v232 = vmax.f32 %v178, 0.0
      %v233 = vmax.f32 %v179, 0.0
      %v234 = vmax.f32 %v180, 0.0
      %v235 = vmax.f32 %v181, 0.0
      %v236 = vmax.f32 %v182, 0.0
      %v237 = vmax.f32 %v183, 0.0
      %v238 = vmax.f32 %v184, 0.0
      %v239 = vmax.f32 %v185, 0.0
      %v240 = vmax.f32 %v186, 0.0
      %v241 = vmax.f32 %v187, 0.0
      %v242 = vmax.f32 %v188, 0.0
      %v243 = vmax.f32 %v189, 0.0
      %v244 = vmax.f32 %v190, 0.0
      %v245 = vmax.f32 %v191, 0.0
      %v246 = vmax.f32 %v192, 0.0
      %v247 = vmax.f32 %v193, 0.0
      %v248 = vmax.f32 %v194, 0.0
      %v249 = vmax.f32 %v195, 0.0
      %v250 = vmax.f32 %v196, 0.0
      %v251 = vmax.f32 %v197, 0.0
      %v252 = vld [vmem:[%s1] sm:$0x1]
      %v254 = vlaneseq
      %v255 = vshrl.u32 %v254, 7
      %v256 = vsub.s32 0, %v255
      %v257 = vrot.slane %v252, %v256
      %v259 = vmul.f32 %v198, %v257
      %v260 = vmul.f32 %v199, %v257
      %v261 = vmul.f32 %v201, %v257
      %v262 = vmul.f32 %v202, %v257
      %v263 = vmul.f32 %v204, %v257
      %v264 = vmul.f32 %v205, %v257
      %v265 = vmul.f32 %v207, %v257
      %v266 = vmul.f32 %v208, %v257
      %v267 = vmul.f32 %v210, %v257
      %v268 = vmul.f32 %v211, %v257
      %v269 = vmul.f32 %v213, %v257
      %v270 = vmul.f32 %v214, %v257
      %v271 = vmul.f32 %v216, %v257
      %v272 = vmul.f32 %v217, %v257
      %v273 = vmul.f32 %v219, %v257
      %v274 = vmul.f32 %v220, %v257
      %v275 = vmul.f32 %v222, %v257
      %v276 = vmul.f32 %v223, %v257
      %v277 = vmul.f32 %v225, %v257
      %v278 = vmul.f32 %v226, %v257
      %v279 = vmul.f32 %v228, %v257
      %v280 = vmul.f32 %v229, %v257
      %v281 = vmul.f32 %v231, %v257
      %v282 = vmul.f32 %v232, %v257
      %v283 = vmul.f32 %v234, %v257
      %v284 = vmul.f32 %v235, %v257
      %v285 = vmul.f32 %v237, %v257
      %v286 = vmul.f32 %v238, %v257
      %v287 = vmul.f32 %v240, %v257
      %v288 = vmul.f32 %v241, %v257
      %v289 = vmul.f32 %v243, %v257
      %v290 = vmul.f32 %v244, %v257
      %v291 = vadd.f32 %v259, 0.0
      %v292 = vadd.f32 %v260, 0.0
      %v293 = vadd.f32 %v261, 0.0
      %v294 = vadd.f32 %v262, 0.0
      %v295 = vadd.f32 %v263, 0.0
      %v296 = vadd.f32 %v264, 0.0
      %v297 = vadd.f32 %v265, 0.0
      %v298 = vadd.f32 %v266, 0.0
      %v299 = vadd.f32 %v267, 0.0
      %v300 = vadd.f32 %v268, 0.0
      %v301 = vadd.f32 %v269, 0.0
      %v302 = vadd.f32 %v270, 0.0
      %v303 = vadd.f32 %v271, 0.0
      %v304 = vadd.f32 %v272, 0.0
      %v305 = vadd.f32 %v273, 0.0
      %v306 = vadd.f32 %v274, 0.0
      %v307 = vadd.f32 %v275, 0.0
      %v308 = vadd.f32 %v276, 0.0
      %v309 = vadd.f32 %v277, 0.0
      %v310 = vadd.f32 %v278, 0.0
      %v311 = vadd.f32 %v279, 0.0
      %v312 = vadd.f32 %v280, 0.0
      %v313 = vadd.f32 %v281, 0.0
      %v314 = vadd.f32 %v282, 0.0
      %v315 = vadd.f32 %v283, 0.0
      %v316 = vadd.f32 %v284, 0.0
      %v317 = vadd.f32 %v285, 0.0
      %v318 = vadd.f32 %v286, 0.0
      %v319 = vadd.f32 %v287, 0.0
      %v320 = vadd.f32 %v288, 0.0
      %v321 = vadd.f32 %v289, 0.0
      %v322 = vadd.f32 %v290, 0.0
      %s323 = scalar_lea.vmem %s1, 1
      %v324 = vld [vmem:[%s323] sm:$0x1]
      %v326 = vlaneseq
      %v327 = vshrl.u32 %v326, 7
      %v328 = vsub.s32 0, %v327
      %v329 = vrot.slane %v324, %v328
      %v331 = vmul.f32 %v198, %v329
      %v332 = vmul.f32 %v199, %v329
      %v333 = vmul.f32 %v200, %v329
      %v334 = vmul.f32 %v201, %v329
      %v335 = vmul.f32 %v202, %v329
      %v336 = vmul.f32 %v203, %v329
      %v337 = vmul.f32 %v204, %v329
      %v338 = vmul.f32 %v205, %v329
      %v339 = vmul.f32 %v206, %v329
      %v340 = vmul.f32 %v207, %v329
      %v341 = vmul.f32 %v208, %v329
      %v342 = vmul.f32 %v209, %v329
      %v343 = vmul.f32 %v210, %v329
      %v344 = vmul.f32 %v211, %v329
      %v345 = vmul.f32 %v212, %v329
      %v346 = vmul.f32 %v213, %v329
      %v347 = vmul.f32 %v214, %v329
      %v348 = vmul.f32 %v215, %v329
      %v349 = vmul.f32 %v216, %v329
      %v350 = vmul.f32 %v217, %v329
      %v351 = vmul.f32 %v218, %v329
      %v352 = vmul.f32 %v219, %v329
      %v353 = vmul.f32 %v220, %v329
      %v354 = vmul.f32 %v221, %v329
      %v355 = vmul.f32 %v222, %v329
      %v356 = vmul.f32 %v223, %v329
      %v357 = vmul.f32 %v224, %v329
      %v358 = vmul.f32 %v225, %v329
      %v359 = vmul.f32 %v226, %v329
      %v360 = vmul.f32 %v227, %v329
      %v361 = vmul.f32 %v228, %v329
      %v362 = vmul.f32 %v229, %v329
      %v363 = vmul.f32 %v230, %v329
      %v364 = vmul.f32 %v231, %v329
      %v365 = vmul.f32 %v232, %v329
      %v366 = vmul.f32 %v233, %v329
      %v367 = vmul.f32 %v234, %v329
      %v368 = vmul.f32 %v235, %v329
      %v369 = vmul.f32 %v236, %v329
      %v370 = vmul.f32 %v237, %v329
      %v371 = vmul.f32 %v238, %v329
      %v372 = vmul.f32 %v239, %v329
      %v373 = vmul.f32 %v240, %v329
      %v374 = vmul.f32 %v241, %v329
      %v375 = vmul.f32 %v242, %v329
      %v376 = vmul.f32 %v243, %v329
      %v377 = vmul.f32 %v244, %v329
      %v378 = vmul.f32 %v245, %v329
      %vm427 = vcmask 1046528
      %v428 = vrot.slane %v331, 1
      %v429 = vrot.slane %v332, 1
      %v430 = vsel %vm427, %v428, %v429
      %v431 = vrot.slane %v333, 1
      %v432 = vsel %vm427, %v429, %v431
      %v433 = vrot.slane %v334, 1
      %v434 = vrot.slane %v335, 1
      %v435 = vsel %vm427, %v433, %v434
      %v436 = vrot.slane %v336, 1
      %v437 = vsel %vm427, %v434, %v436
      %v438 = vrot.slane %v337, 1
      %v439 = vrot.slane %v338, 1
      %v440 = vsel %vm427, %v438, %v439
      %v441 = vrot.slane %v339, 1
      %v442 = vsel %vm427, %v439, %v441
      %v443 = vrot.slane %v340, 1
      %v444 = vrot.slane %v341, 1
      %v445 = vsel %vm427, %v443, %v444
      %v446 = vrot.slane %v342, 1
      %v447 = vsel %vm427, %v444, %v446
      %v448 = vrot.slane %v343, 1
      %v449 = vrot.slane %v344, 1
      %v450 = vsel %vm427, %v448, %v449
      %v451 = vrot.slane %v345, 1
      %v452 = vsel %vm427, %v449, %v451
      %v453 = vrot.slane %v346, 1
      %v454 = vrot.slane %v347, 1
      %v455 = vsel %vm427, %v453, %v454
      %v456 = vrot.slane %v348, 1
      %v457 = vsel %vm427, %v454, %v456
      %v458 = vrot.slane %v349, 1
      %v459 = vrot.slane %v350, 1
      %v460 = vsel %vm427, %v458, %v459
      %v461 = vrot.slane %v351, 1
      %v462 = vsel %vm427, %v459, %v461
      %v463 = vrot.slane %v352, 1
      %v464 = vrot.slane %v353, 1
      %v465 = vsel %vm427, %v463, %v464
      %v466 = vrot.slane %v354, 1
      %v467 = vsel %vm427, %v464, %v466
      %v468 = vrot.slane %v355, 1
      %v469 = vrot.slane %v356, 1
      %v470 = vsel %vm427, %v468, %v469
      %v471 = vrot.slane %v357, 1
      %v472 = vsel %vm427, %v469, %v471
      %v473 = vrot.slane %v358, 1
      %v474 = vrot.slane %v359, 1
      %v475 = vsel %vm427, %v473, %v474
      %v476 = vrot.slane %v360, 1
      %v477 = vsel %vm427, %v474, %v476
      %v478 = vrot.slane %v361, 1
      %v479 = vrot.slane %v362, 1
      %v480 = vsel %vm427, %v478, %v479
      %v481 = vrot.slane %v363, 1
      %v482 = vsel %vm427, %v479, %v481
      %v483 = vrot.slane %v364, 1
      %v484 = vrot.slane %v365, 1
      %v485 = vsel %vm427, %v483, %v484
      %v486 = vrot.slane %v366, 1
      %v487 = vsel %vm427, %v484, %v486
      %v488 = vrot.slane %v367, 1
      %v489 = vrot.slane %v368, 1
      %v490 = vsel %vm427, %v488, %v489
      %v491 = vrot.slane %v369, 1
      %v492 = vsel %vm427, %v489, %v491
      %v493 = vrot.slane %v370, 1
      %v494 = vrot.slane %v371, 1
      %v495 = vsel %vm427, %v493, %v494
      %v496 = vrot.slane %v372, 1
      %v497 = vsel %vm427, %v494, %v496
      %v498 = vrot.slane %v373, 1
      %v499 = vrot.slane %v374, 1
      %v500 = vsel %vm427, %v498, %v499
      %v501 = vrot.slane %v375, 1
      %v502 = vsel %vm427, %v499, %v501
      %v503 = vrot.slane %v376, 1
      %v504 = vrot.slane %v377, 1
      %v505 = vsel %vm427, %v503, %v504
      %v506 = vrot.slane %v378, 1
      %v507 = vsel %vm427, %v504, %v506
      %v540 = vadd.f32 %v291, %v430
      %v541 = vadd.f32 %v292, %v432
      %v542 = vadd.f32 %v293, %v435
      %v543 = vadd.f32 %v294, %v437
      %v544 = vadd.f32 %v295, %v440
      %v545 = vadd.f32 %v296, %v442
      %v546 = vadd.f32 %v297, %v445
      %v547 = vadd.f32 %v298, %v447
      %v548 = vadd.f32 %v299, %v450
      %v549 = vadd.f32 %v300, %v452
      %v550 = vadd.f32 %v301, %v455
      %v551 = vadd.f32 %v302, %v457
      %v552 = vadd.f32 %v303, %v460
      %v553 = vadd.f32 %v304, %v462
      %v554 = vadd.f32 %v305, %v465
      %v555 = vadd.f32 %v306, %v467
      %v556 = vadd.f32 %v307, %v470
      %v557 = vadd.f32 %v308, %v472
      %v558 = vadd.f32 %v309, %v475
      %v559 = vadd.f32 %v310, %v477
      %v560 = vadd.f32 %v311, %v480
      %v561 = vadd.f32 %v312, %v482
      %v562 = vadd.f32 %v313, %v485
      %v563 = vadd.f32 %v314, %v487
      %v564 = vadd.f32 %v315, %v490
      %v565 = vadd.f32 %v316, %v492
      %v566 = vadd.f32 %v317, %v495
      %v567 = vadd.f32 %v318, %v497
      %v568 = vadd.f32 %v319, %v500
      %v569 = vadd.f32 %v320, %v502
      %v570 = vadd.f32 %v321, %v505
      %v571 = vadd.f32 %v322, %v507
      %s572 = scalar_lea.vmem %s1, 2
      %v573 = vld [vmem:[%s572] sm:$0x1]
      %v575 = vlaneseq
      %v576 = vshrl.u32 %v575, 7
      %v577 = vsub.s32 0, %v576
      %v578 = vrot.slane %v573, %v577
      %v580 = vmul.f32 %v198, %v578
      %v581 = vmul.f32 %v199, %v578
      %v582 = vmul.f32 %v200, %v578
      %v583 = vmul.f32 %v201, %v578
      %v584 = vmul.f32 %v202, %v578
      %v585 = vmul.f32 %v203, %v578
      %v586 = vmul.f32 %v204, %v578
      %v587 = vmul.f32 %v205, %v578
      %v588 = vmul.f32 %v206, %v578
      %v589 = vmul.f32 %v207, %v578
      %v590 = vmul.f32 %v208, %v578
      %v591 = vmul.f32 %v209, %v578
      %v592 = vmul.f32 %v210, %v578
      %v593 = vmul.f32 %v211, %v578
      %v594 = vmul.f32 %v212, %v578
      %v595 = vmul.f32 %v213, %v578
      %v596 = vmul.f32 %v214, %v578
      %v597 = vmul.f32 %v215, %v578
      %v598 = vmul.f32 %v216, %v578
      %v599 = vmul.f32 %v217, %v578
      %v600 = vmul.f32 %v218, %v578
      %v601 = vmul.f32 %v219, %v578
      %v602 = vmul.f32 %v220, %v578
      %v603 = vmul.f32 %v221, %v578
      %v604 = vmul.f32 %v222, %v578
      %v605 = vmul.f32 %v223, %v578
      %v606 = vmul.f32 %v224, %v578
      %v607 = vmul.f32 %v225, %v578
      %v608 = vmul.f32 %v226, %v578
      %v609 = vmul.f32 %v227, %v578
      %v610 = vmul.f32 %v228, %v578
      %v611 = vmul.f32 %v229, %v578
      %v612 = vmul.f32 %v230, %v578
      %v613 = vmul.f32 %v231, %v578
      %v614 = vmul.f32 %v232, %v578
      %v615 = vmul.f32 %v233, %v578
      %v616 = vmul.f32 %v234, %v578
      %v617 = vmul.f32 %v235, %v578
      %v618 = vmul.f32 %v236, %v578
      %v619 = vmul.f32 %v237, %v578
      %v620 = vmul.f32 %v238, %v578
      %v621 = vmul.f32 %v239, %v578
      %v622 = vmul.f32 %v240, %v578
      %v623 = vmul.f32 %v241, %v578
      %v624 = vmul.f32 %v242, %v578
      %v625 = vmul.f32 %v243, %v578
      %v626 = vmul.f32 %v244, %v578
      %v627 = vmul.f32 %v245, %v578
      %vm676 = vcmask 1045504
      %v677 = vrot.slane %v580, 2
      %v678 = vrot.slane %v581, 2
      %v679 = vsel %vm676, %v677, %v678
      %v680 = vrot.slane %v582, 2
      %v681 = vsel %vm676, %v678, %v680
      %v682 = vrot.slane %v583, 2
      %v683 = vrot.slane %v584, 2
      %v684 = vsel %vm676, %v682, %v683
      %v685 = vrot.slane %v585, 2
      %v686 = vsel %vm676, %v683, %v685
      %v687 = vrot.slane %v586, 2
      %v688 = vrot.slane %v587, 2
      %v689 = vsel %vm676, %v687, %v688
      %v690 = vrot.slane %v588, 2
      %v691 = vsel %vm676, %v688, %v690
      %v692 = vrot.slane %v589, 2
      %v693 = vrot.slane %v590, 2
      %v694 = vsel %vm676, %v692, %v693
      %v695 = vrot.slane %v591, 2
      %v696 = vsel %vm676, %v693, %v695
      %v697 = vrot.slane %v592, 2
      %v698 = vrot.slane %v593, 2
      %v699 = vsel %vm676, %v697, %v698
      %v700 = vrot.slane %v594, 2
      %v701 = vsel %vm676, %v698, %v700
      %v702 = vrot.slane %v595, 2
      %v703 = vrot.slane %v596, 2
      %v704 = vsel %vm676, %v702, %v703
      %v705 = vrot.slane %v597, 2
      %v706 = vsel %vm676, %v703, %v705
      %v707 = vrot.slane %v598, 2
      %v708 = vrot.slane %v599, 2
      %v709 = vsel %vm676, %v707, %v708
      %v710 = vrot.slane %v600, 2
      %v711 = vsel %vm676, %v708, %v710
      %v712 = vrot.slane %v601, 2
      %v713 = vrot.slane %v602, 2
      %v714 = vsel %vm676, %v712, %v713
      %v715 = vrot.slane %v603, 2
      %v716 = vsel %vm676, %v713, %v715
      %v717 = vrot.slane %v604, 2
      %v718 = vrot.slane %v605, 2
      %v719 = vsel %vm676, %v717, %v718
      %v720 = vrot.slane %v606, 2
      %v721 = vsel %vm676, %v718, %v720
      %v722 = vrot.slane %v607, 2
      %v723 = vrot.slane %v608, 2
      %v724 = vsel %vm676, %v722, %v723
      %v725 = vrot.slane %v609, 2
      %v726 = vsel %vm676, %v723, %v725
      %v727 = vrot.slane %v610, 2
      %v728 = vrot.slane %v611, 2
      %v729 = vsel %vm676, %v727, %v728
      %v730 = vrot.slane %v612, 2
      %v731 = vsel %vm676, %v728, %v730
      %v732 = vrot.slane %v613, 2
      %v733 = vrot.slane %v614, 2
      %v734 = vsel %vm676, %v732, %v733
      %v735 = vrot.slane %v615, 2
      %v736 = vsel %vm676, %v733, %v735
      %v737 = vrot.slane %v616, 2
      %v738 = vrot.slane %v617, 2
      %v739 = vsel %vm676, %v737, %v738
      %v740 = vrot.slane %v618, 2
      %v741 = vsel %vm676, %v738, %v740
      %v742 = vrot.slane %v619, 2
      %v743 = vrot.slane %v620, 2
      %v744 = vsel %vm676, %v742, %v743
      %v745 = vrot.slane %v621, 2
      %v746 = vsel %vm676, %v743, %v745
      %v747 = vrot.slane %v622, 2
      %v748 = vrot.slane %v623, 2
      %v749 = vsel %vm676, %v747, %v748
      %v750 = vrot.slane %v624, 2
      %v751 = vsel %vm676, %v748, %v750
      %v752 = vrot.slane %v625, 2
      %v753 = vrot.slane %v626, 2
      %v754 = vsel %vm676, %v752, %v753
      %v755 = vrot.slane %v627, 2
      %v756 = vsel %vm676, %v753, %v755
      %v789 = vadd.f32 %v540, %v679
      %v790 = vadd.f32 %v541, %v681
      %v791 = vadd.f32 %v542, %v684
      %v792 = vadd.f32 %v543, %v686
      %v793 = vadd.f32 %v544, %v689
      %v794 = vadd.f32 %v545, %v691
      %v795 = vadd.f32 %v546, %v694
      %v796 = vadd.f32 %v547, %v696
      %v797 = vadd.f32 %v548, %v699
      %v798 = vadd.f32 %v549, %v701
      %v799 = vadd.f32 %v550, %v704
      %v800 = vadd.f32 %v551, %v706
      %v801 = vadd.f32 %v552, %v709
      %v802 = vadd.f32 %v553, %v711
      %v803 = vadd.f32 %v554, %v714
      %v804 = vadd.f32 %v555, %v716
      %v805 = vadd.f32 %v556, %v719
      %v806 = vadd.f32 %v557, %v721
      %v807 = vadd.f32 %v558, %v724
      %v808 = vadd.f32 %v559, %v726
      %v809 = vadd.f32 %v560, %v729
      %v810 = vadd.f32 %v561, %v731
      %v811 = vadd.f32 %v562, %v734
      %v812 = vadd.f32 %v563, %v736
      %v813 = vadd.f32 %v564, %v739
      %v814 = vadd.f32 %v565, %v741
      %v815 = vadd.f32 %v566, %v744
      %v816 = vadd.f32 %v567, %v746
      %v817 = vadd.f32 %v568, %v749
      %v818 = vadd.f32 %v569, %v751
      %v819 = vadd.f32 %v570, %v754
      %v820 = vadd.f32 %v571, %v756
      %s821 = scalar_lea.vmem %s1, 3
      %v822 = vld [vmem:[%s821] sm:$0x1]
      %v824 = vlaneseq
      %v825 = vshrl.u32 %v824, 7
      %v826 = vsub.s32 0, %v825
      %v827 = vrot.slane %v822, %v826
      %v829 = vmul.f32 %v201, %v827
      %v830 = vmul.f32 %v202, %v827
      %v831 = vmul.f32 %v204, %v827
      %v832 = vmul.f32 %v205, %v827
      %v833 = vmul.f32 %v207, %v827
      %v834 = vmul.f32 %v208, %v827
      %v835 = vmul.f32 %v210, %v827
      %v836 = vmul.f32 %v211, %v827
      %v837 = vmul.f32 %v213, %v827
      %v838 = vmul.f32 %v214, %v827
      %v839 = vmul.f32 %v216, %v827
      %v840 = vmul.f32 %v217, %v827
      %v841 = vmul.f32 %v219, %v827
      %v842 = vmul.f32 %v220, %v827
      %v843 = vmul.f32 %v222, %v827
      %v844 = vmul.f32 %v223, %v827
      %v845 = vmul.f32 %v225, %v827
      %v846 = vmul.f32 %v226, %v827
      %v847 = vmul.f32 %v228, %v827
      %v848 = vmul.f32 %v229, %v827
      %v849 = vmul.f32 %v231, %v827
      %v850 = vmul.f32 %v232, %v827
      %v851 = vmul.f32 %v234, %v827
      %v852 = vmul.f32 %v235, %v827
      %v853 = vmul.f32 %v237, %v827
      %v854 = vmul.f32 %v238, %v827
      %v855 = vmul.f32 %v240, %v827
      %v856 = vmul.f32 %v241, %v827
      %v857 = vmul.f32 %v243, %v827
      %v858 = vmul.f32 %v244, %v827
      %v859 = vmul.f32 %v246, %v827
      %v860 = vmul.f32 %v247, %v827
      %v861 = vadd.f32 %v789, %v829
      %v862 = vadd.f32 %v790, %v830
      %v863 = vadd.f32 %v791, %v831
      %v864 = vadd.f32 %v792, %v832
      %v865 = vadd.f32 %v793, %v833
      %v866 = vadd.f32 %v794, %v834
      %v867 = vadd.f32 %v795, %v835
      %v868 = vadd.f32 %v796, %v836
      %v869 = vadd.f32 %v797, %v837
      %v870 = vadd.f32 %v798, %v838
      %v871 = vadd.f32 %v799, %v839
      %v872 = vadd.f32 %v800, %v840
      %v873 = vadd.f32 %v801, %v841
      %v874 = vadd.f32 %v802, %v842
      %v875 = vadd.f32 %v803, %v843
      %v876 = vadd.f32 %v804, %v844
      %v877 = vadd.f32 %v805, %v845
      %v878 = vadd.f32 %v806, %v846
      %v879 = vadd.f32 %v807, %v847
      %v880 = vadd.f32 %v808, %v848
      %v881 = vadd.f32 %v809, %v849
      %v882 = vadd.f32 %v810, %v850
      %v883 = vadd.f32 %v811, %v851
      %v884 = vadd.f32 %v812, %v852
      %v885 = vadd.f32 %v813, %v853
      %v886 = vadd.f32 %v814, %v854
      %v887 = vadd.f32 %v815, %v855
      %v888 = vadd.f32 %v816, %v856
      %v889 = vadd.f32 %v817, %v857
      %v890 = vadd.f32 %v818, %v858
      %v891 = vadd.f32 %v819, %v859
      %v892 = vadd.f32 %v820, %v860
      %s893 = scalar_lea.vmem %s1, 4
      %v894 = vld [vmem:[%s893] sm:$0x1]
      %v896 = vlaneseq
      %v897 = vshrl.u32 %v896, 7
      %v898 = vsub.s32 0, %v897
      %v899 = vrot.slane %v894, %v898
      %v901 = vmul.f32 %v201, %v899
      %v902 = vmul.f32 %v202, %v899
      %v903 = vmul.f32 %v203, %v899
      %v904 = vmul.f32 %v204, %v899
      %v905 = vmul.f32 %v205, %v899
      %v906 = vmul.f32 %v206, %v899
      %v907 = vmul.f32 %v207, %v899
      %v908 = vmul.f32 %v208, %v899
      %v909 = vmul.f32 %v209, %v899
      %v910 = vmul.f32 %v210, %v899
      %v911 = vmul.f32 %v211, %v899
      %v912 = vmul.f32 %v212, %v899
      %v913 = vmul.f32 %v213, %v899
      %v914 = vmul.f32 %v214, %v899
      %v915 = vmul.f32 %v215, %v899
      %v916 = vmul.f32 %v216, %v899
      %v917 = vmul.f32 %v217, %v899
      %v918 = vmul.f32 %v218, %v899
      %v919 = vmul.f32 %v219, %v899
      %v920 = vmul.f32 %v220, %v899
      %v921 = vmul.f32 %v221, %v899
      %v922 = vmul.f32 %v222, %v899
      %v923 = vmul.f32 %v223, %v899
      %v924 = vmul.f32 %v224, %v899
      %v925 = vmul.f32 %v225, %v899
      %v926 = vmul.f32 %v226, %v899
      %v927 = vmul.f32 %v227, %v899
      %v928 = vmul.f32 %v228, %v899
      %v929 = vmul.f32 %v229, %v899
      %v930 = vmul.f32 %v230, %v899
      %v931 = vmul.f32 %v231, %v899
      %v932 = vmul.f32 %v232, %v899
      %v933 = vmul.f32 %v233, %v899
      %v934 = vmul.f32 %v234, %v899
      %v935 = vmul.f32 %v235, %v899
      %v936 = vmul.f32 %v236, %v899
      %v937 = vmul.f32 %v237, %v899
      %v938 = vmul.f32 %v238, %v899
      %v939 = vmul.f32 %v239, %v899
      %v940 = vmul.f32 %v240, %v899
      %v941 = vmul.f32 %v241, %v899
      %v942 = vmul.f32 %v242, %v899
      %v943 = vmul.f32 %v243, %v899
      %v944 = vmul.f32 %v244, %v899
      %v945 = vmul.f32 %v245, %v899
      %v946 = vmul.f32 %v246, %v899
      %v947 = vmul.f32 %v247, %v899
      %v948 = vmul.f32 %v248, %v899
      %v997 = vrot.slane %v901, 1
      %v998 = vrot.slane %v902, 1
      %v999 = vsel %vm427, %v997, %v998
      %v1000 = vrot.slane %v903, 1
      %v1001 = vsel %vm427, %v998, %v1000
      %v1002 = vrot.slane %v904, 1
      %v1003 = vrot.slane %v905, 1
      %v1004 = vsel %vm427, %v1002, %v1003
      %v1005 = vrot.slane %v906, 1
      %v1006 = vsel %vm427, %v1003, %v1005
      %v1007 = vrot.slane %v907, 1
      %v1008 = vrot.slane %v908, 1
      %v1009 = vsel %vm427, %v1007, %v1008
      %v1010 = vrot.slane %v909, 1
      %v1011 = vsel %vm427, %v1008, %v1010
      %v1012 = vrot.slane %v910, 1
      %v1013 = vrot.slane %v911, 1
      %v1014 = vsel %vm427, %v1012, %v1013
      %v1015 = vrot.slane %v912, 1
      %v1016 = vsel %vm427, %v1013, %v1015
      %v1017 = vrot.slane %v913, 1
      %v1018 = vrot.slane %v914, 1
      %v1019 = vsel %vm427, %v1017, %v1018
      %v1020 = vrot.slane %v915, 1
      %v1021 = vsel %vm427, %v1018, %v1020
      %v1022 = vrot.slane %v916, 1
      %v1023 = vrot.slane %v917, 1
      %v1024 = vsel %vm427, %v1022, %v1023
      %v1025 = vrot.slane %v918, 1
      %v1026 = vsel %vm427, %v1023, %v1025
      %v1027 = vrot.slane %v919, 1
      %v1028 = vrot.slane %v920, 1
      %v1029 = vsel %vm427, %v1027, %v1028
      %v1030 = vrot.slane %v921, 1
      %v1031 = vsel %vm427, %v1028, %v1030
      %v1032 = vrot.slane %v922, 1
      %v1033 = vrot.slane %v923, 1
      %v1034 = vsel %vm427, %v1032, %v1033
      %v1035 = vrot.slane %v924, 1
      %v1036 = vsel %vm427, %v1033, %v1035
      %v1037 = vrot.slane %v925, 1
      %v1038 = vrot.slane %v926, 1
      %v1039 = vsel %vm427, %v1037, %v1038
      %v1040 = vrot.slane %v927, 1
      %v1041 = vsel %vm427, %v1038, %v1040
      %v1042 = vrot.slane %v928, 1
      %v1043 = vrot.slane %v929, 1
      %v1044 = vsel %vm427, %v1042, %v1043
      %v1045 = vrot.slane %v930, 1
      %v1046 = vsel %vm427, %v1043, %v1045
      %v1047 = vrot.slane %v931, 1
      %v1048 = vrot.slane %v932, 1
      %v1049 = vsel %vm427, %v1047, %v1048
      %v1050 = vrot.slane %v933, 1
      %v1051 = vsel %vm427, %v1048, %v1050
      %v1052 = vrot.slane %v934, 1
      %v1053 = vrot.slane %v935, 1
      %v1054 = vsel %vm427, %v1052, %v1053
      %v1055 = vrot.slane %v936, 1
      %v1056 = vsel %vm427, %v1053, %v1055
      %v1057 = vrot.slane %v937, 1
      %v1058 = vrot.slane %v938, 1
      %v1059 = vsel %vm427, %v1057, %v1058
      %v1060 = vrot.slane %v939, 1
      %v1061 = vsel %vm427, %v1058, %v1060
      %v1062 = vrot.slane %v940, 1
      %v1063 = vrot.slane %v941, 1
      %v1064 = vsel %vm427, %v1062, %v1063
      %v1065 = vrot.slane %v942, 1
      %v1066 = vsel %vm427, %v1063, %v1065
      %v1067 = vrot.slane %v943, 1
      %v1068 = vrot.slane %v944, 1
      %v1069 = vsel %vm427, %v1067, %v1068
      %v1070 = vrot.slane %v945, 1
      %v1071 = vsel %vm427, %v1068, %v1070
      %v1072 = vrot.slane %v946, 1
      %v1073 = vrot.slane %v947, 1
      %v1074 = vsel %vm427, %v1072, %v1073
      %v1075 = vrot.slane %v948, 1
      %v1076 = vsel %vm427, %v1073, %v1075
      %v1109 = vadd.f32 %v861, %v999
      %v1110 = vadd.f32 %v862, %v1001
      %v1111 = vadd.f32 %v863, %v1004
      %v1112 = vadd.f32 %v864, %v1006
      %v1113 = vadd.f32 %v865, %v1009
      %v1114 = vadd.f32 %v866, %v1011
      %v1115 = vadd.f32 %v867, %v1014
      %v1116 = vadd.f32 %v868, %v1016
      %v1117 = vadd.f32 %v869, %v1019
      %v1118 = vadd.f32 %v870, %v1021
      %v1119 = vadd.f32 %v871, %v1024
      %v1120 = vadd.f32 %v872, %v1026
      %v1121 = vadd.f32 %v873, %v1029
      %v1122 = vadd.f32 %v874, %v1031
      %v1123 = vadd.f32 %v875, %v1034
      %v1124 = vadd.f32 %v876, %v1036
      %v1125 = vadd.f32 %v877, %v1039
      %v1126 = vadd.f32 %v878, %v1041
      %v1127 = vadd.f32 %v879, %v1044
      %v1128 = vadd.f32 %v880, %v1046
      %v1129 = vadd.f32 %v881, %v1049
      %v1130 = vadd.f32 %v882, %v1051
      %v1131 = vadd.f32 %v883, %v1054
      %v1132 = vadd.f32 %v884, %v1056
      %v1133 = vadd.f32 %v885, %v1059
      %v1134 = vadd.f32 %v886, %v1061
      %v1135 = vadd.f32 %v887, %v1064
      %v1136 = vadd.f32 %v888, %v1066
      %v1137 = vadd.f32 %v889, %v1069
      %v1138 = vadd.f32 %v890, %v1071
      %v1139 = vadd.f32 %v891, %v1074
      %v1140 = vadd.f32 %v892, %v1076
      %s1141 = scalar_lea.vmem %s1, 5
      %v1142 = vld [vmem:[%s1141] sm:$0x1]
      %v1144 = vlaneseq
      %v1145 = vshrl.u32 %v1144, 7
      %v1146 = vsub.s32 0, %v1145
      %v1147 = vrot.slane %v1142, %v1146
      %v1149 = vmul.f32 %v201, %v1147
      %v1150 = vmul.f32 %v202, %v1147
      %v1151 = vmul.f32 %v203, %v1147
      %v1152 = vmul.f32 %v204, %v1147
      %v1153 = vmul.f32 %v205, %v1147
      %v1154 = vmul.f32 %v206, %v1147
      %v1155 = vmul.f32 %v207, %v1147
      %v1156 = vmul.f32 %v208, %v1147
      %v1157 = vmul.f32 %v209, %v1147
      %v1158 = vmul.f32 %v210, %v1147
      %v1159 = vmul.f32 %v211, %v1147
      %v1160 = vmul.f32 %v212, %v1147
      %v1161 = vmul.f32 %v213, %v1147
      %v1162 = vmul.f32 %v214, %v1147
      %v1163 = vmul.f32 %v215, %v1147
      %v1164 = vmul.f32 %v216, %v1147
      %v1165 = vmul.f32 %v217, %v1147
      %v1166 = vmul.f32 %v218, %v1147
      %v1167 = vmul.f32 %v219, %v1147
      %v1168 = vmul.f32 %v220, %v1147
      %v1169 = vmul.f32 %v221, %v1147
      %v1170 = vmul.f32 %v222, %v1147
      %v1171 = vmul.f32 %v223, %v1147
      %v1172 = vmul.f32 %v224, %v1147
      %v1173 = vmul.f32 %v225, %v1147
      %v1174 = vmul.f32 %v226, %v1147
      %v1175 = vmul.f32 %v227, %v1147
      %v1176 = vmul.f32 %v228, %v1147
      %v1177 = vmul.f32 %v229, %v1147
      %v1178 = vmul.f32 %v230, %v1147
      %v1179 = vmul.f32 %v231, %v1147
      %v1180 = vmul.f32 %v232, %v1147
      %v1181 = vmul.f32 %v233, %v1147
      %v1182 = vmul.f32 %v234, %v1147
      %v1183 = vmul.f32 %v235, %v1147
      %v1184 = vmul.f32 %v236, %v1147
      %v1185 = vmul.f32 %v237, %v1147
      %v1186 = vmul.f32 %v238, %v1147
      %v1187 = vmul.f32 %v239, %v1147
      %v1188 = vmul.f32 %v240, %v1147
      %v1189 = vmul.f32 %v241, %v1147
      %v1190 = vmul.f32 %v242, %v1147
      %v1191 = vmul.f32 %v243, %v1147
      %v1192 = vmul.f32 %v244, %v1147
      %v1193 = vmul.f32 %v245, %v1147
      %v1194 = vmul.f32 %v246, %v1147
      %v1195 = vmul.f32 %v247, %v1147
      %v1196 = vmul.f32 %v248, %v1147
      %v1245 = vrot.slane %v1149, 2
      %v1246 = vrot.slane %v1150, 2
      %v1247 = vsel %vm676, %v1245, %v1246
      %v1248 = vrot.slane %v1151, 2
      %v1249 = vsel %vm676, %v1246, %v1248
      %v1250 = vrot.slane %v1152, 2
      %v1251 = vrot.slane %v1153, 2
      %v1252 = vsel %vm676, %v1250, %v1251
      %v1253 = vrot.slane %v1154, 2
      %v1254 = vsel %vm676, %v1251, %v1253
      %v1255 = vrot.slane %v1155, 2
      %v1256 = vrot.slane %v1156, 2
      %v1257 = vsel %vm676, %v1255, %v1256
      %v1258 = vrot.slane %v1157, 2
      %v1259 = vsel %vm676, %v1256, %v1258
      %v1260 = vrot.slane %v1158, 2
      %v1261 = vrot.slane %v1159, 2
      %v1262 = vsel %vm676, %v1260, %v1261
      %v1263 = vrot.slane %v1160, 2
      %v1264 = vsel %vm676, %v1261, %v1263
      %v1265 = vrot.slane %v1161, 2
      %v1266 = vrot.slane %v1162, 2
      %v1267 = vsel %vm676, %v1265, %v1266
      %v1268 = vrot.slane %v1163, 2
      %v1269 = vsel %vm676, %v1266, %v1268
      %v1270 = vrot.slane %v1164, 2
      %v1271 = vrot.slane %v1165, 2
      %v1272 = vsel %vm676, %v1270, %v1271
      %v1273 = vrot.slane %v1166, 2
      %v1274 = vsel %vm676, %v1271, %v1273
      %v1275 = vrot.slane %v1167, 2
      %v1276 = vrot.slane %v1168, 2
      %v1277 = vsel %vm676, %v1275, %v1276
      %v1278 = vrot.slane %v1169, 2
      %v1279 = vsel %vm676, %v1276, %v1278
      %v1280 = vrot.slane %v1170, 2
      %v1281 = vrot.slane %v1171, 2
      %v1282 = vsel %vm676, %v1280, %v1281
      %v1283 = vrot.slane %v1172, 2
      %v1284 = vsel %vm676, %v1281, %v1283
      %v1285 = vrot.slane %v1173, 2
      %v1286 = vrot.slane %v1174, 2
      %v1287 = vsel %vm676, %v1285, %v1286
      %v1288 = vrot.slane %v1175, 2
      %v1289 = vsel %vm676, %v1286, %v1288
      %v1290 = vrot.slane %v1176, 2
      %v1291 = vrot.slane %v1177, 2
      %v1292 = vsel %vm676, %v1290, %v1291
      %v1293 = vrot.slane %v1178, 2
      %v1294 = vsel %vm676, %v1291, %v1293
      %v1295 = vrot.slane %v1179, 2
      %v1296 = vrot.slane %v1180, 2
      %v1297 = vsel %vm676, %v1295, %v1296
      %v1298 = vrot.slane %v1181, 2
      %v1299 = vsel %vm676, %v1296, %v1298
      %v1300 = vrot.slane %v1182, 2
      %v1301 = vrot.slane %v1183, 2
      %v1302 = vsel %vm676, %v1300, %v1301
      %v1303 = vrot.slane %v1184, 2
      %v1304 = vsel %vm676, %v1301, %v1303
      %v1305 = vrot.slane %v1185, 2
      %v1306 = vrot.slane %v1186, 2
      %v1307 = vsel %vm676, %v1305, %v1306
      %v1308 = vrot.slane %v1187, 2
      %v1309 = vsel %vm676, %v1306, %v1308
      %v1310 = vrot.slane %v1188, 2
      %v1311 = vrot.slane %v1189, 2
      %v1312 = vsel %vm676, %v1310, %v1311
      %v1313 = vrot.slane %v1190, 2
      %v1314 = vsel %vm676, %v1311, %v1313
      %v1315 = vrot.slane %v1191, 2
      %v1316 = vrot.slane %v1192, 2
      %v1317 = vsel %vm676, %v1315, %v1316
      %v1318 = vrot.slane %v1193, 2
      %v1319 = vsel %vm676, %v1316, %v1318
      %v1320 = vrot.slane %v1194, 2
      %v1321 = vrot.slane %v1195, 2
      %v1322 = vsel %vm676, %v1320, %v1321
      %v1323 = vrot.slane %v1196, 2
      %v1324 = vsel %vm676, %v1321, %v1323
      %v1357 = vadd.f32 %v1109, %v1247
      %v1358 = vadd.f32 %v1110, %v1249
      %v1359 = vadd.f32 %v1111, %v1252
      %v1360 = vadd.f32 %v1112, %v1254
      %v1361 = vadd.f32 %v1113, %v1257
      %v1362 = vadd.f32 %v1114, %v1259
      %v1363 = vadd.f32 %v1115, %v1262
      %v1364 = vadd.f32 %v1116, %v1264
      %v1365 = vadd.f32 %v1117, %v1267
      %v1366 = vadd.f32 %v1118, %v1269
      %v1367 = vadd.f32 %v1119, %v1272
      %v1368 = vadd.f32 %v1120, %v1274
      %v1369 = vadd.f32 %v1121, %v1277
      %v1370 = vadd.f32 %v1122, %v1279
      %v1371 = vadd.f32 %v1123, %v1282
      %v1372 = vadd.f32 %v1124, %v1284
      %v1373 = vadd.f32 %v1125, %v1287
      %v1374 = vadd.f32 %v1126, %v1289
      %v1375 = vadd.f32 %v1127, %v1292
      %v1376 = vadd.f32 %v1128, %v1294
      %v1377 = vadd.f32 %v1129, %v1297
      %v1378 = vadd.f32 %v1130, %v1299
      %v1379 = vadd.f32 %v1131, %v1302
      %v1380 = vadd.f32 %v1132, %v1304
      %v1381 = vadd.f32 %v1133, %v1307
      %v1382 = vadd.f32 %v1134, %v1309
      %v1383 = vadd.f32 %v1135, %v1312
      %v1384 = vadd.f32 %v1136, %v1314
      %v1385 = vadd.f32 %v1137, %v1317
      %v1386 = vadd.f32 %v1138, %v1319
      %v1387 = vadd.f32 %v1139, %v1322
      %v1388 = vadd.f32 %v1140, %v1324
      %s1389 = scalar_lea.vmem %s1, 6
      %v1390 = vld [vmem:[%s1389] sm:$0x1]
      %v1392 = vlaneseq
      %v1393 = vshrl.u32 %v1392, 7
      %v1394 = vsub.s32 0, %v1393
      %v1395 = vrot.slane %v1390, %v1394
      %v1397 = vmul.f32 %v204, %v1395
      %v1398 = vmul.f32 %v205, %v1395
      %v1399 = vmul.f32 %v207, %v1395
      %v1400 = vmul.f32 %v208, %v1395
      %v1401 = vmul.f32 %v210, %v1395
      %v1402 = vmul.f32 %v211, %v1395
      %v1403 = vmul.f32 %v213, %v1395
      %v1404 = vmul.f32 %v214, %v1395
      %v1405 = vmul.f32 %v216, %v1395
      %v1406 = vmul.f32 %v217, %v1395
      %v1407 = vmul.f32 %v219, %v1395
      %v1408 = vmul.f32 %v220, %v1395
      %v1409 = vmul.f32 %v222, %v1395
      %v1410 = vmul.f32 %v223, %v1395
      %v1411 = vmul.f32 %v225, %v1395
      %v1412 = vmul.f32 %v226, %v1395
      %v1413 = vmul.f32 %v228, %v1395
      %v1414 = vmul.f32 %v229, %v1395
      %v1415 = vmul.f32 %v231, %v1395
      %v1416 = vmul.f32 %v232, %v1395
      %v1417 = vmul.f32 %v234, %v1395
      %v1418 = vmul.f32 %v235, %v1395
      %v1419 = vmul.f32 %v237, %v1395
      %v1420 = vmul.f32 %v238, %v1395
      %v1421 = vmul.f32 %v240, %v1395
      %v1422 = vmul.f32 %v241, %v1395
      %v1423 = vmul.f32 %v243, %v1395
      %v1424 = vmul.f32 %v244, %v1395
      %v1425 = vmul.f32 %v246, %v1395
      %v1426 = vmul.f32 %v247, %v1395
      %v1427 = vmul.f32 %v249, %v1395
      %v1428 = vmul.f32 %v250, %v1395
      %v1429 = vadd.f32 %v1357, %v1397
      %v1430 = vadd.f32 %v1358, %v1398
      %v1431 = vadd.f32 %v1359, %v1399
      %v1432 = vadd.f32 %v1360, %v1400
      %v1433 = vadd.f32 %v1361, %v1401
      %v1434 = vadd.f32 %v1362, %v1402
      %v1435 = vadd.f32 %v1363, %v1403
      %v1436 = vadd.f32 %v1364, %v1404
      %v1437 = vadd.f32 %v1365, %v1405
      %v1438 = vadd.f32 %v1366, %v1406
      %v1439 = vadd.f32 %v1367, %v1407
      %v1440 = vadd.f32 %v1368, %v1408
      %v1441 = vadd.f32 %v1369, %v1409
      %v1442 = vadd.f32 %v1370, %v1410
      %v1443 = vadd.f32 %v1371, %v1411
      %v1444 = vadd.f32 %v1372, %v1412
      %v1445 = vadd.f32 %v1373, %v1413
      %v1446 = vadd.f32 %v1374, %v1414
      %v1447 = vadd.f32 %v1375, %v1415
      %v1448 = vadd.f32 %v1376, %v1416
      %v1449 = vadd.f32 %v1377, %v1417
      %v1450 = vadd.f32 %v1378, %v1418
      %v1451 = vadd.f32 %v1379, %v1419
      %v1452 = vadd.f32 %v1380, %v1420
      %v1453 = vadd.f32 %v1381, %v1421
      %v1454 = vadd.f32 %v1382, %v1422
      %v1455 = vadd.f32 %v1383, %v1423
      %v1456 = vadd.f32 %v1384, %v1424
      %v1457 = vadd.f32 %v1385, %v1425
      %v1458 = vadd.f32 %v1386, %v1426
      %v1459 = vadd.f32 %v1387, %v1427
      %v1460 = vadd.f32 %v1388, %v1428
      %s1461 = scalar_lea.vmem %s1, 7
      %v1462 = vld [vmem:[%s1461] sm:$0x1]
      %v1464 = vlaneseq
      %v1465 = vshrl.u32 %v1464, 7
      %v1466 = vsub.s32 0, %v1465
      %v1467 = vrot.slane %v1462, %v1466
      %v1469 = vmul.f32 %v204, %v1467
      %v1470 = vmul.f32 %v205, %v1467
      %v1471 = vmul.f32 %v206, %v1467
      %v1472 = vmul.f32 %v207, %v1467
      %v1473 = vmul.f32 %v208, %v1467
      %v1474 = vmul.f32 %v209, %v1467
      %v1475 = vmul.f32 %v210, %v1467
      %v1476 = vmul.f32 %v211, %v1467
      %v1477 = vmul.f32 %v212, %v1467
      %v1478 = vmul.f32 %v213, %v1467
      %v1479 = vmul.f32 %v214, %v1467
      %v1480 = vmul.f32 %v215, %v1467
      %v1481 = vmul.f32 %v216, %v1467
      %v1482 = vmul.f32 %v217, %v1467
      %v1483 = vmul.f32 %v218, %v1467
      %v1484 = vmul.f32 %v219, %v1467
      %v1485 = vmul.f32 %v220, %v1467
      %v1486 = vmul.f32 %v221, %v1467
      %v1487 = vmul.f32 %v222, %v1467
      %v1488 = vmul.f32 %v223, %v1467
      %v1489 = vmul.f32 %v224, %v1467
      %v1490 = vmul.f32 %v225, %v1467
      %v1491 = vmul.f32 %v226, %v1467
      %v1492 = vmul.f32 %v227, %v1467
      %v1493 = vmul.f32 %v228, %v1467
      %v1494 = vmul.f32 %v229, %v1467
      %v1495 = vmul.f32 %v230, %v1467
      %v1496 = vmul.f32 %v231, %v1467
      %v1497 = vmul.f32 %v232, %v1467
      %v1498 = vmul.f32 %v233, %v1467
      %v1499 = vmul.f32 %v234, %v1467
      %v1500 = vmul.f32 %v235, %v1467
      %v1501 = vmul.f32 %v236, %v1467
      %v1502 = vmul.f32 %v237, %v1467
      %v1503 = vmul.f32 %v238, %v1467
      %v1504 = vmul.f32 %v239, %v1467
      %v1505 = vmul.f32 %v240, %v1467
      %v1506 = vmul.f32 %v241, %v1467
      %v1507 = vmul.f32 %v242, %v1467
      %v1508 = vmul.f32 %v243, %v1467
      %v1509 = vmul.f32 %v244, %v1467
      %v1510 = vmul.f32 %v245, %v1467
      %v1511 = vmul.f32 %v246, %v1467
      %v1512 = vmul.f32 %v247, %v1467
      %v1513 = vmul.f32 %v248, %v1467
      %v1514 = vmul.f32 %v249, %v1467
      %v1515 = vmul.f32 %v250, %v1467
      %v1516 = vmul.f32 %v251, %v1467
      %v1565 = vrot.slane %v1469, 1
      %v1566 = vrot.slane %v1470, 1
      %v1567 = vsel %vm427, %v1565, %v1566
      %v1568 = vrot.slane %v1471, 1
      %v1569 = vsel %vm427, %v1566, %v1568
      %v1570 = vrot.slane %v1472, 1
      %v1571 = vrot.slane %v1473, 1
      %v1572 = vsel %vm427, %v1570, %v1571
      %v1573 = vrot.slane %v1474, 1
      %v1574 = vsel %vm427, %v1571, %v1573
      %v1575 = vrot.slane %v1475, 1
      %v1576 = vrot.slane %v1476, 1
      %v1577 = vsel %vm427, %v1575, %v1576
      %v1578 = vrot.slane %v1477, 1
      %v1579 = vsel %vm427, %v1576, %v1578
      %v1580 = vrot.slane %v1478, 1
      %v1581 = vrot.slane %v1479, 1
      %v1582 = vsel %vm427, %v1580, %v1581
      %v1583 = vrot.slane %v1480, 1
      %v1584 = vsel %vm427, %v1581, %v1583
      %v1585 = vrot.slane %v1481, 1
      %v1586 = vrot.slane %v1482, 1
      %v1587 = vsel %vm427, %v1585, %v1586
      %v1588 = vrot.slane %v1483, 1
      %v1589 = vsel %vm427, %v1586, %v1588
      %v1590 = vrot.slane %v1484, 1
      %v1591 = vrot.slane %v1485, 1
      %v1592 = vsel %vm427, %v1590, %v1591
      %v1593 = vrot.slane %v1486, 1
      %v1594 = vsel %vm427, %v1591, %v1593
      %v1595 = vrot.slane %v1487, 1
      %v1596 = vrot.slane %v1488, 1
      %v1597 = vsel %vm427, %v1595, %v1596
      %v1598 = vrot.slane %v1489, 1
      %v1599 = vsel %vm427, %v1596, %v1598
      %v1600 = vrot.slane %v1490, 1
      %v1601 = vrot.slane %v1491, 1
      %v1602 = vsel %vm427, %v1600, %v1601
      %v1603 = vrot.slane %v1492, 1
      %v1604 = vsel %vm427, %v1601, %v1603
      %v1605 = vrot.slane %v1493, 1
      %v1606 = vrot.slane %v1494, 1
      %v1607 = vsel %vm427, %v1605, %v1606
      %v1608 = vrot.slane %v1495, 1
      %v1609 = vsel %vm427, %v1606, %v1608
      %v1610 = vrot.slane %v1496, 1
      %v1611 = vrot.slane %v1497, 1
      %v1612 = vsel %vm427, %v1610, %v1611
      %v1613 = vrot.slane %v1498, 1
      %v1614 = vsel %vm427, %v1611, %v1613
      %v1615 = vrot.slane %v1499, 1
      %v1616 = vrot.slane %v1500, 1
      %v1617 = vsel %vm427, %v1615, %v1616
      %v1618 = vrot.slane %v1501, 1
      %v1619 = vsel %vm427, %v1616, %v1618
      %v1620 = vrot.slane %v1502, 1
      %v1621 = vrot.slane %v1503, 1
      %v1622 = vsel %vm427, %v1620, %v1621
      %v1623 = vrot.slane %v1504, 1
      %v1624 = vsel %vm427, %v1621, %v1623
      %v1625 = vrot.slane %v1505, 1
      %v1626 = vrot.slane %v1506, 1
      %v1627 = vsel %vm427, %v1625, %v1626
      %v1628 = vrot.slane %v1507, 1
      %v1629 = vsel %vm427, %v1626, %v1628
      %v1630 = vrot.slane %v1508, 1
      %v1631 = vrot.slane %v1509, 1
      %v1632 = vsel %vm427, %v1630, %v1631
      %v1633 = vrot.slane %v1510, 1
      %v1634 = vsel %vm427, %v1631, %v1633
      %v1635 = vrot.slane %v1511, 1
      %v1636 = vrot.slane %v1512, 1
      %v1637 = vsel %vm427, %v1635, %v1636
      %v1638 = vrot.slane %v1513, 1
      %v1639 = vsel %vm427, %v1636, %v1638
      %v1640 = vrot.slane %v1514, 1
      %v1641 = vrot.slane %v1515, 1
      %v1642 = vsel %vm427, %v1640, %v1641
      %v1643 = vrot.slane %v1516, 1
      %v1644 = vsel %vm427, %v1641, %v1643
      %v1677 = vadd.f32 %v1429, %v1567
      %v1678 = vadd.f32 %v1430, %v1569
      %v1679 = vadd.f32 %v1431, %v1572
      %v1680 = vadd.f32 %v1432, %v1574
      %v1681 = vadd.f32 %v1433, %v1577
      %v1682 = vadd.f32 %v1434, %v1579
      %v1683 = vadd.f32 %v1435, %v1582
      %v1684 = vadd.f32 %v1436, %v1584
      %v1685 = vadd.f32 %v1437, %v1587
      %v1686 = vadd.f32 %v1438, %v1589
      %v1687 = vadd.f32 %v1439, %v1592
      %v1688 = vadd.f32 %v1440, %v1594
      %v1689 = vadd.f32 %v1441, %v1597
      %v1690 = vadd.f32 %v1442, %v1599
      %v1691 = vadd.f32 %v1443, %v1602
      %v1692 = vadd.f32 %v1444, %v1604
      %v1693 = vadd.f32 %v1445, %v1607
      %v1694 = vadd.f32 %v1446, %v1609
      %v1695 = vadd.f32 %v1447, %v1612
      %v1696 = vadd.f32 %v1448, %v1614
      %v1697 = vadd.f32 %v1449, %v1617
      %v1698 = vadd.f32 %v1450, %v1619
      %v1699 = vadd.f32 %v1451, %v1622
      %v1700 = vadd.f32 %v1452, %v1624
      %v1701 = vadd.f32 %v1453, %v1627
      %v1702 = vadd.f32 %v1454, %v1629
      %v1703 = vadd.f32 %v1455, %v1632
      %v1704 = vadd.f32 %v1456, %v1634
      %v1705 = vadd.f32 %v1457, %v1637
      %v1706 = vadd.f32 %v1458, %v1639
      %v1707 = vadd.f32 %v1459, %v1642
      %v1708 = vadd.f32 %v1460, %v1644
      %s1709 = scalar_lea.vmem %s1, 8
      %v1710 = vld [vmem:[%s1709] sm:$0x1]
      %v1712 = vlaneseq
      %v1713 = vshrl.u32 %v1712, 7
      %v1714 = vsub.s32 0, %v1713
      %v1715 = vrot.slane %v1710, %v1714
      %v1717 = vmul.f32 %v204, %v1715
      %v1718 = vmul.f32 %v205, %v1715
      %v1719 = vmul.f32 %v206, %v1715
      %v1720 = vmul.f32 %v207, %v1715
      %v1721 = vmul.f32 %v208, %v1715
      %v1722 = vmul.f32 %v209, %v1715
      %v1723 = vmul.f32 %v210, %v1715
      %v1724 = vmul.f32 %v211, %v1715
      %v1725 = vmul.f32 %v212, %v1715
      %v1726 = vmul.f32 %v213, %v1715
      %v1727 = vmul.f32 %v214, %v1715
      %v1728 = vmul.f32 %v215, %v1715
      %v1729 = vmul.f32 %v216, %v1715
      %v1730 = vmul.f32 %v217, %v1715
      %v1731 = vmul.f32 %v218, %v1715
      %v1732 = vmul.f32 %v219, %v1715
      %v1733 = vmul.f32 %v220, %v1715
      %v1734 = vmul.f32 %v221, %v1715
      %v1735 = vmul.f32 %v222, %v1715
      %v1736 = vmul.f32 %v223, %v1715
      %v1737 = vmul.f32 %v224, %v1715
      %v1738 = vmul.f32 %v225, %v1715
      %v1739 = vmul.f32 %v226, %v1715
      %v1740 = vmul.f32 %v227, %v1715
      %v1741 = vmul.f32 %v228, %v1715
      %v1742 = vmul.f32 %v229, %v1715
      %v1743 = vmul.f32 %v230, %v1715
      %v1744 = vmul.f32 %v231, %v1715
      %v1745 = vmul.f32 %v232, %v1715
      %v1746 = vmul.f32 %v233, %v1715
      %v1747 = vmul.f32 %v234, %v1715
      %v1748 = vmul.f32 %v235, %v1715
      %v1749 = vmul.f32 %v236, %v1715
      %v1750 = vmul.f32 %v237, %v1715
      %v1751 = vmul.f32 %v238, %v1715
      %v1752 = vmul.f32 %v239, %v1715
      %v1753 = vmul.f32 %v240, %v1715
      %v1754 = vmul.f32 %v241, %v1715
      %v1755 = vmul.f32 %v242, %v1715
      %v1756 = vmul.f32 %v243, %v1715
      %v1757 = vmul.f32 %v244, %v1715
      %v1758 = vmul.f32 %v245, %v1715
      %v1759 = vmul.f32 %v246, %v1715
      %v1760 = vmul.f32 %v247, %v1715
      %v1761 = vmul.f32 %v248, %v1715
      %v1762 = vmul.f32 %v249, %v1715
      %v1763 = vmul.f32 %v250, %v1715
      %v1764 = vmul.f32 %v251, %v1715
      %v1813 = vrot.slane %v1717, 2
      %v1814 = vrot.slane %v1718, 2
      %v1815 = vsel %vm676, %v1813, %v1814
      %v1816 = vrot.slane %v1719, 2
      %v1817 = vsel %vm676, %v1814, %v1816
      %v1818 = vrot.slane %v1720, 2
      %v1819 = vrot.slane %v1721, 2
      %v1820 = vsel %vm676, %v1818, %v1819
      %v1821 = vrot.slane %v1722, 2
      %v1822 = vsel %vm676, %v1819, %v1821
      %v1823 = vrot.slane %v1723, 2
      %v1824 = vrot.slane %v1724, 2
      %v1825 = vsel %vm676, %v1823, %v1824
      %v1826 = vrot.slane %v1725, 2
      %v1827 = vsel %vm676, %v1824, %v1826
      %v1828 = vrot.slane %v1726, 2
      %v1829 = vrot.slane %v1727, 2
      %v1830 = vsel %vm676, %v1828, %v1829
      %v1831 = vrot.slane %v1728, 2
      %v1832 = vsel %vm676, %v1829, %v1831
      %v1833 = vrot.slane %v1729, 2
      %v1834 = vrot.slane %v1730, 2
      %v1835 = vsel %vm676, %v1833, %v1834
      %v1836 = vrot.slane %v1731, 2
      %v1837 = vsel %vm676, %v1834, %v1836
      %v1838 = vrot.slane %v1732, 2
      %v1839 = vrot.slane %v1733, 2
      %v1840 = vsel %vm676, %v1838, %v1839
      %v1841 = vrot.slane %v1734, 2
      %v1842 = vsel %vm676, %v1839, %v1841
      %v1843 = vrot.slane %v1735, 2
      %v1844 = vrot.slane %v1736, 2
      %v1845 = vsel %vm676, %v1843, %v1844
      %v1846 = vrot.slane %v1737, 2
      %v1847 = vsel %vm676, %v1844, %v1846
      %v1848 = vrot.slane %v1738, 2
      %v1849 = vrot.slane %v1739, 2
      %v1850 = vsel %vm676, %v1848, %v1849
      %v1851 = vrot.slane %v1740, 2
      %v1852 = vsel %vm676, %v1849, %v1851
      %v1853 = vrot.slane %v1741, 2
      %v1854 = vrot.slane %v1742, 2
      %v1855 = vsel %vm676, %v1853, %v1854
      %v1856 = vrot.slane %v1743, 2
      %v1857 = vsel %vm676, %v1854, %v1856
      %v1858 = vrot.slane %v1744, 2
      %v1859 = vrot.slane %v1745, 2
      %v1860 = vsel %vm676, %v1858, %v1859
      %v1861 = vrot.slane %v1746, 2
      %v1862 = vsel %vm676, %v1859, %v1861
      %v1863 = vrot.slane %v1747, 2
      %v1864 = vrot.slane %v1748, 2
      %v1865 = vsel %vm676, %v1863, %v1864
      %v1866 = vrot.slane %v1749, 2
      %v1867 = vsel %vm676, %v1864, %v1866
      %v1868 = vrot.slane %v1750, 2
      %v1869 = vrot.slane %v1751, 2
      %v1870 = vsel %vm676, %v1868, %v1869
      %v1871 = vrot.slane %v1752, 2
      %v1872 = vsel %vm676, %v1869, %v1871
      %v1873 = vrot.slane %v1753, 2
      %v1874 = vrot.slane %v1754, 2
      %v1875 = vsel %vm676, %v1873, %v1874
      %v1876 = vrot.slane %v1755, 2
      %v1877 = vsel %vm676, %v1874, %v1876
      %v1878 = vrot.slane %v1756, 2
      %v1879 = vrot.slane %v1757, 2
      %v1880 = vsel %vm676, %v1878, %v1879
      %v1881 = vrot.slane %v1758, 2
      %v1882 = vsel %vm676, %v1879, %v1881
      %v1883 = vrot.slane %v1759, 2
      %v1884 = vrot.slane %v1760, 2
      %v1885 = vsel %vm676, %v1883, %v1884
      %v1886 = vrot.slane %v1761, 2
      %v1887 = vsel %vm676, %v1884, %v1886
      %v1888 = vrot.slane %v1762, 2
      %v1889 = vrot.slane %v1763, 2
      %v1890 = vsel %vm676, %v1888, %v1889
      %v1891 = vrot.slane %v1764, 2
      %v1892 = vsel %vm676, %v1889, %v1891
      %v1925 = vadd.f32 %v1677, %v1815
      %v1926 = vadd.f32 %v1678, %v1817
      %v1927 = vadd.f32 %v1679, %v1820
      %v1928 = vadd.f32 %v1680, %v1822
      %v1929 = vadd.f32 %v1681, %v1825
      %v1930 = vadd.f32 %v1682, %v1827
      %v1931 = vadd.f32 %v1683, %v1830
      %v1932 = vadd.f32 %v1684, %v1832
      %v1933 = vadd.f32 %v1685, %v1835
      %v1934 = vadd.f32 %v1686, %v1837
      %v1935 = vadd.f32 %v1687, %v1840
      %v1936 = vadd.f32 %v1688, %v1842
      %v1937 = vadd.f32 %v1689, %v1845
      %v1938 = vadd.f32 %v1690, %v1847
      %v1939 = vadd.f32 %v1691, %v1850
      %v1940 = vadd.f32 %v1692, %v1852
      %v1941 = vadd.f32 %v1693, %v1855
      %v1942 = vadd.f32 %v1694, %v1857
      %v1943 = vadd.f32 %v1695, %v1860
      %v1944 = vadd.f32 %v1696, %v1862
      %v1945 = vadd.f32 %v1697, %v1865
      %v1946 = vadd.f32 %v1698, %v1867
      %v1947 = vadd.f32 %v1699, %v1870
      %v1948 = vadd.f32 %v1700, %v1872
      %v1949 = vadd.f32 %v1701, %v1875
      %v1950 = vadd.f32 %v1702, %v1877
      %v1951 = vadd.f32 %v1703, %v1880
      %v1952 = vadd.f32 %v1704, %v1882
      %v1953 = vadd.f32 %v1705, %v1885
      %v1954 = vadd.f32 %v1706, %v1887
      %v1955 = vadd.f32 %v1707, %v1890
      %v1956 = vadd.f32 %v1708, %v1892
      %1957 = vst [vmem:[%s143] sm:$0xff] %v1925
      %1958 = vst [vmem:[%s143 + $0x8] sm:$0xff] %v1926
      %1959 = vst [vmem:[%s143 + $0x10] sm:$0xff] %v1927
      %1960 = vst [vmem:[%s143 + $0x18] sm:$0xff] %v1928
      %1961 = vst [vmem:[%s143 + $0x20] sm:$0xff] %v1929
      %1962 = vst [vmem:[%s143 + $0x28] sm:$0xff] %v1930
      %1963 = vst [vmem:[%s143 + $0x30] sm:$0xff] %v1931
      %1964 = vst [vmem:[%s143 + $0x38] sm:$0xff] %v1932
      %1965 = vst [vmem:[%s143 + $0x40] sm:$0xff] %v1933
      %1966 = vst [vmem:[%s143 + $0x48] sm:$0xff] %v1934
      %1967 = vst [vmem:[%s143 + $0x50] sm:$0xff] %v1935
      %1968 = vst [vmem:[%s143 + $0x58] sm:$0xff] %v1936
      %1969 = vst [vmem:[%s143 + $0x60] sm:$0xff] %v1937
      %1970 = vst [vmem:[%s143 + $0x68] sm:$0xff] %v1938
      %1971 = vst [vmem:[%s143 + $0x70] sm:$0xff] %v1939
      %1972 = vst [vmem:[%s143 + $0x78] sm:$0xff] %v1940
      %1973 = vst [vmem:[%s143 + $0x80] sm:$0xff] %v1941
      %1974 = vst [vmem:[%s143 + $0x88] sm:$0xff] %v1942
      %1975 = vst [vmem:[%s143 + $0x90] sm:$0xff] %v1943
      %1976 = vst [vmem:[%s143 + $0x98] sm:$0xff] %v1944
      %1977 = vst [vmem:[%s143 + $0xa0] sm:$0xff] %v1945
      %1978 = vst [vmem:[%s143 + $0xa8] sm:$0xff] %v1946
      %1979 = vst [vmem:[%s143 + $0xb0] sm:$0xff] %v1947
      %1980 = vst [vmem:[%s143 + $0xb8] sm:$0xff] %v1948
      %1981 = vst [vmem:[%s143 + $0xc0] sm:$0xff] %v1949
      %1982 = vst [vmem:[%s143 + $0xc8] sm:$0xff] %v1950
      %1983 = vst [vmem:[%s143 + $0xd0] sm:$0xff] %v1951
      %1984 = vst [vmem:[%s143 + $0xd8] sm:$0xff] %v1952
      %1985 = vst [vmem:[%s143 + $0xe0] sm:$0xff] %v1953
      %1986 = vst [vmem:[%s143 + $0xe8] sm:$0xff] %v1954
      %1987 = vst [vmem:[%s143 + $0xf0] sm:$0xff] %v1955
      %1988 = vst [vmem:[%s143 + $0xf8] sm:$0xff] %v1956
      %p1989 = scmp.lt.s32.totalorder %s13, 1
      %s1990 = scalar_select %p1989, %s13, 1
      %s1991 = smul.addr %s1990, 32
      %s1992 = smul.addr %s1991, 8
      %s1993 = scalar_lea.vmem %s2, %s1992
      // Predicated region
      $region29: #{_lambda_.22} parent=27 // pred_check
        %p1994 = pneg %p78
      $region30: #{_lambda_.22} parent=27 // pred_check_branch
        %1996 = sbr.rel (%p1994) target = $region32
      $region31: #{_lambda_.22} parent=27 // pred_region
        _
      $region32: #{_lambda_.22} parent=27 // pred_fallthru
        _
    $region28: #{_lambda_.22} parent=5 // pred_fallthru
      _
    %p1997 = scmp.le.s32.totalorder 2, %s8
    // Predicated region
    $region33: #{_lambda_.22} parent=5 // pred_check
      %p1998 = pneg %p1997
    $region34: #{_lambda_.22} parent=5 // pred_check_branch
      %2000 = sbr.rel (%p1998) target = $region36
    $region35: #{_lambda_.22} parent=5 // pred_region
      %s2001 = ssub.s32 %s8, 2
      // Predicated region
      $region37: #{_lambda_.22} parent=35 // pred_check
        %p2002 = pneg %p84
      $region38: #{_lambda_.22} parent=35 // pred_check_branch
        %2004 = sbr.rel (%p2002) target = $region40
      $region39: #{_lambda_.22} parent=35 // pred_region
        %p2005 = scmp.lt.s32.totalorder %s14, 1
        %s2006 = scalar_select %p2005, %s14, 1
        %s2007 = smul.addr %s2006, 32
        %s2008 = smul.addr %s2007, 8
        %s2009 = scalar_lea.vmem %s2, %s2008
      $region40: #{_lambda_.22} parent=35 // pred_fallthru
        _
    $region36: #{_lambda_.22} parent=5 // pred_fallthru
      _
  $region6: #{_lambda_.22} parent=0 // loop_footer
    %s12 = sadd.s32 1, %s8
  $region7: #{_lambda_.22} parent=0 // loop_footer_branch
    %7 = sbr.rel target = $region3
  $region8: #{_lambda_.22} parent=0 // loop_exit
    _

// kernel: _lambda_.30
$region0: #{_lambda_.30}
  #allocation0 [shape = 'u32[]', space=smem, size = 0x4, offset = 0x4, fixed_abs, tag = 'smem constant byte address 0x4 - core index']
  #allocation1 [shape = 'u32[144,128]{1,0:T(1,128)}', space=vmem, size = 0x12000, scoped, tag = 'internal scratch']
  %s0 = inlined_call_operand.vmem [shape: f32[128,128], index: 0, kind: input, shape index: {}]
  %s1 = inlined_call_operand.vmem [shape: f32[1,128], index: 1, kind: input, shape index: {}]
  %s2 = inlined_call_operand.vmem [shape: f32[1,128], index: 2, kind: input, shape index: {}]
  %s3 = inlined_call_operand.vmem [shape: f32[128,128], index: 3, kind: output, shape index: {}]
  %s4 = sld [smem:[#allocation0]]
  $region22: #{_lambda_.30} parent=0
    _
  %s6 = ssub.s32 1, %s4
  %s7 = scalar_select 0, %s6, %s4
  // Predicated region
  $region2: #{_lambda_.30} parent=0 // pred_check
    _
  $region3: #{_lambda_.30} parent=0 // pred_check_branch
    %9 = sbr.rel (0) target = $region5
  $region4: #{_lambda_.30} parent=0 // pred_region
    _
  $region5: #{_lambda_.30} parent=0 // pred_fallthru
    _
  // Predicated region
  $region6: #{_lambda_.30} parent=0 // pred_check
    _
  $region7: #{_lambda_.30} parent=0 // pred_check_branch
    %11 = sbr.rel (0) target = $region9
  $region8: #{_lambda_.30} parent=0 // pred_region
    _
  $region9: #{_lambda_.30} parent=0 // pred_fallthru
    _
  // Predicated region
  $region10: #{_lambda_.30} parent=0 // pred_check
    _
  $region11: #{_lambda_.30} parent=0 // pred_check_branch
    %13 = sbr.rel (0) target = $region13
  $region12: #{_lambda_.30} parent=0 // pred_region
    _
  $region13: #{_lambda_.30} parent=0 // pred_fallthru
    _
  %v14 = vld [vmem:[%s0] sm:$0xff]
  %v15 = vld [vmem:[%s0 + $0x8] sm:$0xff]
  %v16 = vld [vmem:[%s0 + $0x10] sm:$0xff]
  %v17 = vld [vmem:[%s0 + $0x18] sm:$0xff]
  %v18 = vld [vmem:[%s0 + $0x20] sm:$0xff]
  %v19 = vld [vmem:[%s0 + $0x28] sm:$0xff]
  %v20 = vld [vmem:[%s0 + $0x30] sm:$0xff]
  %v21 = vld [vmem:[%s0 + $0x38] sm:$0xff]
  %v22 = vld [vmem:[%s0 + $0x40] sm:$0xff]
  %v23 = vld [vmem:[%s0 + $0x48] sm:$0xff]
  %v24 = vld [vmem:[%s0 + $0x50] sm:$0xff]
  %v25 = vld [vmem:[%s0 + $0x58] sm:$0xff]
  %v26 = vld [vmem:[%s0 + $0x60] sm:$0xff]
  %v27 = vld [vmem:[%s0 + $0x68] sm:$0xff]
  %v28 = vld [vmem:[%s0 + $0x70] sm:$0xff]
  %v29 = vld [vmem:[%s0 + $0x78] sm:$0xff]
  %v30 = vadd.f32 %v14, %v15
  %v31 = vadd.f32 %v30, %v16
  %v32 = vadd.f32 %v31, %v17
  %v33 = vadd.f32 %v32, %v18
  %v34 = vadd.f32 %v33, %v19
  %v35 = vadd.f32 %v34, %v20
  %v36 = vadd.f32 %v35, %v21
  %v37 = vadd.f32 %v36, %v22
  %v38 = vadd.f32 %v37, %v23
  %v39 = vadd.f32 %v38, %v24
  %v40 = vadd.f32 %v39, %v25
  %v41 = vadd.f32 %v40, %v26
  %v42 = vadd.f32 %v41, %v27
  %v43 = vadd.f32 %v42, %v28
  %v44 = vadd.f32 %v43, %v29
  %v45 = vrot.slane %v44, 4
  %v46 = vadd.f32 %v44, %v45
  %v47 = vrot.slane %v46, 2
  %v48 = vadd.f32 %v46, %v47
  %v49 = vrot.slane %v48, 1
  %v50 = vadd.f32 %v48, %v49
  %v51 = vrcp.pop 128.0
  %v52 = vmul.f32 %v50, %v51
  %v53 = vsub.f32 %v14, %v52
  %v54 = vsub.f32 %v15, %v52
  %v55 = vsub.f32 %v16, %v52
  %v56 = vsub.f32 %v17, %v52
  %v57 = vsub.f32 %v18, %v52
  %v58 = vsub.f32 %v19, %v52
  %v59 = vsub.f32 %v20, %v52
  %v60 = vsub.f32 %v21, %v52
  %v61 = vsub.f32 %v22, %v52
  %v62 = vsub.f32 %v23, %v52
  %v63 = vsub.f32 %v24, %v52
  %v64 = vsub.f32 %v25, %v52
  %v65 = vsub.f32 %v26, %v52
  %v66 = vsub.f32 %v27, %v52
  %v67 = vsub.f32 %v28, %v52
  %v68 = vsub.f32 %v29, %v52
  %v69 = vmul.f32 %v53, %v53
  %v70 = vmul.f32 %v54, %v54
  %v71 = vmul.f32 %v55, %v55
  %v72 = vmul.f32 %v56, %v56
  %v73 = vmul.f32 %v57, %v57
  %v74 = vmul.f32 %v58, %v58
  %v75 = vmul.f32 %v59, %v59
  %v76 = vmul.f32 %v60, %v60
  %v77 = vmul.f32 %v61, %v61
  %v78 = vmul.f32 %v62, %v62
  %v79 = vmul.f32 %v63, %v63
  %v80 = vmul.f32 %v64, %v64
  %v81 = vmul.f32 %v65, %v65
  %v82 = vmul.f32 %v66, %v66
  %v83 = vmul.f32 %v67, %v67
  %v84 = vmul.f32 %v68, %v68
  %v85 = vadd.f32 %v69, %v70
  %v86 = vadd.f32 %v85, %v71
  %v87 = vadd.f32 %v86, %v72
  %v88 = vadd.f32 %v87, %v73
  %v89 = vadd.f32 %v88, %v74
  %v90 = vadd.f32 %v89, %v75
  %v91 = vadd.f32 %v90, %v76
  %v92 = vadd.f32 %v91, %v77
  %v93 = vadd.f32 %v92, %v78
  %v94 = vadd.f32 %v93, %v79
  %v95 = vadd.f32 %v94, %v80
  %v96 = vadd.f32 %v95, %v81
  %v97 = vadd.f32 %v96, %v82
  %v98 = vadd.f32 %v97, %v83
  %v99 = vadd.f32 %v98, %v84
  %v100 = vrot.slane %v99, 4
  %v101 = vadd.f32 %v99, %v100
  %v102 = vrot.slane %v101, 2
  %v103 = vadd.f32 %v101, %v102
  %v104 = vrot.slane %v103, 1
  %v105 = vadd.f32 %v103, %v104
  %v106 = vmul.f32 %v105, %v51
  %v107 = vadd.f32 %v106, 1e-05
  %v108 = vrsqrt.pop %v107
  %v109 = vmul.f32 %v53, %v108
  %v110 = vmul.f32 %v54, %v108
  %v111 = vmul.f32 %v55, %v108
  %v112 = vmul.f32 %v56, %v108
  %v113 = vmul.f32 %v57, %v108
  %v114 = vmul.f32 %v58, %v108
  %v115 = vmul.f32 %v59, %v108
  %v116 = vmul.f32 %v60, %v108
  %v117 = vmul.f32 %v61, %v108
  %v118 = vmul.f32 %v62, %v108
  %v119 = vmul.f32 %v63, %v108
  %v120 = vmul.f32 %v64, %v108
  %v121 = vmul.f32 %v65, %v108
  %v122 = vmul.f32 %v66, %v108
  %v123 = vmul.f32 %v67, %v108
  %v124 = vmul.f32 %v68, %v108
  %v125 = vld [vmem:[%s1] sm:$0x1]
  %v127 = vlaneseq
  %v128 = vshrl.u32 %v127, 7
  %v129 = vsub.s32 0, %v128
  %v130 = vrot.slane %v125, %v129
  %v132 = vmul.f32 %v109, %v130
  %v133 = vmul.f32 %v110, %v130
  %v134 = vmul.f32 %v111, %v130
  %v135 = vmul.f32 %v112, %v130
  %v136 = vmul.f32 %v113, %v130
  %v137 = vmul.f32 %v114, %v130
  %v138 = vmul.f32 %v115, %v130
  %v139 = vmul.f32 %v116, %v130
  %v140 = vmul.f32 %v117, %v130
  %v141 = vmul.f32 %v118, %v130
  %v142 = vmul.f32 %v119, %v130
  %v143 = vmul.f32 %v120, %v130
  %v144 = vmul.f32 %v121, %v130
  %v145 = vmul.f32 %v122, %v130
  %v146 = vmul.f32 %v123, %v130
  %v147 = vmul.f32 %v124, %v130
  %v148 = vld [vmem:[%s2] sm:$0x1]
  %v150 = vlaneseq
  %v151 = vshrl.u32 %v150, 7
  %v152 = vsub.s32 0, %v151
  %v153 = vrot.slane %v148, %v152
  %v155 = vadd.f32 %v132, %v153
  %v156 = vadd.f32 %v133, %v153
  %v157 = vadd.f32 %v134, %v153
  %v158 = vadd.f32 %v135, %v153
  %v159 = vadd.f32 %v136, %v153
  %v160 = vadd.f32 %v137, %v153
  %v161 = vadd.f32 %v138, %v153
  %v162 = vadd.f32 %v139, %v153
  %v163 = vadd.f32 %v140, %v153
  %v164 = vadd.f32 %v141, %v153
  %v165 = vadd.f32 %v142, %v153
  %v166 = vadd.f32 %v143, %v153
  %v167 = vadd.f32 %v144, %v153
  %v168 = vadd.f32 %v145, %v153
  %v169 = vadd.f32 %v146, %v153
  %v170 = vadd.f32 %v147, %v153
  %171 = vst [vmem:[%s3] sm:$0xff] %v155
  %172 = vst [vmem:[%s3 + $0x8] sm:$0xff] %v156
  %173 = vst [vmem:[%s3 + $0x10] sm:$0xff] %v157
  %174 = vst [vmem:[%s3 + $0x18] sm:$0xff] %v158
  %175 = vst [vmem:[%s3 + $0x20] sm:$0xff] %v159
  %176 = vst [vmem:[%s3 + $0x28] sm:$0xff] %v160
  %177 = vst [vmem:[%s3 + $0x30] sm:$0xff] %v161
  %178 = vst [vmem:[%s3 + $0x38] sm:$0xff] %v162
  %179 = vst [vmem:[%s3 + $0x40] sm:$0xff] %v163
  %180 = vst [vmem:[%s3 + $0x48] sm:$0xff] %v164
  %181 = vst [vmem:[%s3 + $0x50] sm:$0xff] %v165
  %182 = vst [vmem:[%s3 + $0x58] sm:$0xff] %v166
  %183 = vst [vmem:[%s3 + $0x60] sm:$0xff] %v167
  %184 = vst [vmem:[%s3 + $0x68] sm:$0xff] %v168
  %185 = vst [vmem:[%s3 + $0x70] sm:$0xff] %v169
  %186 = vst [vmem:[%s3 + $0x78] sm:$0xff] %v170
  // Predicated region
  $region14: #{_lambda_.30} parent=0 // pred_check
    _
  $region15: #{_lambda_.30} parent=0 // pred_check_branch
    %188 = sbr.rel (0) target = $region17
  $region16: #{_lambda_.30} parent=0 // pred_region
    _
  $region17: #{_lambda_.30} parent=0 // pred_fallthru
    _
  // Predicated region
  $region18: #{_lambda_.30} parent=0 // pred_check
    _
  $region19: #{_lambda_.30} parent=0 // pred_check_branch
    %190 = sbr.rel (0) target = $region21
  $region20: #{_lambda_.30} parent=0 // pred_region
    _
  $region21: #{_lambda_.30} parent=0 // pred_fallthru
    _

// kernel: _lambda_.31
$region0: #{_lambda_.31}
  #allocation0 [shape = 'u32[]', space=smem, size = 0x4, offset = 0x4, fixed_abs, tag = 'smem constant byte address 0x4 - core index']
  #allocation1 [shape = 'u32[144,128]{1,0:T(1,128)}', space=vmem, size = 0x12000, scoped, tag = 'internal scratch']
  %s0 = inlined_call_operand.vmem [shape: f32[128,128], index: 0, kind: input, shape index: {}]
  %s1 = inlined_call_operand.vmem [shape: f32[1,128], index: 1, kind: input, shape index: {}]
  %s2 = inlined_call_operand.vmem [shape: f32[1,128], index: 2, kind: input, shape index: {}]
  %s3 = inlined_call_operand.vmem [shape: f32[128,128], index: 3, kind: input, shape index: {}]
  %s4 = inlined_call_operand.hbm [shape: f32[128,128], index: 4, kind: output, shape index: {}]
  %s5 = sld [smem:[#allocation0]]
  $region26: #{_lambda_.31} parent=0
    _
  %s7 = ssub.s32 1, %s5
  %s8 = scalar_select 0, %s7, %s5
  $region1: #{_lambda_.31} parent=0
    #allocation2 [shape = 'u8[65536]{0}', space=vmem, size = 0x10000, scoped, tag = 'output window, operand 0, single buffered']
    #allocation3 [shape = 's32[1]{0}', space=sflag, size = 0x4, scoped, tag = 'scoped memory for _lambda_.31']
    %9 = vsyncpa [#allocation3], 0
    // Predicated region
    $region2: #{_lambda_.31} parent=1 // pred_check
      _
    $region3: #{_lambda_.31} parent=1 // pred_check_branch
      %11 = sbr.rel (0) target = $region5
    $region4: #{_lambda_.31} parent=1 // pred_region
      _
    $region5: #{_lambda_.31} parent=1 // pred_fallthru
      _
    // Predicated region
    $region6: #{_lambda_.31} parent=1 // pred_check
      _
    $region7: #{_lambda_.31} parent=1 // pred_check_branch
      %13 = sbr.rel (0) target = $region9
    $region8: #{_lambda_.31} parent=1 // pred_region
      _
    $region9: #{_lambda_.31} parent=1 // pred_fallthru
      _
    // Predicated region
    $region10: #{_lambda_.31} parent=1 // pred_check
      _
    $region11: #{_lambda_.31} parent=1 // pred_check_branch
      %15 = sbr.rel (0) target = $region13
    $region12: #{_lambda_.31} parent=1 // pred_region
      _
    $region13: #{_lambda_.31} parent=1 // pred_fallthru
      _
    // Predicated region
    $region14: #{_lambda_.31} parent=1 // pred_check
      _
    $region15: #{_lambda_.31} parent=1 // pred_check_branch
      %17 = sbr.rel (0) target = $region17
    $region16: #{_lambda_.31} parent=1 // pred_region
      _
    $region17: #{_lambda_.31} parent=1 // pred_fallthru
      _
    %v18 = vld [vmem:[%s0] sm:$0xff]
    %v19 = vld [vmem:[%s0 + $0x8] sm:$0xff]
    %v20 = vld [vmem:[%s0 + $0x10] sm:$0xff]
    %v21 = vld [vmem:[%s0 + $0x18] sm:$0xff]
    %v22 = vld [vmem:[%s0 + $0x20] sm:$0xff]
    %v23 = vld [vmem:[%s0 + $0x28] sm:$0xff]
    %v24 = vld [vmem:[%s0 + $0x30] sm:$0xff]
    %v25 = vld [vmem:[%s0 + $0x38] sm:$0xff]
    %v26 = vld [vmem:[%s0 + $0x40] sm:$0xff]
    %v27 = vld [vmem:[%s0 + $0x48] sm:$0xff]
    %v28 = vld [vmem:[%s0 + $0x50] sm:$0xff]
    %v29 = vld [vmem:[%s0 + $0x58] sm:$0xff]
    %v30 = vld [vmem:[%s0 + $0x60] sm:$0xff]
    %v31 = vld [vmem:[%s0 + $0x68] sm:$0xff]
    %v32 = vld [vmem:[%s0 + $0x70] sm:$0xff]
    %v33 = vld [vmem:[%s0 + $0x78] sm:$0xff]
    %v34 = vadd.f32 %v18, %v19
    %v35 = vadd.f32 %v34, %v20
    %v36 = vadd.f32 %v35, %v21
    %v37 = vadd.f32 %v36, %v22
    %v38 = vadd.f32 %v37, %v23
    %v39 = vadd.f32 %v38, %v24
    %v40 = vadd.f32 %v39, %v25
    %v41 = vadd.f32 %v40, %v26
    %v42 = vadd.f32 %v41, %v27
    %v43 = vadd.f32 %v42, %v28
    %v44 = vadd.f32 %v43, %v29
    %v45 = vadd.f32 %v44, %v30
    %v46 = vadd.f32 %v45, %v31
    %v47 = vadd.f32 %v46, %v32
    %v48 = vadd.f32 %v47, %v33
    %v49 = vrot.slane %v48, 4
    %v50 = vadd.f32 %v48, %v49
    %v51 = vrot.slane %v50, 2
    %v52 = vadd.f32 %v50, %v51
    %v53 = vrot.slane %v52, 1
    %v54 = vadd.f32 %v52, %v53
    %v55 = vrcp.pop 128.0
    %v56 = vmul.f32 %v54, %v55
    %v57 = vsub.f32 %v18, %v56
    %v58 = vsub.f32 %v19, %v56
    %v59 = vsub.f32 %v20, %v56
    %v60 = vsub.f32 %v21, %v56
    %v61 = vsub.f32 %v22, %v56
    %v62 = vsub.f32 %v23, %v56
    %v63 = vsub.f32 %v24, %v56
    %v64 = vsub.f32 %v25, %v56
    %v65 = vsub.f32 %v26, %v56
    %v66 = vsub.f32 %v27, %v56
    %v67 = vsub.f32 %v28, %v56
    %v68 = vsub.f32 %v29, %v56
    %v69 = vsub.f32 %v30, %v56
    %v70 = vsub.f32 %v31, %v56
    %v71 = vsub.f32 %v32, %v56
    %v72 = vsub.f32 %v33, %v56
    %v73 = vmul.f32 %v57, %v57
    %v74 = vmul.f32 %v58, %v58
    %v75 = vmul.f32 %v59, %v59
    %v76 = vmul.f32 %v60, %v60
    %v77 = vmul.f32 %v61, %v61
    %v78 = vmul.f32 %v62, %v62
    %v79 = vmul.f32 %v63, %v63
    %v80 = vmul.f32 %v64, %v64
    %v81 = vmul.f32 %v65, %v65
    %v82 = vmul.f32 %v66, %v66
    %v83 = vmul.f32 %v67, %v67
    %v84 = vmul.f32 %v68, %v68
    %v85 = vmul.f32 %v69, %v69
    %v86 = vmul.f32 %v70, %v70
    %v87 = vmul.f32 %v71, %v71
    %v88 = vmul.f32 %v72, %v72
    %v89 = vadd.f32 %v73, %v74
    %v90 = vadd.f32 %v89, %v75
    %v91 = vadd.f32 %v90, %v76
    %v92 = vadd.f32 %v91, %v77
    %v93 = vadd.f32 %v92, %v78
    %v94 = vadd.f32 %v93, %v79
    %v95 = vadd.f32 %v94, %v80
    %v96 = vadd.f32 %v95, %v81
    %v97 = vadd.f32 %v96, %v82
    %v98 = vadd.f32 %v97, %v83
    %v99 = vadd.f32 %v98, %v84
    %v100 = vadd.f32 %v99, %v85
    %v101 = vadd.f32 %v100, %v86
    %v102 = vadd.f32 %v101, %v87
    %v103 = vadd.f32 %v102, %v88
    %v104 = vrot.slane %v103, 4
    %v105 = vadd.f32 %v103, %v104
    %v106 = vrot.slane %v105, 2
    %v107 = vadd.f32 %v105, %v106
    %v108 = vrot.slane %v107, 1
    %v109 = vadd.f32 %v107, %v108
    %v110 = vmul.f32 %v109, %v55
    %v111 = vadd.f32 %v110, 1e-05
    %v112 = vrsqrt.pop %v111
    %v113 = vmul.f32 %v57, %v112
    %v114 = vmul.f32 %v58, %v112
    %v115 = vmul.f32 %v59, %v112
    %v116 = vmul.f32 %v60, %v112
    %v117 = vmul.f32 %v61, %v112
    %v118 = vmul.f32 %v62, %v112
    %v119 = vmul.f32 %v63, %v112
    %v120 = vmul.f32 %v64, %v112
    %v121 = vmul.f32 %v65, %v112
    %v122 = vmul.f32 %v66, %v112
    %v123 = vmul.f32 %v67, %v112
    %v124 = vmul.f32 %v68, %v112
    %v125 = vmul.f32 %v69, %v112
    %v126 = vmul.f32 %v70, %v112
    %v127 = vmul.f32 %v71, %v112
    %v128 = vmul.f32 %v72, %v112
    %v129 = vld [vmem:[%s1] sm:$0x1]
    %v131 = vlaneseq
    %v132 = vshrl.u32 %v131, 7
    %v133 = vsub.s32 0, %v132
    %v134 = vrot.slane %v129, %v133
    %v136 = vmul.f32 %v113, %v134
    %v137 = vmul.f32 %v114, %v134
    %v138 = vmul.f32 %v115, %v134
    %v139 = vmul.f32 %v116, %v134
    %v140 = vmul.f32 %v117, %v134
    %v141 = vmul.f32 %v118, %v134
    %v142 = vmul.f32 %v119, %v134
    %v143 = vmul.f32 %v120, %v134
    %v144 = vmul.f32 %v121, %v134
    %v145 = vmul.f32 %v122, %v134
    %v146 = vmul.f32 %v123, %v134
    %v147 = vmul.f32 %v124, %v134
    %v148 = vmul.f32 %v125, %v134
    %v149 = vmul.f32 %v126, %v134
    %v150 = vmul.f32 %v127, %v134
    %v151 = vmul.f32 %v128, %v134
    %v152 = vld [vmem:[%s2] sm:$0x1]
    %v154 = vlaneseq
    %v155 = vshrl.u32 %v154, 7
    %v156 = vsub.s32 0, %v155
    %v157 = vrot.slane %v152, %v156
    %v159 = vadd.f32 %v136, %v157
    %v160 = vadd.f32 %v137, %v157
    %v161 = vadd.f32 %v138, %v157
    %v162 = vadd.f32 %v139, %v157
    %v163 = vadd.f32 %v140, %v157
    %v164 = vadd.f32 %v141, %v157
    %v165 = vadd.f32 %v142, %v157
    %v166 = vadd.f32 %v143, %v157
    %v167 = vadd.f32 %v144, %v157
    %v168 = vadd.f32 %v145, %v157
    %v169 = vadd.f32 %v146, %v157
    %v170 = vadd.f32 %v147, %v157
    %v171 = vadd.f32 %v148, %v157
    %v172 = vadd.f32 %v149, %v157
    %v173 = vadd.f32 %v150, %v157
    %v174 = vadd.f32 %v151, %v157
    %v175 = vld [vmem:[%s3] sm:$0xff]
    %v176 = vld [vmem:[%s3 + $0x8] sm:$0xff]
    %v177 = vld [vmem:[%s3 + $0x10] sm:$0xff]
    %v178 = vld [vmem:[%s3 + $0x18] sm:$0xff]
    %v179 = vld [vmem:[%s3 + $0x20] sm:$0xff]
    %v180 = vld [vmem:[%s3 + $0x28] sm:$0xff]
    %v181 = vld [vmem:[%s3 + $0x30] sm:$0xff]
    %v182 = vld [vmem:[%s3 + $0x38] sm:$0xff]
    %v183 = vld [vmem:[%s3 + $0x40] sm:$0xff]
    %v184 = vld [vmem:[%s3 + $0x48] sm:$0xff]
    %v185 = vld [vmem:[%s3 + $0x50] sm:$0xff]
    %v186 = vld [vmem:[%s3 + $0x58] sm:$0xff]
    %v187 = vld [vmem:[%s3 + $0x60] sm:$0xff]
    %v188 = vld [vmem:[%s3 + $0x68] sm:$0xff]
    %v189 = vld [vmem:[%s3 + $0x70] sm:$0xff]
    %v190 = vld [vmem:[%s3 + $0x78] sm:$0xff]
    %v191 = vadd.f32 %v159, %v175
    %v192 = vadd.f32 %v160, %v176
    %v193 = vadd.f32 %v161, %v177
    %v194 = vadd.f32 %v162, %v178
    %v195 = vadd.f32 %v163, %v179
    %v196 = vadd.f32 %v164, %v180
    %v197 = vadd.f32 %v165, %v181
    %v198 = vadd.f32 %v166, %v182
    %v199 = vadd.f32 %v167, %v183
    %v200 = vadd.f32 %v168, %v184
    %v201 = vadd.f32 %v169, %v185
    %v202 = vadd.f32 %v170, %v186
    %v203 = vadd.f32 %v171, %v187
    %v204 = vadd.f32 %v172, %v188
    %v205 = vadd.f32 %v173, %v189
    %v206 = vadd.f32 %v174, %v190
    %207 = vst [vmem:[#allocation2] sm:$0xff] %v191
    %208 = vst [vmem:[#allocation2 + $0x8] sm:$0xff] %v192
    %209 = vst [vmem:[#allocation2 + $0x10] sm:$0xff] %v193
    %210 = vst [vmem:[#allocation2 + $0x18] sm:$0xff] %v194
    %211 = vst [vmem:[#allocation2 + $0x20] sm:$0xff] %v195
    %212 = vst [vmem:[#allocation2 + $0x28] sm:$0xff] %v196
    %213 = vst [vmem:[#allocation2 + $0x30] sm:$0xff] %v197
    %214 = vst [vmem:[#allocation2 + $0x38] sm:$0xff] %v198
    %215 = vst [vmem:[#allocation2 + $0x40] sm:$0xff] %v199
    %216 = vst [vmem:[#allocation2 + $0x48] sm:$0xff] %v200
    %217 = vst [vmem:[#allocation2 + $0x50] sm:$0xff] %v201
    %218 = vst [vmem:[#allocation2 + $0x58] sm:$0xff] %v202
    %219 = vst [vmem:[#allocation2 + $0x60] sm:$0xff] %v203
    %220 = vst [vmem:[#allocation2 + $0x68] sm:$0xff] %v204
    %221 = vst [vmem:[#allocation2 + $0x70] sm:$0xff] %v205
    %222 = vst [vmem:[#allocation2 + $0x78] sm:$0xff] %v206
    // Predicated region
    $region18: #{_lambda_.31} parent=1 // pred_check
      _
    $region19: #{_lambda_.31} parent=1 // pred_check_branch
      %224 = sbr.rel (0) target = $region21
    $region20: #{_lambda_.31} parent=1 // pred_region
      %s226 = ssub.s32 2048, 2048
      %227 = vsyncadd [#allocation3], %s226
      %s228 = sshll.u32 [#allocation2], 4
      %s229 = int_to_ptr.vmem [resolvable:$true] %s228
      %234 = dma.vmem_to_hbm [thread:$0]  %s229, 2048, %s4, [#allocation3], 128, 128, 8
    $region21: #{_lambda_.31} parent=1 // pred_fallthru
      _
    // Predicated region
    $region22: #{_lambda_.31} parent=1 // pred_check
      _
    $region23: #{_lambda_.31} parent=1 // pred_check_branch
      %236 = sbr.rel (0) target = $region25
    $region24: #{_lambda_.31} parent=1 // pred_region
      %237 = dma.done [#allocation3], 2048
    $region25: #{_lambda_.31} parent=1 // pred_fallthru
      _
    %238 = vsyncpa [#allocation3], 1

// kernel: _lambda_.28
$region0: #{_lambda_.28}
  #allocation0 [shape = 'u32[]', space=smem, size = 0x4, offset = 0x4, fixed_abs, tag = 'smem constant byte address 0x4 - core index']
  #allocation1 [shape = 'u32[144,128]{1,0:T(1,128)}', space=vmem, size = 0x12000, scoped, tag = 'internal scratch']
  %s0 = inlined_call_operand.vmem [shape: f32[2,20,20,128], index: 0, kind: input, shape index: {}]
  %s1 = inlined_call_operand.vmem [shape: f32[25,1,128], index: 1, kind: input, shape index: {}]
  %s2 = inlined_call_operand.vmem [shape: f32[2,16,16,128], index: 2, kind: output, shape index: {}]
  %s3 = sld [smem:[#allocation0]]
  $region41: #{_lambda_.28} parent=0
    _
  %s5 = ssub.s32 1, %s3
  %s6 = scalar_select 0, %s5, %s3
  loop: start=0, step=1, limit=4
  $region2: #{_lambda_.28} parent=0 // loop_pre_header
    _
  $region3: #{_lambda_.28} parent=0 // loop_header
    %s8 = sphi 0, %s12
    %p9 = scmp.ge.s32.totalorder %s8, 4
    %s18 = sphi 0, %s20
    %s21 = sphi 0, %s18
    %s22 = sphi 0, %s21
    %s38 = sphi 0, %s22
    %s42 = sphi 0, %s42
    %s44 = sphi 0, %s42
    %s45 = sphi 0, %s44
    %s59 = sphi 0, %s45
    %s65 = sphi 0, %s67
    %s68 = sphi 0, %s65
    %s69 = sphi 0, %s68
    %s85 = sphi 0, %s69
  $region4: #{_lambda_.28} parent=0 // loop_header_branch
    %11 = sbr.rel (%p9) target = $region8
  $region5: #{_lambda_.28} parent=0 // loop_body
    %s13 = ssub.s32 %s8, 1
    %s14 = ssub.s32 %s8, 2
    %s15 = sadd.s32 %s8, 1
    %s16 = ssub.s32 %s8, %s15
    %p17 = scmp.eq.s32.totalorder %s16, 0
    %s19 = sadd.s32 %s18, 1
    %s20 = scalar_select %p17, %s18, %s19
    %p23 = pneg %p17
    %p24 = scmp.eq.s32.totalorder %s8, 1
    %p25 = por %p23, %p24
    %p26 = scmp.ne.s32.totalorder %s18, %s21
    %p27 = scmp.eq.s32.totalorder %s8, 0
    %p28 = por %p26, %p27
    %p29 = scmp.ne.s32.totalorder %s18, %s21
    %p30 = scmp.eq.s32.totalorder %s13, 1
    %p31 = por %p29, %p30
    %p32 = scmp.ne.s32.totalorder %s21, %s22
    %p33 = scmp.eq.s32.totalorder %s13, 0
    %p34 = por %p32, %p33
    %p35 = scmp.ne.s32.totalorder %s21, %s22
    %p36 = scmp.eq.s32.totalorder %s14, 1
    %p37 = por %p35, %p36
    %p39 = scmp.ne.s32.totalorder %s22, %s38
    %p40 = scmp.eq.s32.totalorder %s14, 0
    %p41 = por %p39, %p40
    %s43 = sadd.s32 %s42, 1
    %p46 = scmp.eq.s32.totalorder %s8, 1
    %p47 = scmp.ne.s32.totalorder %s42, %s44
    %p48 = scmp.eq.s32.totalorder %s8, 0
    %p49 = por %p47, %p48
    %p50 = scmp.ne.s32.totalorder %s42, %s44
    %p51 = scmp.eq.s32.totalorder %s13, 1
    %p52 = por %p50, %p51
    %p53 = scmp.ne.s32.totalorder %s44, %s45
    %p54 = scmp.eq.s32.totalorder %s13, 0
    %p55 = por %p53, %p54
    %p56 = scmp.ne.s32.totalorder %s44, %s45
    %p57 = scmp.eq.s32.totalorder %s14, 1
    %p58 = por %p56, %p57
    %p60 = scmp.ne.s32.totalorder %s45, %s59
    %p61 = scmp.eq.s32.totalorder %s14, 0
    %p62 = por %p60, %p61
    %s63 = ssub.s32 %s8, %s15
    %p64 = scmp.eq.s32.totalorder %s63, 0
    %s66 = sadd.s32 %s65, 1
    %s67 = scalar_select %p64, %s65, %s66
    %p70 = pneg %p64
    %p71 = scmp.eq.s32.totalorder %s8, 1
    %p72 = por %p70, %p71
    %p73 = scmp.ne.s32.totalorder %s65, %s68
    %p74 = scmp.eq.s32.totalorder %s8, 0
    %p75 = por %p73, %p74
    %p76 = scmp.ne.s32.totalorder %s65, %s68
    %p77 = scmp.eq.s32.totalorder %s13, 1
    %p78 = por %p76, %p77
    %p79 = scmp.ne.s32.totalorder %s68, %s69
    %p80 = scmp.eq.s32.totalorder %s13, 0
    %p81 = por %p79, %p80
    %p82 = scmp.ne.s32.totalorder %s68, %s69
    %p83 = scmp.eq.s32.totalorder %s14, 1
    %p84 = por %p82, %p83
    %p86 = scmp.ne.s32.totalorder %s69, %s85
    %p87 = scmp.eq.s32.totalorder %s14, 0
    %p88 = por %p86, %p87
    %p89 = scmp.le.s32.totalorder 1, %s8
    %p90 = scmp.lt.s32.totalorder %s8, 3
    %p91 = pnand %p89, %p90
    %p92 = pneg %p91
    // Predicated region
    $region9: #{_lambda_.28} parent=5 // pred_check
      _
    $region10: #{_lambda_.28} parent=5 // pred_check_branch
      %94 = sbr.rel (%p91) target = $region12
    $region11: #{_lambda_.28} parent=5 // pred_region
      %s95 = ssub.s32 %s8, 1
      // Predicated region
      $region13: #{_lambda_.28} parent=11 // pred_check
        %p96 = pneg %p55
      $region14: #{_lambda_.28} parent=11 // pred_check_branch
        %98 = sbr.rel (%p96) target = $region16
      $region15: #{_lambda_.28} parent=11 // pred_region
        _
      $region16: #{_lambda_.28} parent=11 // pred_fallthru
        _
    $region12: #{_lambda_.28} parent=5 // pred_fallthru
      _
    %p99 = scmp.lt.s32.totalorder %s8, 2
    // Predicated region
    $region17: #{_lambda_.28} parent=5 // pred_check
      %p100 = pneg %p99
    $region18: #{_lambda_.28} parent=5 // pred_check_branch
      %102 = sbr.rel (%p100) target = $region20
    $region19: #{_lambda_.28} parent=5 // pred_region
      // Predicated region
      $region21: #{_lambda_.28} parent=19 // pred_check
        %p103 = pneg %p28
      $region22: #{_lambda_.28} parent=19 // pred_check_branch
        %105 = sbr.rel (%p103) target = $region24
      $region23: #{_lambda_.28} parent=19 // pred_region
        %p106 = scmp.lt.s32.totalorder %s8, 1
        %s107 = scalar_select %p106, %s8, 1
        %s108 = smul.addr %s107, 60
        %s109 = smul.addr %s108, 8
        %s110 = scalar_lea.vmem %s0, %s109
      $region24: #{_lambda_.28} parent=19 // pred_fallthru
        _
    $region20: #{_lambda_.28} parent=5 // pred_fallthru
      _
    %p111 = scmp.le.s32.totalorder 1, %s8
    %p112 = scmp.lt.s32.totalorder %s8, 3
    %p113 = pnand %p111, %p112
    %p114 = pneg %p113
    // Predicated region
    $region25: #{_lambda_.28} parent=5 // pred_check
      _
    $region26: #{_lambda_.28} parent=5 // pred_check_branch
      %116 = sbr.rel (%p113) target = $region28
    $region27: #{_lambda_.28} parent=5 // pred_region
      %s117 = ssub.s32 %s8, 1
      %p118 = scmp.lt.s32.totalorder %s13, 1
      %s119 = scalar_select %p118, %s13, 1
      %s120 = smul.addr %s119, 60
      %s121 = smul.addr %s120, 8
      %s122 = scalar_lea.vmem %s0, %s121
      %p123 = pneg %p34
      %p124 = pneg %p31
      %p125 = pneg %p55
      %p126 = pneg %p52
      %p127 = pneg %p81
      %p128 = pneg %p78
      %p129 = scmp.lt.s32.totalorder %s13, 1
      %s130 = scalar_select %p129, %s13, 1
      %s131 = smul.addr %s130, 32
      %s132 = smul.addr %s131, 8
      %s133 = scalar_lea.vmem %s2, %s132
      %p134 = scmp.lt.s32.totalorder %s13, 1
      %s135 = scalar_select %p134, %s13, 1
      %s136 = smul.addr %s135, 60
      %s137 = smul.addr %s136, 8
      %s138 = scalar_lea.vmem %s0, %s137
      %p139 = scmp.lt.s32.totalorder %s13, 1
      %s140 = scalar_select %p139, %s13, 1
      %s141 = smul.addr %s140, 32
      %s142 = smul.addr %s141, 8
      %s143 = scalar_lea.vmem %s2, %s142
      %v144 = vld [vmem:[%s138] sm:$0xff]
      %v145 = vld [vmem:[%s138 + $0x8] sm:$0xff]
      %v146 = vld [vmem:[%s138 + $0x10] sm:$0xf]
      %v147 = vld [vmem:[%s138 + $0x18] sm:$0xff]
      %v148 = vld [vmem:[%s138 + $0x20] sm:$0xff]
      %v149 = vld [vmem:[%s138 + $0x28] sm:$0xf]
      %v150 = vld [vmem:[%s138 + $0x30] sm:$0xff]
      %v151 = vld [vmem:[%s138 + $0x38] sm:$0xff]
      %v152 = vld [vmem:[%s138 + $0x40] sm:$0xf]
      %v153 = vld [vmem:[%s138 + $0x48] sm:$0xff]
      %v154 = vld [vmem:[%s138 + $0x50] sm:$0xff]
      %v155 = vld [vmem:[%s138 + $0x58] sm:$0xf]
      %v156 = vld [vmem:[%s138 + $0x60] sm:$0xff]
      %v157 = vld [vmem:[%s138 + $0x68] sm:$0xff]
      %v158 = vld [vmem:[%s138 + $0x70] sm:$0xf]
      %v159 = vld [vmem:[%s138 + $0x78] sm:$0xff]
      %v160 = vld [vmem:[%s138 + $0x80] sm:$0xff]
      %v161 = vld [vmem:[%s138 + $0x88] sm:$0xf]
      %v162 = vld [vmem:[%s138 + $0x90] sm:$0xff]
      %v163 = vld [vmem:[%s138 + $0x98] sm:$0xff]
      %v164 = vld [vmem:[%s138 + $0xa0] sm:$0xf]
      %v165 = vld [vmem:[%s138 + $0xa8] sm:$0xff]
      %v166 = vld [vmem:[%s138 + $0xb0] sm:$0xff]
      %v167 = vld [vmem:[%s138 + $0xb8] sm:$0xf]
      %v168 = vld [vmem:[%s138 + $0xc0] sm:$0xff]
      %v169 = vld [vmem:[%s138 + $0xc8] sm:$0xff]
      %v170 = vld [vmem:[%s138 + $0xd0] sm:$0xf]
      %v171 = vld [vmem:[%s138 + $0xd8] sm:$0xff]
      %v172 = vld [vmem:[%s138 + $0xe0] sm:$0xff]
      %v173 = vld [vmem:[%s138 + $0xe8] sm:$0xf]
      %v174 = vld [vmem:[%s138 + $0xf0] sm:$0xff]
      %v175 = vld [vmem:[%s138 + $0xf8] sm:$0xff]
      %v176 = vld [vmem:[%s138 + $0x100] sm:$0xf]
      %v177 = vld [vmem:[%s138 + $0x108] sm:$0xff]
      %v178 = vld [vmem:[%s138 + $0x110] sm:$0xff]
      %v179 = vld [vmem:[%s138 + $0x118] sm:$0xf]
      %v180 = vld [vmem:[%s138 + $0x120] sm:$0xff]
      %v181 = vld [vmem:[%s138 + $0x128] sm:$0xff]
      %v182 = vld [vmem:[%s138 + $0x130] sm:$0xf]
      %v183 = vld [vmem:[%s138 + $0x138] sm:$0xff]
      %v184 = vld [vmem:[%s138 + $0x140] sm:$0xff]
      %v185 = vld [vmem:[%s138 + $0x148] sm:$0xf]
      %v186 = vld [vmem:[%s138 + $0x150] sm:$0xff]
      %v187 = vld [vmem:[%s138 + $0x158] sm:$0xff]
      %v188 = vld [vmem:[%s138 + $0x160] sm:$0xf]
      %v189 = vld [vmem:[%s138 + $0x168] sm:$0xff]
      %v190 = vld [vmem:[%s138 + $0x170] sm:$0xff]
      %v191 = vld [vmem:[%s138 + $0x178] sm:$0xf]
      %v192 = vld [vmem:[%s138 + $0x180] sm:$0xff]
      %v193 = vld [vmem:[%s138 + $0x188] sm:$0xff]
      %v194 = vld [vmem:[%s138 + $0x190] sm:$0xf]
      %v195 = vld [vmem:[%s138 + $0x198] sm:$0xff]
      %v196 = vld [vmem:[%s138 + $0x1a0] sm:$0xff]
      %v197 = vld [vmem:[%s138 + $0x1a8] sm:$0xf]
      %v198 = vld [vmem:[%s138 + $0x1b0] sm:$0xff]
      %v199 = vld [vmem:[%s138 + $0x1b8] sm:$0xff]
      %v200 = vld [vmem:[%s138 + $0x1c0] sm:$0xf]
      %v201 = vld [vmem:[%s138 + $0x1c8] sm:$0xff]
      %v202 = vld [vmem:[%s138 + $0x1d0] sm:$0xff]
      %v203 = vld [vmem:[%s138 + $0x1d8] sm:$0xf]
      %v204 = vmax.f32 %v144, 0.0
      %v205 = vmax.f32 %v145, 0.0
      %v206 = vmax.f32 %v146, 0.0
      %v207 = vmax.f32 %v147, 0.0
      %v208 = vmax.f32 %v148, 0.0
      %v209 = vmax.f32 %v149, 0.0
      %v210 = vmax.f32 %v150, 0.0
      %v211 = vmax.f32 %v151, 0.0
      %v212 = vmax.f32 %v152, 0.0
      %v213 = vmax.f32 %v153, 0.0
      %v214 = vmax.f32 %v154, 0.0
      %v215 = vmax.f32 %v155, 0.0
      %v216 = vmax.f32 %v156, 0.0
      %v217 = vmax.f32 %v157, 0.0
      %v218 = vmax.f32 %v158, 0.0
      %v219 = vmax.f32 %v159, 0.0
      %v220 = vmax.f32 %v160, 0.0
      %v221 = vmax.f32 %v161, 0.0
      %v222 = vmax.f32 %v162, 0.0
      %v223 = vmax.f32 %v163, 0.0
      %v224 = vmax.f32 %v164, 0.0
      %v225 = vmax.f32 %v165, 0.0
      %v226 = vmax.f32 %v166, 0.0
      %v227 = vmax.f32 %v167, 0.0
      %v228 = vmax.f32 %v168, 0.0
      %v229 = vmax.f32 %v169, 0.0
      %v230 = vmax.f32 %v170, 0.0
      %v231 = vmax.f32 %v171, 0.0
      %v232 = vmax.f32 %v172, 0.0
      %v233 = vmax.f32 %v173, 0.0
      %v234 = vmax.f32 %v174, 0.0
      %v235 = vmax.f32 %v175, 0.0
      %v236 = vmax.f32 %v176, 0.0
      %v237 = vmax.f32 %v177, 0.0
      %v238 = vmax.f32 %v178, 0.0
      %v239 = vmax.f32 %v179, 0.0
      %v240 = vmax.f32 %v180, 0.0
      %v241 = vmax.f32 %v181, 0.0
      %v242 = vmax.f32 %v182, 0.0
      %v243 = vmax.f32 %v183, 0.0
      %v244 = vmax.f32 %v184, 0.0
      %v245 = vmax.f32 %v185, 0.0
      %v246 = vmax.f32 %v186, 0.0
      %v247 = vmax.f32 %v187, 0.0
      %v248 = vmax.f32 %v188, 0.0
      %v249 = vmax.f32 %v189, 0.0
      %v250 = vmax.f32 %v190, 0.0
      %v251 = vmax.f32 %v191, 0.0
      %v252 = vmax.f32 %v192, 0.0
      %v253 = vmax.f32 %v193, 0.0
      %v254 = vmax.f32 %v194, 0.0
      %v255 = vmax.f32 %v195, 0.0
      %v256 = vmax.f32 %v196, 0.0
      %v257 = vmax.f32 %v197, 0.0
      %v258 = vmax.f32 %v198, 0.0
      %v259 = vmax.f32 %v199, 0.0
      %v260 = vmax.f32 %v200, 0.0
      %v261 = vmax.f32 %v201, 0.0
      %v262 = vmax.f32 %v202, 0.0
      %v263 = vmax.f32 %v203, 0.0
      %v264 = vld [vmem:[%s1] sm:$0x1]
      %v266 = vlaneseq
      %v267 = vshrl.u32 %v266, 7
      %v268 = vsub.s32 0, %v267
      %v269 = vrot.slane %v264, %v268
      %v271 = vmul.f32 %v204, %v269
      %v272 = vmul.f32 %v205, %v269
      %v273 = vmul.f32 %v207, %v269
      %v274 = vmul.f32 %v208, %v269
      %v275 = vmul.f32 %v210, %v269
      %v276 = vmul.f32 %v211, %v269
      %v277 = vmul.f32 %v213, %v269
      %v278 = vmul.f32 %v214, %v269
      %v279 = vmul.f32 %v216, %v269
      %v280 = vmul.f32 %v217, %v269
      %v281 = vmul.f32 %v219, %v269
      %v282 = vmul.f32 %v220, %v269
      %v283 = vmul.f32 %v222, %v269
      %v284 = vmul.f32 %v223, %v269
      %v285 = vmul.f32 %v225, %v269
      %v286 = vmul.f32 %v226, %v269
      %v287 = vmul.f32 %v228, %v269
      %v288 = vmul.f32 %v229, %v269
      %v289 = vmul.f32 %v231, %v269
      %v290 = vmul.f32 %v232, %v269
      %v291 = vmul.f32 %v234, %v269
      %v292 = vmul.f32 %v235, %v269
      %v293 = vmul.f32 %v237, %v269
      %v294 = vmul.f32 %v238, %v269
      %v295 = vmul.f32 %v240, %v269
      %v296 = vmul.f32 %v241, %v269
      %v297 = vmul.f32 %v243, %v269
      %v298 = vmul.f32 %v244, %v269
      %v299 = vmul.f32 %v246, %v269
      %v300 = vmul.f32 %v247, %v269
      %v301 = vmul.f32 %v249, %v269
      %v302 = vmul.f32 %v250, %v269
      %v303 = vadd.f32 %v271, 0.0
      %v304 = vadd.f32 %v272, 0.0
      %v305 = vadd.f32 %v273, 0.0
      %v306 = vadd.f32 %v274, 0.0
      %v307 = vadd.f32 %v275, 0.0
      %v308 = vadd.f32 %v276, 0.0
      %v309 = vadd.f32 %v277, 0.0
      %v310 = vadd.f32 %v278, 0.0
      %v311 = vadd.f32 %v279, 0.0
      %v312 = vadd.f32 %v280, 0.0
      %v313 = vadd.f32 %v281, 0.0
      %v314 = vadd.f32 %v282, 0.0
      %v315 = vadd.f32 %v283, 0.0
      %v316 = vadd.f32 %v284, 0.0
      %v317 = vadd.f32 %v285, 0.0
      %v318 = vadd.f32 %v286, 0.0
      %v319 = vadd.f32 %v287, 0.0
      %v320 = vadd.f32 %v288, 0.0
      %v321 = vadd.f32 %v289, 0.0
      %v322 = vadd.f32 %v290, 0.0
      %v323 = vadd.f32 %v291, 0.0
      %v324 = vadd.f32 %v292, 0.0
      %v325 = vadd.f32 %v293, 0.0
      %v326 = vadd.f32 %v294, 0.0
      %v327 = vadd.f32 %v295, 0.0
      %v328 = vadd.f32 %v296, 0.0
      %v329 = vadd.f32 %v297, 0.0
      %v330 = vadd.f32 %v298, 0.0
      %v331 = vadd.f32 %v299, 0.0
      %v332 = vadd.f32 %v300, 0.0
      %v333 = vadd.f32 %v301, 0.0
      %v334 = vadd.f32 %v302, 0.0
      %s335 = scalar_lea.vmem %s1, 1
      %v336 = vld [vmem:[%s335] sm:$0x1]
      %v338 = vlaneseq
      %v339 = vshrl.u32 %v338, 7
      %v340 = vsub.s32 0, %v339
      %v341 = vrot.slane %v336, %v340
      %v343 = vmul.f32 %v204, %v341
      %v344 = vmul.f32 %v205, %v341
      %v345 = vmul.f32 %v206, %v341
      %v346 = vmul.f32 %v207, %v341
      %v347 = vmul.f32 %v208, %v341
      %v348 = vmul.f32 %v209, %v341
      %v349 = vmul.f32 %v210, %v341
      %v350 = vmul.f32 %v211, %v341
      %v351 = vmul.f32 %v212, %v341
      %v352 = vmul.f32 %v213, %v341
      %v353 = vmul.f32 %v214, %v341
      %v354 = vmul.f32 %v215, %v341
      %v355 = vmul.f32 %v216, %v341
      %v356 = vmul.f32 %v217, %v341
      %v357 = vmul.f32 %v218, %v341
      %v358 = vmul.f32 %v219, %v341
      %v359 = vmul.f32 %v220, %v341
      %v360 = vmul.f32 %v221, %v341
      %v361 = vmul.f32 %v222, %v341
      %v362 = vmul.f32 %v223, %v341
      %v363 = vmul.f32 %v224, %v341
      %v364 = vmul.f32 %v225, %v341
      %v365 = vmul.f32 %v226, %v341
      %v366 = vmul.f32 %v227, %v341
      %v367 = vmul.f32 %v228, %v341
      %v368 = vmul.f32 %v229, %v341
      %v369 = vmul.f32 %v230, %v341
      %v370 = vmul.f32 %v231, %v341
      %v371 = vmul.f32 %v232, %v341
      %v372 = vmul.f32 %v233, %v341
      %v373 = vmul.f32 %v234, %v341
      %v374 = vmul.f32 %v235, %v341
      %v375 = vmul.f32 %v236, %v341
      %v376 = vmul.f32 %v237, %v341
      %v377 = vmul.f32 %v238, %v341
      %v378 = vmul.f32 %v239, %v341
      %v379 = vmul.f32 %v240, %v341
      %v380 = vmul.f32 %v241, %v341
      %v381 = vmul.f32 %v242, %v341
      %v382 = vmul.f32 %v243, %v341
      %v383 = vmul.f32 %v244, %v341
      %v384 = vmul.f32 %v245, %v341
      %v385 = vmul.f32 %v246, %v341
      %v386 = vmul.f32 %v247, %v341
      %v387 = vmul.f32 %v248, %v341
      %v388 = vmul.f32 %v249, %v341
      %v389 = vmul.f32 %v250, %v341
      %v390 = vmul.f32 %v251, %v341
      %vm439 = vcmask 1046528
      %v440 = vrot.slane %v343, 1
      %v441 = vrot.slane %v344, 1
      %v442 = vsel %vm439, %v440, %v441
      %v443 = vrot.slane %v345, 1
      %v444 = vsel %vm439, %v441, %v443
      %v445 = vrot.slane %v346, 1
      %v446 = vrot.slane %v347, 1
      %v447 = vsel %vm439, %v445, %v446
      %v448 = vrot.slane %v348, 1
      %v449 = vsel %vm439, %v446, %v448
      %v450 = vrot.slane %v349, 1
      %v451 = vrot.slane %v350, 1
      %v452 = vsel %vm439, %v450, %v451
      %v453 = vrot.slane %v351, 1
      %v454 = vsel %vm439, %v451, %v453
      %v455 = vrot.slane %v352, 1
      %v456 = vrot.slane %v353, 1
      %v457 = vsel %vm439, %v455, %v456
      %v458 = vrot.slane %v354, 1
      %v459 = vsel %vm439, %v456, %v458
      %v460 = vrot.slane %v355, 1
      %v461 = vrot.slane %v356, 1
      %v462 = vsel %vm439, %v460, %v461
      %v463 = vrot.slane %v357, 1
      %v464 = vsel %vm439, %v461, %v463
      %v465 = vrot.slane %v358, 1
      %v466 = vrot.slane %v359, 1
      %v467 = vsel %vm439, %v465, %v466
      %v468 = vrot.slane %v360, 1
      %v469 = vsel %vm439, %v466, %v468
      %v470 = vrot.slane %v361, 1
      %v471 = vrot.slane %v362, 1
      %v472 = vsel %vm439, %v470, %v471
      %v473 = vrot.slane %v363, 1
      %v474 = vsel %vm439, %v471, %v473
      %v475 = vrot.slane %v364, 1
      %v476 = vrot.slane %v365, 1
      %v477 = vsel %vm439, %v475, %v476
      %v478 = vrot.slane %v366, 1
      %v479 = vsel %vm439, %v476, %v478
      %v480 = vrot.slane %v367, 1
      %v481 = vrot.slane %v368, 1
      %v482 = vsel %vm439, %v480, %v481
      %v483 = vrot.slane %v369, 1
      %v484 = vsel %vm439, %v481, %v483
      %v485 = vrot.slane %v370, 1
      %v486 = vrot.slane %v371, 1
      %v487 = vsel %vm439, %v485, %v486
      %v488 = vrot.slane %v372, 1
      %v489 = vsel %vm439, %v486, %v488
      %v490 = vrot.slane %v373, 1
      %v491 = vrot.slane %v374, 1
      %v492 = vsel %vm439, %v490, %v491
      %v493 = vrot.slane %v375, 1
      %v494 = vsel %vm439, %v491, %v493
      %v495 = vrot.slane %v376, 1
      %v496 = vrot.slane %v377, 1
      %v497 = vsel %vm439, %v495, %v496
      %v498 = vrot.slane %v378, 1
      %v499 = vsel %vm439, %v496, %v498
      %v500 = vrot.slane %v379, 1
      %v501 = vrot.slane %v380, 1
      %v502 = vsel %vm439, %v500, %v501
      %v503 = vrot.slane %v381, 1
      %v504 = vsel %vm439, %v501, %v503
      %v505 = vrot.slane %v382, 1
      %v506 = vrot.slane %v383, 1
      %v507 = vsel %vm439, %v505, %v506
      %v508 = vrot.slane %v384, 1
      %v509 = vsel %vm439, %v506, %v508
      %v510 = vrot.slane %v385, 1
      %v511 = vrot.slane %v386, 1
      %v512 = vsel %vm439, %v510, %v511
      %v513 = vrot.slane %v387, 1
      %v514 = vsel %vm439, %v511, %v513
      %v515 = vrot.slane %v388, 1
      %v516 = vrot.slane %v389, 1
      %v517 = vsel %vm439, %v515, %v516
      %v518 = vrot.slane %v390, 1
      %v519 = vsel %vm439, %v516, %v518
      %v552 = vadd.f32 %v303, %v442
      %v553 = vadd.f32 %v304, %v444
      %v554 = vadd.f32 %v305, %v447
      %v555 = vadd.f32 %v306, %v449
      %v556 = vadd.f32 %v307, %v452
      %v557 = vadd.f32 %v308, %v454
      %v558 = vadd.f32 %v309, %v457
      %v559 = vadd.f32 %v310, %v459
      %v560 = vadd.f32 %v311, %v462
      %v561 = vadd.f32 %v312, %v464
      %v562 = vadd.f32 %v313, %v467
      %v563 = vadd.f32 %v314, %v469
      %v564 = vadd.f32 %v315, %v472
      %v565 = vadd.f32 %v316, %v474
      %v566 = vadd.f32 %v317, %v477
      %v567 = vadd.f32 %v318, %v479
      %v568 = vadd.f32 %v319, %v482
      %v569 = vadd.f32 %v320, %v484
      %v570 = vadd.f32 %v321, %v487
      %v571 = vadd.f32 %v322, %v489
      %v572 = vadd.f32 %v323, %v492
      %v573 = vadd.f32 %v324, %v494
      %v574 = vadd.f32 %v325, %v497
      %v575 = vadd.f32 %v326, %v499
      %v576 = vadd.f32 %v327, %v502
      %v577 = vadd.f32 %v328, %v504
      %v578 = vadd.f32 %v329, %v507
      %v579 = vadd.f32 %v330, %v509
      %v580 = vadd.f32 %v331, %v512
      %v581 = vadd.f32 %v332, %v514
      %v582 = vadd.f32 %v333, %v517
      %v583 = vadd.f32 %v334, %v519
      %s584 = scalar_lea.vmem %s1, 2
      %v585 = vld [vmem:[%s584] sm:$0x1]
      %v587 = vlaneseq
      %v588 = vshrl.u32 %v587, 7
      %v589 = vsub.s32 0, %v588
      %v590 = vrot.slane %v585, %v589
      %v592 = vmul.f32 %v204, %v590
      %v593 = vmul.f32 %v205, %v590
      %v594 = vmul.f32 %v206, %v590
      %v595 = vmul.f32 %v207, %v590
      %v596 = vmul.f32 %v208, %v590
      %v597 = vmul.f32 %v209, %v590
      %v598 = vmul.f32 %v210, %v590
      %v599 = vmul.f32 %v211, %v590
      %v600 = vmul.f32 %v212, %v590
      %v601 = vmul.f32 %v213, %v590
      %v602 = vmul.f32 %v214, %v590
      %v603 = vmul.f32 %v215, %v590
      %v604 = vmul.f32 %v216, %v590
      %v605 = vmul.f32 %v217, %v590
      %v606 = vmul.f32 %v218, %v590
      %v607 = vmul.f32 %v219, %v590
      %v608 = vmul.f32 %v220, %v590
      %v609 = vmul.f32 %v221, %v590
      %v610 = vmul.f32 %v222, %v590
      %v611 = vmul.f32 %v223, %v590
      %v612 = vmul.f32 %v224, %v590
      %v613 = vmul.f32 %v225, %v590
      %v614 = vmul.f32 %v226, %v590
      %v615 = vmul.f32 %v227, %v590
      %v616 = vmul.f32 %v228, %v590
      %v617 = vmul.f32 %v229, %v590
      %v618 = vmul.f32 %v230, %v590
      %v619 = vmul.f32 %v231, %v590
      %v620 = vmul.f32 %v232, %v590
      %v621 = vmul.f32 %v233, %v590
      %v622 = vmul.f32 %v234, %v590
      %v623 = vmul.f32 %v235, %v590
      %v624 = vmul.f32 %v236, %v590
      %v625 = vmul.f32 %v237, %v590
      %v626 = vmul.f32 %v238, %v590
      %v627 = vmul.f32 %v239, %v590
      %v628 = vmul.f32 %v240, %v590
      %v629 = vmul.f32 %v241, %v590
      %v630 = vmul.f32 %v242, %v590
      %v631 = vmul.f32 %v243, %v590
      %v632 = vmul.f32 %v244, %v590
      %v633 = vmul.f32 %v245, %v590
      %v634 = vmul.f32 %v246, %v590
      %v635 = vmul.f32 %v247, %v590
      %v636 = vmul.f32 %v248, %v590
      %v637 = vmul.f32 %v249, %v590
      %v638 = vmul.f32 %v250, %v590
      %v639 = vmul.f32 %v251, %v590
      %vm688 = vcmask 1045504
      %v689 = vrot.slane %v592, 2
      %v690 = vrot.slane %v593, 2
      %v691 = vsel %vm688, %v689, %v690
      %v692 = vrot.slane %v594, 2
      %v693 = vsel %vm688, %v690, %v692
      %v694 = vrot.slane %v595, 2
      %v695 = vrot.slane %v596, 2
      %v696 = vsel %vm688, %v694, %v695
      %v697 = vrot.slane %v597, 2
      %v698 = vsel %vm688, %v695, %v697
      %v699 = vrot.slane %v598, 2
      %v700 = vrot.slane %v599, 2
      %v701 = vsel %vm688, %v699, %v700
      %v702 = vrot.slane %v600, 2
      %v703 = vsel %vm688, %v700, %v702
      %v704 = vrot.slane %v601, 2
      %v705 = vrot.slane %v602, 2
      %v706 = vsel %vm688, %v704, %v705
      %v707 = vrot.slane %v603, 2
      %v708 = vsel %vm688, %v705, %v707
      %v709 = vrot.slane %v604, 2
      %v710 = vrot.slane %v605, 2
      %v711 = vsel %vm688, %v709, %v710
      %v712 = vrot.slane %v606, 2
      %v713 = vsel %vm688, %v710, %v712
      %v714 = vrot.slane %v607, 2
      %v715 = vrot.slane %v608, 2
      %v716 = vsel %vm688, %v714, %v715
      %v717 = vrot.slane %v609, 2
      %v718 = vsel %vm688, %v715, %v717
      %v719 = vrot.slane %v610, 2
      %v720 = vrot.slane %v611, 2
      %v721 = vsel %vm688, %v719, %v720
      %v722 = vrot.slane %v612, 2
      %v723 = vsel %vm688, %v720, %v722
      %v724 = vrot.slane %v613, 2
      %v725 = vrot.slane %v614, 2
      %v726 = vsel %vm688, %v724, %v725
      %v727 = vrot.slane %v615, 2
      %v728 = vsel %vm688, %v725, %v727
      %v729 = vrot.slane %v616, 2
      %v730 = vrot.slane %v617, 2
      %v731 = vsel %vm688, %v729, %v730
      %v732 = vrot.slane %v618, 2
      %v733 = vsel %vm688, %v730, %v732
      %v734 = vrot.slane %v619, 2
      %v735 = vrot.slane %v620, 2
      %v736 = vsel %vm688, %v734, %v735
      %v737 = vrot.slane %v621, 2
      %v738 = vsel %vm688, %v735, %v737
      %v739 = vrot.slane %v622, 2
      %v740 = vrot.slane %v623, 2
      %v741 = vsel %vm688, %v739, %v740
      %v742 = vrot.slane %v624, 2
      %v743 = vsel %vm688, %v740, %v742
      %v744 = vrot.slane %v625, 2
      %v745 = vrot.slane %v626, 2
      %v746 = vsel %vm688, %v744, %v745
      %v747 = vrot.slane %v627, 2
      %v748 = vsel %vm688, %v745, %v747
      %v749 = vrot.slane %v628, 2
      %v750 = vrot.slane %v629, 2
      %v751 = vsel %vm688, %v749, %v750
      %v752 = vrot.slane %v630, 2
      %v753 = vsel %vm688, %v750, %v752
      %v754 = vrot.slane %v631, 2
      %v755 = vrot.slane %v632, 2
      %v756 = vsel %vm688, %v754, %v755
      %v757 = vrot.slane %v633, 2
      %v758 = vsel %vm688, %v755, %v757
      %v759 = vrot.slane %v634, 2
      %v760 = vrot.slane %v635, 2
      %v761 = vsel %vm688, %v759, %v760
      %v762 = vrot.slane %v636, 2
      %v763 = vsel %vm688, %v760, %v762
      %v764 = vrot.slane %v637, 2
      %v765 = vrot.slane %v638, 2
      %v766 = vsel %vm688, %v764, %v765
      %v767 = vrot.slane %v639, 2
      %v768 = vsel %vm688, %v765, %v767
      %v801 = vadd.f32 %v552, %v691
      %v802 = vadd.f32 %v553, %v693
      %v803 = vadd.f32 %v554, %v696
      %v804 = vadd.f32 %v555, %v698
      %v805 = vadd.f32 %v556, %v701
      %v806 = vadd.f32 %v557, %v703
      %v807 = vadd.f32 %v558, %v706
      %v808 = vadd.f32 %v559, %v708
      %v809 = vadd.f32 %v560, %v711
      %v810 = vadd.f32 %v561, %v713
      %v811 = vadd.f32 %v562, %v716
      %v812 = vadd.f32 %v563, %v718
      %v813 = vadd.f32 %v564, %v721
      %v814 = vadd.f32 %v565, %v723
      %v815 = vadd.f32 %v566, %v726
      %v816 = vadd.f32 %v567, %v728
      %v817 = vadd.f32 %v568, %v731
      %v818 = vadd.f32 %v569, %v733
      %v819 = vadd.f32 %v570, %v736
      %v820 = vadd.f32 %v571, %v738
      %v821 = vadd.f32 %v572, %v741
      %v822 = vadd.f32 %v573, %v743
      %v823 = vadd.f32 %v574, %v746
      %v824 = vadd.f32 %v575, %v748
      %v825 = vadd.f32 %v576, %v751
      %v826 = vadd.f32 %v577, %v753
      %v827 = vadd.f32 %v578, %v756
      %v828 = vadd.f32 %v579, %v758
      %v829 = vadd.f32 %v580, %v761
      %v830 = vadd.f32 %v581, %v763
      %v831 = vadd.f32 %v582, %v766
      %v832 = vadd.f32 %v583, %v768
      %s833 = scalar_lea.vmem %s1, 3
      %v834 = vld [vmem:[%s833] sm:$0x1]
      %v836 = vlaneseq
      %v837 = vshrl.u32 %v836, 7
      %v838 = vsub.s32 0, %v837
      %v839 = vrot.slane %v834, %v838
      %v841 = vmul.f32 %v204, %v839
      %v842 = vmul.f32 %v205, %v839
      %v843 = vmul.f32 %v206, %v839
      %v844 = vmul.f32 %v207, %v839
      %v845 = vmul.f32 %v208, %v839
      %v846 = vmul.f32 %v209, %v839
      %v847 = vmul.f32 %v210, %v839
      %v848 = vmul.f32 %v211, %v839
      %v849 = vmul.f32 %v212, %v839
      %v850 = vmul.f32 %v213, %v839
      %v851 = vmul.f32 %v214, %v839
      %v852 = vmul.f32 %v215, %v839
      %v853 = vmul.f32 %v216, %v839
      %v854 = vmul.f32 %v217, %v839
      %v855 = vmul.f32 %v218, %v839
      %v856 = vmul.f32 %v219, %v839
      %v857 = vmul.f32 %v220, %v839
      %v858 = vmul.f32 %v221, %v839
      %v859 = vmul.f32 %v222, %v839
      %v860 = vmul.f32 %v223, %v839
      %v861 = vmul.f32 %v224, %v839
      %v862 = vmul.f32 %v225, %v839
      %v863 = vmul.f32 %v226, %v839
      %v864 = vmul.f32 %v227, %v839
      %v865 = vmul.f32 %v228, %v839
      %v866 = vmul.f32 %v229, %v839
      %v867 = vmul.f32 %v230, %v839
      %v868 = vmul.f32 %v231, %v839
      %v869 = vmul.f32 %v232, %v839
      %v870 = vmul.f32 %v233, %v839
      %v871 = vmul.f32 %v234, %v839
      %v872 = vmul.f32 %v235, %v839
      %v873 = vmul.f32 %v236, %v839
      %v874 = vmul.f32 %v237, %v839
      %v875 = vmul.f32 %v238, %v839
      %v876 = vmul.f32 %v239, %v839
      %v877 = vmul.f32 %v240, %v839
      %v878 = vmul.f32 %v241, %v839
      %v879 = vmul.f32 %v242, %v839
      %v880 = vmul.f32 %v243, %v839
      %v881 = vmul.f32 %v244, %v839
      %v882 = vmul.f32 %v245, %v839
      %v883 = vmul.f32 %v246, %v839
      %v884 = vmul.f32 %v247, %v839
      %v885 = vmul.f32 %v248, %v839
      %v886 = vmul.f32 %v249, %v839
      %v887 = vmul.f32 %v250, %v839
      %v888 = vmul.f32 %v251, %v839
      %vm937 = vcmask 1044480
      %v938 = vrot.slane %v841, 3
      %v939 = vrot.slane %v842, 3
      %v940 = vsel %vm937, %v938, %v939
      %v941 = vrot.slane %v843, 3
      %v942 = vsel %vm937, %v939, %v941
      %v943 = vrot.slane %v844, 3
      %v944 = vrot.slane %v845, 3
      %v945 = vsel %vm937, %v943, %v944
      %v946 = vrot.slane %v846, 3
      %v947 = vsel %vm937, %v944, %v946
      %v948 = vrot.slane %v847, 3
      %v949 = vrot.slane %v848, 3
      %v950 = vsel %vm937, %v948, %v949
      %v951 = vrot.slane %v849, 3
      %v952 = vsel %vm937, %v949, %v951
      %v953 = vrot.slane %v850, 3
      %v954 = vrot.slane %v851, 3
      %v955 = vsel %vm937, %v953, %v954
      %v956 = vrot.slane %v852, 3
      %v957 = vsel %vm937, %v954, %v956
      %v958 = vrot.slane %v853, 3
      %v959 = vrot.slane %v854, 3
      %v960 = vsel %vm937, %v958, %v959
      %v961 = vrot.slane %v855, 3
      %v962 = vsel %vm937, %v959, %v961
      %v963 = vrot.slane %v856, 3
      %v964 = vrot.slane %v857, 3
      %v965 = vsel %vm937, %v963, %v964
      %v966 = vrot.slane %v858, 3
      %v967 = vsel %vm937, %v964, %v966
      %v968 = vrot.slane %v859, 3
      %v969 = vrot.slane %v860, 3
      %v970 = vsel %vm937, %v968, %v969
      %v971 = vrot.slane %v861, 3
      %v972 = vsel %vm937, %v969, %v971
      %v973 = vrot.slane %v862, 3
      %v974 = vrot.slane %v863, 3
      %v975 = vsel %vm937, %v973, %v974
      %v976 = vrot.slane %v864, 3
      %v977 = vsel %vm937, %v974, %v976
      %v978 = vrot.slane %v865, 3
      %v979 = vrot.slane %v866, 3
      %v980 = vsel %vm937, %v978, %v979
      %v981 = vrot.slane %v867, 3
      %v982 = vsel %vm937, %v979, %v981
      %v983 = vrot.slane %v868, 3
      %v984 = vrot.slane %v869, 3
      %v985 = vsel %vm937, %v983, %v984
      %v986 = vrot.slane %v870, 3
      %v987 = vsel %vm937, %v984, %v986
      %v988 = vrot.slane %v871, 3
      %v989 = vrot.slane %v872, 3
      %v990 = vsel %vm937, %v988, %v989
      %v991 = vrot.slane %v873, 3
      %v992 = vsel %vm937, %v989, %v991
      %v993 = vrot.slane %v874, 3
      %v994 = vrot.slane %v875, 3
      %v995 = vsel %vm937, %v993, %v994
      %v996 = vrot.slane %v876, 3
      %v997 = vsel %vm937, %v994, %v996
      %v998 = vrot.slane %v877, 3
      %v999 = vrot.slane %v878, 3
      %v1000 = vsel %vm937, %v998, %v999
      %v1001 = vrot.slane %v879, 3
      %v1002 = vsel %vm937, %v999, %v1001
      %v1003 = vrot.slane %v880, 3
      %v1004 = vrot.slane %v881, 3
      %v1005 = vsel %vm937, %v1003, %v1004
      %v1006 = vrot.slane %v882, 3
      %v1007 = vsel %vm937, %v1004, %v1006
      %v1008 = vrot.slane %v883, 3
      %v1009 = vrot.slane %v884, 3
      %v1010 = vsel %vm937, %v1008, %v1009
      %v1011 = vrot.slane %v885, 3
      %v1012 = vsel %vm937, %v1009, %v1011
      %v1013 = vrot.slane %v886, 3
      %v1014 = vrot.slane %v887, 3
      %v1015 = vsel %vm937, %v1013, %v1014
      %v1016 = vrot.slane %v888, 3
      %v1017 = vsel %vm937, %v1014, %v1016
      %v1050 = vadd.f32 %v801, %v940
      %v1051 = vadd.f32 %v802, %v942
      %v1052 = vadd.f32 %v803, %v945
      %v1053 = vadd.f32 %v804, %v947
      %v1054 = vadd.f32 %v805, %v950
      %v1055 = vadd.f32 %v806, %v952
      %v1056 = vadd.f32 %v807, %v955
      %v1057 = vadd.f32 %v808, %v957
      %v1058 = vadd.f32 %v809, %v960
      %v1059 = vadd.f32 %v810, %v962
      %v1060 = vadd.f32 %v811, %v965
      %v1061 = vadd.f32 %v812, %v967
      %v1062 = vadd.f32 %v813, %v970
      %v1063 = vadd.f32 %v814, %v972
      %v1064 = vadd.f32 %v815, %v975
      %v1065 = vadd.f32 %v816, %v977
      %v1066 = vadd.f32 %v817, %v980
      %v1067 = vadd.f32 %v818, %v982
      %v1068 = vadd.f32 %v819, %v985
      %v1069 = vadd.f32 %v820, %v987
      %v1070 = vadd.f32 %v821, %v990
      %v1071 = vadd.f32 %v822, %v992
      %v1072 = vadd.f32 %v823, %v995
      %v1073 = vadd.f32 %v824, %v997
      %v1074 = vadd.f32 %v825, %v1000
      %v1075 = vadd.f32 %v826, %v1002
      %v1076 = vadd.f32 %v827, %v1005
      %v1077 = vadd.f32 %v828, %v1007
      %v1078 = vadd.f32 %v829, %v1010
      %v1079 = vadd.f32 %v830, %v1012
      %v1080 = vadd.f32 %v831, %v1015
      %v1081 = vadd.f32 %v832, %v1017
      %s1082 = scalar_lea.vmem %s1, 4
      %v1083 = vld [vmem:[%s1082] sm:$0x1]
      %v1085 = vlaneseq
      %v1086 = vshrl.u32 %v1085, 7
      %v1087 = vsub.s32 0, %v1086
      %v1088 = vrot.slane %v1083, %v1087
      %v1090 = vmul.f32 %v204, %v1088
      %v1091 = vmul.f32 %v205, %v1088
      %v1092 = vmul.f32 %v206, %v1088
      %v1093 = vmul.f32 %v207, %v1088
      %v1094 = vmul.f32 %v208, %v1088
      %v1095 = vmul.f32 %v209, %v1088
      %v1096 = vmul.f32 %v210, %v1088
      %v1097 = vmul.f32 %v211, %v1088
      %v1098 = vmul.f32 %v212, %v1088
      %v1099 = vmul.f32 %v213, %v1088
      %v1100 = vmul.f32 %v214, %v1088
      %v1101 = vmul.f32 %v215, %v1088
      %v1102 = vmul.f32 %v216, %v1088
      %v1103 = vmul.f32 %v217, %v1088
      %v1104 = vmul.f32 %v218, %v1088
      %v1105 = vmul.f32 %v219, %v1088
      %v1106 = vmul.f32 %v220, %v1088
      %v1107 = vmul.f32 %v221, %v1088
      %v1108 = vmul.f32 %v222, %v1088
      %v1109 = vmul.f32 %v223, %v1088
      %v1110 = vmul.f32 %v224, %v1088
      %v1111 = vmul.f32 %v225, %v1088
      %v1112 = vmul.f32 %v226, %v1088
      %v1113 = vmul.f32 %v227, %v1088
      %v1114 = vmul.f32 %v228, %v1088
      %v1115 = vmul.f32 %v229, %v1088
      %v1116 = vmul.f32 %v230, %v1088
      %v1117 = vmul.f32 %v231, %v1088
      %v1118 = vmul.f32 %v232, %v1088
      %v1119 = vmul.f32 %v233, %v1088
      %v1120 = vmul.f32 %v234, %v1088
      %v1121 = vmul.f32 %v235, %v1088
      %v1122 = vmul.f32 %v236, %v1088
      %v1123 = vmul.f32 %v237, %v1088
      %v1124 = vmul.f32 %v238, %v1088
      %v1125 = vmul.f32 %v239, %v1088
      %v1126 = vmul.f32 %v240, %v1088
      %v1127 = vmul.f32 %v241, %v1088
      %v1128 = vmul.f32 %v242, %v1088
      %v1129 = vmul.f32 %v243, %v1088
      %v1130 = vmul.f32 %v244, %v1088
      %v1131 = vmul.f32 %v245, %v1088
      %v1132 = vmul.f32 %v246, %v1088
      %v1133 = vmul.f32 %v247, %v1088
      %v1134 = vmul.f32 %v248, %v1088
      %v1135 = vmul.f32 %v249, %v1088
      %v1136 = vmul.f32 %v250, %v1088
      %v1137 = vmul.f32 %v251, %v1088
      %vm1186 = vcmask 1043456
      %v1187 = vrot.slane %v1090, 4
      %v1188 = vrot.slane %v1091, 4
      %v1189 = vsel %vm1186, %v1187, %v1188
      %v1190 = vrot.slane %v1092, 4
      %v1191 = vsel %vm1186, %v1188, %v1190
      %v1192 = vrot.slane %v1093, 4
      %v1193 = vrot.slane %v1094, 4
      %v1194 = vsel %vm1186, %v1192, %v1193
      %v1195 = vrot.slane %v1095, 4
      %v1196 = vsel %vm1186, %v1193, %v1195
      %v1197 = vrot.slane %v1096, 4
      %v1198 = vrot.slane %v1097, 4
      %v1199 = vsel %vm1186, %v1197, %v1198
      %v1200 = vrot.slane %v1098, 4
      %v1201 = vsel %vm1186, %v1198, %v1200
      %v1202 = vrot.slane %v1099, 4
      %v1203 = vrot.slane %v1100, 4
      %v1204 = vsel %vm1186, %v1202, %v1203
      %v1205 = vrot.slane %v1101, 4
      %v1206 = vsel %vm1186, %v1203, %v1205
      %v1207 = vrot.slane %v1102, 4
      %v1208 = vrot.slane %v1103, 4
      %v1209 = vsel %vm1186, %v1207, %v1208
      %v1210 = vrot.slane %v1104, 4
      %v1211 = vsel %vm1186, %v1208, %v1210
      %v1212 = vrot.slane %v1105, 4
      %v1213 = vrot.slane %v1106, 4
      %v1214 = vsel %vm1186, %v1212, %v1213
      %v1215 = vrot.slane %v1107, 4
      %v1216 = vsel %vm1186, %v1213, %v1215
      %v1217 = vrot.slane %v1108, 4
      %v1218 = vrot.slane %v1109, 4
      %v1219 = vsel %vm1186, %v1217, %v1218
      %v1220 = vrot.slane %v1110, 4
      %v1221 = vsel %vm1186, %v1218, %v1220
      %v1222 = vrot.slane %v1111, 4
      %v1223 = vrot.slane %v1112, 4
      %v1224 = vsel %vm1186, %v1222, %v1223
      %v1225 = vrot.slane %v1113, 4
      %v1226 = vsel %vm1186, %v1223, %v1225
      %v1227 = vrot.slane %v1114, 4
      %v1228 = vrot.slane %v1115, 4
      %v1229 = vsel %vm1186, %v1227, %v1228
      %v1230 = vrot.slane %v1116, 4
      %v1231 = vsel %vm1186, %v1228, %v1230
      %v1232 = vrot.slane %v1117, 4
      %v1233 = vrot.slane %v1118, 4
      %v1234 = vsel %vm1186, %v1232, %v1233
      %v1235 = vrot.slane %v1119, 4
      %v1236 = vsel %vm1186, %v1233, %v1235
      %v1237 = vrot.slane %v1120, 4
      %v1238 = vrot.slane %v1121, 4
      %v1239 = vsel %vm1186, %v1237, %v1238
      %v1240 = vrot.slane %v1122, 4
      %v1241 = vsel %vm1186, %v1238, %v1240
      %v1242 = vrot.slane %v1123, 4
      %v1243 = vrot.slane %v1124, 4
      %v1244 = vsel %vm1186, %v1242, %v1243
      %v1245 = vrot.slane %v1125, 4
      %v1246 = vsel %vm1186, %v1243, %v1245
      %v1247 = vrot.slane %v1126, 4
      %v1248 = vrot.slane %v1127, 4
      %v1249 = vsel %vm1186, %v1247, %v1248
      %v1250 = vrot.slane %v1128, 4
      %v1251 = vsel %vm1186, %v1248, %v1250
      %v1252 = vrot.slane %v1129, 4
      %v1253 = vrot.slane %v1130, 4
      %v1254 = vsel %vm1186, %v1252, %v1253
      %v1255 = vrot.slane %v1131, 4
      %v1256 = vsel %vm1186, %v1253, %v1255
      %v1257 = vrot.slane %v1132, 4
      %v1258 = vrot.slane %v1133, 4
      %v1259 = vsel %vm1186, %v1257, %v1258
      %v1260 = vrot.slane %v1134, 4
      %v1261 = vsel %vm1186, %v1258, %v1260
      %v1262 = vrot.slane %v1135, 4
      %v1263 = vrot.slane %v1136, 4
      %v1264 = vsel %vm1186, %v1262, %v1263
      %v1265 = vrot.slane %v1137, 4
      %v1266 = vsel %vm1186, %v1263, %v1265
      %v1299 = vadd.f32 %v1050, %v1189
      %v1300 = vadd.f32 %v1051, %v1191
      %v1301 = vadd.f32 %v1052, %v1194
      %v1302 = vadd.f32 %v1053, %v1196
      %v1303 = vadd.f32 %v1054, %v1199
      %v1304 = vadd.f32 %v1055, %v1201
      %v1305 = vadd.f32 %v1056, %v1204
      %v1306 = vadd.f32 %v1057, %v1206
      %v1307 = vadd.f32 %v1058, %v1209
      %v1308 = vadd.f32 %v1059, %v1211
      %v1309 = vadd.f32 %v1060, %v1214
      %v1310 = vadd.f32 %v1061, %v1216
      %v1311 = vadd.f32 %v1062, %v1219
      %v1312 = vadd.f32 %v1063, %v1221
      %v1313 = vadd.f32 %v1064, %v1224
      %v1314 = vadd.f32 %v1065, %v1226
      %v1315 = vadd.f32 %v1066, %v1229
      %v1316 = vadd.f32 %v1067, %v1231
      %v1317 = vadd.f32 %v1068, %v1234
      %v1318 = vadd.f32 %v1069, %v1236
      %v1319 = vadd.f32 %v1070, %v1239
      %v1320 = vadd.f32 %v1071, %v1241
      %v1321 = vadd.f32 %v1072, %v1244
      %v1322 = vadd.f32 %v1073, %v1246
      %v1323 = vadd.f32 %v1074, %v1249
      %v1324 = vadd.f32 %v1075, %v1251
      %v1325 = vadd.f32 %v1076, %v1254
      %v1326 = vadd.f32 %v1077, %v1256
      %v1327 = vadd.f32 %v1078, %v1259
      %v1328 = vadd.f32 %v1079, %v1261
      %v1329 = vadd.f32 %v1080, %v1264
      %v1330 = vadd.f32 %v1081, %v1266
      %s1331 = scalar_lea.vmem %s1, 5
      %v1332 = vld [vmem:[%s1331] sm:$0x1]
      %v1334 = vlaneseq
      %v1335 = vshrl.u32 %v1334, 7
      %v1336 = vsub.s32 0, %v1335
      %v1337 = vrot.slane %v1332, %v1336
      %v1339 = vmul.f32 %v207, %v1337
      %v1340 = vmul.f32 %v208, %v1337
      %v1341 = vmul.f32 %v210, %v1337
      %v1342 = vmul.f32 %v211, %v1337
      %v1343 = vmul.f32 %v213, %v1337
      %v1344 = vmul.f32 %v214, %v1337
      %v1345 = vmul.f32 %v216, %v1337
      %v1346 = vmul.f32 %v217, %v1337
      %v1347 = vmul.f32 %v219, %v1337
      %v1348 = vmul.f32 %v220, %v1337
      %v1349 = vmul.f32 %v222, %v1337
      %v1350 = vmul.f32 %v223, %v1337
      %v1351 = vmul.f32 %v225, %v1337
      %v1352 = vmul.f32 %v226, %v1337
      %v1353 = vmul.f32 %v228, %v1337
      %v1354 = vmul.f32 %v229, %v1337
      %v1355 = vmul.f32 %v231, %v1337
      %v1356 = vmul.f32 %v232, %v1337
      %v1357 = vmul.f32 %v234, %v1337
      %v1358 = vmul.f32 %v235, %v1337
      %v1359 = vmul.f32 %v237, %v1337
      %v1360 = vmul.f32 %v238, %v1337
      %v1361 = vmul.f32 %v240, %v1337
      %v1362 = vmul.f32 %v241, %v1337
      %v1363 = vmul.f32 %v243, %v1337
      %v1364 = vmul.f32 %v244, %v1337
      %v1365 = vmul.f32 %v246, %v1337
      %v1366 = vmul.f32 %v247, %v1337
      %v1367 = vmul.f32 %v249, %v1337
      %v1368 = vmul.f32 %v250, %v1337
      %v1369 = vmul.f32 %v252, %v1337
      %v1370 = vmul.f32 %v253, %v1337
      %v1371 = vadd.f32 %v1299, %v1339
      %v1372 = vadd.f32 %v1300, %v1340
      %v1373 = vadd.f32 %v1301, %v1341
      %v1374 = vadd.f32 %v1302, %v1342
      %v1375 = vadd.f32 %v1303, %v1343
      %v1376 = vadd.f32 %v1304, %v1344
      %v1377 = vadd.f32 %v1305, %v1345
      %v1378 = vadd.f32 %v1306, %v1346
      %v1379 = vadd.f32 %v1307, %v1347
      %v1380 = vadd.f32 %v1308, %v1348
      %v1381 = vadd.f32 %v1309, %v1349
      %v1382 = vadd.f32 %v1310, %v1350
      %v1383 = vadd.f32 %v1311, %v1351
      %v1384 = vadd.f32 %v1312, %v1352
      %v1385 = vadd.f32 %v1313, %v1353
      %v1386 = vadd.f32 %v1314, %v1354
      %v1387 = vadd.f32 %v1315, %v1355
      %v1388 = vadd.f32 %v1316, %v1356
      %v1389 = vadd.f32 %v1317, %v1357
      %v1390 = vadd.f32 %v1318, %v1358
      %v1391 = vadd.f32 %v1319, %v1359
      %v1392 = vadd.f32 %v1320, %v1360
      %v1393 = vadd.f32 %v1321, %v1361
      %v1394 = vadd.f32 %v1322, %v1362
      %v1395 = vadd.f32 %v1323, %v1363
      %v1396 = vadd.f32 %v1324, %v1364
      %v1397 = vadd.f32 %v1325, %v1365
      %v1398 = vadd.f32 %v1326, %v1366
      %v1399 = vadd.f32 %v1327, %v1367
      %v1400 = vadd.f32 %v1328, %v1368
      %v1401 = vadd.f32 %v1329, %v1369
      %v1402 = vadd.f32 %v1330, %v1370
      %s1403 = scalar_lea.vmem %s1, 6
      %v1404 = vld [vmem:[%s1403] sm:$0x1]
      %v1406 = vlaneseq
      %v1407 = vshrl.u32 %v1406, 7
      %v1408 = vsub.s32 0, %v1407
      %v1409 = vrot.slane %v1404, %v1408
      %v1411 = vmul.f32 %v207, %v1409
      %v1412 = vmul.f32 %v208, %v1409
      %v1413 = vmul.f32 %v209, %v1409
      %v1414 = vmul.f32 %v210, %v1409
      %v1415 = vmul.f32 %v211, %v1409
      %v1416 = vmul.f32 %v212, %v1409
      %v1417 = vmul.f32 %v213, %v1409
      %v1418 = vmul.f32 %v214, %v1409
      %v1419 = vmul.f32 %v215, %v1409
      %v1420 = vmul.f32 %v216, %v1409
      %v1421 = vmul.f32 %v217, %v1409
      %v1422 = vmul.f32 %v218, %v1409
      %v1423 = vmul.f32 %v219, %v1409
      %v1424 = vmul.f32 %v220, %v1409
      %v1425 = vmul.f32 %v221, %v1409
      %v1426 = vmul.f32 %v222, %v1409
      %v1427 = vmul.f32 %v223, %v1409
      %v1428 = vmul.f32 %v224, %v1409
      %v1429 = vmul.f32 %v225, %v1409
      %v1430 = vmul.f32 %v226, %v1409
      %v1431 = vmul.f32 %v227, %v1409
      %v1432 = vmul.f32 %v228, %v1409
      %v1433 = vmul.f32 %v229, %v1409
      %v1434 = vmul.f32 %v230, %v1409
      %v1435 = vmul.f32 %v231, %v1409
      %v1436 = vmul.f32 %v232, %v1409
      %v1437 = vmul.f32 %v233, %v1409
      %v1438 = vmul.f32 %v234, %v1409
      %v1439 = vmul.f32 %v235, %v1409
      %v1440 = vmul.f32 %v236, %v1409
      %v1441 = vmul.f32 %v237, %v1409
      %v1442 = vmul.f32 %v238, %v1409
      %v1443 = vmul.f32 %v239, %v1409
      %v1444 = vmul.f32 %v240, %v1409
      %v1445 = vmul.f32 %v241, %v1409
      %v1446 = vmul.f32 %v242, %v1409
      %v1447 = vmul.f32 %v243, %v1409
      %v1448 = vmul.f32 %v244, %v1409
      %v1449 = vmul.f32 %v245, %v1409
      %v1450 = vmul.f32 %v246, %v1409
      %v1451 = vmul.f32 %v247, %v1409
      %v1452 = vmul.f32 %v248, %v1409
      %v1453 = vmul.f32 %v249, %v1409
      %v1454 = vmul.f32 %v250, %v1409
      %v1455 = vmul.f32 %v251, %v1409
      %v1456 = vmul.f32 %v252, %v1409
      %v1457 = vmul.f32 %v253, %v1409
      %v1458 = vmul.f32 %v254, %v1409
      %v1507 = vrot.slane %v1411, 1
      %v1508 = vrot.slane %v1412, 1
      %v1509 = vsel %vm439, %v1507, %v1508
      %v1510 = vrot.slane %v1413, 1
      %v1511 = vsel %vm439, %v1508, %v1510
      %v1512 = vrot.slane %v1414, 1
      %v1513 = vrot.slane %v1415, 1
      %v1514 = vsel %vm439, %v1512, %v1513
      %v1515 = vrot.slane %v1416, 1
      %v1516 = vsel %vm439, %v1513, %v1515
      %v1517 = vrot.slane %v1417, 1
      %v1518 = vrot.slane %v1418, 1
      %v1519 = vsel %vm439, %v1517, %v1518
      %v1520 = vrot.slane %v1419, 1
      %v1521 = vsel %vm439, %v1518, %v1520
      %v1522 = vrot.slane %v1420, 1
      %v1523 = vrot.slane %v1421, 1
      %v1524 = vsel %vm439, %v1522, %v1523
      %v1525 = vrot.slane %v1422, 1
      %v1526 = vsel %vm439, %v1523, %v1525
      %v1527 = vrot.slane %v1423, 1
      %v1528 = vrot.slane %v1424, 1
      %v1529 = vsel %vm439, %v1527, %v1528
      %v1530 = vrot.slane %v1425, 1
      %v1531 = vsel %vm439, %v1528, %v1530
      %v1532 = vrot.slane %v1426, 1
      %v1533 = vrot.slane %v1427, 1
      %v1534 = vsel %vm439, %v1532, %v1533
      %v1535 = vrot.slane %v1428, 1
      %v1536 = vsel %vm439, %v1533, %v1535
      %v1537 = vrot.slane %v1429, 1
      %v1538 = vrot.slane %v1430, 1
      %v1539 = vsel %vm439, %v1537, %v1538
      %v1540 = vrot.slane %v1431, 1
      %v1541 = vsel %vm439, %v1538, %v1540
      %v1542 = vrot.slane %v1432, 1
      %v1543 = vrot.slane %v1433, 1
      %v1544 = vsel %vm439, %v1542, %v1543
      %v1545 = vrot.slane %v1434, 1
      %v1546 = vsel %vm439, %v1543, %v1545
      %v1547 = vrot.slane %v1435, 1
      %v1548 = vrot.slane %v1436, 1
      %v1549 = vsel %vm439, %v1547, %v1548
      %v1550 = vrot.slane %v1437, 1
      %v1551 = vsel %vm439, %v1548, %v1550
      %v1552 = vrot.slane %v1438, 1
      %v1553 = vrot.slane %v1439, 1
      %v1554 = vsel %vm439, %v1552, %v1553
      %v1555 = vrot.slane %v1440, 1
      %v1556 = vsel %vm439, %v1553, %v1555
      %v1557 = vrot.slane %v1441, 1
      %v1558 = vrot.slane %v1442, 1
      %v1559 = vsel %vm439, %v1557, %v1558
      %v1560 = vrot.slane %v1443, 1
      %v1561 = vsel %vm439, %v1558, %v1560
      %v1562 = vrot.slane %v1444, 1
      %v1563 = vrot.slane %v1445, 1
      %v1564 = vsel %vm439, %v1562, %v1563
      %v1565 = vrot.slane %v1446, 1
      %v1566 = vsel %vm439, %v1563, %v1565
      %v1567 = vrot.slane %v1447, 1
      %v1568 = vrot.slane %v1448, 1
      %v1569 = vsel %vm439, %v1567, %v1568
      %v1570 = vrot.slane %v1449, 1
      %v1571 = vsel %vm439, %v1568, %v1570
      %v1572 = vrot.slane %v1450, 1
      %v1573 = vrot.slane %v1451, 1
      %v1574 = vsel %vm439, %v1572, %v1573
      %v1575 = vrot.slane %v1452, 1
      %v1576 = vsel %vm439, %v1573, %v1575
      %v1577 = vrot.slane %v1453, 1
      %v1578 = vrot.slane %v1454, 1
      %v1579 = vsel %vm439, %v1577, %v1578
      %v1580 = vrot.slane %v1455, 1
      %v1581 = vsel %vm439, %v1578, %v1580
      %v1582 = vrot.slane %v1456, 1
      %v1583 = vrot.slane %v1457, 1
      %v1584 = vsel %vm439, %v1582, %v1583
      %v1585 = vrot.slane %v1458, 1
      %v1586 = vsel %vm439, %v1583, %v1585
      %v1619 = vadd.f32 %v1371, %v1509
      %v1620 = vadd.f32 %v1372, %v1511
      %v1621 = vadd.f32 %v1373, %v1514
      %v1622 = vadd.f32 %v1374, %v1516
      %v1623 = vadd.f32 %v1375, %v1519
      %v1624 = vadd.f32 %v1376, %v1521
      %v1625 = vadd.f32 %v1377, %v1524
      %v1626 = vadd.f32 %v1378, %v1526
      %v1627 = vadd.f32 %v1379, %v1529
      %v1628 = vadd.f32 %v1380, %v1531
      %v1629 = vadd.f32 %v1381, %v1534
      %v1630 = vadd.f32 %v1382, %v1536
      %v1631 = vadd.f32 %v1383, %v1539
      %v1632 = vadd.f32 %v1384, %v1541
      %v1633 = vadd.f32 %v1385, %v1544
      %v1634 = vadd.f32 %v1386, %v1546
      %v1635 = vadd.f32 %v1387, %v1549
      %v1636 = vadd.f32 %v1388, %v1551
      %v1637 = vadd.f32 %v1389, %v1554
      %v1638 = vadd.f32 %v1390, %v1556
      %v1639 = vadd.f32 %v1391, %v1559
      %v1640 = vadd.f32 %v1392, %v1561
      %v1641 = vadd.f32 %v1393, %v1564
      %v1642 = vadd.f32 %v1394, %v1566
      %v1643 = vadd.f32 %v1395, %v1569
      %v1644 = vadd.f32 %v1396, %v1571
      %v1645 = vadd.f32 %v1397, %v1574
      %v1646 = vadd.f32 %v1398, %v1576
      %v1647 = vadd.f32 %v1399, %v1579
      %v1648 = vadd.f32 %v1400, %v1581
      %v1649 = vadd.f32 %v1401, %v1584
      %v1650 = vadd.f32 %v1402, %v1586
      %s1651 = scalar_lea.vmem %s1, 7
      %v1652 = vld [vmem:[%s1651] sm:$0x1]
      %v1654 = vlaneseq
      %v1655 = vshrl.u32 %v1654, 7
      %v1656 = vsub.s32 0, %v1655
      %v1657 = vrot.slane %v1652, %v1656
      %v1659 = vmul.f32 %v207, %v1657
      %v1660 = vmul.f32 %v208, %v1657
      %v1661 = vmul.f32 %v209, %v1657
      %v1662 = vmul.f32 %v210, %v1657
      %v1663 = vmul.f32 %v211, %v1657
      %v1664 = vmul.f32 %v212, %v1657
      %v1665 = vmul.f32 %v213, %v1657
      %v1666 = vmul.f32 %v214, %v1657
      %v1667 = vmul.f32 %v215, %v1657
      %v1668 = vmul.f32 %v216, %v1657
      %v1669 = vmul.f32 %v217, %v1657
      %v1670 = vmul.f32 %v218, %v1657
      %v1671 = vmul.f32 %v219, %v1657
      %v1672 = vmul.f32 %v220, %v1657
      %v1673 = vmul.f32 %v221, %v1657
      %v1674 = vmul.f32 %v222, %v1657
      %v1675 = vmul.f32 %v223, %v1657
      %v1676 = vmul.f32 %v224, %v1657
      %v1677 = vmul.f32 %v225, %v1657
      %v1678 = vmul.f32 %v226, %v1657
      %v1679 = vmul.f32 %v227, %v1657
      %v1680 = vmul.f32 %v228, %v1657
      %v1681 = vmul.f32 %v229, %v1657
      %v1682 = vmul.f32 %v230, %v1657
      %v1683 = vmul.f32 %v231, %v1657
      %v1684 = vmul.f32 %v232, %v1657
      %v1685 = vmul.f32 %v233, %v1657
      %v1686 = vmul.f32 %v234, %v1657
      %v1687 = vmul.f32 %v235, %v1657
      %v1688 = vmul.f32 %v236, %v1657
      %v1689 = vmul.f32 %v237, %v1657
      %v1690 = vmul.f32 %v238, %v1657
      %v1691 = vmul.f32 %v239, %v1657
      %v1692 = vmul.f32 %v240, %v1657
      %v1693 = vmul.f32 %v241, %v1657
      %v1694 = vmul.f32 %v242, %v1657
      %v1695 = vmul.f32 %v243, %v1657
      %v1696 = vmul.f32 %v244, %v1657
      %v1697 = vmul.f32 %v245, %v1657
      %v1698 = vmul.f32 %v246, %v1657
      %v1699 = vmul.f32 %v247, %v1657
      %v1700 = vmul.f32 %v248, %v1657
      %v1701 = vmul.f32 %v249, %v1657
      %v1702 = vmul.f32 %v250, %v1657
      %v1703 = vmul.f32 %v251, %v1657
      %v1704 = vmul.f32 %v252, %v1657
      %v1705 = vmul.f32 %v253, %v1657
      %v1706 = vmul.f32 %v254, %v1657
      %v1755 = vrot.slane %v1659, 2
      %v1756 = vrot.slane %v1660, 2
      %v1757 = vsel %vm688, %v1755, %v1756
      %v1758 = vrot.slane %v1661, 2
      %v1759 = vsel %vm688, %v1756, %v1758
      %v1760 = vrot.slane %v1662, 2
      %v1761 = vrot.slane %v1663, 2
      %v1762 = vsel %vm688, %v1760, %v1761
      %v1763 = vrot.slane %v1664, 2
      %v1764 = vsel %vm688, %v1761, %v1763
      %v1765 = vrot.slane %v1665, 2
      %v1766 = vrot.slane %v1666, 2
      %v1767 = vsel %vm688, %v1765, %v1766
      %v1768 = vrot.slane %v1667, 2
      %v1769 = vsel %vm688, %v1766, %v1768
      %v1770 = vrot.slane %v1668, 2
      %v1771 = vrot.slane %v1669, 2
      %v1772 = vsel %vm688, %v1770, %v1771
      %v1773 = vrot.slane %v1670, 2
      %v1774 = vsel %vm688, %v1771, %v1773
      %v1775 = vrot.slane %v1671, 2
      %v1776 = vrot.slane %v1672, 2
      %v1777 = vsel %vm688, %v1775, %v1776
      %v1778 = vrot.slane %v1673, 2
      %v1779 = vsel %vm688, %v1776, %v1778
      %v1780 = vrot.slane %v1674, 2
      %v1781 = vrot.slane %v1675, 2
      %v1782 = vsel %vm688, %v1780, %v1781
      %v1783 = vrot.slane %v1676, 2
      %v1784 = vsel %vm688, %v1781, %v1783
      %v1785 = vrot.slane %v1677, 2
      %v1786 = vrot.slane %v1678, 2
      %v1787 = vsel %vm688, %v1785, %v1786
      %v1788 = vrot.slane %v1679, 2
      %v1789 = vsel %vm688, %v1786, %v1788
      %v1790 = vrot.slane %v1680, 2
      %v1791 = vrot.slane %v1681, 2
      %v1792 = vsel %vm688, %v1790, %v1791
      %v1793 = vrot.slane %v1682, 2
      %v1794 = vsel %vm688, %v1791, %v1793
      %v1795 = vrot.slane %v1683, 2
      %v1796 = vrot.slane %v1684, 2
      %v1797 = vsel %vm688, %v1795, %v1796
      %v1798 = vrot.slane %v1685, 2
      %v1799 = vsel %vm688, %v1796, %v1798
      %v1800 = vrot.slane %v1686, 2
      %v1801 = vrot.slane %v1687, 2
      %v1802 = vsel %vm688, %v1800, %v1801
      %v1803 = vrot.slane %v1688, 2
      %v1804 = vsel %vm688, %v1801, %v1803
      %v1805 = vrot.slane %v1689, 2
      %v1806 = vrot.slane %v1690, 2
      %v1807 = vsel %vm688, %v1805, %v1806
      %v1808 = vrot.slane %v1691, 2
      %v1809 = vsel %vm688, %v1806, %v1808
      %v1810 = vrot.slane %v1692, 2
      %v1811 = vrot.slane %v1693, 2
      %v1812 = vsel %vm688, %v1810, %v1811
      %v1813 = vrot.slane %v1694, 2
      %v1814 = vsel %vm688, %v1811, %v1813
      %v1815 = vrot.slane %v1695, 2
      %v1816 = vrot.slane %v1696, 2
      %v1817 = vsel %vm688, %v1815, %v1816
      %v1818 = vrot.slane %v1697, 2
      %v1819 = vsel %vm688, %v1816, %v1818
      %v1820 = vrot.slane %v1698, 2
      %v1821 = vrot.slane %v1699, 2
      %v1822 = vsel %vm688, %v1820, %v1821
      %v1823 = vrot.slane %v1700, 2
      %v1824 = vsel %vm688, %v1821, %v1823
      %v1825 = vrot.slane %v1701, 2
      %v1826 = vrot.slane %v1702, 2
      %v1827 = vsel %vm688, %v1825, %v1826
      %v1828 = vrot.slane %v1703, 2
      %v1829 = vsel %vm688, %v1826, %v1828
      %v1830 = vrot.slane %v1704, 2
      %v1831 = vrot.slane %v1705, 2
      %v1832 = vsel %vm688, %v1830, %v1831
      %v1833 = vrot.slane %v1706, 2
      %v1834 = vsel %vm688, %v1831, %v1833
      %v1867 = vadd.f32 %v1619, %v1757
      %v1868 = vadd.f32 %v1620, %v1759
      %v1869 = vadd.f32 %v1621, %v1762
      %v1870 = vadd.f32 %v1622, %v1764
      %v1871 = vadd.f32 %v1623, %v1767
      %v1872 = vadd.f32 %v1624, %v1769
      %v1873 = vadd.f32 %v1625, %v1772
      %v1874 = vadd.f32 %v1626, %v1774
      %v1875 = vadd.f32 %v1627, %v1777
      %v1876 = vadd.f32 %v1628, %v1779
      %v1877 = vadd.f32 %v1629, %v1782
      %v1878 = vadd.f32 %v1630, %v1784
      %v1879 = vadd.f32 %v1631, %v1787
      %v1880 = vadd.f32 %v1632, %v1789
      %v1881 = vadd.f32 %v1633, %v1792
      %v1882 = vadd.f32 %v1634, %v1794
      %v1883 = vadd.f32 %v1635, %v1797
      %v1884 = vadd.f32 %v1636, %v1799
      %v1885 = vadd.f32 %v1637, %v1802
      %v1886 = vadd.f32 %v1638, %v1804
      %v1887 = vadd.f32 %v1639, %v1807
      %v1888 = vadd.f32 %v1640, %v1809
      %v1889 = vadd.f32 %v1641, %v1812
      %v1890 = vadd.f32 %v1642, %v1814
      %v1891 = vadd.f32 %v1643, %v1817
      %v1892 = vadd.f32 %v1644, %v1819
      %v1893 = vadd.f32 %v1645, %v1822
      %v1894 = vadd.f32 %v1646, %v1824
      %v1895 = vadd.f32 %v1647, %v1827
      %v1896 = vadd.f32 %v1648, %v1829
      %v1897 = vadd.f32 %v1649, %v1832
      %v1898 = vadd.f32 %v1650, %v1834
      %s1899 = scalar_lea.vmem %s1, 8
      %v1900 = vld [vmem:[%s1899] sm:$0x1]
      %v1902 = vlaneseq
      %v1903 = vshrl.u32 %v1902, 7
      %v1904 = vsub.s32 0, %v1903
      %v1905 = vrot.slane %v1900, %v1904
      %v1907 = vmul.f32 %v207, %v1905
      %v1908 = vmul.f32 %v208, %v1905
      %v1909 = vmul.f32 %v209, %v1905
      %v1910 = vmul.f32 %v210, %v1905
      %v1911 = vmul.f32 %v211, %v1905
      %v1912 = vmul.f32 %v212, %v1905
      %v1913 = vmul.f32 %v213, %v1905
      %v1914 = vmul.f32 %v214, %v1905
      %v1915 = vmul.f32 %v215, %v1905
      %v1916 = vmul.f32 %v216, %v1905
      %v1917 = vmul.f32 %v217, %v1905
      %v1918 = vmul.f32 %v218, %v1905
      %v1919 = vmul.f32 %v219, %v1905
      %v1920 = vmul.f32 %v220, %v1905
      %v1921 = vmul.f32 %v221, %v1905
      %v1922 = vmul.f32 %v222, %v1905
      %v1923 = vmul.f32 %v223, %v1905
      %v1924 = vmul.f32 %v224, %v1905
      %v1925 = vmul.f32 %v225, %v1905
      %v1926 = vmul.f32 %v226, %v1905
      %v1927 = vmul.f32 %v227, %v1905
      %v1928 = vmul.f32 %v228, %v1905
      %v1929 = vmul.f32 %v229, %v1905
      %v1930 = vmul.f32 %v230, %v1905
      %v1931 = vmul.f32 %v231, %v1905
      %v1932 = vmul.f32 %v232, %v1905
      %v1933 = vmul.f32 %v233, %v1905
      %v1934 = vmul.f32 %v234, %v1905
      %v1935 = vmul.f32 %v235, %v1905
      %v1936 = vmul.f32 %v236, %v1905
      %v1937 = vmul.f32 %v237, %v1905
      %v1938 = vmul.f32 %v238, %v1905
      %v1939 = vmul.f32 %v239, %v1905
      %v1940 = vmul.f32 %v240, %v1905
      %v1941 = vmul.f32 %v241, %v1905
      %v1942 = vmul.f32 %v242, %v1905
      %v1943 = vmul.f32 %v243, %v1905
      %v1944 = vmul.f32 %v244, %v1905
      %v1945 = vmul.f32 %v245, %v1905
      %v1946 = vmul.f32 %v246, %v1905
      %v1947 = vmul.f32 %v247, %v1905
      %v1948 = vmul.f32 %v248, %v1905
      %v1949 = vmul.f32 %v249, %v1905
      %v1950 = vmul.f32 %v250, %v1905
      %v1951 = vmul.f32 %v251, %v1905
      %v1952 = vmul.f32 %v252, %v1905
      %v1953 = vmul.f32 %v253, %v1905
      %v1954 = vmul.f32 %v254, %v1905
      %v2003 = vrot.slane %v1907, 3
      %v2004 = vrot.slane %v1908, 3
      %v2005 = vsel %vm937, %v2003, %v2004
      %v2006 = vrot.slane %v1909, 3
      %v2007 = vsel %vm937, %v2004, %v2006
      %v2008 = vrot.slane %v1910, 3
      %v2009 = vrot.slane %v1911, 3
      %v2010 = vsel %vm937, %v2008, %v2009
      %v2011 = vrot.slane %v1912, 3
      %v2012 = vsel %vm937, %v2009, %v2011
      %v2013 = vrot.slane %v1913, 3
      %v2014 = vrot.slane %v1914, 3
      %v2015 = vsel %vm937, %v2013, %v2014
      %v2016 = vrot.slane %v1915, 3
      %v2017 = vsel %vm937, %v2014, %v2016
      %v2018 = vrot.slane %v1916, 3
      %v2019 = vrot.slane %v1917, 3
      %v2020 = vsel %vm937, %v2018, %v2019
      %v2021 = vrot.slane %v1918, 3
      %v2022 = vsel %vm937, %v2019, %v2021
      %v2023 = vrot.slane %v1919, 3
      %v2024 = vrot.slane %v1920, 3
      %v2025 = vsel %vm937, %v2023, %v2024
      %v2026 = vrot.slane %v1921, 3
      %v2027 = vsel %vm937, %v2024, %v2026
      %v2028 = vrot.slane %v1922, 3
      %v2029 = vrot.slane %v1923, 3
      %v2030 = vsel %vm937, %v2028, %v2029
      %v2031 = vrot.slane %v1924, 3
      %v2032 = vsel %vm937, %v2029, %v2031
      %v2033 = vrot.slane %v1925, 3
      %v2034 = vrot.slane %v1926, 3
      %v2035 = vsel %vm937, %v2033, %v2034
      %v2036 = vrot.slane %v1927, 3
      %v2037 = vsel %vm937, %v2034, %v2036
      %v2038 = vrot.slane %v1928, 3
      %v2039 = vrot.slane %v1929, 3
      %v2040 = vsel %vm937, %v2038, %v2039
      %v2041 = vrot.slane %v1930, 3
      %v2042 = vsel %vm937, %v2039, %v2041
      %v2043 = vrot.slane %v1931, 3
      %v2044 = vrot.slane %v1932, 3
      %v2045 = vsel %vm937, %v2043, %v2044
      %v2046 = vrot.slane %v1933, 3
      %v2047 = vsel %vm937, %v2044, %v2046
      %v2048 = vrot.slane %v1934, 3
      %v2049 = vrot.slane %v1935, 3
      %v2050 = vsel %vm937, %v2048, %v2049
      %v2051 = vrot.slane %v1936, 3
      %v2052 = vsel %vm937, %v2049, %v2051
      %v2053 = vrot.slane %v1937, 3
      %v2054 = vrot.slane %v1938, 3
      %v2055 = vsel %vm937, %v2053, %v2054
      %v2056 = vrot.slane %v1939, 3
      %v2057 = vsel %vm937, %v2054, %v2056
      %v2058 = vrot.slane %v1940, 3
      %v2059 = vrot.slane %v1941, 3
      %v2060 = vsel %vm937, %v2058, %v2059
      %v2061 = vrot.slane %v1942, 3
      %v2062 = vsel %vm937, %v2059, %v2061
      %v2063 = vrot.slane %v1943, 3
      %v2064 = vrot.slane %v1944, 3
      %v2065 = vsel %vm937, %v2063, %v2064
      %v2066 = vrot.slane %v1945, 3
      %v2067 = vsel %vm937, %v2064, %v2066
      %v2068 = vrot.slane %v1946, 3
      %v2069 = vrot.slane %v1947, 3
      %v2070 = vsel %vm937, %v2068, %v2069
      %v2071 = vrot.slane %v1948, 3
      %v2072 = vsel %vm937, %v2069, %v2071
      %v2073 = vrot.slane %v1949, 3
      %v2074 = vrot.slane %v1950, 3
      %v2075 = vsel %vm937, %v2073, %v2074
      %v2076 = vrot.slane %v1951, 3
      %v2077 = vsel %vm937, %v2074, %v2076
      %v2078 = vrot.slane %v1952, 3
      %v2079 = vrot.slane %v1953, 3
      %v2080 = vsel %vm937, %v2078, %v2079
      %v2081 = vrot.slane %v1954, 3
      %v2082 = vsel %vm937, %v2079, %v2081
      %v2115 = vadd.f32 %v1867, %v2005
      %v2116 = vadd.f32 %v1868, %v2007
      %v2117 = vadd.f32 %v1869, %v2010
      %v2118 = vadd.f32 %v1870, %v2012
      %v2119 = vadd.f32 %v1871, %v2015
      %v2120 = vadd.f32 %v1872, %v2017
      %v2121 = vadd.f32 %v1873, %v2020
      %v2122 = vadd.f32 %v1874, %v2022
      %v2123 = vadd.f32 %v1875, %v2025
      %v2124 = vadd.f32 %v1876, %v2027
      %v2125 = vadd.f32 %v1877, %v2030
      %v2126 = vadd.f32 %v1878, %v2032
      %v2127 = vadd.f32 %v1879, %v2035
      %v2128 = vadd.f32 %v1880, %v2037
      %v2129 = vadd.f32 %v1881, %v2040
      %v2130 = vadd.f32 %v1882, %v2042
      %v2131 = vadd.f32 %v1883, %v2045
      %v2132 = vadd.f32 %v1884, %v2047
      %v2133 = vadd.f32 %v1885, %v2050
      %v2134 = vadd.f32 %v1886, %v2052
      %v2135 = vadd.f32 %v1887, %v2055
      %v2136 = vadd.f32 %v1888, %v2057
      %v2137 = vadd.f32 %v1889, %v2060
      %v2138 = vadd.f32 %v1890, %v2062
      %v2139 = vadd.f32 %v1891, %v2065
      %v2140 = vadd.f32 %v1892, %v2067
      %v2141 = vadd.f32 %v1893, %v2070
      %v2142 = vadd.f32 %v1894, %v2072
      %v2143 = vadd.f32 %v1895, %v2075
      %v2144 = vadd.f32 %v1896, %v2077
      %v2145 = vadd.f32 %v1897, %v2080
      %v2146 = vadd.f32 %v1898, %v2082
      %s2147 = scalar_lea.vmem %s1, 9
      %v2148 = vld [vmem:[%s2147] sm:$0x1]
      %v2150 = vlaneseq
      %v2151 = vshrl.u32 %v2150, 7
      %v2152 = vsub.s32 0, %v2151
      %v2153 = vrot.slane %v2148, %v2152
      %v2155 = vmul.f32 %v207, %v2153
      %v2156 = vmul.f32 %v208, %v2153
      %v2157 = vmul.f32 %v209, %v2153
      %v2158 = vmul.f32 %v210, %v2153
      %v2159 = vmul.f32 %v211, %v2153
      %v2160 = vmul.f32 %v212, %v2153
      %v2161 = vmul.f32 %v213, %v2153
      %v2162 = vmul.f32 %v214, %v2153
      %v2163 = vmul.f32 %v215, %v2153
      %v2164 = vmul.f32 %v216, %v2153
      %v2165 = vmul.f32 %v217, %v2153
      %v2166 = vmul.f32 %v218, %v2153
      %v2167 = vmul.f32 %v219, %v2153
      %v2168 = vmul.f32 %v220, %v2153
      %v2169 = vmul.f32 %v221, %v2153
      %v2170 = vmul.f32 %v222, %v2153
      %v2171 = vmul.f32 %v223, %v2153
      %v2172 = vmul.f32 %v224, %v2153
      %v2173 = vmul.f32 %v225, %v2153
      %v2174 = vmul.f32 %v226, %v2153
      %v2175 = vmul.f32 %v227, %v2153
      %v2176 = vmul.f32 %v228, %v2153
      %v2177 = vmul.f32 %v229, %v2153
      %v2178 = vmul.f32 %v230, %v2153
      %v2179 = vmul.f32 %v231, %v2153
      %v2180 = vmul.f32 %v232, %v2153
      %v2181 = vmul.f32 %v233, %v2153
      %v2182 = vmul.f32 %v234, %v2153
      %v2183 = vmul.f32 %v235, %v2153
      %v2184 = vmul.f32 %v236, %v2153
      %v2185 = vmul.f32 %v237, %v2153
      %v2186 = vmul.f32 %v238, %v2153
      %v2187 = vmul.f32 %v239, %v2153
      %v2188 = vmul.f32 %v240, %v2153
      %v2189 = vmul.f32 %v241, %v2153
      %v2190 = vmul.f32 %v242, %v2153
      %v2191 = vmul.f32 %v243, %v2153
      %v2192 = vmul.f32 %v244, %v2153
      %v2193 = vmul.f32 %v245, %v2153
      %v2194 = vmul.f32 %v246, %v2153
      %v2195 = vmul.f32 %v247, %v2153
      %v2196 = vmul.f32 %v248, %v2153
      %v2197 = vmul.f32 %v249, %v2153
      %v2198 = vmul.f32 %v250, %v2153
      %v2199 = vmul.f32 %v251, %v2153
      %v2200 = vmul.f32 %v252, %v2153
      %v2201 = vmul.f32 %v253, %v2153
      %v2202 = vmul.f32 %v254, %v2153
      %v2251 = vrot.slane %v2155, 4
      %v2252 = vrot.slane %v2156, 4
      %v2253 = vsel %vm1186, %v2251, %v2252
      %v2254 = vrot.slane %v2157, 4
      %v2255 = vsel %vm1186, %v2252, %v2254
      %v2256 = vrot.slane %v2158, 4
      %v2257 = vrot.slane %v2159, 4
      %v2258 = vsel %vm1186, %v2256, %v2257
      %v2259 = vrot.slane %v2160, 4
      %v2260 = vsel %vm1186, %v2257, %v2259
      %v2261 = vrot.slane %v2161, 4
      %v2262 = vrot.slane %v2162, 4
      %v2263 = vsel %vm1186, %v2261, %v2262
      %v2264 = vrot.slane %v2163, 4
      %v2265 = vsel %vm1186, %v2262, %v2264
      %v2266 = vrot.slane %v2164, 4
      %v2267 = vrot.slane %v2165, 4
      %v2268 = vsel %vm1186, %v2266, %v2267
      %v2269 = vrot.slane %v2166, 4
      %v2270 = vsel %vm1186, %v2267, %v2269
      %v2271 = vrot.slane %v2167, 4
      %v2272 = vrot.slane %v2168, 4
      %v2273 = vsel %vm1186, %v2271, %v2272
      %v2274 = vrot.slane %v2169, 4
      %v2275 = vsel %vm1186, %v2272, %v2274
      %v2276 = vrot.slane %v2170, 4
      %v2277 = vrot.slane %v2171, 4
      %v2278 = vsel %vm1186, %v2276, %v2277
      %v2279 = vrot.slane %v2172, 4
      %v2280 = vsel %vm1186, %v2277, %v2279
      %v2281 = vrot.slane %v2173, 4
      %v2282 = vrot.slane %v2174, 4
      %v2283 = vsel %vm1186, %v2281, %v2282
      %v2284 = vrot.slane %v2175, 4
      %v2285 = vsel %vm1186, %v2282, %v2284
      %v2286 = vrot.slane %v2176, 4
      %v2287 = vrot.slane %v2177, 4
      %v2288 = vsel %vm1186, %v2286, %v2287
      %v2289 = vrot.slane %v2178, 4
      %v2290 = vsel %vm1186, %v2287, %v2289
      %v2291 = vrot.slane %v2179, 4
      %v2292 = vrot.slane %v2180, 4
      %v2293 = vsel %vm1186, %v2291, %v2292
      %v2294 = vrot.slane %v2181, 4
      %v2295 = vsel %vm1186, %v2292, %v2294
      %v2296 = vrot.slane %v2182, 4
      %v2297 = vrot.slane %v2183, 4
      %v2298 = vsel %vm1186, %v2296, %v2297
      %v2299 = vrot.slane %v2184, 4
      %v2300 = vsel %vm1186, %v2297, %v2299
      %v2301 = vrot.slane %v2185, 4
      %v2302 = vrot.slane %v2186, 4
      %v2303 = vsel %vm1186, %v2301, %v2302
      %v2304 = vrot.slane %v2187, 4
      %v2305 = vsel %vm1186, %v2302, %v2304
      %v2306 = vrot.slane %v2188, 4
      %v2307 = vrot.slane %v2189, 4
      %v2308 = vsel %vm1186, %v2306, %v2307
      %v2309 = vrot.slane %v2190, 4
      %v2310 = vsel %vm1186, %v2307, %v2309
      %v2311 = vrot.slane %v2191, 4
      %v2312 = vrot.slane %v2192, 4
      %v2313 = vsel %vm1186, %v2311, %v2312
      %v2314 = vrot.slane %v2193, 4
      %v2315 = vsel %vm1186, %v2312, %v2314
      %v2316 = vrot.slane %v2194, 4
      %v2317 = vrot.slane %v2195, 4
      %v2318 = vsel %vm1186, %v2316, %v2317
      %v2319 = vrot.slane %v2196, 4
      %v2320 = vsel %vm1186, %v2317, %v2319
      %v2321 = vrot.slane %v2197, 4
      %v2322 = vrot.slane %v2198, 4
      %v2323 = vsel %vm1186, %v2321, %v2322
      %v2324 = vrot.slane %v2199, 4
      %v2325 = vsel %vm1186, %v2322, %v2324
      %v2326 = vrot.slane %v2200, 4
      %v2327 = vrot.slane %v2201, 4
      %v2328 = vsel %vm1186, %v2326, %v2327
      %v2329 = vrot.slane %v2202, 4
      %v2330 = vsel %vm1186, %v2327, %v2329
      %v2363 = vadd.f32 %v2115, %v2253
      %v2364 = vadd.f32 %v2116, %v2255
      %v2365 = vadd.f32 %v2117, %v2258
      %v2366 = vadd.f32 %v2118, %v2260
      %v2367 = vadd.f32 %v2119, %v2263
      %v2368 = vadd.f32 %v2120, %v2265
      %v2369 = vadd.f32 %v2121, %v2268
      %v2370 = vadd.f32 %v2122, %v2270
      %v2371 = vadd.f32 %v2123, %v2273
      %v2372 = vadd.f32 %v2124, %v2275
      %v2373 = vadd.f32 %v2125, %v2278
      %v2374 = vadd.f32 %v2126, %v2280
      %v2375 = vadd.f32 %v2127, %v2283
      %v2376 = vadd.f32 %v2128, %v2285
      %v2377 = vadd.f32 %v2129, %v2288
      %v2378 = vadd.f32 %v2130, %v2290
      %v2379 = vadd.f32 %v2131, %v2293
      %v2380 = vadd.f32 %v2132, %v2295
      %v2381 = vadd.f32 %v2133, %v2298
      %v2382 = vadd.f32 %v2134, %v2300
      %v2383 = vadd.f32 %v2135, %v2303
      %v2384 = vadd.f32 %v2136, %v2305
      %v2385 = vadd.f32 %v2137, %v2308
      %v2386 = vadd.f32 %v2138, %v2310
      %v2387 = vadd.f32 %v2139, %v2313
      %v2388 = vadd.f32 %v2140, %v2315
      %v2389 = vadd.f32 %v2141, %v2318
      %v2390 = vadd.f32 %v2142, %v2320
      %v2391 = vadd.f32 %v2143, %v2323
      %v2392 = vadd.f32 %v2144, %v2325
      %v2393 = vadd.f32 %v2145, %v2328
      %v2394 = vadd.f32 %v2146, %v2330
      %s2395 = scalar_lea.vmem %s1, 10
      %v2396 = vld [vmem:[%s2395] sm:$0x1]
      %v2398 = vlaneseq
      %v2399 = vshrl.u32 %v2398, 7
      %v2400 = vsub.s32 0, %v2399
      %v2401 = vrot.slane %v2396, %v2400
      %v2403 = vmul.f32 %v210, %v2401
      %v2404 = vmul.f32 %v211, %v2401
      %v2405 = vmul.f32 %v213, %v2401
      %v2406 = vmul.f32 %v214, %v2401
      %v2407 = vmul.f32 %v216, %v2401
      %v2408 = vmul.f32 %v217, %v2401
      %v2409 = vmul.f32 %v219, %v2401
      %v2410 = vmul.f32 %v220, %v2401
      %v2411 = vmul.f32 %v222, %v2401
      %v2412 = vmul.f32 %v223, %v2401
      %v2413 = vmul.f32 %v225, %v2401
      %v2414 = vmul.f32 %v226, %v2401
      %v2415 = vmul.f32 %v228, %v2401
      %v2416 = vmul.f32 %v229, %v2401
      %v2417 = vmul.f32 %v231, %v2401
      %v2418 = vmul.f32 %v232, %v2401
      %v2419 = vmul.f32 %v234, %v2401
      %v2420 = vmul.f32 %v235, %v2401
      %v2421 = vmul.f32 %v237, %v2401
      %v2422 = vmul.f32 %v238, %v2401
      %v2423 = vmul.f32 %v240, %v2401
      %v2424 = vmul.f32 %v241, %v2401
      %v2425 = vmul.f32 %v243, %v2401
      %v2426 = vmul.f32 %v244, %v2401
      %v2427 = vmul.f32 %v246, %v2401
      %v2428 = vmul.f32 %v247, %v2401
      %v2429 = vmul.f32 %v249, %v2401
      %v2430 = vmul.f32 %v250, %v2401
      %v2431 = vmul.f32 %v252, %v2401
      %v2432 = vmul.f32 %v253, %v2401
      %v2433 = vmul.f32 %v255, %v2401
      %v2434 = vmul.f32 %v256, %v2401
      %v2435 = vadd.f32 %v2363, %v2403
      %v2436 = vadd.f32 %v2364, %v2404
      %v2437 = vadd.f32 %v2365, %v2405
      %v2438 = vadd.f32 %v2366, %v2406
      %v2439 = vadd.f32 %v2367, %v2407
      %v2440 = vadd.f32 %v2368, %v2408
      %v2441 = vadd.f32 %v2369, %v2409
      %v2442 = vadd.f32 %v2370, %v2410
      %v2443 = vadd.f32 %v2371, %v2411
      %v2444 = vadd.f32 %v2372, %v2412
      %v2445 = vadd.f32 %v2373, %v2413
      %v2446 = vadd.f32 %v2374, %v2414
      %v2447 = vadd.f32 %v2375, %v2415
      %v2448 = vadd.f32 %v2376, %v2416
      %v2449 = vadd.f32 %v2377, %v2417
      %v2450 = vadd.f32 %v2378, %v2418
      %v2451 = vadd.f32 %v2379, %v2419
      %v2452 = vadd.f32 %v2380, %v2420
      %v2453 = vadd.f32 %v2381, %v2421
      %v2454 = vadd.f32 %v2382, %v2422
      %v2455 = vadd.f32 %v2383, %v2423
      %v2456 = vadd.f32 %v2384, %v2424
      %v2457 = vadd.f32 %v2385, %v2425
      %v2458 = vadd.f32 %v2386, %v2426
      %v2459 = vadd.f32 %v2387, %v2427
      %v2460 = vadd.f32 %v2388, %v2428
      %v2461 = vadd.f32 %v2389, %v2429
      %v2462 = vadd.f32 %v2390, %v2430
      %v2463 = vadd.f32 %v2391, %v2431
      %v2464 = vadd.f32 %v2392, %v2432
      %v2465 = vadd.f32 %v2393, %v2433
      %v2466 = vadd.f32 %v2394, %v2434
      %s2467 = scalar_lea.vmem %s1, 11
      %v2468 = vld [vmem:[%s2467] sm:$0x1]
      %v2470 = vlaneseq
      %v2471 = vshrl.u32 %v2470, 7
      %v2472 = vsub.s32 0, %v2471
      %v2473 = vrot.slane %v2468, %v2472
      %v2475 = vmul.f32 %v210, %v2473
      %v2476 = vmul.f32 %v211, %v2473
      %v2477 = vmul.f32 %v212, %v2473
      %v2478 = vmul.f32 %v213, %v2473
      %v2479 = vmul.f32 %v214, %v2473
      %v2480 = vmul.f32 %v215, %v2473
      %v2481 = vmul.f32 %v216, %v2473
      %v2482 = vmul.f32 %v217, %v2473
      %v2483 = vmul.f32 %v218, %v2473
      %v2484 = vmul.f32 %v219, %v2473
      %v2485 = vmul.f32 %v220, %v2473
      %v2486 = vmul.f32 %v221, %v2473
      %v2487 = vmul.f32 %v222, %v2473
      %v2488 = vmul.f32 %v223, %v2473
      %v2489 = vmul.f32 %v224, %v2473
      %v2490 = vmul.f32 %v225, %v2473
      %v2491 = vmul.f32 %v226, %v2473
      %v2492 = vmul.f32 %v227, %v2473
      %v2493 = vmul.f32 %v228, %v2473
      %v2494 = vmul.f32 %v229, %v2473
      %v2495 = vmul.f32 %v230, %v2473
      %v2496 = vmul.f32 %v231, %v2473
      %v2497 = vmul.f32 %v232, %v2473
      %v2498 = vmul.f32 %v233, %v2473
      %v2499 = vmul.f32 %v234, %v2473
      %v2500 = vmul.f32 %v235, %v2473
      %v2501 = vmul.f32 %v236, %v2473
      %v2502 = vmul.f32 %v237, %v2473
      %v2503 = vmul.f32 %v238, %v2473
      %v2504 = vmul.f32 %v239, %v2473
      %v2505 = vmul.f32 %v240, %v2473
      %v2506 = vmul.f32 %v241, %v2473
      %v2507 = vmul.f32 %v242, %v2473
      %v2508 = vmul.f32 %v243, %v2473
      %v2509 = vmul.f32 %v244, %v2473
      %v2510 = vmul.f32 %v245, %v2473
      %v2511 = vmul.f32 %v246, %v2473
      %v2512 = vmul.f32 %v247, %v2473
      %v2513 = vmul.f32 %v248, %v2473
      %v2514 = vmul.f32 %v249, %v2473
      %v2515 = vmul.f32 %v250, %v2473
      %v2516 = vmul.f32 %v251, %v2473
      %v2517 = vmul.f32 %v252, %v2473
      %v2518 = vmul.f32 %v253, %v2473
      %v2519 = vmul.f32 %v254, %v2473
      %v2520 = vmul.f32 %v255, %v2473
      %v2521 = vmul.f32 %v256, %v2473
      %v2522 = vmul.f32 %v257, %v2473
      %v2571 = vrot.slane %v2475, 1
      %v2572 = vrot.slane %v2476, 1
      %v2573 = vsel %vm439, %v2571, %v2572
      %v2574 = vrot.slane %v2477, 1
      %v2575 = vsel %vm439, %v2572, %v2574
      %v2576 = vrot.slane %v2478, 1
      %v2577 = vrot.slane %v2479, 1
      %v2578 = vsel %vm439, %v2576, %v2577
      %v2579 = vrot.slane %v2480, 1
      %v2580 = vsel %vm439, %v2577, %v2579
      %v2581 = vrot.slane %v2481, 1
      %v2582 = vrot.slane %v2482, 1
      %v2583 = vsel %vm439, %v2581, %v2582
      %v2584 = vrot.slane %v2483, 1
      %v2585 = vsel %vm439, %v2582, %v2584
      %v2586 = vrot.slane %v2484, 1
      %v2587 = vrot.slane %v2485, 1
      %v2588 = vsel %vm439, %v2586, %v2587
      %v2589 = vrot.slane %v2486, 1
      %v2590 = vsel %vm439, %v2587, %v2589
      %v2591 = vrot.slane %v2487, 1
      %v2592 = vrot.slane %v2488, 1
      %v2593 = vsel %vm439, %v2591, %v2592
      %v2594 = vrot.slane %v2489, 1
      %v2595 = vsel %vm439, %v2592, %v2594
      %v2596 = vrot.slane %v2490, 1
      %v2597 = vrot.slane %v2491, 1
      %v2598 = vsel %vm439, %v2596, %v2597
      %v2599 = vrot.slane %v2492, 1
      %v2600 = vsel %vm439, %v2597, %v2599
      %v2601 = vrot.slane %v2493, 1
      %v2602 = vrot.slane %v2494, 1
      %v2603 = vsel %vm439, %v2601, %v2602
      %v2604 = vrot.slane %v2495, 1
      %v2605 = vsel %vm439, %v2602, %v2604
      %v2606 = vrot.slane %v2496, 1
      %v2607 = vrot.slane %v2497, 1
      %v2608 = vsel %vm439, %v2606, %v2607
      %v2609 = vrot.slane %v2498, 1
      %v2610 = vsel %vm439, %v2607, %v2609
      %v2611 = vrot.slane %v2499, 1
      %v2612 = vrot.slane %v2500, 1
      %v2613 = vsel %vm439, %v2611, %v2612
      %v2614 = vrot.slane %v2501, 1
      %v2615 = vsel %vm439, %v2612, %v2614
      %v2616 = vrot.slane %v2502, 1
      %v2617 = vrot.slane %v2503, 1
      %v2618 = vsel %vm439, %v2616, %v2617
      %v2619 = vrot.slane %v2504, 1
      %v2620 = vsel %vm439, %v2617, %v2619
      %v2621 = vrot.slane %v2505, 1
      %v2622 = vrot.slane %v2506, 1
      %v2623 = vsel %vm439, %v2621, %v2622
      %v2624 = vrot.slane %v2507, 1
      %v2625 = vsel %vm439, %v2622, %v2624
      %v2626 = vrot.slane %v2508, 1
      %v2627 = vrot.slane %v2509, 1
      %v2628 = vsel %vm439, %v2626, %v2627
      %v2629 = vrot.slane %v2510, 1
      %v2630 = vsel %vm439, %v2627, %v2629
      %v2631 = vrot.slane %v2511, 1
      %v2632 = vrot.slane %v2512, 1
      %v2633 = vsel %vm439, %v2631, %v2632
      %v2634 = vrot.slane %v2513, 1
      %v2635 = vsel %vm439, %v2632, %v2634
      %v2636 = vrot.slane %v2514, 1
      %v2637 = vrot.slane %v2515, 1
      %v2638 = vsel %vm439, %v2636, %v2637
      %v2639 = vrot.slane %v2516, 1
      %v2640 = vsel %vm439, %v2637, %v2639
      %v2641 = vrot.slane %v2517, 1
      %v2642 = vrot.slane %v2518, 1
      %v2643 = vsel %vm439, %v2641, %v2642
      %v2644 = vrot.slane %v2519, 1
      %v2645 = vsel %vm439, %v2642, %v2644
      %v2646 = vrot.slane %v2520, 1
      %v2647 = vrot.slane %v2521, 1
      %v2648 = vsel %vm439, %v2646, %v2647
      %v2649 = vrot.slane %v2522, 1
      %v2650 = vsel %vm439, %v2647, %v2649
      %v2683 = vadd.f32 %v2435, %v2573
      %v2684 = vadd.f32 %v2436, %v2575
      %v2685 = vadd.f32 %v2437, %v2578
      %v2686 = vadd.f32 %v2438, %v2580
      %v2687 = vadd.f32 %v2439, %v2583
      %v2688 = vadd.f32 %v2440, %v2585
      %v2689 = vadd.f32 %v2441, %v2588
      %v2690 = vadd.f32 %v2442, %v2590
      %v2691 = vadd.f32 %v2443, %v2593
      %v2692 = vadd.f32 %v2444, %v2595
      %v2693 = vadd.f32 %v2445, %v2598
      %v2694 = vadd.f32 %v2446, %v2600
      %v2695 = vadd.f32 %v2447, %v2603
      %v2696 = vadd.f32 %v2448, %v2605
      %v2697 = vadd.f32 %v2449, %v2608
      %v2698 = vadd.f32 %v2450, %v2610
      %v2699 = vadd.f32 %v2451, %v2613
      %v2700 = vadd.f32 %v2452, %v2615
      %v2701 = vadd.f32 %v2453, %v2618
      %v2702 = vadd.f32 %v2454, %v2620
      %v2703 = vadd.f32 %v2455, %v2623
      %v2704 = vadd.f32 %v2456, %v2625
      %v2705 = vadd.f32 %v2457, %v2628
      %v2706 = vadd.f32 %v2458, %v2630
      %v2707 = vadd.f32 %v2459, %v2633
      %v2708 = vadd.f32 %v2460, %v2635
      %v2709 = vadd.f32 %v2461, %v2638
      %v2710 = vadd.f32 %v2462, %v2640
      %v2711 = vadd.f32 %v2463, %v2643
      %v2712 = vadd.f32 %v2464, %v2645
      %v2713 = vadd.f32 %v2465, %v2648
      %v2714 = vadd.f32 %v2466, %v2650
      %s2715 = scalar_lea.vmem %s1, 12
      %v2716 = vld [vmem:[%s2715] sm:$0x1]
      %v2718 = vlaneseq
      %v2719 = vshrl.u32 %v2718, 7
      %v2720 = vsub.s32 0, %v2719
      %v2721 = vrot.slane %v2716, %v2720
      %v2723 = vmul.f32 %v210, %v2721
      %v2724 = vmul.f32 %v211, %v2721
      %v2725 = vmul.f32 %v212, %v2721
      %v2726 = vmul.f32 %v213, %v2721
      %v2727 = vmul.f32 %v214, %v2721
      %v2728 = vmul.f32 %v215, %v2721
      %v2729 = vmul.f32 %v216, %v2721
      %v2730 = vmul.f32 %v217, %v2721
      %v2731 = vmul.f32 %v218, %v2721
      %v2732 = vmul.f32 %v219, %v2721
      %v2733 = vmul.f32 %v220, %v2721
      %v2734 = vmul.f32 %v221, %v2721
      %v2735 = vmul.f32 %v222, %v2721
      %v2736 = vmul.f32 %v223, %v2721
      %v2737 = vmul.f32 %v224, %v2721
      %v2738 = vmul.f32 %v225, %v2721
      %v2739 = vmul.f32 %v226, %v2721
      %v2740 = vmul.f32 %v227, %v2721
      %v2741 = vmul.f32 %v228, %v2721
      %v2742 = vmul.f32 %v229, %v2721
      %v2743 = vmul.f32 %v230, %v2721
      %v2744 = vmul.f32 %v231, %v2721
      %v2745 = vmul.f32 %v232, %v2721
      %v2746 = vmul.f32 %v233, %v2721
      %v2747 = vmul.f32 %v234, %v2721
      %v2748 = vmul.f32 %v235, %v2721
      %v2749 = vmul.f32 %v236, %v2721
      %v2750 = vmul.f32 %v237, %v2721
      %v2751 = vmul.f32 %v238, %v2721
      %v2752 = vmul.f32 %v239, %v2721
      %v2753 = vmul.f32 %v240, %v2721
      %v2754 = vmul.f32 %v241, %v2721
      %v2755 = vmul.f32 %v242, %v2721
      %v2756 = vmul.f32 %v243, %v2721
      %v2757 = vmul.f32 %v244, %v2721
      %v2758 = vmul.f32 %v245, %v2721
      %v2759 = vmul.f32 %v246, %v2721
      %v2760 = vmul.f32 %v247, %v2721
      %v2761 = vmul.f32 %v248, %v2721
      %v2762 = vmul.f32 %v249, %v2721
      %v2763 = vmul.f32 %v250, %v2721
      %v2764 = vmul.f32 %v251, %v2721
      %v2765 = vmul.f32 %v252, %v2721
      %v2766 = vmul.f32 %v253, %v2721
      %v2767 = vmul.f32 %v254, %v2721
      %v2768 = vmul.f32 %v255, %v2721
      %v2769 = vmul.f32 %v256, %v2721
      %v2770 = vmul.f32 %v257, %v2721
      %v2819 = vrot.slane %v2723, 2
      %v2820 = vrot.slane %v2724, 2
      %v2821 = vsel %vm688, %v2819, %v2820
      %v2822 = vrot.slane %v2725, 2
      %v2823 = vsel %vm688, %v2820, %v2822
      %v2824 = vrot.slane %v2726, 2
      %v2825 = vrot.slane %v2727, 2
      %v2826 = vsel %vm688, %v2824, %v2825
      %v2827 = vrot.slane %v2728, 2
      %v2828 = vsel %vm688, %v2825, %v2827
      %v2829 = vrot.slane %v2729, 2
      %v2830 = vrot.slane %v2730, 2
      %v2831 = vsel %vm688, %v2829, %v2830
      %v2832 = vrot.slane %v2731, 2
      %v2833 = vsel %vm688, %v2830, %v2832
      %v2834 = vrot.slane %v2732, 2
      %v2835 = vrot.slane %v2733, 2
      %v2836 = vsel %vm688, %v2834, %v2835
      %v2837 = vrot.slane %v2734, 2
      %v2838 = vsel %vm688, %v2835, %v2837
      %v2839 = vrot.slane %v2735, 2
      %v2840 = vrot.slane %v2736, 2
      %v2841 = vsel %vm688, %v2839, %v2840
      %v2842 = vrot.slane %v2737, 2
      %v2843 = vsel %vm688, %v2840, %v2842
      %v2844 = vrot.slane %v2738, 2
      %v2845 = vrot.slane %v2739, 2
      %v2846 = vsel %vm688, %v2844, %v2845
      %v2847 = vrot.slane %v2740, 2
      %v2848 = vsel %vm688, %v2845, %v2847
      %v2849 = vrot.slane %v2741, 2
      %v2850 = vrot.slane %v2742, 2
      %v2851 = vsel %vm688, %v2849, %v2850
      %v2852 = vrot.slane %v2743, 2
      %v2853 = vsel %vm688, %v2850, %v2852
      %v2854 = vrot.slane %v2744, 2
      %v2855 = vrot.slane %v2745, 2
      %v2856 = vsel %vm688, %v2854, %v2855
      %v2857 = vrot.slane %v2746, 2
      %v2858 = vsel %vm688, %v2855, %v2857
      %v2859 = vrot.slane %v2747, 2
      %v2860 = vrot.slane %v2748, 2
      %v2861 = vsel %vm688, %v2859, %v2860
      %v2862 = vrot.slane %v2749, 2
      %v2863 = vsel %vm688, %v2860, %v2862
      %v2864 = vrot.slane %v2750, 2
      %v2865 = vrot.slane %v2751, 2
      %v2866 = vsel %vm688, %v2864, %v2865
      %v2867 = vrot.slane %v2752, 2
      %v2868 = vsel %vm688, %v2865, %v2867
      %v2869 = vrot.slane %v2753, 2
      %v2870 = vrot.slane %v2754, 2
      %v2871 = vsel %vm688, %v2869, %v2870
      %v2872 = vrot.slane %v2755, 2
      %v2873 = vsel %vm688, %v2870, %v2872
      %v2874 = vrot.slane %v2756, 2
      %v2875 = vrot.slane %v2757, 2
      %v2876 = vsel %vm688, %v2874, %v2875
      %v2877 = vrot.slane %v2758, 2
      %v2878 = vsel %vm688, %v2875, %v2877
      %v2879 = vrot.slane %v2759, 2
      %v2880 = vrot.slane %v2760, 2
      %v2881 = vsel %vm688, %v2879, %v2880
      %v2882 = vrot.slane %v2761, 2
      %v2883 = vsel %vm688, %v2880, %v2882
      %v2884 = vrot.slane %v2762, 2
      %v2885 = vrot.slane %v2763, 2
      %v2886 = vsel %vm688, %v2884, %v2885
      %v2887 = vrot.slane %v2764, 2
      %v2888 = vsel %vm688, %v2885, %v2887
      %v2889 = vrot.slane %v2765, 2
      %v2890 = vrot.slane %v2766, 2
      %v2891 = vsel %vm688, %v2889, %v2890
      %v2892 = vrot.slane %v2767, 2
      %v2893 = vsel %vm688, %v2890, %v2892
      %v2894 = vrot.slane %v2768, 2
      %v2895 = vrot.slane %v2769, 2
      %v2896 = vsel %vm688, %v2894, %v2895
      %v2897 = vrot.slane %v2770, 2
      %v2898 = vsel %vm688, %v2895, %v2897
      %v2931 = vadd.f32 %v2683, %v2821
      %v2932 = vadd.f32 %v2684, %v2823
      %v2933 = vadd.f32 %v2685, %v2826
      %v2934 = vadd.f32 %v2686, %v2828
      %v2935 = vadd.f32 %v2687, %v2831
      %v2936 = vadd.f32 %v2688, %v2833
      %v2937 = vadd.f32 %v2689, %v2836
      %v2938 = vadd.f32 %v2690, %v2838
      %v2939 = vadd.f32 %v2691, %v2841
      %v2940 = vadd.f32 %v2692, %v2843
      %v2941 = vadd.f32 %v2693, %v2846
      %v2942 = vadd.f32 %v2694, %v2848
      %v2943 = vadd.f32 %v2695, %v2851
      %v2944 = vadd.f32 %v2696, %v2853
      %v2945 = vadd.f32 %v2697, %v2856
      %v2946 = vadd.f32 %v2698, %v2858
      %v2947 = vadd.f32 %v2699, %v2861
      %v2948 = vadd.f32 %v2700, %v2863
      %v2949 = vadd.f32 %v2701, %v2866
      %v2950 = vadd.f32 %v2702, %v2868
      %v2951 = vadd.f32 %v2703, %v2871
      %v2952 = vadd.f32 %v2704, %v2873
      %v2953 = vadd.f32 %v2705, %v2876
      %v2954 = vadd.f32 %v2706, %v2878
      %v2955 = vadd.f32 %v2707, %v2881
      %v2956 = vadd.f32 %v2708, %v2883
      %v2957 = vadd.f32 %v2709, %v2886
      %v2958 = vadd.f32 %v2710, %v2888
      %v2959 = vadd.f32 %v2711, %v2891
      %v2960 = vadd.f32 %v2712, %v2893
      %v2961 = vadd.f32 %v2713, %v2896
      %v2962 = vadd.f32 %v2714, %v2898
      %s2963 = scalar_lea.vmem %s1, 13
      %v2964 = vld [vmem:[%s2963] sm:$0x1]
      %v2966 = vlaneseq
      %v2967 = vshrl.u32 %v2966, 7
      %v2968 = vsub.s32 0, %v2967
      %v2969 = vrot.slane %v2964, %v2968
      %v2971 = vmul.f32 %v210, %v2969
      %v2972 = vmul.f32 %v211, %v2969
      %v2973 = vmul.f32 %v212, %v2969
      %v2974 = vmul.f32 %v213, %v2969
      %v2975 = vmul.f32 %v214, %v2969
      %v2976 = vmul.f32 %v215, %v2969
      %v2977 = vmul.f32 %v216, %v2969
      %v2978 = vmul.f32 %v217, %v2969
      %v2979 = vmul.f32 %v218, %v2969
      %v2980 = vmul.f32 %v219, %v2969
      %v2981 = vmul.f32 %v220, %v2969
      %v2982 = vmul.f32 %v221, %v2969
      %v2983 = vmul.f32 %v222, %v2969
      %v2984 = vmul.f32 %v223, %v2969
      %v2985 = vmul.f32 %v224, %v2969
      %v2986 = vmul.f32 %v225, %v2969
      %v2987 = vmul.f32 %v226, %v2969
      %v2988 = vmul.f32 %v227, %v2969
      %v2989 = vmul.f32 %v228, %v2969
      %v2990 = vmul.f32 %v229, %v2969
      %v2991 = vmul.f32 %v230, %v2969
      %v2992 = vmul.f32 %v231, %v2969
      %v2993 = vmul.f32 %v232, %v2969
      %v2994 = vmul.f32 %v233, %v2969
      %v2995 = vmul.f32 %v234, %v2969
      %v2996 = vmul.f32 %v235, %v2969
      %v2997 = vmul.f32 %v236, %v2969
      %v2998 = vmul.f32 %v237, %v2969
      %v2999 = vmul.f32 %v238, %v2969
      %v3000 = vmul.f32 %v239, %v2969
      %v3001 = vmul.f32 %v240, %v2969
      %v3002 = vmul.f32 %v241, %v2969
      %v3003 = vmul.f32 %v242, %v2969
      %v3004 = vmul.f32 %v243, %v2969
      %v3005 = vmul.f32 %v244, %v2969
      %v3006 = vmul.f32 %v245, %v2969
      %v3007 = vmul.f32 %v246, %v2969
      %v3008 = vmul.f32 %v247, %v2969
      %v3009 = vmul.f32 %v248, %v2969
      %v3010 = vmul.f32 %v249, %v2969
      %v3011 = vmul.f32 %v250, %v2969
      %v3012 = vmul.f32 %v251, %v2969
      %v3013 = vmul.f32 %v252, %v2969
      %v3014 = vmul.f32 %v253, %v2969
      %v3015 = vmul.f32 %v254, %v2969
      %v3016 = vmul.f32 %v255, %v2969
      %v3017 = vmul.f32 %v256, %v2969
      %v3018 = vmul.f32 %v257, %v2969
      %v3067 = vrot.slane %v2971, 3
      %v3068 = vrot.slane %v2972, 3
      %v3069 = vsel %vm937, %v3067, %v3068
      %v3070 = vrot.slane %v2973, 3
      %v3071 = vsel %vm937, %v3068, %v3070
      %v3072 = vrot.slane %v2974, 3
      %v3073 = vrot.slane %v2975, 3
      %v3074 = vsel %vm937, %v3072, %v3073
      %v3075 = vrot.slane %v2976, 3
      %v3076 = vsel %vm937, %v3073, %v3075
      %v3077 = vrot.slane %v2977, 3
      %v3078 = vrot.slane %v2978, 3
      %v3079 = vsel %vm937, %v3077, %v3078
      %v3080 = vrot.slane %v2979, 3
      %v3081 = vsel %vm937, %v3078, %v3080
      %v3082 = vrot.slane %v2980, 3
      %v3083 = vrot.slane %v2981, 3
      %v3084 = vsel %vm937, %v3082, %v3083
      %v3085 = vrot.slane %v2982, 3
      %v3086 = vsel %vm937, %v3083, %v3085
      %v3087 = vrot.slane %v2983, 3
      %v3088 = vrot.slane %v2984, 3
      %v3089 = vsel %vm937, %v3087, %v3088
      %v3090 = vrot.slane %v2985, 3
      %v3091 = vsel %vm937, %v3088, %v3090
      %v3092 = vrot.slane %v2986, 3
      %v3093 = vrot.slane %v2987, 3
      %v3094 = vsel %vm937, %v3092, %v3093
      %v3095 = vrot.slane %v2988, 3
      %v3096 = vsel %vm937, %v3093, %v3095
      %v3097 = vrot.slane %v2989, 3
      %v3098 = vrot.slane %v2990, 3
      %v3099 = vsel %vm937, %v3097, %v3098
      %v3100 = vrot.slane %v2991, 3
      %v3101 = vsel %vm937, %v3098, %v3100
      %v3102 = vrot.slane %v2992, 3
      %v3103 = vrot.slane %v2993, 3
      %v3104 = vsel %vm937, %v3102, %v3103
      %v3105 = vrot.slane %v2994, 3
      %v3106 = vsel %vm937, %v3103, %v3105
      %v3107 = vrot.slane %v2995, 3
      %v3108 = vrot.slane %v2996, 3
      %v3109 = vsel %vm937, %v3107, %v3108
      %v3110 = vrot.slane %v2997, 3
      %v3111 = vsel %vm937, %v3108, %v3110
      %v3112 = vrot.slane %v2998, 3
      %v3113 = vrot.slane %v2999, 3
      %v3114 = vsel %vm937, %v3112, %v3113
      %v3115 = vrot.slane %v3000, 3
      %v3116 = vsel %vm937, %v3113, %v3115
      %v3117 = vrot.slane %v3001, 3
      %v3118 = vrot.slane %v3002, 3
      %v3119 = vsel %vm937, %v3117, %v3118
      %v3120 = vrot.slane %v3003, 3
      %v3121 = vsel %vm937, %v3118, %v3120
      %v3122 = vrot.slane %v3004, 3
      %v3123 = vrot.slane %v3005, 3
      %v3124 = vsel %vm937, %v3122, %v3123
      %v3125 = vrot.slane %v3006, 3
      %v3126 = vsel %vm937, %v3123, %v3125
      %v3127 = vrot.slane %v3007, 3
      %v3128 = vrot.slane %v3008, 3
      %v3129 = vsel %vm937, %v3127, %v3128
      %v3130 = vrot.slane %v3009, 3
      %v3131 = vsel %vm937, %v3128, %v3130
      %v3132 = vrot.slane %v3010, 3
      %v3133 = vrot.slane %v3011, 3
      %v3134 = vsel %vm937, %v3132, %v3133
      %v3135 = vrot.slane %v3012, 3
      %v3136 = vsel %vm937, %v3133, %v3135
      %v3137 = vrot.slane %v3013, 3
      %v3138 = vrot.slane %v3014, 3
      %v3139 = vsel %vm937, %v3137, %v3138
      %v3140 = vrot.slane %v3015, 3
      %v3141 = vsel %vm937, %v3138, %v3140
      %v3142 = vrot.slane %v3016, 3
      %v3143 = vrot.slane %v3017, 3
      %v3144 = vsel %vm937, %v3142, %v3143
      %v3145 = vrot.slane %v3018, 3
      %v3146 = vsel %vm937, %v3143, %v3145
      %v3179 = vadd.f32 %v2931, %v3069
      %v3180 = vadd.f32 %v2932, %v3071
      %v3181 = vadd.f32 %v2933, %v3074
      %v3182 = vadd.f32 %v2934, %v3076
      %v3183 = vadd.f32 %v2935, %v3079
      %v3184 = vadd.f32 %v2936, %v3081
      %v3185 = vadd.f32 %v2937, %v3084
      %v3186 = vadd.f32 %v2938, %v3086
      %v3187 = vadd.f32 %v2939, %v3089
      %v3188 = vadd.f32 %v2940, %v3091
      %v3189 = vadd.f32 %v2941, %v3094
      %v3190 = vadd.f32 %v2942, %v3096
      %v3191 = vadd.f32 %v2943, %v3099
      %v3192 = vadd.f32 %v2944, %v3101
      %v3193 = vadd.f32 %v2945, %v3104
      %v3194 = vadd.f32 %v2946, %v3106
      %v3195 = vadd.f32 %v2947, %v3109
      %v3196 = vadd.f32 %v2948, %v3111
      %v3197 = vadd.f32 %v2949, %v3114
      %v3198 = vadd.f32 %v2950, %v3116
      %v3199 = vadd.f32 %v2951, %v3119
      %v3200 = vadd.f32 %v2952, %v3121
      %v3201 = vadd.f32 %v2953, %v3124
      %v3202 = vadd.f32 %v2954, %v3126
      %v3203 = vadd.f32 %v2955, %v3129
      %v3204 = vadd.f32 %v2956, %v3131
      %v3205 = vadd.f32 %v2957, %v3134
      %v3206 = vadd.f32 %v2958, %v3136
      %v3207 = vadd.f32 %v2959, %v3139
      %v3208 = vadd.f32 %v2960, %v3141
      %v3209 = vadd.f32 %v2961, %v3144
      %v3210 = vadd.f32 %v2962, %v3146
      %s3211 = scalar_lea.vmem %s1, 14
      %v3212 = vld [vmem:[%s3211] sm:$0x1]
      %v3214 = vlaneseq
      %v3215 = vshrl.u32 %v3214, 7
      %v3216 = vsub.s32 0, %v3215
      %v3217 = vrot.slane %v3212, %v3216
      %v3219 = vmul.f32 %v210, %v3217
      %v3220 = vmul.f32 %v211, %v3217
      %v3221 = vmul.f32 %v212, %v3217
      %v3222 = vmul.f32 %v213, %v3217
      %v3223 = vmul.f32 %v214, %v3217
      %v3224 = vmul.f32 %v215, %v3217
      %v3225 = vmul.f32 %v216, %v3217
      %v3226 = vmul.f32 %v217, %v3217
      %v3227 = vmul.f32 %v218, %v3217
      %v3228 = vmul.f32 %v219, %v3217
      %v3229 = vmul.f32 %v220, %v3217
      %v3230 = vmul.f32 %v221, %v3217
      %v3231 = vmul.f32 %v222, %v3217
      %v3232 = vmul.f32 %v223, %v3217
      %v3233 = vmul.f32 %v224, %v3217
      %v3234 = vmul.f32 %v225, %v3217
      %v3235 = vmul.f32 %v226, %v3217
      %v3236 = vmul.f32 %v227, %v3217
      %v3237 = vmul.f32 %v228, %v3217
      %v3238 = vmul.f32 %v229, %v3217
      %v3239 = vmul.f32 %v230, %v3217
      %v3240 = vmul.f32 %v231, %v3217
      %v3241 = vmul.f32 %v232, %v3217
      %v3242 = vmul.f32 %v233, %v3217
      %v3243 = vmul.f32 %v234, %v3217
      %v3244 = vmul.f32 %v235, %v3217
      %v3245 = vmul.f32 %v236, %v3217
      %v3246 = vmul.f32 %v237, %v3217
      %v3247 = vmul.f32 %v238, %v3217
      %v3248 = vmul.f32 %v239, %v3217
      %v3249 = vmul.f32 %v240, %v3217
      %v3250 = vmul.f32 %v241, %v3217
      %v3251 = vmul.f32 %v242, %v3217
      %v3252 = vmul.f32 %v243, %v3217
      %v3253 = vmul.f32 %v244, %v3217
      %v3254 = vmul.f32 %v245, %v3217
      %v3255 = vmul.f32 %v246, %v3217
      %v3256 = vmul.f32 %v247, %v3217
      %v3257 = vmul.f32 %v248, %v3217
      %v3258 = vmul.f32 %v249, %v3217
      %v3259 = vmul.f32 %v250, %v3217
      %v3260 = vmul.f32 %v251, %v3217
      %v3261 = vmul.f32 %v252, %v3217
      %v3262 = vmul.f32 %v253, %v3217
      %v3263 = vmul.f32 %v254, %v3217
      %v3264 = vmul.f32 %v255, %v3217
      %v3265 = vmul.f32 %v256, %v3217
      %v3266 = vmul.f32 %v257, %v3217
      %v3315 = vrot.slane %v3219, 4
      %v3316 = vrot.slane %v3220, 4
      %v3317 = vsel %vm1186, %v3315, %v3316
      %v3318 = vrot.slane %v3221, 4
      %v3319 = vsel %vm1186, %v3316, %v3318
      %v3320 = vrot.slane %v3222, 4
      %v3321 = vrot.slane %v3223, 4
      %v3322 = vsel %vm1186, %v3320, %v3321
      %v3323 = vrot.slane %v3224, 4
      %v3324 = vsel %vm1186, %v3321, %v3323
      %v3325 = vrot.slane %v3225, 4
      %v3326 = vrot.slane %v3226, 4
      %v3327 = vsel %vm1186, %v3325, %v3326
      %v3328 = vrot.slane %v3227, 4
      %v3329 = vsel %vm1186, %v3326, %v3328
      %v3330 = vrot.slane %v3228, 4
      %v3331 = vrot.slane %v3229, 4
      %v3332 = vsel %vm1186, %v3330, %v3331
      %v3333 = vrot.slane %v3230, 4
      %v3334 = vsel %vm1186, %v3331, %v3333
      %v3335 = vrot.slane %v3231, 4
      %v3336 = vrot.slane %v3232, 4
      %v3337 = vsel %vm1186, %v3335, %v3336
      %v3338 = vrot.slane %v3233, 4
      %v3339 = vsel %vm1186, %v3336, %v3338
      %v3340 = vrot.slane %v3234, 4
      %v3341 = vrot.slane %v3235, 4
      %v3342 = vsel %vm1186, %v3340, %v3341
      %v3343 = vrot.slane %v3236, 4
      %v3344 = vsel %vm1186, %v3341, %v3343
      %v3345 = vrot.slane %v3237, 4
      %v3346 = vrot.slane %v3238, 4
      %v3347 = vsel %vm1186, %v3345, %v3346
      %v3348 = vrot.slane %v3239, 4
      %v3349 = vsel %vm1186, %v3346, %v3348
      %v3350 = vrot.slane %v3240, 4
      %v3351 = vrot.slane %v3241, 4
      %v3352 = vsel %vm1186, %v3350, %v3351
      %v3353 = vrot.slane %v3242, 4
      %v3354 = vsel %vm1186, %v3351, %v3353
      %v3355 = vrot.slane %v3243, 4
      %v3356 = vrot.slane %v3244, 4
      %v3357 = vsel %vm1186, %v3355, %v3356
      %v3358 = vrot.slane %v3245, 4
      %v3359 = vsel %vm1186, %v3356, %v3358
      %v3360 = vrot.slane %v3246, 4
      %v3361 = vrot.slane %v3247, 4
      %v3362 = vsel %vm1186, %v3360, %v3361
      %v3363 = vrot.slane %v3248, 4
      %v3364 = vsel %vm1186, %v3361, %v3363
      %v3365 = vrot.slane %v3249, 4
      %v3366 = vrot.slane %v3250, 4
      %v3367 = vsel %vm1186, %v3365, %v3366
      %v3368 = vrot.slane %v3251, 4
      %v3369 = vsel %vm1186, %v3366, %v3368
      %v3370 = vrot.slane %v3252, 4
      %v3371 = vrot.slane %v3253, 4
      %v3372 = vsel %vm1186, %v3370, %v3371
      %v3373 = vrot.slane %v3254, 4
      %v3374 = vsel %vm1186, %v3371, %v3373
      %v3375 = vrot.slane %v3255, 4
      %v3376 = vrot.slane %v3256, 4
      %v3377 = vsel %vm1186, %v3375, %v3376
      %v3378 = vrot.slane %v3257, 4
      %v3379 = vsel %vm1186, %v3376, %v3378
      %v3380 = vrot.slane %v3258, 4
      %v3381 = vrot.slane %v3259, 4
      %v3382 = vsel %vm1186, %v3380, %v3381
      %v3383 = vrot.slane %v3260, 4
      %v3384 = vsel %vm1186, %v3381, %v3383
      %v3385 = vrot.slane %v3261, 4
      %v3386 = vrot.slane %v3262, 4
      %v3387 = vsel %vm1186, %v3385, %v3386
      %v3388 = vrot.slane %v3263, 4
      %v3389 = vsel %vm1186, %v3386, %v3388
      %v3390 = vrot.slane %v3264, 4
      %v3391 = vrot.slane %v3265, 4
      %v3392 = vsel %vm1186, %v3390, %v3391
      %v3393 = vrot.slane %v3266, 4
      %v3394 = vsel %vm1186, %v3391, %v3393
      %v3427 = vadd.f32 %v3179, %v3317
      %v3428 = vadd.f32 %v3180, %v3319
      %v3429 = vadd.f32 %v3181, %v3322
      %v3430 = vadd.f32 %v3182, %v3324
      %v3431 = vadd.f32 %v3183, %v3327
      %v3432 = vadd.f32 %v3184, %v3329
      %v3433 = vadd.f32 %v3185, %v3332
      %v3434 = vadd.f32 %v3186, %v3334
      %v3435 = vadd.f32 %v3187, %v3337
      %v3436 = vadd.f32 %v3188, %v3339
      %v3437 = vadd.f32 %v3189, %v3342
      %v3438 = vadd.f32 %v3190, %v3344
      %v3439 = vadd.f32 %v3191, %v3347
      %v3440 = vadd.f32 %v3192, %v3349
      %v3441 = vadd.f32 %v3193, %v3352
      %v3442 = vadd.f32 %v3194, %v3354
      %v3443 = vadd.f32 %v3195, %v3357
      %v3444 = vadd.f32 %v3196, %v3359
      %v3445 = vadd.f32 %v3197, %v3362
      %v3446 = vadd.f32 %v3198, %v3364
      %v3447 = vadd.f32 %v3199, %v3367
      %v3448 = vadd.f32 %v3200, %v3369
      %v3449 = vadd.f32 %v3201, %v3372
      %v3450 = vadd.f32 %v3202, %v3374
      %v3451 = vadd.f32 %v3203, %v3377
      %v3452 = vadd.f32 %v3204, %v3379
      %v3453 = vadd.f32 %v3205, %v3382
      %v3454 = vadd.f32 %v3206, %v3384
      %v3455 = vadd.f32 %v3207, %v3387
      %v3456 = vadd.f32 %v3208, %v3389
      %v3457 = vadd.f32 %v3209, %v3392
      %v3458 = vadd.f32 %v3210, %v3394
      %s3459 = scalar_lea.vmem %s1, 15
      %v3460 = vld [vmem:[%s3459] sm:$0x1]
      %v3462 = vlaneseq
      %v3463 = vshrl.u32 %v3462, 7
      %v3464 = vsub.s32 0, %v3463
      %v3465 = vrot.slane %v3460, %v3464
      %v3467 = vmul.f32 %v213, %v3465
      %v3468 = vmul.f32 %v214, %v3465
      %v3469 = vmul.f32 %v216, %v3465
      %v3470 = vmul.f32 %v217, %v3465
      %v3471 = vmul.f32 %v219, %v3465
      %v3472 = vmul.f32 %v220, %v3465
      %v3473 = vmul.f32 %v222, %v3465
      %v3474 = vmul.f32 %v223, %v3465
      %v3475 = vmul.f32 %v225, %v3465
      %v3476 = vmul.f32 %v226, %v3465
      %v3477 = vmul.f32 %v228, %v3465
      %v3478 = vmul.f32 %v229, %v3465
      %v3479 = vmul.f32 %v231, %v3465
      %v3480 = vmul.f32 %v232, %v3465
      %v3481 = vmul.f32 %v234, %v3465
      %v3482 = vmul.f32 %v235, %v3465
      %v3483 = vmul.f32 %v237, %v3465
      %v3484 = vmul.f32 %v238, %v3465
      %v3485 = vmul.f32 %v240, %v3465
      %v3486 = vmul.f32 %v241, %v3465
      %v3487 = vmul.f32 %v243, %v3465
      %v3488 = vmul.f32 %v244, %v3465
      %v3489 = vmul.f32 %v246, %v3465
      %v3490 = vmul.f32 %v247, %v3465
      %v3491 = vmul.f32 %v249, %v3465
      %v3492 = vmul.f32 %v250, %v3465
      %v3493 = vmul.f32 %v252, %v3465
      %v3494 = vmul.f32 %v253, %v3465
      %v3495 = vmul.f32 %v255, %v3465
      %v3496 = vmul.f32 %v256, %v3465
      %v3497 = vmul.f32 %v258, %v3465
      %v3498 = vmul.f32 %v259, %v3465
      %v3499 = vadd.f32 %v3427, %v3467
      %v3500 = vadd.f32 %v3428, %v3468
      %v3501 = vadd.f32 %v3429, %v3469
      %v3502 = vadd.f32 %v3430, %v3470
      %v3503 = vadd.f32 %v3431, %v3471
      %v3504 = vadd.f32 %v3432, %v3472
      %v3505 = vadd.f32 %v3433, %v3473
      %v3506 = vadd.f32 %v3434, %v3474
      %v3507 = vadd.f32 %v3435, %v3475
      %v3508 = vadd.f32 %v3436, %v3476
      %v3509 = vadd.f32 %v3437, %v3477
      %v3510 = vadd.f32 %v3438, %v3478
      %v3511 = vadd.f32 %v3439, %v3479
      %v3512 = vadd.f32 %v3440, %v3480
      %v3513 = vadd.f32 %v3441, %v3481
      %v3514 = vadd.f32 %v3442, %v3482
      %v3515 = vadd.f32 %v3443, %v3483
      %v3516 = vadd.f32 %v3444, %v3484
      %v3517 = vadd.f32 %v3445, %v3485
      %v3518 = vadd.f32 %v3446, %v3486
      %v3519 = vadd.f32 %v3447, %v3487
      %v3520 = vadd.f32 %v3448, %v3488
      %v3521 = vadd.f32 %v3449, %v3489
      %v3522 = vadd.f32 %v3450, %v3490
      %v3523 = vadd.f32 %v3451, %v3491
      %v3524 = vadd.f32 %v3452, %v3492
      %v3525 = vadd.f32 %v3453, %v3493
      %v3526 = vadd.f32 %v3454, %v3494
      %v3527 = vadd.f32 %v3455, %v3495
      %v3528 = vadd.f32 %v3456, %v3496
      %v3529 = vadd.f32 %v3457, %v3497
      %v3530 = vadd.f32 %v3458, %v3498
      %s3531 = scalar_lea.vmem %s1, 16
      %v3532 = vld [vmem:[%s3531] sm:$0x1]
      %v3534 = vlaneseq
      %v3535 = vshrl.u32 %v3534, 7
      %v3536 = vsub.s32 0, %v3535
      %v3537 = vrot.slane %v3532, %v3536
      %v3539 = vmul.f32 %v213, %v3537
      %v3540 = vmul.f32 %v214, %v3537
      %v3541 = vmul.f32 %v215, %v3537
      %v3542 = vmul.f32 %v216, %v3537
      %v3543 = vmul.f32 %v217, %v3537
      %v3544 = vmul.f32 %v218, %v3537
      %v3545 = vmul.f32 %v219, %v3537
      %v3546 = vmul.f32 %v220, %v3537
      %v3547 = vmul.f32 %v221, %v3537
      %v3548 = vmul.f32 %v222, %v3537
      %v3549 = vmul.f32 %v223, %v3537
      %v3550 = vmul.f32 %v224, %v3537
      %v3551 = vmul.f32 %v225, %v3537
      %v3552 = vmul.f32 %v226, %v3537
      %v3553 = vmul.f32 %v227, %v3537
      %v3554 = vmul.f32 %v228, %v3537
      %v3555 = vmul.f32 %v229, %v3537
      %v3556 = vmul.f32 %v230, %v3537
      %v3557 = vmul.f32 %v231, %v3537
      %v3558 = vmul.f32 %v232, %v3537
      %v3559 = vmul.f32 %v233, %v3537
      %v3560 = vmul.f32 %v234, %v3537
      %v3561 = vmul.f32 %v235, %v3537
      %v3562 = vmul.f32 %v236, %v3537
      %v3563 = vmul.f32 %v237, %v3537
      %v3564 = vmul.f32 %v238, %v3537
      %v3565 = vmul.f32 %v239, %v3537
      %v3566 = vmul.f32 %v240, %v3537
      %v3567 = vmul.f32 %v241, %v3537
      %v3568 = vmul.f32 %v242, %v3537
      %v3569 = vmul.f32 %v243, %v3537
      %v3570 = vmul.f32 %v244, %v3537
      %v3571 = vmul.f32 %v245, %v3537
      %v3572 = vmul.f32 %v246, %v3537
      %v3573 = vmul.f32 %v247, %v3537
      %v3574 = vmul.f32 %v248, %v3537
      %v3575 = vmul.f32 %v249, %v3537
      %v3576 = vmul.f32 %v250, %v3537
      %v3577 = vmul.f32 %v251, %v3537
      %v3578 = vmul.f32 %v252, %v3537
      %v3579 = vmul.f32 %v253, %v3537
      %v3580 = vmul.f32 %v254, %v3537
      %v3581 = vmul.f32 %v255, %v3537
      %v3582 = vmul.f32 %v256, %v3537
      %v3583 = vmul.f32 %v257, %v3537
      %v3584 = vmul.f32 %v258, %v3537
      %v3585 = vmul.f32 %v259, %v3537
      %v3586 = vmul.f32 %v260, %v3537
      %v3635 = vrot.slane %v3539, 1
      %v3636 = vrot.slane %v3540, 1
      %v3637 = vsel %vm439, %v3635, %v3636
      %v3638 = vrot.slane %v3541, 1
      %v3639 = vsel %vm439, %v3636, %v3638
      %v3640 = vrot.slane %v3542, 1
      %v3641 = vrot.slane %v3543, 1
      %v3642 = vsel %vm439, %v3640, %v3641
      %v3643 = vrot.slane %v3544, 1
      %v3644 = vsel %vm439, %v3641, %v3643
      %v3645 = vrot.slane %v3545, 1
      %v3646 = vrot.slane %v3546, 1
      %v3647 = vsel %vm439, %v3645, %v3646
      %v3648 = vrot.slane %v3547, 1
      %v3649 = vsel %vm439, %v3646, %v3648
      %v3650 = vrot.slane %v3548, 1
      %v3651 = vrot.slane %v3549, 1
      %v3652 = vsel %vm439, %v3650, %v3651
      %v3653 = vrot.slane %v3550, 1
      %v3654 = vsel %vm439, %v3651, %v3653
      %v3655 = vrot.slane %v3551, 1
      %v3656 = vrot.slane %v3552, 1
      %v3657 = vsel %vm439, %v3655, %v3656
      %v3658 = vrot.slane %v3553, 1
      %v3659 = vsel %vm439, %v3656, %v3658
      %v3660 = vrot.slane %v3554, 1
      %v3661 = vrot.slane %v3555, 1
      %v3662 = vsel %vm439, %v3660, %v3661
      %v3663 = vrot.slane %v3556, 1
      %v3664 = vsel %vm439, %v3661, %v3663
      %v3665 = vrot.slane %v3557, 1
      %v3666 = vrot.slane %v3558, 1
      %v3667 = vsel %vm439, %v3665, %v3666
      %v3668 = vrot.slane %v3559, 1
      %v3669 = vsel %vm439, %v3666, %v3668
      %v3670 = vrot.slane %v3560, 1
      %v3671 = vrot.slane %v3561, 1
      %v3672 = vsel %vm439, %v3670, %v3671
      %v3673 = vrot.slane %v3562, 1
      %v3674 = vsel %vm439, %v3671, %v3673
      %v3675 = vrot.slane %v3563, 1
      %v3676 = vrot.slane %v3564, 1
      %v3677 = vsel %vm439, %v3675, %v3676
      %v3678 = vrot.slane %v3565, 1
      %v3679 = vsel %vm439, %v3676, %v3678
      %v3680 = vrot.slane %v3566, 1
      %v3681 = vrot.slane %v3567, 1
      %v3682 = vsel %vm439, %v3680, %v3681
      %v3683 = vrot.slane %v3568, 1
      %v3684 = vsel %vm439, %v3681, %v3683
      %v3685 = vrot.slane %v3569, 1
      %v3686 = vrot.slane %v3570, 1
      %v3687 = vsel %vm439, %v3685, %v3686
      %v3688 = vrot.slane %v3571, 1
      %v3689 = vsel %vm439, %v3686, %v3688
      %v3690 = vrot.slane %v3572, 1
      %v3691 = vrot.slane %v3573, 1
      %v3692 = vsel %vm439, %v3690, %v3691
      %v3693 = vrot.slane %v3574, 1
      %v3694 = vsel %vm439, %v3691, %v3693
      %v3695 = vrot.slane %v3575, 1
      %v3696 = vrot.slane %v3576, 1
      %v3697 = vsel %vm439, %v3695, %v3696
      %v3698 = vrot.slane %v3577, 1
      %v3699 = vsel %vm439, %v3696, %v3698
      %v3700 = vrot.slane %v3578, 1
      %v3701 = vrot.slane %v3579, 1
      %v3702 = vsel %vm439, %v3700, %v3701
      %v3703 = vrot.slane %v3580, 1
      %v3704 = vsel %vm439, %v3701, %v3703
      %v3705 = vrot.slane %v3581, 1
      %v3706 = vrot.slane %v3582, 1
      %v3707 = vsel %vm439, %v3705, %v3706
      %v3708 = vrot.slane %v3583, 1
      %v3709 = vsel %vm439, %v3706, %v3708
      %v3710 = vrot.slane %v3584, 1
      %v3711 = vrot.slane %v3585, 1
      %v3712 = vsel %vm439, %v3710, %v3711
      %v3713 = vrot.slane %v3586, 1
      %v3714 = vsel %vm439, %v3711, %v3713
      %v3747 = vadd.f32 %v3499, %v3637
      %v3748 = vadd.f32 %v3500, %v3639
      %v3749 = vadd.f32 %v3501, %v3642
      %v3750 = vadd.f32 %v3502, %v3644
      %v3751 = vadd.f32 %v3503, %v3647
      %v3752 = vadd.f32 %v3504, %v3649
      %v3753 = vadd.f32 %v3505, %v3652
      %v3754 = vadd.f32 %v3506, %v3654
      %v3755 = vadd.f32 %v3507, %v3657
      %v3756 = vadd.f32 %v3508, %v3659
      %v3757 = vadd.f32 %v3509, %v3662
      %v3758 = vadd.f32 %v3510, %v3664
      %v3759 = vadd.f32 %v3511, %v3667
      %v3760 = vadd.f32 %v3512, %v3669
      %v3761 = vadd.f32 %v3513, %v3672
      %v3762 = vadd.f32 %v3514, %v3674
      %v3763 = vadd.f32 %v3515, %v3677
      %v3764 = vadd.f32 %v3516, %v3679
      %v3765 = vadd.f32 %v3517, %v3682
      %v3766 = vadd.f32 %v3518, %v3684
      %v3767 = vadd.f32 %v3519, %v3687
      %v3768 = vadd.f32 %v3520, %v3689
      %v3769 = vadd.f32 %v3521, %v3692
      %v3770 = vadd.f32 %v3522, %v3694
      %v3771 = vadd.f32 %v3523, %v3697
      %v3772 = vadd.f32 %v3524, %v3699
      %v3773 = vadd.f32 %v3525, %v3702
      %v3774 = vadd.f32 %v3526, %v3704
      %v3775 = vadd.f32 %v3527, %v3707
      %v3776 = vadd.f32 %v3528, %v3709
      %v3777 = vadd.f32 %v3529, %v3712
      %v3778 = vadd.f32 %v3530, %v3714
      %s3779 = scalar_lea.vmem %s1, 17
      %v3780 = vld [vmem:[%s3779] sm:$0x1]
      %v3782 = vlaneseq
      %v3783 = vshrl.u32 %v3782, 7
      %v3784 = vsub.s32 0, %v3783
      %v3785 = vrot.slane %v3780, %v3784
      %v3787 = vmul.f32 %v213, %v3785
      %v3788 = vmul.f32 %v214, %v3785
      %v3789 = vmul.f32 %v215, %v3785
      %v3790 = vmul.f32 %v216, %v3785
      %v3791 = vmul.f32 %v217, %v3785
      %v3792 = vmul.f32 %v218, %v3785
      %v3793 = vmul.f32 %v219, %v3785
      %v3794 = vmul.f32 %v220, %v3785
      %v3795 = vmul.f32 %v221, %v3785
      %v3796 = vmul.f32 %v222, %v3785
      %v3797 = vmul.f32 %v223, %v3785
      %v3798 = vmul.f32 %v224, %v3785
      %v3799 = vmul.f32 %v225, %v3785
      %v3800 = vmul.f32 %v226, %v3785
      %v3801 = vmul.f32 %v227, %v3785
      %v3802 = vmul.f32 %v228, %v3785
      %v3803 = vmul.f32 %v229, %v3785
      %v3804 = vmul.f32 %v230, %v3785
      %v3805 = vmul.f32 %v231, %v3785
      %v3806 = vmul.f32 %v232, %v3785
      %v3807 = vmul.f32 %v233, %v3785
      %v3808 = vmul.f32 %v234, %v3785
      %v3809 = vmul.f32 %v235, %v3785
      %v3810 = vmul.f32 %v236, %v3785
      %v3811 = vmul.f32 %v237, %v3785
      %v3812 = vmul.f32 %v238, %v3785
      %v3813 = vmul.f32 %v239, %v3785
      %v3814 = vmul.f32 %v240, %v3785
      %v3815 = vmul.f32 %v241, %v3785
      %v3816 = vmul.f32 %v242, %v3785
      %v3817 = vmul.f32 %v243, %v3785
      %v3818 = vmul.f32 %v244, %v3785
      %v3819 = vmul.f32 %v245, %v3785
      %v3820 = vmul.f32 %v246, %v3785
      %v3821 = vmul.f32 %v247, %v3785
      %v3822 = vmul.f32 %v248, %v3785
      %v3823 = vmul.f32 %v249, %v3785
      %v3824 = vmul.f32 %v250, %v3785
      %v3825 = vmul.f32 %v251, %v3785
      %v3826 = vmul.f32 %v252, %v3785
      %v3827 = vmul.f32 %v253, %v3785
      %v3828 = vmul.f32 %v254, %v3785
      %v3829 = vmul.f32 %v255, %v3785
      %v3830 = vmul.f32 %v256, %v3785
      %v3831 = vmul.f32 %v257, %v3785
      %v3832 = vmul.f32 %v258, %v3785
      %v3833 = vmul.f32 %v259, %v3785
      %v3834 = vmul.f32 %v260, %v3785
      %v3883 = vrot.slane %v3787, 2
      %v3884 = vrot.slane %v3788, 2
      %v3885 = vsel %vm688, %v3883, %v3884
      %v3886 = vrot.slane %v3789, 2
      %v3887 = vsel %vm688, %v3884, %v3886
      %v3888 = vrot.slane %v3790, 2
      %v3889 = vrot.slane %v3791, 2
      %v3890 = vsel %vm688, %v3888, %v3889
      %v3891 = vrot.slane %v3792, 2
      %v3892 = vsel %vm688, %v3889, %v3891
      %v3893 = vrot.slane %v3793, 2
      %v3894 = vrot.slane %v3794, 2
      %v3895 = vsel %vm688, %v3893, %v3894
      %v3896 = vrot.slane %v3795, 2
      %v3897 = vsel %vm688, %v3894, %v3896
      %v3898 = vrot.slane %v3796, 2
      %v3899 = vrot.slane %v3797, 2
      %v3900 = vsel %vm688, %v3898, %v3899
      %v3901 = vrot.slane %v3798, 2
      %v3902 = vsel %vm688, %v3899, %v3901
      %v3903 = vrot.slane %v3799, 2
      %v3904 = vrot.slane %v3800, 2
      %v3905 = vsel %vm688, %v3903, %v3904
      %v3906 = vrot.slane %v3801, 2
      %v3907 = vsel %vm688, %v3904, %v3906
      %v3908 = vrot.slane %v3802, 2
      %v3909 = vrot.slane %v3803, 2
      %v3910 = vsel %vm688, %v3908, %v3909
      %v3911 = vrot.slane %v3804, 2
      %v3912 = vsel %vm688, %v3909, %v3911
      %v3913 = vrot.slane %v3805, 2
      %v3914 = vrot.slane %v3806, 2
      %v3915 = vsel %vm688, %v3913, %v3914
      %v3916 = vrot.slane %v3807, 2
      %v3917 = vsel %vm688, %v3914, %v3916
      %v3918 = vrot.slane %v3808, 2
      %v3919 = vrot.slane %v3809, 2
      %v3920 = vsel %vm688, %v3918, %v3919
      %v3921 = vrot.slane %v3810, 2
      %v3922 = vsel %vm688, %v3919, %v3921
      %v3923 = vrot.slane %v3811, 2
      %v3924 = vrot.slane %v3812, 2
      %v3925 = vsel %vm688, %v3923, %v3924
      %v3926 = vrot.slane %v3813, 2
      %v3927 = vsel %vm688, %v3924, %v3926
      %v3928 = vrot.slane %v3814, 2
      %v3929 = vrot.slane %v3815, 2
      %v3930 = vsel %vm688, %v3928, %v3929
      %v3931 = vrot.slane %v3816, 2
      %v3932 = vsel %vm688, %v3929, %v3931
      %v3933 = vrot.slane %v3817, 2
      %v3934 = vrot.slane %v3818, 2
      %v3935 = vsel %vm688, %v3933, %v3934
      %v3936 = vrot.slane %v3819, 2
      %v3937 = vsel %vm688, %v3934, %v3936
      %v3938 = vrot.slane %v3820, 2
      %v3939 = vrot.slane %v3821, 2
      %v3940 = vsel %vm688, %v3938, %v3939
      %v3941 = vrot.slane %v3822, 2
      %v3942 = vsel %vm688, %v3939, %v3941
      %v3943 = vrot.slane %v3823, 2
      %v3944 = vrot.slane %v3824, 2
      %v3945 = vsel %vm688, %v3943, %v3944
      %v3946 = vrot.slane %v3825, 2
      %v3947 = vsel %vm688, %v3944, %v3946
      %v3948 = vrot.slane %v3826, 2
      %v3949 = vrot.slane %v3827, 2
      %v3950 = vsel %vm688, %v3948, %v3949
      %v3951 = vrot.slane %v3828, 2
      %v3952 = vsel %vm688, %v3949, %v3951
      %v3953 = vrot.slane %v3829, 2
      %v3954 = vrot.slane %v3830, 2
      %v3955 = vsel %vm688, %v3953, %v3954
      %v3956 = vrot.slane %v3831, 2
      %v3957 = vsel %vm688, %v3954, %v3956
      %v3958 = vrot.slane %v3832, 2
      %v3959 = vrot.slane %v3833, 2
      %v3960 = vsel %vm688, %v3958, %v3959
      %v3961 = vrot.slane %v3834, 2
      %v3962 = vsel %vm688, %v3959, %v3961
      %v3995 = vadd.f32 %v3747, %v3885
      %v3996 = vadd.f32 %v3748, %v3887
      %v3997 = vadd.f32 %v3749, %v3890
      %v3998 = vadd.f32 %v3750, %v3892
      %v3999 = vadd.f32 %v3751, %v3895
      %v4000 = vadd.f32 %v3752, %v3897
      %v4001 = vadd.f32 %v3753, %v3900
      %v4002 = vadd.f32 %v3754, %v3902
      %v4003 = vadd.f32 %v3755, %v3905
      %v4004 = vadd.f32 %v3756, %v3907
      %v4005 = vadd.f32 %v3757, %v3910
      %v4006 = vadd.f32 %v3758, %v3912
      %v4007 = vadd.f32 %v3759, %v3915
      %v4008 = vadd.f32 %v3760, %v3917
      %v4009 = vadd.f32 %v3761, %v3920
      %v4010 = vadd.f32 %v3762, %v3922
      %v4011 = vadd.f32 %v3763, %v3925
      %v4012 = vadd.f32 %v3764, %v3927
      %v4013 = vadd.f32 %v3765, %v3930
      %v4014 = vadd.f32 %v3766, %v3932
      %v4015 = vadd.f32 %v3767, %v3935
      %v4016 = vadd.f32 %v3768, %v3937
      %v4017 = vadd.f32 %v3769, %v3940
      %v4018 = vadd.f32 %v3770, %v3942
      %v4019 = vadd.f32 %v3771, %v3945
      %v4020 = vadd.f32 %v3772, %v3947
      %v4021 = vadd.f32 %v3773, %v3950
      %v4022 = vadd.f32 %v3774, %v3952
      %v4023 = vadd.f32 %v3775, %v3955
      %v4024 = vadd.f32 %v3776, %v3957
      %v4025 = vadd.f32 %v3777, %v3960
      %v4026 = vadd.f32 %v3778, %v3962
      %s4027 = scalar_lea.vmem %s1, 18
      %v4028 = vld [vmem:[%s4027] sm:$0x1]
      %v4030 = vlaneseq
      %v4031 = vshrl.u32 %v4030, 7
      %v4032 = vsub.s32 0, %v4031
      %v4033 = vrot.slane %v4028, %v4032
      %v4035 = vmul.f32 %v213, %v4033
      %v4036 = vmul.f32 %v214, %v4033
      %v4037 = vmul.f32 %v215, %v4033
      %v4038 = vmul.f32 %v216, %v4033
      %v4039 = vmul.f32 %v217, %v4033
      %v4040 = vmul.f32 %v218, %v4033
      %v4041 = vmul.f32 %v219, %v4033
      %v4042 = vmul.f32 %v220, %v4033
      %v4043 = vmul.f32 %v221, %v4033
      %v4044 = vmul.f32 %v222, %v4033
      %v4045 = vmul.f32 %v223, %v4033
      %v4046 = vmul.f32 %v224, %v4033
      %v4047 = vmul.f32 %v225, %v4033
      %v4048 = vmul.f32 %v226, %v4033
      %v4049 = vmul.f32 %v227, %v4033
      %v4050 = vmul.f32 %v228, %v4033
      %v4051 = vmul.f32 %v229, %v4033
      %v4052 = vmul.f32 %v230, %v4033
      %v4053 = vmul.f32 %v231, %v4033
      %v4054 = vmul.f32 %v232, %v4033
      %v4055 = vmul.f32 %v233, %v4033
      %v4056 = vmul.f32 %v234, %v4033
      %v4057 = vmul.f32 %v235, %v4033
      %v4058 = vmul.f32 %v236, %v4033
      %v4059 = vmul.f32 %v237, %v4033
      %v4060 = vmul.f32 %v238, %v4033
      %v4061 = vmul.f32 %v239, %v4033
      %v4062 = vmul.f32 %v240, %v4033
      %v4063 = vmul.f32 %v241, %v4033
      %v4064 = vmul.f32 %v242, %v4033
      %v4065 = vmul.f32 %v243, %v4033
      %v4066 = vmul.f32 %v244, %v4033
      %v4067 = vmul.f32 %v245, %v4033
      %v4068 = vmul.f32 %v246, %v4033
      %v4069 = vmul.f32 %v247, %v4033
      %v4070 = vmul.f32 %v248, %v4033
      %v4071 = vmul.f32 %v249, %v4033
      %v4072 = vmul.f32 %v250, %v4033
      %v4073 = vmul.f32 %v251, %v4033
      %v4074 = vmul.f32 %v252, %v4033
      %v4075 = vmul.f32 %v253, %v4033
      %v4076 = vmul.f32 %v254, %v4033
      %v4077 = vmul.f32 %v255, %v4033
      %v4078 = vmul.f32 %v256, %v4033
      %v4079 = vmul.f32 %v257, %v4033
      %v4080 = vmul.f32 %v258, %v4033
      %v4081 = vmul.f32 %v259, %v4033
      %v4082 = vmul.f32 %v260, %v4033
      %v4131 = vrot.slane %v4035, 3
      %v4132 = vrot.slane %v4036, 3
      %v4133 = vsel %vm937, %v4131, %v4132
      %v4134 = vrot.slane %v4037, 3
      %v4135 = vsel %vm937, %v4132, %v4134
      %v4136 = vrot.slane %v4038, 3
      %v4137 = vrot.slane %v4039, 3
      %v4138 = vsel %vm937, %v4136, %v4137
      %v4139 = vrot.slane %v4040, 3
      %v4140 = vsel %vm937, %v4137, %v4139
      %v4141 = vrot.slane %v4041, 3
      %v4142 = vrot.slane %v4042, 3
      %v4143 = vsel %vm937, %v4141, %v4142
      %v4144 = vrot.slane %v4043, 3
      %v4145 = vsel %vm937, %v4142, %v4144
      %v4146 = vrot.slane %v4044, 3
      %v4147 = vrot.slane %v4045, 3
      %v4148 = vsel %vm937, %v4146, %v4147
      %v4149 = vrot.slane %v4046, 3
      %v4150 = vsel %vm937, %v4147, %v4149
      %v4151 = vrot.slane %v4047, 3
      %v4152 = vrot.slane %v4048, 3
      %v4153 = vsel %vm937, %v4151, %v4152
      %v4154 = vrot.slane %v4049, 3
      %v4155 = vsel %vm937, %v4152, %v4154
      %v4156 = vrot.slane %v4050, 3
      %v4157 = vrot.slane %v4051, 3
      %v4158 = vsel %vm937, %v4156, %v4157
      %v4159 = vrot.slane %v4052, 3
      %v4160 = vsel %vm937, %v4157, %v4159
      %v4161 = vrot.slane %v4053, 3
      %v4162 = vrot.slane %v4054, 3
      %v4163 = vsel %vm937, %v4161, %v4162
      %v4164 = vrot.slane %v4055, 3
      %v4165 = vsel %vm937, %v4162, %v4164
      %v4166 = vrot.slane %v4056, 3
      %v4167 = vrot.slane %v4057, 3
      %v4168 = vsel %vm937, %v4166, %v4167
      %v4169 = vrot.slane %v4058, 3
      %v4170 = vsel %vm937, %v4167, %v4169
      %v4171 = vrot.slane %v4059, 3
      %v4172 = vrot.slane %v4060, 3
      %v4173 = vsel %vm937, %v4171, %v4172
      %v4174 = vrot.slane %v4061, 3
      %v4175 = vsel %vm937, %v4172, %v4174
      %v4176 = vrot.slane %v4062, 3
      %v4177 = vrot.slane %v4063, 3
      %v4178 = vsel %vm937, %v4176, %v4177
      %v4179 = vrot.slane %v4064, 3
      %v4180 = vsel %vm937, %v4177, %v4179
      %v4181 = vrot.slane %v4065, 3
      %v4182 = vrot.slane %v4066, 3
      %v4183 = vsel %vm937, %v4181, %v4182
      %v4184 = vrot.slane %v4067, 3
      %v4185 = vsel %vm937, %v4182, %v4184
      %v4186 = vrot.slane %v4068, 3
      %v4187 = vrot.slane %v4069, 3
      %v4188 = vsel %vm937, %v4186, %v4187
      %v4189 = vrot.slane %v4070, 3
      %v4190 = vsel %vm937, %v4187, %v4189
      %v4191 = vrot.slane %v4071, 3
      %v4192 = vrot.slane %v4072, 3
      %v4193 = vsel %vm937, %v4191, %v4192
      %v4194 = vrot.slane %v4073, 3
      %v4195 = vsel %vm937, %v4192, %v4194
      %v4196 = vrot.slane %v4074, 3
      %v4197 = vrot.slane %v4075, 3
      %v4198 = vsel %vm937, %v4196, %v4197
      %v4199 = vrot.slane %v4076, 3
      %v4200 = vsel %vm937, %v4197, %v4199
      %v4201 = vrot.slane %v4077, 3
      %v4202 = vrot.slane %v4078, 3
      %v4203 = vsel %vm937, %v4201, %v4202
      %v4204 = vrot.slane %v4079, 3
      %v4205 = vsel %vm937, %v4202, %v4204
      %v4206 = vrot.slane %v4080, 3
      %v4207 = vrot.slane %v4081, 3
      %v4208 = vsel %vm937, %v4206, %v4207
      %v4209 = vrot.slane %v4082, 3
      %v4210 = vsel %vm937, %v4207, %v4209
      %v4243 = vadd.f32 %v3995, %v4133
      %v4244 = vadd.f32 %v3996, %v4135
      %v4245 = vadd.f32 %v3997, %v4138
      %v4246 = vadd.f32 %v3998, %v4140
      %v4247 = vadd.f32 %v3999, %v4143
      %v4248 = vadd.f32 %v4000, %v4145
      %v4249 = vadd.f32 %v4001, %v4148
      %v4250 = vadd.f32 %v4002, %v4150
      %v4251 = vadd.f32 %v4003, %v4153
      %v4252 = vadd.f32 %v4004, %v4155
      %v4253 = vadd.f32 %v4005, %v4158
      %v4254 = vadd.f32 %v4006, %v4160
      %v4255 = vadd.f32 %v4007, %v4163
      %v4256 = vadd.f32 %v4008, %v4165
      %v4257 = vadd.f32 %v4009, %v4168
      %v4258 = vadd.f32 %v4010, %v4170
      %v4259 = vadd.f32 %v4011, %v4173
      %v4260 = vadd.f32 %v4012, %v4175
      %v4261 = vadd.f32 %v4013, %v4178
      %v4262 = vadd.f32 %v4014, %v4180
      %v4263 = vadd.f32 %v4015, %v4183
      %v4264 = vadd.f32 %v4016, %v4185
      %v4265 = vadd.f32 %v4017, %v4188
      %v4266 = vadd.f32 %v4018, %v4190
      %v4267 = vadd.f32 %v4019, %v4193
      %v4268 = vadd.f32 %v4020, %v4195
      %v4269 = vadd.f32 %v4021, %v4198
      %v4270 = vadd.f32 %v4022, %v4200
      %v4271 = vadd.f32 %v4023, %v4203
      %v4272 = vadd.f32 %v4024, %v4205
      %v4273 = vadd.f32 %v4025, %v4208
      %v4274 = vadd.f32 %v4026, %v4210
      %s4275 = scalar_lea.vmem %s1, 19
      %v4276 = vld [vmem:[%s4275] sm:$0x1]
      %v4278 = vlaneseq
      %v4279 = vshrl.u32 %v4278, 7
      %v4280 = vsub.s32 0, %v4279
      %v4281 = vrot.slane %v4276, %v4280
      %v4283 = vmul.f32 %v213, %v4281
      %v4284 = vmul.f32 %v214, %v4281
      %v4285 = vmul.f32 %v215, %v4281
      %v4286 = vmul.f32 %v216, %v4281
      %v4287 = vmul.f32 %v217, %v4281
      %v4288 = vmul.f32 %v218, %v4281
      %v4289 = vmul.f32 %v219, %v4281
      %v4290 = vmul.f32 %v220, %v4281
      %v4291 = vmul.f32 %v221, %v4281
      %v4292 = vmul.f32 %v222, %v4281
      %v4293 = vmul.f32 %v223, %v4281
      %v4294 = vmul.f32 %v224, %v4281
      %v4295 = vmul.f32 %v225, %v4281
      %v4296 = vmul.f32 %v226, %v4281
      %v4297 = vmul.f32 %v227, %v4281
      %v4298 = vmul.f32 %v228, %v4281
      %v4299 = vmul.f32 %v229, %v4281
      %v4300 = vmul.f32 %v230, %v4281
      %v4301 = vmul.f32 %v231, %v4281
      %v4302 = vmul.f32 %v232, %v4281
      %v4303 = vmul.f32 %v233, %v4281
      %v4304 = vmul.f32 %v234, %v4281
      %v4305 = vmul.f32 %v235, %v4281
      %v4306 = vmul.f32 %v236, %v4281
      %v4307 = vmul.f32 %v237, %v4281
      %v4308 = vmul.f32 %v238, %v4281
      %v4309 = vmul.f32 %v239, %v4281
      %v4310 = vmul.f32 %v240, %v4281
      %v4311 = vmul.f32 %v241, %v4281
      %v4312 = vmul.f32 %v242, %v4281
      %v4313 = vmul.f32 %v243, %v4281
      %v4314 = vmul.f32 %v244, %v4281
      %v4315 = vmul.f32 %v245, %v4281
      %v4316 = vmul.f32 %v246, %v4281
      %v4317 = vmul.f32 %v247, %v4281
      %v4318 = vmul.f32 %v248, %v4281
      %v4319 = vmul.f32 %v249, %v4281
      %v4320 = vmul.f32 %v250, %v4281
      %v4321 = vmul.f32 %v251, %v4281
      %v4322 = vmul.f32 %v252, %v4281
      %v4323 = vmul.f32 %v253, %v4281
      %v4324 = vmul.f32 %v254, %v4281
      %v4325 = vmul.f32 %v255, %v4281
      %v4326 = vmul.f32 %v256, %v4281
      %v4327 = vmul.f32 %v257, %v4281
      %v4328 = vmul.f32 %v258, %v4281
      %v4329 = vmul.f32 %v259, %v4281
      %v4330 = vmul.f32 %v260, %v4281
      %v4379 = vrot.slane %v4283, 4
      %v4380 = vrot.slane %v4284, 4
      %v4381 = vsel %vm1186, %v4379, %v4380
      %v4382 = vrot.slane %v4285, 4
      %v4383 = vsel %vm1186, %v4380, %v4382
      %v4384 = vrot.slane %v4286, 4
      %v4385 = vrot.slane %v4287, 4
      %v4386 = vsel %vm1186, %v4384, %v4385
      %v4387 = vrot.slane %v4288, 4
      %v4388 = vsel %vm1186, %v4385, %v4387
      %v4389 = vrot.slane %v4289, 4
      %v4390 = vrot.slane %v4290, 4
      %v4391 = vsel %vm1186, %v4389, %v4390
      %v4392 = vrot.slane %v4291, 4
      %v4393 = vsel %vm1186, %v4390, %v4392
      %v4394 = vrot.slane %v4292, 4
      %v4395 = vrot.slane %v4293, 4
      %v4396 = vsel %vm1186, %v4394, %v4395
      %v4397 = vrot.slane %v4294, 4
      %v4398 = vsel %vm1186, %v4395, %v4397
      %v4399 = vrot.slane %v4295, 4
      %v4400 = vrot.slane %v4296, 4
      %v4401 = vsel %vm1186, %v4399, %v4400
      %v4402 = vrot.slane %v4297, 4
      %v4403 = vsel %vm1186, %v4400, %v4402
      %v4404 = vrot.slane %v4298, 4
      %v4405 = vrot.slane %v4299, 4
      %v4406 = vsel %vm1186, %v4404, %v4405
      %v4407 = vrot.slane %v4300, 4
      %v4408 = vsel %vm1186, %v4405, %v4407
      %v4409 = vrot.slane %v4301, 4
      %v4410 = vrot.slane %v4302, 4
      %v4411 = vsel %vm1186, %v4409, %v4410
      %v4412 = vrot.slane %v4303, 4
      %v4413 = vsel %vm1186, %v4410, %v4412
      %v4414 = vrot.slane %v4304, 4
      %v4415 = vrot.slane %v4305, 4
      %v4416 = vsel %vm1186, %v4414, %v4415
      %v4417 = vrot.slane %v4306, 4
      %v4418 = vsel %vm1186, %v4415, %v4417
      %v4419 = vrot.slane %v4307, 4
      %v4420 = vrot.slane %v4308, 4
      %v4421 = vsel %vm1186, %v4419, %v4420
      %v4422 = vrot.slane %v4309, 4
      %v4423 = vsel %vm1186, %v4420, %v4422
      %v4424 = vrot.slane %v4310, 4
      %v4425 = vrot.slane %v4311, 4
      %v4426 = vsel %vm1186, %v4424, %v4425
      %v4427 = vrot.slane %v4312, 4
      %v4428 = vsel %vm1186, %v4425, %v4427
      %v4429 = vrot.slane %v4313, 4
      %v4430 = vrot.slane %v4314, 4
      %v4431 = vsel %vm1186, %v4429, %v4430
      %v4432 = vrot.slane %v4315, 4
      %v4433 = vsel %vm1186, %v4430, %v4432
      %v4434 = vrot.slane %v4316, 4
      %v4435 = vrot.slane %v4317, 4
      %v4436 = vsel %vm1186, %v4434, %v4435
      %v4437 = vrot.slane %v4318, 4
      %v4438 = vsel %vm1186, %v4435, %v4437
      %v4439 = vrot.slane %v4319, 4
      %v4440 = vrot.slane %v4320, 4
      %v4441 = vsel %vm1186, %v4439, %v4440
      %v4442 = vrot.slane %v4321, 4
      %v4443 = vsel %vm1186, %v4440, %v4442
      %v4444 = vrot.slane %v4322, 4
      %v4445 = vrot.slane %v4323, 4
      %v4446 = vsel %vm1186, %v4444, %v4445
      %v4447 = vrot.slane %v4324, 4
      %v4448 = vsel %vm1186, %v4445, %v4447
      %v4449 = vrot.slane %v4325, 4
      %v4450 = vrot.slane %v4326, 4
      %v4451 = vsel %vm1186, %v4449, %v4450
      %v4452 = vrot.slane %v4327, 4
      %v4453 = vsel %vm1186, %v4450, %v4452
      %v4454 = vrot.slane %v4328, 4
      %v4455 = vrot.slane %v4329, 4
      %v4456 = vsel %vm1186, %v4454, %v4455
      %v4457 = vrot.slane %v4330, 4
      %v4458 = vsel %vm1186, %v4455, %v4457
      %v4491 = vadd.f32 %v4243, %v4381
      %v4492 = vadd.f32 %v4244, %v4383
      %v4493 = vadd.f32 %v4245, %v4386
      %v4494 = vadd.f32 %v4246, %v4388
      %v4495 = vadd.f32 %v4247, %v4391
      %v4496 = vadd.f32 %v4248, %v4393
      %v4497 = vadd.f32 %v4249, %v4396
      %v4498 = vadd.f32 %v4250, %v4398
      %v4499 = vadd.f32 %v4251, %v4401
      %v4500 = vadd.f32 %v4252, %v4403
      %v4501 = vadd.f32 %v4253, %v4406
      %v4502 = vadd.f32 %v4254, %v4408
      %v4503 = vadd.f32 %v4255, %v4411
      %v4504 = vadd.f32 %v4256, %v4413
      %v4505 = vadd.f32 %v4257, %v4416
      %v4506 = vadd.f32 %v4258, %v4418
      %v4507 = vadd.f32 %v4259, %v4421
      %v4508 = vadd.f32 %v4260, %v4423
      %v4509 = vadd.f32 %v4261, %v4426
      %v4510 = vadd.f32 %v4262, %v4428
      %v4511 = vadd.f32 %v4263, %v4431
      %v4512 = vadd.f32 %v4264, %v4433
      %v4513 = vadd.f32 %v4265, %v4436
      %v4514 = vadd.f32 %v4266, %v4438
      %v4515 = vadd.f32 %v4267, %v4441
      %v4516 = vadd.f32 %v4268, %v4443
      %v4517 = vadd.f32 %v4269, %v4446
      %v4518 = vadd.f32 %v4270, %v4448
      %v4519 = vadd.f32 %v4271, %v4451
      %v4520 = vadd.f32 %v4272, %v4453
      %v4521 = vadd.f32 %v4273, %v4456
      %v4522 = vadd.f32 %v4274, %v4458
      %s4523 = scalar_lea.vmem %s1, 20
      %v4524 = vld [vmem:[%s4523] sm:$0x1]
      %v4526 = vlaneseq
      %v4527 = vshrl.u32 %v4526, 7
      %v4528 = vsub.s32 0, %v4527
      %v4529 = vrot.slane %v4524, %v4528
      %v4531 = vmul.f32 %v216, %v4529
      %v4532 = vmul.f32 %v217, %v4529
      %v4533 = vmul.f32 %v219, %v4529
      %v4534 = vmul.f32 %v220, %v4529
      %v4535 = vmul.f32 %v222, %v4529
      %v4536 = vmul.f32 %v223, %v4529
      %v4537 = vmul.f32 %v225, %v4529
      %v4538 = vmul.f32 %v226, %v4529
      %v4539 = vmul.f32 %v228, %v4529
      %v4540 = vmul.f32 %v229, %v4529
      %v4541 = vmul.f32 %v231, %v4529
      %v4542 = vmul.f32 %v232, %v4529
      %v4543 = vmul.f32 %v234, %v4529
      %v4544 = vmul.f32 %v235, %v4529
      %v4545 = vmul.f32 %v237, %v4529
      %v4546 = vmul.f32 %v238, %v4529
      %v4547 = vmul.f32 %v240, %v4529
      %v4548 = vmul.f32 %v241, %v4529
      %v4549 = vmul.f32 %v243, %v4529
      %v4550 = vmul.f32 %v244, %v4529
      %v4551 = vmul.f32 %v246, %v4529
      %v4552 = vmul.f32 %v247, %v4529
      %v4553 = vmul.f32 %v249, %v4529
      %v4554 = vmul.f32 %v250, %v4529
      %v4555 = vmul.f32 %v252, %v4529
      %v4556 = vmul.f32 %v253, %v4529
      %v4557 = vmul.f32 %v255, %v4529
      %v4558 = vmul.f32 %v256, %v4529
      %v4559 = vmul.f32 %v258, %v4529
      %v4560 = vmul.f32 %v259, %v4529
      %v4561 = vmul.f32 %v261, %v4529
      %v4562 = vmul.f32 %v262, %v4529
      %v4563 = vadd.f32 %v4491, %v4531
      %v4564 = vadd.f32 %v4492, %v4532
      %v4565 = vadd.f32 %v4493, %v4533
      %v4566 = vadd.f32 %v4494, %v4534
      %v4567 = vadd.f32 %v4495, %v4535
      %v4568 = vadd.f32 %v4496, %v4536
      %v4569 = vadd.f32 %v4497, %v4537
      %v4570 = vadd.f32 %v4498, %v4538
      %v4571 = vadd.f32 %v4499, %v4539
      %v4572 = vadd.f32 %v4500, %v4540
      %v4573 = vadd.f32 %v4501, %v4541
      %v4574 = vadd.f32 %v4502, %v4542
      %v4575 = vadd.f32 %v4503, %v4543
      %v4576 = vadd.f32 %v4504, %v4544
      %v4577 = vadd.f32 %v4505, %v4545
      %v4578 = vadd.f32 %v4506, %v4546
      %v4579 = vadd.f32 %v4507, %v4547
      %v4580 = vadd.f32 %v4508, %v4548
      %v4581 = vadd.f32 %v4509, %v4549
      %v4582 = vadd.f32 %v4510, %v4550
      %v4583 = vadd.f32 %v4511, %v4551
      %v4584 = vadd.f32 %v4512, %v4552
      %v4585 = vadd.f32 %v4513, %v4553
      %v4586 = vadd.f32 %v4514, %v4554
      %v4587 = vadd.f32 %v4515, %v4555
      %v4588 = vadd.f32 %v4516, %v4556
      %v4589 = vadd.f32 %v4517, %v4557
      %v4590 = vadd.f32 %v4518, %v4558
      %v4591 = vadd.f32 %v4519, %v4559
      %v4592 = vadd.f32 %v4520, %v4560
      %v4593 = vadd.f32 %v4521, %v4561
      %v4594 = vadd.f32 %v4522, %v4562
      %s4595 = scalar_lea.vmem %s1, 21
      %v4596 = vld [vmem:[%s4595] sm:$0x1]
      %v4598 = vlaneseq
      %v4599 = vshrl.u32 %v4598, 7
      %v4600 = vsub.s32 0, %v4599
      %v4601 = vrot.slane %v4596, %v4600
      %v4603 = vmul.f32 %v216, %v4601
      %v4604 = vmul.f32 %v217, %v4601
      %v4605 = vmul.f32 %v218, %v4601
      %v4606 = vmul.f32 %v219, %v4601
      %v4607 = vmul.f32 %v220, %v4601
      %v4608 = vmul.f32 %v221, %v4601
      %v4609 = vmul.f32 %v222, %v4601
      %v4610 = vmul.f32 %v223, %v4601
      %v4611 = vmul.f32 %v224, %v4601
      %v4612 = vmul.f32 %v225, %v4601
      %v4613 = vmul.f32 %v226, %v4601
      %v4614 = vmul.f32 %v227, %v4601
      %v4615 = vmul.f32 %v228, %v4601
      %v4616 = vmul.f32 %v229, %v4601
      %v4617 = vmul.f32 %v230, %v4601
      %v4618 = vmul.f32 %v231, %v4601
      %v4619 = vmul.f32 %v232, %v4601
      %v4620 = vmul.f32 %v233, %v4601
      %v4621 = vmul.f32 %v234, %v4601
      %v4622 = vmul.f32 %v235, %v4601
      %v4623 = vmul.f32 %v236, %v4601
      %v4624 = vmul.f32 %v237, %v4601
      %v4625 = vmul.f32 %v238, %v4601
      %v4626 = vmul.f32 %v239, %v4601
      %v4627 = vmul.f32 %v240, %v4601
      %v4628 = vmul.f32 %v241, %v4601
      %v4629 = vmul.f32 %v242, %v4601
      %v4630 = vmul.f32 %v243, %v4601
      %v4631 = vmul.f32 %v244, %v4601
      %v4632 = vmul.f32 %v245, %v4601
      %v4633 = vmul.f32 %v246, %v4601
      %v4634 = vmul.f32 %v247, %v4601
      %v4635 = vmul.f32 %v248, %v4601
      %v4636 = vmul.f32 %v249, %v4601
      %v4637 = vmul.f32 %v250, %v4601
      %v4638 = vmul.f32 %v251, %v4601
      %v4639 = vmul.f32 %v252, %v4601
      %v4640 = vmul.f32 %v253, %v4601
      %v4641 = vmul.f32 %v254, %v4601
      %v4642 = vmul.f32 %v255, %v4601
      %v4643 = vmul.f32 %v256, %v4601
      %v4644 = vmul.f32 %v257, %v4601
      %v4645 = vmul.f32 %v258, %v4601
      %v4646 = vmul.f32 %v259, %v4601
      %v4647 = vmul.f32 %v260, %v4601
      %v4648 = vmul.f32 %v261, %v4601
      %v4649 = vmul.f32 %v262, %v4601
      %v4650 = vmul.f32 %v263, %v4601
      %v4699 = vrot.slane %v4603, 1
      %v4700 = vrot.slane %v4604, 1
      %v4701 = vsel %vm439, %v4699, %v4700
      %v4702 = vrot.slane %v4605, 1
      %v4703 = vsel %vm439, %v4700, %v4702
      %v4704 = vrot.slane %v4606, 1
      %v4705 = vrot.slane %v4607, 1
      %v4706 = vsel %vm439, %v4704, %v4705
      %v4707 = vrot.slane %v4608, 1
      %v4708 = vsel %vm439, %v4705, %v4707
      %v4709 = vrot.slane %v4609, 1
      %v4710 = vrot.slane %v4610, 1
      %v4711 = vsel %vm439, %v4709, %v4710
      %v4712 = vrot.slane %v4611, 1
      %v4713 = vsel %vm439, %v4710, %v4712
      %v4714 = vrot.slane %v4612, 1
      %v4715 = vrot.slane %v4613, 1
      %v4716 = vsel %vm439, %v4714, %v4715
      %v4717 = vrot.slane %v4614, 1
      %v4718 = vsel %vm439, %v4715, %v4717
      %v4719 = vrot.slane %v4615, 1
      %v4720 = vrot.slane %v4616, 1
      %v4721 = vsel %vm439, %v4719, %v4720
      %v4722 = vrot.slane %v4617, 1
      %v4723 = vsel %vm439, %v4720, %v4722
      %v4724 = vrot.slane %v4618, 1
      %v4725 = vrot.slane %v4619, 1
      %v4726 = vsel %vm439, %v4724, %v4725
      %v4727 = vrot.slane %v4620, 1
      %v4728 = vsel %vm439, %v4725, %v4727
      %v4729 = vrot.slane %v4621, 1
      %v4730 = vrot.slane %v4622, 1
      %v4731 = vsel %vm439, %v4729, %v4730
      %v4732 = vrot.slane %v4623, 1
      %v4733 = vsel %vm439, %v4730, %v4732
      %v4734 = vrot.slane %v4624, 1
      %v4735 = vrot.slane %v4625, 1
      %v4736 = vsel %vm439, %v4734, %v4735
      %v4737 = vrot.slane %v4626, 1
      %v4738 = vsel %vm439, %v4735, %v4737
      %v4739 = vrot.slane %v4627, 1
      %v4740 = vrot.slane %v4628, 1
      %v4741 = vsel %vm439, %v4739, %v4740
      %v4742 = vrot.slane %v4629, 1
      %v4743 = vsel %vm439, %v4740, %v4742
      %v4744 = vrot.slane %v4630, 1
      %v4745 = vrot.slane %v4631, 1
      %v4746 = vsel %vm439, %v4744, %v4745
      %v4747 = vrot.slane %v4632, 1
      %v4748 = vsel %vm439, %v4745, %v4747
      %v4749 = vrot.slane %v4633, 1
      %v4750 = vrot.slane %v4634, 1
      %v4751 = vsel %vm439, %v4749, %v4750
      %v4752 = vrot.slane %v4635, 1
      %v4753 = vsel %vm439, %v4750, %v4752
      %v4754 = vrot.slane %v4636, 1
      %v4755 = vrot.slane %v4637, 1
      %v4756 = vsel %vm439, %v4754, %v4755
      %v4757 = vrot.slane %v4638, 1
      %v4758 = vsel %vm439, %v4755, %v4757
      %v4759 = vrot.slane %v4639, 1
      %v4760 = vrot.slane %v4640, 1
      %v4761 = vsel %vm439, %v4759, %v4760
      %v4762 = vrot.slane %v4641, 1
      %v4763 = vsel %vm439, %v4760, %v4762
      %v4764 = vrot.slane %v4642, 1
      %v4765 = vrot.slane %v4643, 1
      %v4766 = vsel %vm439, %v4764, %v4765
      %v4767 = vrot.slane %v4644, 1
      %v4768 = vsel %vm439, %v4765, %v4767
      %v4769 = vrot.slane %v4645, 1
      %v4770 = vrot.slane %v4646, 1
      %v4771 = vsel %vm439, %v4769, %v4770
      %v4772 = vrot.slane %v4647, 1
      %v4773 = vsel %vm439, %v4770, %v4772
      %v4774 = vrot.slane %v4648, 1
      %v4775 = vrot.slane %v4649, 1
      %v4776 = vsel %vm439, %v4774, %v4775
      %v4777 = vrot.slane %v4650, 1
      %v4778 = vsel %vm439, %v4775, %v4777
      %v4811 = vadd.f32 %v4563, %v4701
      %v4812 = vadd.f32 %v4564, %v4703
      %v4813 = vadd.f32 %v4565, %v4706
      %v4814 = vadd.f32 %v4566, %v4708
      %v4815 = vadd.f32 %v4567, %v4711
      %v4816 = vadd.f32 %v4568, %v4713
      %v4817 = vadd.f32 %v4569, %v4716
      %v4818 = vadd.f32 %v4570, %v4718
      %v4819 = vadd.f32 %v4571, %v4721
      %v4820 = vadd.f32 %v4572, %v4723
      %v4821 = vadd.f32 %v4573, %v4726
      %v4822 = vadd.f32 %v4574, %v4728
      %v4823 = vadd.f32 %v4575, %v4731
      %v4824 = vadd.f32 %v4576, %v4733
      %v4825 = vadd.f32 %v4577, %v4736
      %v4826 = vadd.f32 %v4578, %v4738
      %v4827 = vadd.f32 %v4579, %v4741
      %v4828 = vadd.f32 %v4580, %v4743
      %v4829 = vadd.f32 %v4581, %v4746
      %v4830 = vadd.f32 %v4582, %v4748
      %v4831 = vadd.f32 %v4583, %v4751
      %v4832 = vadd.f32 %v4584, %v4753
      %v4833 = vadd.f32 %v4585, %v4756
      %v4834 = vadd.f32 %v4586, %v4758
      %v4835 = vadd.f32 %v4587, %v4761
      %v4836 = vadd.f32 %v4588, %v4763
      %v4837 = vadd.f32 %v4589, %v4766
      %v4838 = vadd.f32 %v4590, %v4768
      %v4839 = vadd.f32 %v4591, %v4771
      %v4840 = vadd.f32 %v4592, %v4773
      %v4841 = vadd.f32 %v4593, %v4776
      %v4842 = vadd.f32 %v4594, %v4778
      %s4843 = scalar_lea.vmem %s1, 22
      %v4844 = vld [vmem:[%s4843] sm:$0x1]
      %v4846 = vlaneseq
      %v4847 = vshrl.u32 %v4846, 7
      %v4848 = vsub.s32 0, %v4847
      %v4849 = vrot.slane %v4844, %v4848
      %v4851 = vmul.f32 %v216, %v4849
      %v4852 = vmul.f32 %v217, %v4849
      %v4853 = vmul.f32 %v218, %v4849
      %v4854 = vmul.f32 %v219, %v4849
      %v4855 = vmul.f32 %v220, %v4849
      %v4856 = vmul.f32 %v221, %v4849
      %v4857 = vmul.f32 %v222, %v4849
      %v4858 = vmul.f32 %v223, %v4849
      %v4859 = vmul.f32 %v224, %v4849
      %v4860 = vmul.f32 %v225, %v4849
      %v4861 = vmul.f32 %v226, %v4849
      %v4862 = vmul.f32 %v227, %v4849
      %v4863 = vmul.f32 %v228, %v4849
      %v4864 = vmul.f32 %v229, %v4849
      %v4865 = vmul.f32 %v230, %v4849
      %v4866 = vmul.f32 %v231, %v4849
      %v4867 = vmul.f32 %v232, %v4849
      %v4868 = vmul.f32 %v233, %v4849
      %v4869 = vmul.f32 %v234, %v4849
      %v4870 = vmul.f32 %v235, %v4849
      %v4871 = vmul.f32 %v236, %v4849
      %v4872 = vmul.f32 %v237, %v4849
      %v4873 = vmul.f32 %v238, %v4849
      %v4874 = vmul.f32 %v239, %v4849
      %v4875 = vmul.f32 %v240, %v4849
      %v4876 = vmul.f32 %v241, %v4849
      %v4877 = vmul.f32 %v242, %v4849
      %v4878 = vmul.f32 %v243, %v4849
      %v4879 = vmul.f32 %v244, %v4849
      %v4880 = vmul.f32 %v245, %v4849
      %v4881 = vmul.f32 %v246, %v4849
      %v4882 = vmul.f32 %v247, %v4849
      %v4883 = vmul.f32 %v248, %v4849
      %v4884 = vmul.f32 %v249, %v4849
      %v4885 = vmul.f32 %v250, %v4849
      %v4886 = vmul.f32 %v251, %v4849
      %v4887 = vmul.f32 %v252, %v4849
      %v4888 = vmul.f32 %v253, %v4849
      %v4889 = vmul.f32 %v254, %v4849
      %v4890 = vmul.f32 %v255, %v4849
      %v4891 = vmul.f32 %v256, %v4849
      %v4892 = vmul.f32 %v257, %v4849
      %v4893 = vmul.f32 %v258, %v4849
      %v4894 = vmul.f32 %v259, %v4849
      %v4895 = vmul.f32 %v260, %v4849
      %v4896 = vmul.f32 %v261, %v4849
      %v4897 = vmul.f32 %v262, %v4849
      %v4898 = vmul.f32 %v263, %v4849
      %v4947 = vrot.slane %v4851, 2
      %v4948 = vrot.slane %v4852, 2
      %v4949 = vsel %vm688, %v4947, %v4948
      %v4950 = vrot.slane %v4853, 2
      %v4951 = vsel %vm688, %v4948, %v4950
      %v4952 = vrot.slane %v4854, 2
      %v4953 = vrot.slane %v4855, 2
      %v4954 = vsel %vm688, %v4952, %v4953
      %v4955 = vrot.slane %v4856, 2
      %v4956 = vsel %vm688, %v4953, %v4955
      %v4957 = vrot.slane %v4857, 2
      %v4958 = vrot.slane %v4858, 2
      %v4959 = vsel %vm688, %v4957, %v4958
      %v4960 = vrot.slane %v4859, 2
      %v4961 = vsel %vm688, %v4958, %v4960
      %v4962 = vrot.slane %v4860, 2
      %v4963 = vrot.slane %v4861, 2
      %v4964 = vsel %vm688, %v4962, %v4963
      %v4965 = vrot.slane %v4862, 2
      %v4966 = vsel %vm688, %v4963, %v4965
      %v4967 = vrot.slane %v4863, 2
      %v4968 = vrot.slane %v4864, 2
      %v4969 = vsel %vm688, %v4967, %v4968
      %v4970 = vrot.slane %v4865, 2
      %v4971 = vsel %vm688, %v4968, %v4970
      %v4972 = vrot.slane %v4866, 2
      %v4973 = vrot.slane %v4867, 2
      %v4974 = vsel %vm688, %v4972, %v4973
      %v4975 = vrot.slane %v4868, 2
      %v4976 = vsel %vm688, %v4973, %v4975
      %v4977 = vrot.slane %v4869, 2
      %v4978 = vrot.slane %v4870, 2
      %v4979 = vsel %vm688, %v4977, %v4978
      %v4980 = vrot.slane %v4871, 2
      %v4981 = vsel %vm688, %v4978, %v4980
      %v4982 = vrot.slane %v4872, 2
      %v4983 = vrot.slane %v4873, 2
      %v4984 = vsel %vm688, %v4982, %v4983
      %v4985 = vrot.slane %v4874, 2
      %v4986 = vsel %vm688, %v4983, %v4985
      %v4987 = vrot.slane %v4875, 2
      %v4988 = vrot.slane %v4876, 2
      %v4989 = vsel %vm688, %v4987, %v4988
      %v4990 = vrot.slane %v4877, 2
      %v4991 = vsel %vm688, %v4988, %v4990
      %v4992 = vrot.slane %v4878, 2
      %v4993 = vrot.slane %v4879, 2
      %v4994 = vsel %vm688, %v4992, %v4993
      %v4995 = vrot.slane %v4880, 2
      %v4996 = vsel %vm688, %v4993, %v4995
      %v4997 = vrot.slane %v4881, 2
      %v4998 = vrot.slane %v4882, 2
      %v4999 = vsel %vm688, %v4997, %v4998
      %v5000 = vrot.slane %v4883, 2
      %v5001 = vsel %vm688, %v4998, %v5000
      %v5002 = vrot.slane %v4884, 2
      %v5003 = vrot.slane %v4885, 2
      %v5004 = vsel %vm688, %v5002, %v5003
      %v5005 = vrot.slane %v4886, 2
      %v5006 = vsel %vm688, %v5003, %v5005
      %v5007 = vrot.slane %v4887, 2
      %v5008 = vrot.slane %v4888, 2
      %v5009 = vsel %vm688, %v5007, %v5008
      %v5010 = vrot.slane %v4889, 2
      %v5011 = vsel %vm688, %v5008, %v5010
      %v5012 = vrot.slane %v4890, 2
      %v5013 = vrot.slane %v4891, 2
      %v5014 = vsel %vm688, %v5012, %v5013
      %v5015 = vrot.slane %v4892, 2
      %v5016 = vsel %vm688, %v5013, %v5015
      %v5017 = vrot.slane %v4893, 2
      %v5018 = vrot.slane %v4894, 2
      %v5019 = vsel %vm688, %v5017, %v5018
      %v5020 = vrot.slane %v4895, 2
      %v5021 = vsel %vm688, %v5018, %v5020
      %v5022 = vrot.slane %v4896, 2
      %v5023 = vrot.slane %v4897, 2
      %v5024 = vsel %vm688, %v5022, %v5023
      %v5025 = vrot.slane %v4898, 2
      %v5026 = vsel %vm688, %v5023, %v5025
      %v5059 = vadd.f32 %v4811, %v4949
      %v5060 = vadd.f32 %v4812, %v4951
      %v5061 = vadd.f32 %v4813, %v4954
      %v5062 = vadd.f32 %v4814, %v4956
      %v5063 = vadd.f32 %v4815, %v4959
      %v5064 = vadd.f32 %v4816, %v4961
      %v5065 = vadd.f32 %v4817, %v4964
      %v5066 = vadd.f32 %v4818, %v4966
      %v5067 = vadd.f32 %v4819, %v4969
      %v5068 = vadd.f32 %v4820, %v4971
      %v5069 = vadd.f32 %v4821, %v4974
      %v5070 = vadd.f32 %v4822, %v4976
      %v5071 = vadd.f32 %v4823, %v4979
      %v5072 = vadd.f32 %v4824, %v4981
      %v5073 = vadd.f32 %v4825, %v4984
      %v5074 = vadd.f32 %v4826, %v4986
      %v5075 = vadd.f32 %v4827, %v4989
      %v5076 = vadd.f32 %v4828, %v4991
      %v5077 = vadd.f32 %v4829, %v4994
      %v5078 = vadd.f32 %v4830, %v4996
      %v5079 = vadd.f32 %v4831, %v4999
      %v5080 = vadd.f32 %v4832, %v5001
      %v5081 = vadd.f32 %v4833, %v5004
      %v5082 = vadd.f32 %v4834, %v5006
      %v5083 = vadd.f32 %v4835, %v5009
      %v5084 = vadd.f32 %v4836, %v5011
      %v5085 = vadd.f32 %v4837, %v5014
      %v5086 = vadd.f32 %v4838, %v5016
      %v5087 = vadd.f32 %v4839, %v5019
      %v5088 = vadd.f32 %v4840, %v5021
      %v5089 = vadd.f32 %v4841, %v5024
      %v5090 = vadd.f32 %v4842, %v5026
      %s5091 = scalar_lea.vmem %s1, 23
      %v5092 = vld [vmem:[%s5091] sm:$0x1]
      %v5094 = vlaneseq
      %v5095 = vshrl.u32 %v5094, 7
      %v5096 = vsub.s32 0, %v5095
      %v5097 = vrot.slane %v5092, %v5096
      %v5099 = vmul.f32 %v216, %v5097
      %v5100 = vmul.f32 %v217, %v5097
      %v5101 = vmul.f32 %v218, %v5097
      %v5102 = vmul.f32 %v219, %v5097
      %v5103 = vmul.f32 %v220, %v5097
      %v5104 = vmul.f32 %v221, %v5097
      %v5105 = vmul.f32 %v222, %v5097
      %v5106 = vmul.f32 %v223, %v5097
      %v5107 = vmul.f32 %v224, %v5097
      %v5108 = vmul.f32 %v225, %v5097
      %v5109 = vmul.f32 %v226, %v5097
      %v5110 = vmul.f32 %v227, %v5097
      %v5111 = vmul.f32 %v228, %v5097
      %v5112 = vmul.f32 %v229, %v5097
      %v5113 = vmul.f32 %v230, %v5097
      %v5114 = vmul.f32 %v231, %v5097
      %v5115 = vmul.f32 %v232, %v5097
      %v5116 = vmul.f32 %v233, %v5097
      %v5117 = vmul.f32 %v234, %v5097
      %v5118 = vmul.f32 %v235, %v5097
      %v5119 = vmul.f32 %v236, %v5097
      %v5120 = vmul.f32 %v237, %v5097
      %v5121 = vmul.f32 %v238, %v5097
      %v5122 = vmul.f32 %v239, %v5097
      %v5123 = vmul.f32 %v240, %v5097
      %v5124 = vmul.f32 %v241, %v5097
      %v5125 = vmul.f32 %v242, %v5097
      %v5126 = vmul.f32 %v243, %v5097
      %v5127 = vmul.f32 %v244, %v5097
      %v5128 = vmul.f32 %v245, %v5097
      %v5129 = vmul.f32 %v246, %v5097
      %v5130 = vmul.f32 %v247, %v5097
      %v5131 = vmul.f32 %v248, %v5097
      %v5132 = vmul.f32 %v249, %v5097
      %v5133 = vmul.f32 %v250, %v5097
      %v5134 = vmul.f32 %v251, %v5097
      %v5135 = vmul.f32 %v252, %v5097
      %v5136 = vmul.f32 %v253, %v5097
      %v5137 = vmul.f32 %v254, %v5097
      %v5138 = vmul.f32 %v255, %v5097
      %v5139 = vmul.f32 %v256, %v5097
      %v5140 = vmul.f32 %v257, %v5097
      %v5141 = vmul.f32 %v258, %v5097
      %v5142 = vmul.f32 %v259, %v5097
      %v5143 = vmul.f32 %v260, %v5097
      %v5144 = vmul.f32 %v261, %v5097
      %v5145 = vmul.f32 %v262, %v5097
      %v5146 = vmul.f32 %v263, %v5097
      %v5195 = vrot.slane %v5099, 3
      %v5196 = vrot.slane %v5100, 3
      %v5197 = vsel %vm937, %v5195, %v5196
      %v5198 = vrot.slane %v5101, 3
      %v5199 = vsel %vm937, %v5196, %v5198
      %v5200 = vrot.slane %v5102, 3
      %v5201 = vrot.slane %v5103, 3
      %v5202 = vsel %vm937, %v5200, %v5201
      %v5203 = vrot.slane %v5104, 3
      %v5204 = vsel %vm937, %v5201, %v5203
      %v5205 = vrot.slane %v5105, 3
      %v5206 = vrot.slane %v5106, 3
      %v5207 = vsel %vm937, %v5205, %v5206
      %v5208 = vrot.slane %v5107, 3
      %v5209 = vsel %vm937, %v5206, %v5208
      %v5210 = vrot.slane %v5108, 3
      %v5211 = vrot.slane %v5109, 3
      %v5212 = vsel %vm937, %v5210, %v5211
      %v5213 = vrot.slane %v5110, 3
      %v5214 = vsel %vm937, %v5211, %v5213
      %v5215 = vrot.slane %v5111, 3
      %v5216 = vrot.slane %v5112, 3
      %v5217 = vsel %vm937, %v5215, %v5216
      %v5218 = vrot.slane %v5113, 3
      %v5219 = vsel %vm937, %v5216, %v5218
      %v5220 = vrot.slane %v5114, 3
      %v5221 = vrot.slane %v5115, 3
      %v5222 = vsel %vm937, %v5220, %v5221
      %v5223 = vrot.slane %v5116, 3
      %v5224 = vsel %vm937, %v5221, %v5223
      %v5225 = vrot.slane %v5117, 3
      %v5226 = vrot.slane %v5118, 3
      %v5227 = vsel %vm937, %v5225, %v5226
      %v5228 = vrot.slane %v5119, 3
      %v5229 = vsel %vm937, %v5226, %v5228
      %v5230 = vrot.slane %v5120, 3
      %v5231 = vrot.slane %v5121, 3
      %v5232 = vsel %vm937, %v5230, %v5231
      %v5233 = vrot.slane %v5122, 3
      %v5234 = vsel %vm937, %v5231, %v5233
      %v5235 = vrot.slane %v5123, 3
      %v5236 = vrot.slane %v5124, 3
      %v5237 = vsel %vm937, %v5235, %v5236
      %v5238 = vrot.slane %v5125, 3
      %v5239 = vsel %vm937, %v5236, %v5238
      %v5240 = vrot.slane %v5126, 3
      %v5241 = vrot.slane %v5127, 3
      %v5242 = vsel %vm937, %v5240, %v5241
      %v5243 = vrot.slane %v5128, 3
      %v5244 = vsel %vm937, %v5241, %v5243
      %v5245 = vrot.slane %v5129, 3
      %v5246 = vrot.slane %v5130, 3
      %v5247 = vsel %vm937, %v5245, %v5246
      %v5248 = vrot.slane %v5131, 3
      %v5249 = vsel %vm937, %v5246, %v5248
      %v5250 = vrot.slane %v5132, 3
      %v5251 = vrot.slane %v5133, 3
      %v5252 = vsel %vm937, %v5250, %v5251
      %v5253 = vrot.slane %v5134, 3
      %v5254 = vsel %vm937, %v5251, %v5253
      %v5255 = vrot.slane %v5135, 3
      %v5256 = vrot.slane %v5136, 3
      %v5257 = vsel %vm937, %v5255, %v5256
      %v5258 = vrot.slane %v5137, 3
      %v5259 = vsel %vm937, %v5256, %v5258
      %v5260 = vrot.slane %v5138, 3
      %v5261 = vrot.slane %v5139, 3
      %v5262 = vsel %vm937, %v5260, %v5261
      %v5263 = vrot.slane %v5140, 3
      %v5264 = vsel %vm937, %v5261, %v5263
      %v5265 = vrot.slane %v5141, 3
      %v5266 = vrot.slane %v5142, 3
      %v5267 = vsel %vm937, %v5265, %v5266
      %v5268 = vrot.slane %v5143, 3
      %v5269 = vsel %vm937, %v5266, %v5268
      %v5270 = vrot.slane %v5144, 3
      %v5271 = vrot.slane %v5145, 3
      %v5272 = vsel %vm937, %v5270, %v5271
      %v5273 = vrot.slane %v5146, 3
      %v5274 = vsel %vm937, %v5271, %v5273
      %v5307 = vadd.f32 %v5059, %v5197
      %v5308 = vadd.f32 %v5060, %v5199
      %v5309 = vadd.f32 %v5061, %v5202
      %v5310 = vadd.f32 %v5062, %v5204
      %v5311 = vadd.f32 %v5063, %v5207
      %v5312 = vadd.f32 %v5064, %v5209
      %v5313 = vadd.f32 %v5065, %v5212
      %v5314 = vadd.f32 %v5066, %v5214
      %v5315 = vadd.f32 %v5067, %v5217
      %v5316 = vadd.f32 %v5068, %v5219
      %v5317 = vadd.f32 %v5069, %v5222
      %v5318 = vadd.f32 %v5070, %v5224
      %v5319 = vadd.f32 %v5071, %v5227
      %v5320 = vadd.f32 %v5072, %v5229
      %v5321 = vadd.f32 %v5073, %v5232
      %v5322 = vadd.f32 %v5074, %v5234
      %v5323 = vadd.f32 %v5075, %v5237
      %v5324 = vadd.f32 %v5076, %v5239
      %v5325 = vadd.f32 %v5077, %v5242
      %v5326 = vadd.f32 %v5078, %v5244
      %v5327 = vadd.f32 %v5079, %v5247
      %v5328 = vadd.f32 %v5080, %v5249
      %v5329 = vadd.f32 %v5081, %v5252
      %v5330 = vadd.f32 %v5082, %v5254
      %v5331 = vadd.f32 %v5083, %v5257
      %v5332 = vadd.f32 %v5084, %v5259
      %v5333 = vadd.f32 %v5085, %v5262
      %v5334 = vadd.f32 %v5086, %v5264
      %v5335 = vadd.f32 %v5087, %v5267
      %v5336 = vadd.f32 %v5088, %v5269
      %v5337 = vadd.f32 %v5089, %v5272
      %v5338 = vadd.f32 %v5090, %v5274
      %s5339 = scalar_lea.vmem %s1, 24
      %v5340 = vld [vmem:[%s5339] sm:$0x1]
      %v5342 = vlaneseq
      %v5343 = vshrl.u32 %v5342, 7
      %v5344 = vsub.s32 0, %v5343
      %v5345 = vrot.slane %v5340, %v5344
      %v5347 = vmul.f32 %v216, %v5345
      %v5348 = vmul.f32 %v217, %v5345
      %v5349 = vmul.f32 %v218, %v5345
      %v5350 = vmul.f32 %v219, %v5345
      %v5351 = vmul.f32 %v220, %v5345
      %v5352 = vmul.f32 %v221, %v5345
      %v5353 = vmul.f32 %v222, %v5345
      %v5354 = vmul.f32 %v223, %v5345
      %v5355 = vmul.f32 %v224, %v5345
      %v5356 = vmul.f32 %v225, %v5345
      %v5357 = vmul.f32 %v226, %v5345
      %v5358 = vmul.f32 %v227, %v5345
      %v5359 = vmul.f32 %v228, %v5345
      %v5360 = vmul.f32 %v229, %v5345
      %v5361 = vmul.f32 %v230, %v5345
      %v5362 = vmul.f32 %v231, %v5345
      %v5363 = vmul.f32 %v232, %v5345
      %v5364 = vmul.f32 %v233, %v5345
      %v5365 = vmul.f32 %v234, %v5345
      %v5366 = vmul.f32 %v235, %v5345
      %v5367 = vmul.f32 %v236, %v5345
      %v5368 = vmul.f32 %v237, %v5345
      %v5369 = vmul.f32 %v238, %v5345
      %v5370 = vmul.f32 %v239, %v5345
      %v5371 = vmul.f32 %v240, %v5345
      %v5372 = vmul.f32 %v241, %v5345
      %v5373 = vmul.f32 %v242, %v5345
      %v5374 = vmul.f32 %v243, %v5345
      %v5375 = vmul.f32 %v244, %v5345
      %v5376 = vmul.f32 %v245, %v5345
      %v5377 = vmul.f32 %v246, %v5345
      %v5378 = vmul.f32 %v247, %v5345
      %v5379 = vmul.f32 %v248, %v5345
      %v5380 = vmul.f32 %v249, %v5345
      %v5381 = vmul.f32 %v250, %v5345
      %v5382 = vmul.f32 %v251, %v5345
      %v5383 = vmul.f32 %v252, %v5345
      %v5384 = vmul.f32 %v253, %v5345
      %v5385 = vmul.f32 %v254, %v5345
      %v5386 = vmul.f32 %v255, %v5345
      %v5387 = vmul.f32 %v256, %v5345
      %v5388 = vmul.f32 %v257, %v5345
      %v5389 = vmul.f32 %v258, %v5345
      %v5390 = vmul.f32 %v259, %v5345
      %v5391 = vmul.f32 %v260, %v5345
      %v5392 = vmul.f32 %v261, %v5345
      %v5393 = vmul.f32 %v262, %v5345
      %v5394 = vmul.f32 %v263, %v5345
      %v5443 = vrot.slane %v5347, 4
      %v5444 = vrot.slane %v5348, 4
      %v5445 = vsel %vm1186, %v5443, %v5444
      %v5446 = vrot.slane %v5349, 4
      %v5447 = vsel %vm1186, %v5444, %v5446
      %v5448 = vrot.slane %v5350, 4
      %v5449 = vrot.slane %v5351, 4
      %v5450 = vsel %vm1186, %v5448, %v5449
      %v5451 = vrot.slane %v5352, 4
      %v5452 = vsel %vm1186, %v5449, %v5451
      %v5453 = vrot.slane %v5353, 4
      %v5454 = vrot.slane %v5354, 4
      %v5455 = vsel %vm1186, %v5453, %v5454
      %v5456 = vrot.slane %v5355, 4
      %v5457 = vsel %vm1186, %v5454, %v5456
      %v5458 = vrot.slane %v5356, 4
      %v5459 = vrot.slane %v5357, 4
      %v5460 = vsel %vm1186, %v5458, %v5459
      %v5461 = vrot.slane %v5358, 4
      %v5462 = vsel %vm1186, %v5459, %v5461
      %v5463 = vrot.slane %v5359, 4
      %v5464 = vrot.slane %v5360, 4
      %v5465 = vsel %vm1186, %v5463, %v5464
      %v5466 = vrot.slane %v5361, 4
      %v5467 = vsel %vm1186, %v5464, %v5466
      %v5468 = vrot.slane %v5362, 4
      %v5469 = vrot.slane %v5363, 4
      %v5470 = vsel %vm1186, %v5468, %v5469
      %v5471 = vrot.slane %v5364, 4
      %v5472 = vsel %vm1186, %v5469, %v5471
      %v5473 = vrot.slane %v5365, 4
      %v5474 = vrot.slane %v5366, 4
      %v5475 = vsel %vm1186, %v5473, %v5474
      %v5476 = vrot.slane %v5367, 4
      %v5477 = vsel %vm1186, %v5474, %v5476
      %v5478 = vrot.slane %v5368, 4
      %v5479 = vrot.slane %v5369, 4
      %v5480 = vsel %vm1186, %v5478, %v5479
      %v5481 = vrot.slane %v5370, 4
      %v5482 = vsel %vm1186, %v5479, %v5481
      %v5483 = vrot.slane %v5371, 4
      %v5484 = vrot.slane %v5372, 4
      %v5485 = vsel %vm1186, %v5483, %v5484
      %v5486 = vrot.slane %v5373, 4
      %v5487 = vsel %vm1186, %v5484, %v5486
      %v5488 = vrot.slane %v5374, 4
      %v5489 = vrot.slane %v5375, 4
      %v5490 = vsel %vm1186, %v5488, %v5489
      %v5491 = vrot.slane %v5376, 4
      %v5492 = vsel %vm1186, %v5489, %v5491
      %v5493 = vrot.slane %v5377, 4
      %v5494 = vrot.slane %v5378, 4
      %v5495 = vsel %vm1186, %v5493, %v5494
      %v5496 = vrot.slane %v5379, 4
      %v5497 = vsel %vm1186, %v5494, %v5496
      %v5498 = vrot.slane %v5380, 4
      %v5499 = vrot.slane %v5381, 4
      %v5500 = vsel %vm1186, %v5498, %v5499
      %v5501 = vrot.slane %v5382, 4
      %v5502 = vsel %vm1186, %v5499, %v5501
      %v5503 = vrot.slane %v5383, 4
      %v5504 = vrot.slane %v5384, 4
      %v5505 = vsel %vm1186, %v5503, %v5504
      %v5506 = vrot.slane %v5385, 4
      %v5507 = vsel %vm1186, %v5504, %v5506
      %v5508 = vrot.slane %v5386, 4
      %v5509 = vrot.slane %v5387, 4
      %v5510 = vsel %vm1186, %v5508, %v5509
      %v5511 = vrot.slane %v5388, 4
      %v5512 = vsel %vm1186, %v5509, %v5511
      %v5513 = vrot.slane %v5389, 4
      %v5514 = vrot.slane %v5390, 4
      %v5515 = vsel %vm1186, %v5513, %v5514
      %v5516 = vrot.slane %v5391, 4
      %v5517 = vsel %vm1186, %v5514, %v5516
      %v5518 = vrot.slane %v5392, 4
      %v5519 = vrot.slane %v5393, 4
      %v5520 = vsel %vm1186, %v5518, %v5519
      %v5521 = vrot.slane %v5394, 4
      %v5522 = vsel %vm1186, %v5519, %v5521
      %v5555 = vadd.f32 %v5307, %v5445
      %v5556 = vadd.f32 %v5308, %v5447
      %v5557 = vadd.f32 %v5309, %v5450
      %v5558 = vadd.f32 %v5310, %v5452
      %v5559 = vadd.f32 %v5311, %v5455
      %v5560 = vadd.f32 %v5312, %v5457
      %v5561 = vadd.f32 %v5313, %v5460
      %v5562 = vadd.f32 %v5314, %v5462
      %v5563 = vadd.f32 %v5315, %v5465
      %v5564 = vadd.f32 %v5316, %v5467
      %v5565 = vadd.f32 %v5317, %v5470
      %v5566 = vadd.f32 %v5318, %v5472
      %v5567 = vadd.f32 %v5319, %v5475
      %v5568 = vadd.f32 %v5320, %v5477
      %v5569 = vadd.f32 %v5321, %v5480
      %v5570 = vadd.f32 %v5322, %v5482
      %v5571 = vadd.f32 %v5323, %v5485
      %v5572 = vadd.f32 %v5324, %v5487
      %v5573 = vadd.f32 %v5325, %v5490
      %v5574 = vadd.f32 %v5326, %v5492
      %v5575 = vadd.f32 %v5327, %v5495
      %v5576 = vadd.f32 %v5328, %v5497
      %v5577 = vadd.f32 %v5329, %v5500
      %v5578 = vadd.f32 %v5330, %v5502
      %v5579 = vadd.f32 %v5331, %v5505
      %v5580 = vadd.f32 %v5332, %v5507
      %v5581 = vadd.f32 %v5333, %v5510
      %v5582 = vadd.f32 %v5334, %v5512
      %v5583 = vadd.f32 %v5335, %v5515
      %v5584 = vadd.f32 %v5336, %v5517
      %v5585 = vadd.f32 %v5337, %v5520
      %v5586 = vadd.f32 %v5338, %v5522
      %5587 = vst [vmem:[%s143] sm:$0xff] %v5555
      %5588 = vst [vmem:[%s143 + $0x8] sm:$0xff] %v5556
      %5589 = vst [vmem:[%s143 + $0x10] sm:$0xff] %v5557
      %5590 = vst [vmem:[%s143 + $0x18] sm:$0xff] %v5558
      %5591 = vst [vmem:[%s143 + $0x20] sm:$0xff] %v5559
      %5592 = vst [vmem:[%s143 + $0x28] sm:$0xff] %v5560
      %5593 = vst [vmem:[%s143 + $0x30] sm:$0xff] %v5561
      %5594 = vst [vmem:[%s143 + $0x38] sm:$0xff] %v5562
      %5595 = vst [vmem:[%s143 + $0x40] sm:$0xff] %v5563
      %5596 = vst [vmem:[%s143 + $0x48] sm:$0xff] %v5564
      %5597 = vst [vmem:[%s143 + $0x50] sm:$0xff] %v5565
      %5598 = vst [vmem:[%s143 + $0x58] sm:$0xff] %v5566
      %5599 = vst [vmem:[%s143 + $0x60] sm:$0xff] %v5567
      %5600 = vst [vmem:[%s143 + $0x68] sm:$0xff] %v5568
      %5601 = vst [vmem:[%s143 + $0x70] sm:$0xff] %v5569
      %5602 = vst [vmem:[%s143 + $0x78] sm:$0xff] %v5570
      %5603 = vst [vmem:[%s143 + $0x80] sm:$0xff] %v5571
      %5604 = vst [vmem:[%s143 + $0x88] sm:$0xff] %v5572
      %5605 = vst [vmem:[%s143 + $0x90] sm:$0xff] %v5573
      %5606 = vst [vmem:[%s143 + $0x98] sm:$0xff] %v5574
      %5607 = vst [vmem:[%s143 + $0xa0] sm:$0xff] %v5575
      %5608 = vst [vmem:[%s143 + $0xa8] sm:$0xff] %v5576
      %5609 = vst [vmem:[%s143 + $0xb0] sm:$0xff] %v5577
      %5610 = vst [vmem:[%s143 + $0xb8] sm:$0xff] %v5578
      %5611 = vst [vmem:[%s143 + $0xc0] sm:$0xff] %v5579
      %5612 = vst [vmem:[%s143 + $0xc8] sm:$0xff] %v5580
      %5613 = vst [vmem:[%s143 + $0xd0] sm:$0xff] %v5581
      %5614 = vst [vmem:[%s143 + $0xd8] sm:$0xff] %v5582
      %5615 = vst [vmem:[%s143 + $0xe0] sm:$0xff] %v5583
      %5616 = vst [vmem:[%s143 + $0xe8] sm:$0xff] %v5584
      %5617 = vst [vmem:[%s143 + $0xf0] sm:$0xff] %v5585
      %5618 = vst [vmem:[%s143 + $0xf8] sm:$0xff] %v5586
      %p5619 = scmp.lt.s32.totalorder %s13, 1
      %s5620 = scalar_select %p5619, %s13, 1
      %s5621 = smul.addr %s5620, 32
      %s5622 = smul.addr %s5621, 8
      %s5623 = scalar_lea.vmem %s2, %s5622
      // Predicated region
      $region29: #{_lambda_.28} parent=27 // pred_check
        %p5624 = pneg %p78
      $region30: #{_lambda_.28} parent=27 // pred_check_branch
        %5626 = sbr.rel (%p5624) target = $region32
      $region31: #{_lambda_.28} parent=27 // pred_region
        _
      $region32: #{_lambda_.28} parent=27 // pred_fallthru
        _
    $region28: #{_lambda_.28} parent=5 // pred_fallthru
      _
    %p5627 = scmp.le.s32.totalorder 2, %s8
    // Predicated region
    $region33: #{_lambda_.28} parent=5 // pred_check
      %p5628 = pneg %p5627
    $region34: #{_lambda_.28} parent=5 // pred_check_branch
      %5630 = sbr.rel (%p5628) target = $region36
    $region35: #{_lambda_.28} parent=5 // pred_region
      %s5631 = ssub.s32 %s8, 2
      // Predicated region
      $region37: #{_lambda_.28} parent=35 // pred_check
        %p5632 = pneg %p84
      $region38: #{_lambda_.28} parent=35 // pred_check_branch
        %5634 = sbr.rel (%p5632) target = $region40
      $region39: #{_lambda_.28} parent=35 // pred_region
        %p5635 = scmp.lt.s32.totalorder %s14, 1
        %s5636 = scalar_select %p5635, %s14, 1
        %s5637 = smul.addr %s5636, 32
        %s5638 = smul.addr %s5637, 8
        %s5639 = scalar_lea.vmem %s2, %s5638
      $region40: #{_lambda_.28} parent=35 // pred_fallthru
        _
    $region36: #{_lambda_.28} parent=5 // pred_fallthru
      _
  $region6: #{_lambda_.28} parent=0 // loop_footer
    %s12 = sadd.s32 1, %s8
  $region7: #{_lambda_.28} parent=0 // loop_footer_branch
    %7 = sbr.rel target = $region3
  $region8: #{_lambda_.28} parent=0 // loop_exit
    _

</llo_original>
